<compile_context>
chip_gen: v5e
topology: v5e:2x2
jax: 0.10.0
libtpu: 0.0.40
codegen_flags: <defaults>
</compile_context>

<pallas_src>
import functools

import jax
import jax.numpy as jnp
from jax import lax
from jax.experimental import pallas as pl
from jax.experimental.pallas import tpu as pltpu


# ----------------------------------------------------------------------------
# In-kernel helpers (operate on values / refs inside a Pallas kernel)
# ----------------------------------------------------------------------------
def _group_norm_2d(xf, A, gamma, beta, eps):
    """GroupNorm on a flattened (HW, C) tile.  A is the (C, C) group-averaging matrix."""
    s1 = jnp.sum(xf, axis=0, keepdims=True)                            # (1, C)
    mean = jnp.dot(s1, A, preferred_element_type=jnp.float32)          # per-group mean
    xc = xf - mean
    var = jnp.dot(jnp.sum(xc * xc, axis=0, keepdims=True), A,
                  preferred_element_type=jnp.float32)                  # per-group var (two-pass)
    return xc * lax.rsqrt(var + eps) * gamma + beta


def _layer_norm(x, gamma, beta, eps):
    mean = jnp.mean(x, axis=-1, keepdims=True)
    xc = x - mean
    var = jnp.mean(xc * xc, axis=-1, keepdims=True)
    return xc * lax.rsqrt(var + eps) * gamma + beta


def _conv3x3_acc(pad_ref, w_ref, H, W):
    """3x3 conv (stride 1) as 9 shifted matmuls from a zero-padded VMEM scratch.

    pad_ref: (H+2, W+2, Cin) VMEM scratch holding the zero-padded input.
    w_ref:   (3, 3, Cin, Cout) weight ref (HWIO).
    Returns (H*W, Cout) f32 accumulator (no bias).
    """
    Cin = pad_ref.shape[-1]
    Cout = w_ref.shape[-1]
    acc = jnp.zeros((H * W, Cout), jnp.float32)
    for ky in range(3):
        for kx in range(3):
            patch = pad_ref[ky:ky + H, kx:kx + W, :]                   # (H, W, Cin)
            acc = acc + jnp.dot(patch.reshape(H * W, Cin), w_ref[ky, kx],
                                preferred_element_type=jnp.float32)
    return acc


def _fill_pad(pad_ref, h2d, H, W):
    """Zero the padded scratch and write the (HW, C) image into its interior."""
    pad_ref[...] = jnp.zeros(pad_ref.shape, pad_ref.dtype)
    pad_ref[1:H + 1, 1:W + 1, :] = h2d.reshape(H, W, h2d.shape[-1])


# ----------------------------------------------------------------------------
# Pallas kernels
# ----------------------------------------------------------------------------
def resnet_kernel(x_ref, temb_ref,
                  n1g_ref, n1b_ref, A1_ref,
                  w1_ref, b1_ref, tw_ref, tb_ref,
                  n2g_ref, n2b_ref, A2_ref,
                  w2_ref, b2_ref, sw_ref, sb_ref,
                  o_ref, pad1_ref, pad2_ref, *, H, W, eps, inv_osf):
    """Fused PareResnetBlock2D: one batch element per grid step, all stages in VMEM."""
    Cin = x_ref.shape[-1]
    Cout = o_ref.shape[-1]

    x = x_ref[0]                                                       # (HW, Cin)

    # GroupNorm1 + SiLU
    h = _group_norm_2d(x, A1_ref[...], n1g_ref[...], n1b_ref[...], eps)
    h = h * jax.nn.sigmoid(h)

    # conv1: 3x3 pad 1 (in-kernel, no HBM im2col)
    _fill_pad(pad1_ref, h, H, W)
    h = _conv3x3_acc(pad1_ref, w1_ref, H, W) + b1_ref[...]             # (HW, Cout)

    # + time-embedding projection (SiLU + Linear), broadcast over spatial
    t = temb_ref[0]                                                    # (1, T)
    t = t * jax.nn.sigmoid(t)
    h = h + jnp.dot(t, tw_ref[...], preferred_element_type=jnp.float32) + tb_ref[...]

    # GroupNorm2 + SiLU  (dropout p=0.0 is identity at inference)
    h = _group_norm_2d(h, A2_ref[...], n2g_ref[...], n2b_ref[...], eps)
    h = h * jax.nn.sigmoid(h)

    # conv2: 3x3 pad 1
    _fill_pad(pad2_ref, h, H, W)
    h = _conv3x3_acc(pad2_ref, w2_ref, H, W) + b2_ref[...]

    # 1x1 conv shortcut on the raw input, fused with residual add and output scale
    sc = jnp.dot(x, sw_ref[...], preferred_element_type=jnp.float32) + sb_ref[...]
    out = sc + h
    if inv_osf != 1.0:                                                 # specialize at trace time
        out = out * inv_osf
    o_ref[0] = out


def transformer_kernel(x_ref, enc_ref,
                       gng_ref, gnb_ref, gnA_ref,
                       pinw_ref, pinb_ref,
                       ln1_ref, q1_ref, k1_ref, v1_ref, o1w_ref, o1b_ref,
                       ln2_ref, q2_ref, k2_ref, v2_ref, o2w_ref, o2b_ref,
                       ln3_ref, ff1w_ref, ff1b_ref, ff2w_ref, ff2b_ref,
                       poutw_ref, poutb_ref,
                       o_ref, *, heads, gn_eps, ln_eps):
    """Fused PareTransformer2DModel (1 BasicTransformerBlock): one batch element per grid step."""
    C = o_ref.shape[-1]
    dh = C // heads
    scale = 1.0 / (float(dh) ** 0.5)

    x = x_ref[0]                                                       # (HW, C)  residual
    enc = enc_ref[0]                                                   # (S, De)

    # GroupNorm + proj_in (1x1 conv == matmul on the flattened spatial)
    h = _group_norm_2d(x, gnA_ref[...], gng_ref[...], gnb_ref[...], gn_eps)
    h = jnp.dot(h, pinw_ref[...], preferred_element_type=jnp.float32) + pinb_ref[...]

    def _attn(q_in, kv_in, qw, kw, vw, ow, ob):
        q = jnp.dot(q_in, qw, preferred_element_type=jnp.float32)
        k = jnp.dot(kv_in, kw, preferred_element_type=jnp.float32)
        v = jnp.dot(kv_in, vw, preferred_element_type=jnp.float32)
        out = jnp.zeros((q_in.shape[0], C), jnp.float32)
        for hd in range(heads):                                        # static unroll over heads
            lo, hi = hd * dh, (hd + 1) * dh
            qh, kh, vh = q[:, lo:hi], k[:, lo:hi], v[:, lo:hi]
            s = lax.dot_general(qh, kh, (((1,), (1,)), ((), ())),
                                preferred_element_type=jnp.float32) * scale
            s = s - jnp.max(s, axis=-1, keepdims=True)
            e = jnp.exp(s)
            p = e / jnp.sum(e, axis=-1, keepdims=True)
            oh = jnp.dot(p, vh, preferred_element_type=jnp.float32)    # (M, dh)
            out = out + jnp.dot(oh, ow[lo:hi, :], preferred_element_type=jnp.float32)
        return out + ob

    # --- BasicTransformerBlock ---
    ln1 = ln1_ref[...]
    hn = _layer_norm(h, ln1[0:1, :], ln1[1:2, :], ln_eps)
    h = h + _attn(hn, hn, q1_ref[...], k1_ref[...], v1_ref[...], o1w_ref[...], o1b_ref[...])

    ln2 = ln2_ref[...]
    hn = _layer_norm(h, ln2[0:1, :], ln2[1:2, :], ln_eps)
    h = h + _attn(hn, enc, q2_ref[...], k2_ref[...], v2_ref[...], o2w_ref[...], o2b_ref[...])

    # Feed-forward (GEGLU).
    # TODO(synk): PyTorch GEGLU uses exact erf GELU; tanh approximation used here (and in ref).
    ln3 = ln3_ref[...]
    hn = _layer_norm(h, ln3[0:1, :], ln3[1:2, :], ln_eps)
    proj = jnp.dot(hn, ff1w_ref[...], preferred_element_type=jnp.float32) + ff1b_ref[...]
    dff = ff2w_ref.shape[0]
    ff = proj[:, :dff] * jax.nn.gelu(proj[:, dff:], approximate=True)
    h = h + jnp.dot(ff, ff2w_ref[...], preferred_element_type=jnp.float32) + ff2b_ref[...]

    # proj_out + residual
    h = jnp.dot(h, poutw_ref[...], preferred_element_type=jnp.float32) + poutb_ref[...]
    o_ref[0] = h + x


def conv3x3_kernel(x_ref, w_ref, b_ref, o_ref, pad_ref, *, H, W):
    """Standalone 3x3 conv (stride 1, pad 1) — used for the upsampler conv."""
    _fill_pad(pad_ref, x_ref[0], H, W)
    o_ref[0] = _conv3x3_acc(pad_ref, w_ref, H, W) + b_ref[...]


# ----------------------------------------------------------------------------
# Spec helpers & Pallas wrappers
# ----------------------------------------------------------------------------
def _rep_spec(arr):
    """Full-array block, replicated across the batch grid."""
    nd = arr.ndim
    return pl.BlockSpec(tuple(arr.shape), lambda b, nd=nd: (0,) * nd)


def _batch_spec(arr):
    """(1, ...) block over the leading (batch) axis; trailing dims are the full array dims."""
    nd = arr.ndim
    return pl.BlockSpec((1,) + tuple(arr.shape[1:]),
                        lambda b, nd=nd: (b,) + (0,) * (nd - 1))


def group_avg_matrix(C, groups, HW):
    Cg = C // groups
    g = jnp.arange(C) // Cg
    M = (g[:, None] == g[None, :]).astype(jnp.float32)
    return M / float(HW * Cg)


def resnet_forward(x_flat, temb3, p, *, H, W, groups, eps, osf):
    B, HW, Cin = x_flat.shape
    Cout = p["conv1_w"].shape[-1]
    A1 = group_avg_matrix(Cin, groups, HW)
    A2 = group_avg_matrix(Cout, groups, HW)

    batch_args = [x_flat, temb3]
    rep_args = [p["n1_g"], p["n1_b"], A1, p["conv1_w"], p["conv1_b"],
                p["time_w"], p["time_b"], p["n2_g"], p["n2_b"], A2,
                p["conv2_w"], p["conv2_b"], p["short_w"], p["short_b"]]

    kernel = functools.partial(resnet_kernel, H=H, W=W, eps=float(eps),
                               inv_osf=float(1.0 / osf))
    return pl.pallas_call(
        kernel,
        out_shape=jax.ShapeDtypeStruct((B, HW, Cout), jnp.float32),
        grid=(B,),
        in_specs=[_batch_spec(a) for a in batch_args] + [_rep_spec(a) for a in rep_args],
        out_specs=pl.BlockSpec((1, HW, Cout), lambda b: (b, 0, 0)),
        scratch_shapes=[pltpu.VMEM((H + 2, W + 2, Cin), jnp.float32),
                        pltpu.VMEM((H + 2, W + 2, Cout), jnp.float32)],
        compiler_params=pltpu.CompilerParams(dimension_semantics=("parallel",)),
    )(*batch_args, *rep_args)


def transformer_forward(x_flat, enc, p, *, groups, heads, gn_eps=1e-6, ln_eps=1e-5):
    B, HW, C = x_flat.shape
    A = group_avg_matrix(C, groups, HW)

    batch_args = [x_flat, enc]
    rep_args = [p["gn_g"], p["gn_b"], A,
                p["pin_w"], p["pin_b"],
                p["ln1"], p["q1"], p["k1"], p["v1"], p["o1_w"], p["o1_b"],
                p["ln2"], p["q2"], p["k2"], p["v2"], p["o2_w"], p["o2_b"],
                p["ln3"], p["ff1_w"], p["ff1_b"], p["ff2_w"], p["ff2_b"],
                p["pout_w"], p["pout_b"]]

    kernel = functools.partial(transformer_kernel, heads=heads,
                               gn_eps=float(gn_eps), ln_eps=float(ln_eps))
    return pl.pallas_call(
        kernel,
        out_shape=jax.ShapeDtypeStruct((B, HW, C), jnp.float32),
        grid=(B,),
        in_specs=[_batch_spec(a) for a in batch_args] + [_rep_spec(a) for a in rep_args],
        out_specs=pl.BlockSpec((1, HW, C), lambda b: (b, 0, 0)),
        compiler_params=pltpu.CompilerParams(dimension_semantics=("parallel",)),
    )(*batch_args, *rep_args)


def conv3x3_forward(x_nhwc, w, b):
    B, H, W, Cin = x_nhwc.shape
    Cout = w.shape[-1]
    x_flat = x_nhwc.reshape(B, H * W, Cin)
    out = pl.pallas_call(
        functools.partial(conv3x3_kernel, H=H, W=W),
        out_shape=jax.ShapeDtypeStruct((B, H * W, Cout), jnp.float32),
        grid=(B,),
        in_specs=[_batch_spec(x_flat), _rep_spec(w), _rep_spec(b)],
        out_specs=pl.BlockSpec((1, H * W, Cout), lambda b: (b, 0, 0)),
        scratch_shapes=[pltpu.VMEM((H + 2, W + 2, Cin), jnp.float32)],
        compiler_params=pltpu.CompilerParams(dimension_semantics=("parallel",)),
    )(x_flat, w, b)
    return out.reshape(B, H, W, Cout)


# ----------------------------------------------------------------------------
# Block forward (plain-JAX glue around the fused kernels)
# ----------------------------------------------------------------------------
def pare_cross_attn_up_block_fwd(hidden, res_hidden_states_tuple, temb, enc, params,
                                 *, groups, eps, osf, heads):
    B, H, W, _ = hidden.shape
    temb3 = temb[:, None, :]                                           # (B, 1, T)
    for lp in params["layers"]:
        skip = res_hidden_states_tuple[-1]
        res_hidden_states_tuple = res_hidden_states_tuple[:-1]
        x = jnp.concatenate([hidden, skip], axis=-1)                   # torch.cat(dim=1) in NHWC
        xf = x.reshape(B, H * W, x.shape[-1])
        hf = resnet_forward(xf, temb3, lp["resnet"], H=H, W=W,
                            groups=groups, eps=eps, osf=osf)
        hf = transformer_forward(hf, enc, lp["attn"], groups=groups, heads=heads)
        hidden = hf.reshape(B, H, W, -1)
    # PareUpsample2D: nearest-2x upsample (glue) + 3x3 conv (Pallas).
    # TODO(synk): nearest upsample done with jnp.repeat in plain JAX; no Pallas gain at this size.
    up = jnp.repeat(jnp.repeat(hidden, 2, axis=1), 2, axis=2)
    return conv3x3_forward(up, params["up_w"], params["up_b"])


# ----------------------------------------------------------------------------
# Pure-JAX reference (for correctness check)
# ----------------------------------------------------------------------------
def _silu(x):
    return x * jax.nn.sigmoid(x)


def ref_group_norm(x, gamma, beta, groups, eps):
    B, M, C = x.shape
    xg = x.reshape(B, M, groups, C // groups)
    mean = xg.mean(axis=(1, 3), keepdims=True)
    var = xg.var(axis=(1, 3), keepdims=True)
    xn = ((xg - mean) / jnp.sqrt(var + eps)).reshape(B, M, C)
    return xn * gamma + beta


def ref_layer_norm(x, gamma, beta, eps=1e-5):
    mean = x.mean(axis=-1, keepdims=True)
    var = ((x - mean) ** 2).mean(axis=-1, keepdims=True)
    return (x - mean) / jnp.sqrt(var + eps) * gamma + beta


def ref_conv3x3(x, w, b):
    y = lax.conv_general_dilated(x, w, (1, 1), ((1, 1), (1, 1)),
                                 dimension_numbers=("NHWC", "HWIO", "NHWC"),
                                 precision=lax.Precision.HIGHEST)
    return y + b.reshape(1, 1, 1, -1)


def ref_resnet(x, temb, p, groups, eps, osf):
    B, H, W, Cin = x.shape
    Cout = p["conv1_w"].shape[-1]
    hp = lax.Precision.HIGHEST
    h = _silu(ref_group_norm(x.reshape(B, H * W, Cin), p["n1_g"], p["n1_b"], groups, eps))
    h = ref_conv3x3(h.reshape(B, H, W, Cin), p["conv1_w"], p["conv1_b"])
    t = jnp.dot(_silu(temb), p["time_w"], precision=hp) + p["time_b"]
    h = h + t[:, None, None, :]
    h = _silu(ref_group_norm(h.reshape(B, H * W, Cout), p["n2_g"], p["n2_b"], groups, eps))
    h = ref_conv3x3(h.reshape(B, H, W, Cout), p["conv2_w"], p["conv2_b"])
    sc = jnp.einsum("bhwc,cd->bhwd", x, p["short_w"], precision=hp) + p["short_b"].reshape(1, 1, 1, -1)
    return (sc + h) / osf


def ref_attention(x, kv, qw, kw, vw, ow, ob, heads):
    B, M, C = x.shape
    S = kv.shape[1]
    dh = C // heads
    hp = lax.Precision.HIGHEST
    q = jnp.dot(x, qw, precision=hp).reshape(B, M, heads, dh).transpose(0, 2, 1, 3)
    k = jnp.dot(kv, kw, precision=hp).reshape(B, S, heads, dh).transpose(0, 2, 1, 3)
    v = jnp.dot(kv, vw, precision=hp).reshape(B, S, heads, dh).transpose(0, 2, 1, 3)
    s = jnp.einsum("bhqd,bhkd->bhqk", q, k, precision=hp) / (float(dh) ** 0.5)
    p = jax.nn.softmax(s, axis=-1)
    o = jnp.einsum("bhqk,bhkd->bhqd", p, v, precision=hp).transpose(0, 2, 1, 3).reshape(B, M, C)
    return jnp.dot(o, ow, precision=hp) + ob


def ref_transformer(x_nhwc, enc, p, groups, heads, gn_eps=1e-6, ln_eps=1e-5):
    B, H, W, C = x_nhwc.shape
    hp = lax.Precision.HIGHEST
    residual = x_nhwc.reshape(B, H * W, C)
    h = ref_group_norm(residual, p["gn_g"], p["gn_b"], groups, gn_eps)
    h = jnp.dot(h, p["pin_w"], precision=hp) + p["pin_b"]
    hn = ref_layer_norm(h, p["ln1"][0:1], p["ln1"][1:2], ln_eps)
    h = h + ref_attention(hn, hn, p["q1"], p["k1"], p["v1"], p["o1_w"], p["o1_b"], heads)
    hn = ref_layer_norm(h, p["ln2"][0:1], p["ln2"][1:2], ln_eps)
    h = h + ref_attention(hn, enc, p["q2"], p["k2"], p["v2"], p["o2_w"], p["o2_b"], heads)
    hn = ref_layer_norm(h, p["ln3"][0:1], p["ln3"][1:2], ln_eps)
    proj = jnp.dot(hn, p["ff1_w"], precision=hp) + p["ff1_b"]
    dff = p["ff2_w"].shape[0]
    ff = proj[..., :dff] * jax.nn.gelu(proj[..., dff:], approximate=True)
    h = h + jnp.dot(ff, p["ff2_w"], precision=hp) + p["ff2_b"]
    h = jnp.dot(h, p["pout_w"], precision=hp) + p["pout_b"]
    return (h + residual).reshape(B, H, W, C)


def ref_block(hidden, res_tuple, temb, enc, params, groups, eps, osf, heads):
    for lp in params["layers"]:
        skip = res_tuple[-1]
        res_tuple = res_tuple[:-1]
        x = jnp.concatenate([hidden, skip], axis=-1)
        h = ref_resnet(x, temb, lp["resnet"], groups, eps, osf)
        hidden = ref_transformer(h, enc, lp["attn"], groups, heads)
    up = jnp.repeat(jnp.repeat(hidden, 2, axis=1), 2, axis=2)
    return ref_conv3x3(up, params["up_w"], params["up_b"])


# ----------------------------------------------------------------------------
# Deterministic parameter init
# ----------------------------------------------------------------------------
def init_params(key, *, in_channels, prev_output_channel, out_channels,
                temb_channels, cross_attention_dim, num_layers):
    params = {"layers": []}
    for i in range(num_layers):
        res_skip = in_channels if i == num_layers - 1 else out_channels
        res_in = prev_output_channel if i == 0 else out_channels
        cin = res_in + res_skip
        C = out_channels
        klayer = jax.random.fold_in(key, i)

        kr = list(jax.random.split(jax.random.fold_in(klayer, 0), 12))
        rk = kr.pop
        resnet = {
            "n1_g": 1.0 + 0.1 * jax.random.normal(rk(0), (1, cin)),
            "n1_b": 0.1 * jax.random.normal(rk(0), (1, cin)),
            "conv1_w": 0.08 * jax.random.normal(rk(0), (3, 3, cin, C)),
            "conv1_b": 0.05 * jax.random.normal(rk(0), (1, C)),
            "time_w": 0.08 * jax.random.normal(rk(0), (temb_channels, C)),
            "time_b": 0.05 * jax.random.normal(rk(0), (1, C)),
            "n2_g": 1.0 + 0.1 * jax.random.normal(rk(0), (1, C)),
            "n2_b": 0.1 * jax.random.normal(rk(0), (1, C)),
            "conv2_w": 0.08 * jax.random.normal(rk(0), (3, 3, C, C)),
            "conv2_b": 0.05 * jax.random.normal(rk(0), (1, C)),
            "short_w": 0.08 * jax.random.normal(rk(0), (cin, C)),
            "short_b": 0.05 * jax.random.normal(rk(0), (1, C)),
        }

        ka = list(jax.random.split(jax.random.fold_in(klayer, 1), 26))
        ak = ka.pop

        def _ln(kg, kb, C=C):
            return jnp.concatenate([1.0 + 0.1 * jax.random.normal(kg, (1, C)),
                                    0.1 * jax.random.normal(kb, (1, C))], axis=0)

        attn = {
            "gn_g": 1.0 + 0.1 * jax.random.normal(ak(0), (1, C)),
            "gn_b": 0.1 * jax.random.normal(ak(0), (1, C)),
            "pin_w": 0.15 * jax.random.normal(ak(0), (C, C)),
            "pin_b": 0.05 * jax.random.normal(ak(0), (1, C)),
            "ln1": _ln(ak(0), ak(0)),
            "q1": 0.15 * jax.random.normal(ak(0), (C, C)),
            "k1": 0.15 * jax.random.normal(ak(0), (C, C)),
            "v1": 0.15 * jax.random.normal(ak(0), (C, C)),
            "o1_w": 0.15 * jax.random.normal(ak(0), (C, C)),
            "o1_b": 0.05 * jax.random.normal(ak(0), (1, C)),
            "ln2": _ln(ak(0), ak(0)),
            "q2": 0.15 * jax.random.normal(ak(0), (C, C)),
            "k2": 0.15 * jax.random.normal(ak(0), (cross_attention_dim, C)),
            "v2": 0.15 * jax.random.normal(ak(0), (cross_attention_dim, C)),
            "o2_w": 0.15 * jax.random.normal(ak(0), (C, C)),
            "o2_b": 0.05 * jax.random.normal(ak(0), (1, C)),
            "ln3": _ln(ak(0), ak(0)),
            "ff1_w": 0.1 * jax.random.normal(ak(0), (C, 8 * C)),
            "ff1_b": 0.05 * jax.random.normal(ak(0), (1, 8 * C)),
            "ff2_w": 0.1 * jax.random.normal(ak(0), (4 * C, C)),
            "ff2_b": 0.05 * jax.random.normal(ak(0), (1, C)),
            "pout_w": 0.15 * jax.random.normal(ak(0), (C, C)),
            "pout_b": 0.05 * jax.random.normal(ak(0), (1, C)),
        }
        params["layers"].append({"resnet": resnet, "attn": attn})

    ku = jax.random.split(jax.random.fold_in(key, 10_000), 2)
    params["up_w"] = 0.08 * jax.random.normal(ku[0], (3, 3, out_channels, out_channels))
    params["up_b"] = 0.05 * jax.random.normal(ku[1], (1, out_channels))
    return params


# ----------------------------------------------------------------------------
# Main
# ----------------------------------------------------------------------------
if __name__ == "__main__":
    # Small config consistent with PareCrossAttnUpBlock2D
    B, H, W = 2, 16, 16
    in_channels = 16            # skip-connection channels (res_hidden_states)
    prev_output_channel = 32    # channels of the incoming hidden states
    out_channels = 32
    temb_channels = 32
    cross_attention_dim = 64
    num_attention_heads = 2
    resnet_groups = 8
    resnet_eps = 1e-6
    output_scale_factor = 1.0
    num_layers = 1
    enc_seq = 8

    key = jax.random.PRNGKey(0)
    k1, k2, k3, k4, kp = jax.random.split(key, 5)
    hidden = jax.random.normal(k1, (B, H, W, prev_output_channel), jnp.float32)   # NHWC
    skip = jax.random.normal(k2, (B, H, W, in_channels), jnp.float32)             # NHWC
    temb = jax.random.normal(k3, (B, temb_channels), jnp.float32)
    enc = jax.random.normal(k4, (B, enc_seq, cross_attention_dim), jnp.float32)
    params = init_params(kp, in_channels=in_channels,
                         prev_output_channel=prev_output_channel,
                         out_channels=out_channels, temb_channels=temb_channels,
                         cross_attention_dim=cross_attention_dim, num_layers=num_layers)

    out = pare_cross_attn_up_block_fwd(
        hidden, (skip,), temb, enc, params,
        groups=resnet_groups, eps=resnet_eps, osf=output_scale_factor,
        heads=num_attention_heads)
    out = jax.block_until_ready(out)

    ref = ref_block(hidden, (skip,), temb, enc, params,
                    resnet_groups, resnet_eps, output_scale_factor, num_attention_heads)
    ref = jax.block_until_ready(ref)

    assert out.shape == (B, 2 * H, 2 * W, out_channels), out.shape
    max_err = float(jnp.max(jnp.abs(out - ref)))
    assert jnp.allclose(out, ref, rtol=2e-2, atol=2e-2), max_err

    print("KERNEL_OK")
</pallas_src>

<mosaic_0001>
module attributes {stable_mosaic.version = 11 : i64} {
  func.func @resnet_kernel(%arg0: i32, %arg1: memref<1x256x48xf32, #tpu.memory_space<vmem>>, %arg2: memref<1x1x32xf32, #tpu.memory_space<vmem>>, %arg3: memref<1x48xf32, #tpu.memory_space<vmem>>, %arg4: memref<1x48xf32, #tpu.memory_space<vmem>>, %arg5: memref<48x48xf32, #tpu.memory_space<vmem>>, %arg6: memref<3x3x48x32xf32, #tpu.memory_space<vmem>>, %arg7: memref<1x32xf32, #tpu.memory_space<vmem>>, %arg8: memref<32x32xf32, #tpu.memory_space<vmem>>, %arg9: memref<1x32xf32, #tpu.memory_space<vmem>>, %arg10: memref<1x32xf32, #tpu.memory_space<vmem>>, %arg11: memref<1x32xf32, #tpu.memory_space<vmem>>, %arg12: memref<32x32xf32, #tpu.memory_space<vmem>>, %arg13: memref<3x3x32x32xf32, #tpu.memory_space<vmem>>, %arg14: memref<1x32xf32, #tpu.memory_space<vmem>>, %arg15: memref<48x32xf32, #tpu.memory_space<vmem>>, %arg16: memref<1x32xf32, #tpu.memory_space<vmem>>, %arg17: memref<1x256x32xf32, #tpu.memory_space<vmem>>, %arg18: memref<18x18x48xf32, #tpu.memory_space<vmem>>, %arg19: memref<18x18x32xf32, #tpu.memory_space<vmem>>) attributes {dimension_semantics = [#tpu.dimension_semantics<parallel>], iteration_bounds = array<i64: 2>, scalar_prefetch = 0 : i64, scratch_operands = 2 : i64, tpu.core_type = #tpu.core_type<tc>, window_params = [{transform_indices = @transform_0, window_bounds = array<i64: 1, 256, 48>}, {transform_indices = @transform_1, window_bounds = array<i64: 1, 1, 32>}, {pipeline_mode = #tpu.pipeline_mode<synchronous>, transform_indices = @transform_2, window_bounds = array<i64: 1, 48>}, {pipeline_mode = #tpu.pipeline_mode<synchronous>, transform_indices = @transform_3, window_bounds = array<i64: 1, 48>}, {pipeline_mode = #tpu.pipeline_mode<synchronous>, transform_indices = @transform_4, window_bounds = array<i64: 48, 48>}, {pipeline_mode = #tpu.pipeline_mode<synchronous>, transform_indices = @transform_5, window_bounds = array<i64: 3, 3, 48, 32>}, {pipeline_mode = #tpu.pipeline_mode<synchronous>, transform_indices = @transform_6, window_bounds = array<i64: 1, 32>}, {pipeline_mode = #tpu.pipeline_mode<synchronous>, transform_indices = @transform_7, window_bounds = array<i64: 32, 32>}, {pipeline_mode = #tpu.pipeline_mode<synchronous>, transform_indices = @transform_8, window_bounds = array<i64: 1, 32>}, {pipeline_mode = #tpu.pipeline_mode<synchronous>, transform_indices = @transform_9, window_bounds = array<i64: 1, 32>}, {pipeline_mode = #tpu.pipeline_mode<synchronous>, transform_indices = @transform_10, window_bounds = array<i64: 1, 32>}, {pipeline_mode = #tpu.pipeline_mode<synchronous>, transform_indices = @transform_11, window_bounds = array<i64: 32, 32>}, {pipeline_mode = #tpu.pipeline_mode<synchronous>, transform_indices = @transform_12, window_bounds = array<i64: 3, 3, 32, 32>}, {pipeline_mode = #tpu.pipeline_mode<synchronous>, transform_indices = @transform_13, window_bounds = array<i64: 1, 32>}, {pipeline_mode = #tpu.pipeline_mode<synchronous>, transform_indices = @transform_14, window_bounds = array<i64: 48, 32>}, {pipeline_mode = #tpu.pipeline_mode<synchronous>, transform_indices = @transform_15, window_bounds = array<i64: 1, 32>}, {transform_indices = @transform_16, window_bounds = array<i64: 1, 256, 32>}]} {
    %c0 = arith.constant 0 : index
    %c0_0 = arith.constant 0 : index
    %c0_1 = arith.constant 0 : index
    %0 = vector.load %arg1[%c0, %c0_0, %c0_1] : memref<1x256x48xf32, #tpu.memory_space<vmem>>, vector<1x256x48xf32>
    %1 = vector.shape_cast %0 : vector<1x256x48xf32> to vector<256x48xf32>
    %c0_2 = arith.constant 0 : index
    %c0_3 = arith.constant 0 : index
    %2 = vector.load %arg5[%c0_2, %c0_3] : memref<48x48xf32, #tpu.memory_space<vmem>>, vector<48x48xf32>
    %c0_4 = arith.constant 0 : index
    %c0_5 = arith.constant 0 : index
    %3 = vector.load %arg3[%c0_4, %c0_5] : memref<1x48xf32, #tpu.memory_space<vmem>>, vector<1x48xf32>
    %c0_6 = arith.constant 0 : index
    %c0_7 = arith.constant 0 : index
    %4 = vector.load %arg4[%c0_6, %c0_7] : memref<1x48xf32, #tpu.memory_space<vmem>>, vector<1x48xf32>
    %cst = arith.constant dense<0.000000e+00> : vector<48xf32>
    %5 = vector.multi_reduction <add>, %1, %cst [0] : vector<256x48xf32> to vector<48xf32>
    %6 = vector.shape_cast %5 : vector<48xf32> to vector<1x48xf32>
    %cst_8 = arith.constant dense<0.000000e+00> : vector<1x48xf32>
    %7 = tpu.matmul %6, %2, %cst_8 {dimension_numbers = #tpu.dot_dimension_numbers<[1], [0], [0], [1], [0, 0, 1, 1], [], []>} : vector<1x48xf32>, vector<48x48xf32>, vector<1x48xf32> -> vector<1x48xf32>
    %8 = vector.broadcast %7 : vector<1x48xf32> to vector<256x48xf32>
    %9 = arith.subf %1, %8 : vector<256x48xf32>
    %10 = arith.mulf %9, %9 : vector<256x48xf32>
    %cst_9 = arith.constant dense<0.000000e+00> : vector<48xf32>
    %11 = vector.multi_reduction <add>, %10, %cst_9 [0] : vector<256x48xf32> to vector<48xf32>
    %12 = vector.shape_cast %11 : vector<48xf32> to vector<1x48xf32>
    %cst_10 = arith.constant dense<0.000000e+00> : vector<1x48xf32>
    %13 = tpu.matmul %12, %2, %cst_10 {dimension_numbers = #tpu.dot_dimension_numbers<[1], [0], [0], [1], [0, 0, 1, 1], [], []>} : vector<1x48xf32>, vector<48x48xf32>, vector<1x48xf32> -> vector<1x48xf32>
    %cst_11 = arith.constant 9.99999997E-7 : f32
    %14 = vector.broadcast %cst_11 : f32 to vector<1x48xf32>
    %15 = arith.addf %13, %14 : vector<1x48xf32>
    %16 = math.rsqrt %15 : vector<1x48xf32>
    %17 = vector.broadcast %16 : vector<1x48xf32> to vector<256x48xf32>
    %18 = arith.mulf %9, %17 : vector<256x48xf32>
    %19 = vector.broadcast %3 : vector<1x48xf32> to vector<256x48xf32>
    %20 = arith.mulf %18, %19 : vector<256x48xf32>
    %21 = vector.broadcast %4 : vector<1x48xf32> to vector<256x48xf32>
    %22 = arith.addf %20, %21 : vector<256x48xf32>
    %23 = arith.negf %22 : vector<256x48xf32>
    %24 = math.exp %23 : vector<256x48xf32>
    %cst_12 = arith.constant 1.000000e+00 : f32
    %25 = vector.broadcast %cst_12 : f32 to vector<256x48xf32>
    %26 = arith.addf %25, %24 : vector<256x48xf32>
    %27 = arith.divf %25, %26 : vector<256x48xf32>
    %28 = arith.mulf %22, %27 : vector<256x48xf32>
    %cst_13 = arith.constant 0.000000e+00 : f32
    %29 = vector.broadcast %cst_13 : f32 to vector<18x18x48xf32>
    %c0_14 = arith.constant 0 : index
    %c0_15 = arith.constant 0 : index
    %c0_16 = arith.constant 0 : index
    %30 = vector.load %arg18[%c0_14, %c0_15, %c0_16] : memref<18x18x48xf32, #tpu.memory_space<vmem>>, vector<18x18x48xf32>
    tpu.vector_store %arg18[%c0_14, %c0_15, %c0_16], %29 {strides = array<i32>} : memref<18x18x48xf32, #tpu.memory_space<vmem>>, vector<18x18x48xf32>,
    %31 = vector.shape_cast %28 : vector<256x48xf32> to vector<16x16x48xf32>
    %c1 = arith.constant 1 : index
    %c1_17 = arith.constant 1 : index
    %c0_18 = arith.constant 0 : index
    %32 = vector.load %arg18[%c1, %c1_17, %c0_18] : memref<18x18x48xf32, #tpu.memory_space<vmem>>, vector<16x16x48xf32>
    tpu.vector_store %arg18[%c1, %c1_17, %c0_18], %31 {strides = array<i32>} : memref<18x18x48xf32, #tpu.memory_space<vmem>>, vector<16x16x48xf32>,
    %cst_19 = arith.constant 0.000000e+00 : f32
    %33 = vector.broadcast %cst_19 : f32 to vector<256x32xf32>
    %c0_20 = arith.constant 0 : index
    %c0_21 = arith.constant 0 : index
    %c0_22 = arith.constant 0 : index
    %34 = vector.load %arg18[%c0_20, %c0_21, %c0_22] : memref<18x18x48xf32, #tpu.memory_space<vmem>>, vector<16x16x48xf32>
    %35 = vector.shape_cast %34 : vector<16x16x48xf32> to vector<256x48xf32>
    %c0_23 = arith.constant 0 : index
    %c0_24 = arith.constant 0 : index
    %c0_25 = arith.constant 0 : index
    %c0_26 = arith.constant 0 : index
    %36 = vector.load %arg6[%c0_23, %c0_24, %c0_25, %c0_26] : memref<3x3x48x32xf32, #tpu.memory_space<vmem>>, vector<1x1x48x32xf32>
    %37 = vector.shape_cast %36 : vector<1x1x48x32xf32> to vector<48x32xf32>
    %cst_27 = arith.constant dense<0.000000e+00> : vector<256x32xf32>
    %38 = tpu.matmul %35, %37, %cst_27 {dimension_numbers = #tpu.dot_dimension_numbers<[1], [0], [0], [1], [0, 0, 1, 1], [], []>} : vector<256x48xf32>, vector<48x32xf32>, vector<256x32xf32> -> vector<256x32xf32>
    %39 = arith.addf %33, %38 : vector<256x32xf32>
    %c0_28 = arith.constant 0 : index
    %c1_29 = arith.constant 1 : index
    %c0_30 = arith.constant 0 : index
    %40 = vector.load %arg18[%c0_28, %c1_29, %c0_30] : memref<18x18x48xf32, #tpu.memory_space<vmem>>, vector<16x16x48xf32>
    %41 = vector.shape_cast %40 : vector<16x16x48xf32> to vector<256x48xf32>
    %c0_31 = arith.constant 0 : index
    %c1_32 = arith.constant 1 : index
    %c0_33 = arith.constant 0 : index
    %c0_34 = arith.constant 0 : index
    %42 = vector.load %arg6[%c0_31, %c1_32, %c0_33, %c0_34] : memref<3x3x48x32xf32, #tpu.memory_space<vmem>>, vector<1x1x48x32xf32>
    %43 = vector.shape_cast %42 : vector<1x1x48x32xf32> to vector<48x32xf32>
    %cst_35 = arith.constant dense<0.000000e+00> : vector<256x32xf32>
    %44 = tpu.matmul %41, %43, %cst_35 {dimension_numbers = #tpu.dot_dimension_numbers<[1], [0], [0], [1], [0, 0, 1, 1], [], []>} : vector<256x48xf32>, vector<48x32xf32>, vector<256x32xf32> -> vector<256x32xf32>
    %45 = arith.addf %39, %44 : vector<256x32xf32>
    %c0_36 = arith.constant 0 : index
    %c2 = arith.constant 2 : index
    %c0_37 = arith.constant 0 : index
    %46 = vector.load %arg18[%c0_36, %c2, %c0_37] : memref<18x18x48xf32, #tpu.memory_space<vmem>>, vector<16x16x48xf32>
    %47 = vector.shape_cast %46 : vector<16x16x48xf32> to vector<256x48xf32>
    %c0_38 = arith.constant 0 : index
    %c2_39 = arith.constant 2 : index
    %c0_40 = arith.constant 0 : index
    %c0_41 = arith.constant 0 : index
    %48 = vector.load %arg6[%c0_38, %c2_39, %c0_40, %c0_41] : memref<3x3x48x32xf32, #tpu.memory_space<vmem>>, vector<1x1x48x32xf32>
    %49 = vector.shape_cast %48 : vector<1x1x48x32xf32> to vector<48x32xf32>
    %cst_42 = arith.constant dense<0.000000e+00> : vector<256x32xf32>
    %50 = tpu.matmul %47, %49, %cst_42 {dimension_numbers = #tpu.dot_dimension_numbers<[1], [0], [0], [1], [0, 0, 1, 1], [], []>} : vector<256x48xf32>, vector<48x32xf32>, vector<256x32xf32> -> vector<256x32xf32>
    %51 = arith.addf %45, %50 : vector<256x32xf32>
    %c1_43 = arith.constant 1 : index
    %c0_44 = arith.constant 0 : index
    %c0_45 = arith.constant 0 : index
    %52 = vector.load %arg18[%c1_43, %c0_44, %c0_45] : memref<18x18x48xf32, #tpu.memory_space<vmem>>, vector<16x16x48xf32>
    %53 = vector.shape_cast %52 : vector<16x16x48xf32> to vector<256x48xf32>
    %c1_46 = arith.constant 1 : index
    %c0_47 = arith.constant 0 : index
    %c0_48 = arith.constant 0 : index
    %c0_49 = arith.constant 0 : index
    %54 = vector.load %arg6[%c1_46, %c0_47, %c0_48, %c0_49] : memref<3x3x48x32xf32, #tpu.memory_space<vmem>>, vector<1x1x48x32xf32>
    %55 = vector.shape_cast %54 : vector<1x1x48x32xf32> to vector<48x32xf32>
    %cst_50 = arith.constant dense<0.000000e+00> : vector<256x32xf32>
    %56 = tpu.matmul %53, %55, %cst_50 {dimension_numbers = #tpu.dot_dimension_numbers<[1], [0], [0], [1], [0, 0, 1, 1], [], []>} : vector<256x48xf32>, vector<48x32xf32>, vector<256x32xf32> -> vector<256x32xf32>
    %57 = arith.addf %51, %56 : vector<256x32xf32>
    %c1_51 = arith.constant 1 : index
    %c1_52 = arith.constant 1 : index
    %c0_53 = arith.constant 0 : index
    %58 = vector.load %arg18[%c1_51, %c1_52, %c0_53] : memref<18x18x48xf32, #tpu.memory_space<vmem>>, vector<16x16x48xf32>
    %59 = vector.shape_cast %58 : vector<16x16x48xf32> to vector<256x48xf32>
    %c1_54 = arith.constant 1 : index
    %c1_55 = arith.constant 1 : index
    %c0_56 = arith.constant 0 : index
    %c0_57 = arith.constant 0 : index
    %60 = vector.load %arg6[%c1_54, %c1_55, %c0_56, %c0_57] : memref<3x3x48x32xf32, #tpu.memory_space<vmem>>, vector<1x1x48x32xf32>
    %61 = vector.shape_cast %60 : vector<1x1x48x32xf32> to vector<48x32xf32>
    %cst_58 = arith.constant dense<0.000000e+00> : vector<256x32xf32>
    %62 = tpu.matmul %59, %61, %cst_58 {dimension_numbers = #tpu.dot_dimension_numbers<[1], [0], [0], [1], [0, 0, 1, 1], [], []>} : vector<256x48xf32>, vector<48x32xf32>, vector<256x32xf32> -> vector<256x32xf32>
    %63 = arith.addf %57, %62 : vector<256x32xf32>
    %c1_59 = arith.constant 1 : index
    %c2_60 = arith.constant 2 : index
    %c0_61 = arith.constant 0 : index
    %64 = vector.load %arg18[%c1_59, %c2_60, %c0_61] : memref<18x18x48xf32, #tpu.memory_space<vmem>>, vector<16x16x48xf32>
    %65 = vector.shape_cast %64 : vector<16x16x48xf32> to vector<256x48xf32>
    %c1_62 = arith.constant 1 : index
    %c2_63 = arith.constant 2 : index
    %c0_64 = arith.constant 0 : index
    %c0_65 = arith.constant 0 : index
    %66 = vector.load %arg6[%c1_62, %c2_63, %c0_64, %c0_65] : memref<3x3x48x32xf32, #tpu.memory_space<vmem>>, vector<1x1x48x32xf32>
    %67 = vector.shape_cast %66 : vector<1x1x48x32xf32> to vector<48x32xf32>
    %cst_66 = arith.constant dense<0.000000e+00> : vector<256x32xf32>
    %68 = tpu.matmul %65, %67, %cst_66 {dimension_numbers = #tpu.dot_dimension_numbers<[1], [0], [0], [1], [0, 0, 1, 1], [], []>} : vector<256x48xf32>, vector<48x32xf32>, vector<256x32xf32> -> vector<256x32xf32>
    %69 = arith.addf %63, %68 : vector<256x32xf32>
    %c2_67 = arith.constant 2 : index
    %c0_68 = arith.constant 0 : index
    %c0_69 = arith.constant 0 : index
    %70 = vector.load %arg18[%c2_67, %c0_68, %c0_69] : memref<18x18x48xf32, #tpu.memory_space<vmem>>, vector<16x16x48xf32>
    %71 = vector.shape_cast %70 : vector<16x16x48xf32> to vector<256x48xf32>
    %c2_70 = arith.constant 2 : index
    %c0_71 = arith.constant 0 : index
    %c0_72 = arith.constant 0 : index
    %c0_73 = arith.constant 0 : index
    %72 = vector.load %arg6[%c2_70, %c0_71, %c0_72, %c0_73] : memref<3x3x48x32xf32, #tpu.memory_space<vmem>>, vector<1x1x48x32xf32>
    %73 = vector.shape_cast %72 : vector<1x1x48x32xf32> to vector<48x32xf32>
    %cst_74 = arith.constant dense<0.000000e+00> : vector<256x32xf32>
    %74 = tpu.matmul %71, %73, %cst_74 {dimension_numbers = #tpu.dot_dimension_numbers<[1], [0], [0], [1], [0, 0, 1, 1], [], []>} : vector<256x48xf32>, vector<48x32xf32>, vector<256x32xf32> -> vector<256x32xf32>
    %75 = arith.addf %69, %74 : vector<256x32xf32>
    %c2_75 = arith.constant 2 : index
    %c1_76 = arith.constant 1 : index
    %c0_77 = arith.constant 0 : index
    %76 = vector.load %arg18[%c2_75, %c1_76, %c0_77] : memref<18x18x48xf32, #tpu.memory_space<vmem>>, vector<16x16x48xf32>
    %77 = vector.shape_cast %76 : vector<16x16x48xf32> to vector<256x48xf32>
    %c2_78 = arith.constant 2 : index
    %c1_79 = arith.constant 1 : index
    %c0_80 = arith.constant 0 : index
    %c0_81 = arith.constant 0 : index
    %78 = vector.load %arg6[%c2_78, %c1_79, %c0_80, %c0_81] : memref<3x3x48x32xf32, #tpu.memory_space<vmem>>, vector<1x1x48x32xf32>
    %79 = vector.shape_cast %78 : vector<1x1x48x32xf32> to vector<48x32xf32>
    %cst_82 = arith.constant dense<0.000000e+00> : vector<256x32xf32>
    %80 = tpu.matmul %77, %79, %cst_82 {dimension_numbers = #tpu.dot_dimension_numbers<[1], [0], [0], [1], [0, 0, 1, 1], [], []>} : vector<256x48xf32>, vector<48x32xf32>, vector<256x32xf32> -> vector<256x32xf32>
    %81 = arith.addf %75, %80 : vector<256x32xf32>
    %c2_83 = arith.constant 2 : index
    %c2_84 = arith.constant 2 : index
    %c0_85 = arith.constant 0 : index
    %82 = vector.load %arg18[%c2_83, %c2_84, %c0_85] : memref<18x18x48xf32, #tpu.memory_space<vmem>>, vector<16x16x48xf32>
    %83 = vector.shape_cast %82 : vector<16x16x48xf32> to vector<256x48xf32>
    %c2_86 = arith.constant 2 : index
    %c2_87 = arith.constant 2 : index
    %c0_88 = arith.constant 0 : index
    %c0_89 = arith.constant 0 : index
    %84 = vector.load %arg6[%c2_86, %c2_87, %c0_88, %c0_89] : memref<3x3x48x32xf32, #tpu.memory_space<vmem>>, vector<1x1x48x32xf32>
    %85 = vector.shape_cast %84 : vector<1x1x48x32xf32> to vector<48x32xf32>
    %cst_90 = arith.constant dense<0.000000e+00> : vector<256x32xf32>
    %86 = tpu.matmul %83, %85, %cst_90 {dimension_numbers = #tpu.dot_dimension_numbers<[1], [0], [0], [1], [0, 0, 1, 1], [], []>} : vector<256x48xf32>, vector<48x32xf32>, vector<256x32xf32> -> vector<256x32xf32>
    %87 = arith.addf %81, %86 : vector<256x32xf32>
    %c0_91 = arith.constant 0 : index
    %c0_92 = arith.constant 0 : index
    %88 = vector.load %arg7[%c0_91, %c0_92] : memref<1x32xf32, #tpu.memory_space<vmem>>, vector<1x32xf32>
    %89 = vector.broadcast %88 : vector<1x32xf32> to vector<256x32xf32>
    %90 = arith.addf %87, %89 : vector<256x32xf32>
    %c0_93 = arith.constant 0 : index
    %c0_94 = arith.constant 0 : index
    %c0_95 = arith.constant 0 : index
    %91 = vector.load %arg2[%c0_93, %c0_94, %c0_95] : memref<1x1x32xf32, #tpu.memory_space<vmem>>, vector<1x1x32xf32>
    %92 = vector.shape_cast %91 : vector<1x1x32xf32> to vector<1x32xf32>
    %93 = arith.negf %92 : vector<1x32xf32>
    %94 = math.exp %93 : vector<1x32xf32>
    %cst_96 = arith.constant 1.000000e+00 : f32
    %95 = vector.broadcast %cst_96 : f32 to vector<1x32xf32>
    %96 = arith.addf %95, %94 : vector<1x32xf32>
    %97 = arith.divf %95, %96 : vector<1x32xf32>
    %98 = arith.mulf %92, %97 : vector<1x32xf32>
    %c0_97 = arith.constant 0 : index
    %c0_98 = arith.constant 0 : index
    %99 = vector.load %arg8[%c0_97, %c0_98] : memref<32x32xf32, #tpu.memory_space<vmem>>, vector<32x32xf32>
    %cst_99 = arith.constant dense<0.000000e+00> : vector<1x32xf32>
    %100 = tpu.matmul %98, %99, %cst_99 {dimension_numbers = #tpu.dot_dimension_numbers<[1], [0], [0], [1], [0, 0, 1, 1], [], []>} : vector<1x32xf32>, vector<32x32xf32>, vector<1x32xf32> -> vector<1x32xf32>
    %101 = vector.broadcast %100 : vector<1x32xf32> to vector<256x32xf32>
    %102 = arith.addf %90, %101 : vector<256x32xf32>
    %c0_100 = arith.constant 0 : index
    %c0_101 = arith.constant 0 : index
    %103 = vector.load %arg9[%c0_100, %c0_101] : memref<1x32xf32, #tpu.memory_space<vmem>>, vector<1x32xf32>
    %104 = vector.broadcast %103 : vector<1x32xf32> to vector<256x32xf32>
    %105 = arith.addf %102, %104 : vector<256x32xf32>
    %c0_102 = arith.constant 0 : index
    %c0_103 = arith.constant 0 : index
    %106 = vector.load %arg12[%c0_102, %c0_103] : memref<32x32xf32, #tpu.memory_space<vmem>>, vector<32x32xf32>
    %c0_104 = arith.constant 0 : index
    %c0_105 = arith.constant 0 : index
    %107 = vector.load %arg10[%c0_104, %c0_105] : memref<1x32xf32, #tpu.memory_space<vmem>>, vector<1x32xf32>
    %c0_106 = arith.constant 0 : index
    %c0_107 = arith.constant 0 : index
    %108 = vector.load %arg11[%c0_106, %c0_107] : memref<1x32xf32, #tpu.memory_space<vmem>>, vector<1x32xf32>
    %cst_108 = arith.constant dense<0.000000e+00> : vector<32xf32>
    %109 = vector.multi_reduction <add>, %105, %cst_108 [0] : vector<256x32xf32> to vector<32xf32>
    %110 = vector.shape_cast %109 : vector<32xf32> to vector<1x32xf32>
    %cst_109 = arith.constant dense<0.000000e+00> : vector<1x32xf32>
    %111 = tpu.matmul %110, %106, %cst_109 {dimension_numbers = #tpu.dot_dimension_numbers<[1], [0], [0], [1], [0, 0, 1, 1], [], []>} : vector<1x32xf32>, vector<32x32xf32>, vector<1x32xf32> -> vector<1x32xf32>
    %112 = vector.broadcast %111 : vector<1x32xf32> to vector<256x32xf32>
    %113 = arith.subf %105, %112 : vector<256x32xf32>
    %114 = arith.mulf %113, %113 : vector<256x32xf32>
    %cst_110 = arith.constant dense<0.000000e+00> : vector<32xf32>
    %115 = vector.multi_reduction <add>, %114, %cst_110 [0] : vector<256x32xf32> to vector<32xf32>
    %116 = vector.shape_cast %115 : vector<32xf32> to vector<1x32xf32>
    %cst_111 = arith.constant dense<0.000000e+00> : vector<1x32xf32>
    %117 = tpu.matmul %116, %106, %cst_111 {dimension_numbers = #tpu.dot_dimension_numbers<[1], [0], [0], [1], [0, 0, 1, 1], [], []>} : vector<1x32xf32>, vector<32x32xf32>, vector<1x32xf32> -> vector<1x32xf32>
    %cst_112 = arith.constant 9.99999997E-7 : f32
    %118 = vector.broadcast %cst_112 : f32 to vector<1x32xf32>
    %119 = arith.addf %117, %118 : vector<1x32xf32>
    %120 = math.rsqrt %119 : vector<1x32xf32>
    %121 = vector.broadcast %120 : vector<1x32xf32> to vector<256x32xf32>
    %122 = arith.mulf %113, %121 : vector<256x32xf32>
    %123 = vector.broadcast %107 : vector<1x32xf32> to vector<256x32xf32>
    %124 = arith.mulf %122, %123 : vector<256x32xf32>
    %125 = vector.broadcast %108 : vector<1x32xf32> to vector<256x32xf32>
    %126 = arith.addf %124, %125 : vector<256x32xf32>
    %127 = arith.negf %126 : vector<256x32xf32>
    %128 = math.exp %127 : vector<256x32xf32>
    %cst_113 = arith.constant 1.000000e+00 : f32
    %129 = vector.broadcast %cst_113 : f32 to vector<256x32xf32>
    %130 = arith.addf %129, %128 : vector<256x32xf32>
    %131 = arith.divf %129, %130 : vector<256x32xf32>
    %132 = arith.mulf %126, %131 : vector<256x32xf32>
    %cst_114 = arith.constant 0.000000e+00 : f32
    %133 = vector.broadcast %cst_114 : f32 to vector<18x18x32xf32>
    %c0_115 = arith.constant 0 : index
    %c0_116 = arith.constant 0 : index
    %c0_117 = arith.constant 0 : index
    %134 = vector.load %arg19[%c0_115, %c0_116, %c0_117] : memref<18x18x32xf32, #tpu.memory_space<vmem>>, vector<18x18x32xf32>
    tpu.vector_store %arg19[%c0_115, %c0_116, %c0_117], %133 {strides = array<i32>} : memref<18x18x32xf32, #tpu.memory_space<vmem>>, vector<18x18x32xf32>,
    %135 = vector.shape_cast %132 : vector<256x32xf32> to vector<16x16x32xf32>
    %c1_118 = arith.constant 1 : index
    %c1_119 = arith.constant 1 : index
    %c0_120 = arith.constant 0 : index
    %136 = vector.load %arg19[%c1_118, %c1_119, %c0_120] : memref<18x18x32xf32, #tpu.memory_space<vmem>>, vector<16x16x32xf32>
    tpu.vector_store %arg19[%c1_118, %c1_119, %c0_120], %135 {strides = array<i32>} : memref<18x18x32xf32, #tpu.memory_space<vmem>>, vector<16x16x32xf32>,
    %cst_121 = arith.constant 0.000000e+00 : f32
    %137 = vector.broadcast %cst_121 : f32 to vector<256x32xf32>
    %c0_122 = arith.constant 0 : index
    %c0_123 = arith.constant 0 : index
    %c0_124 = arith.constant 0 : index
    %138 = vector.load %arg19[%c0_122, %c0_123, %c0_124] : memref<18x18x32xf32, #tpu.memory_space<vmem>>, vector<16x16x32xf32>
    %139 = vector.shape_cast %138 : vector<16x16x32xf32> to vector<256x32xf32>
    %c0_125 = arith.constant 0 : index
    %c0_126 = arith.constant 0 : index
    %c0_127 = arith.constant 0 : index
    %c0_128 = arith.constant 0 : index
    %140 = vector.load %arg13[%c0_125, %c0_126, %c0_127, %c0_128] : memref<3x3x32x32xf32, #tpu.memory_space<vmem>>, vector<1x1x32x32xf32>
    %141 = vector.shape_cast %140 : vector<1x1x32x32xf32> to vector<32x32xf32>
    %cst_129 = arith.constant dense<0.000000e+00> : vector<256x32xf32>
    %142 = tpu.matmul %139, %141, %cst_129 {dimension_numbers = #tpu.dot_dimension_numbers<[1], [0], [0], [1], [0, 0, 1, 1], [], []>} : vector<256x32xf32>, vector<32x32xf32>, vector<256x32xf32> -> vector<256x32xf32>
    %143 = arith.addf %137, %142 : vector<256x32xf32>
    %c0_130 = arith.constant 0 : index
    %c1_131 = arith.constant 1 : index
    %c0_132 = arith.constant 0 : index
    %144 = vector.load %arg19[%c0_130, %c1_131, %c0_132] : memref<18x18x32xf32, #tpu.memory_space<vmem>>, vector<16x16x32xf32>
    %145 = vector.shape_cast %144 : vector<16x16x32xf32> to vector<256x32xf32>
    %c0_133 = arith.constant 0 : index
    %c1_134 = arith.constant 1 : index
    %c0_135 = arith.constant 0 : index
    %c0_136 = arith.constant 0 : index
    %146 = vector.load %arg13[%c0_133, %c1_134, %c0_135, %c0_136] : memref<3x3x32x32xf32, #tpu.memory_space<vmem>>, vector<1x1x32x32xf32>
    %147 = vector.shape_cast %146 : vector<1x1x32x32xf32> to vector<32x32xf32>
    %cst_137 = arith.constant dense<0.000000e+00> : vector<256x32xf32>
    %148 = tpu.matmul %145, %147, %cst_137 {dimension_numbers = #tpu.dot_dimension_numbers<[1], [0], [0], [1], [0, 0, 1, 1], [], []>} : vector<256x32xf32>, vector<32x32xf32>, vector<256x32xf32> -> vector<256x32xf32>
    %149 = arith.addf %143, %148 : vector<256x32xf32>
    %c0_138 = arith.constant 0 : index
    %c2_139 = arith.constant 2 : index
    %c0_140 = arith.constant 0 : index
    %150 = vector.load %arg19[%c0_138, %c2_139, %c0_140] : memref<18x18x32xf32, #tpu.memory_space<vmem>>, vector<16x16x32xf32>
    %151 = vector.shape_cast %150 : vector<16x16x32xf32> to vector<256x32xf32>
    %c0_141 = arith.constant 0 : index
    %c2_142 = arith.constant 2 : index
    %c0_143 = arith.constant 0 : index
    %c0_144 = arith.constant 0 : index
    %152 = vector.load %arg13[%c0_141, %c2_142, %c0_143, %c0_144] : memref<3x3x32x32xf32, #tpu.memory_space<vmem>>, vector<1x1x32x32xf32>
    %153 = vector.shape_cast %152 : vector<1x1x32x32xf32> to vector<32x32xf32>
    %cst_145 = arith.constant dense<0.000000e+00> : vector<256x32xf32>
    %154 = tpu.matmul %151, %153, %cst_145 {dimension_numbers = #tpu.dot_dimension_numbers<[1], [0], [0], [1], [0, 0, 1, 1], [], []>} : vector<256x32xf32>, vector<32x32xf32>, vector<256x32xf32> -> vector<256x32xf32>
    %155 = arith.addf %149, %154 : vector<256x32xf32>
    %c1_146 = arith.constant 1 : index
    %c0_147 = arith.constant 0 : index
    %c0_148 = arith.constant 0 : index
    %156 = vector.load %arg19[%c1_146, %c0_147, %c0_148] : memref<18x18x32xf32, #tpu.memory_space<vmem>>, vector<16x16x32xf32>
    %157 = vector.shape_cast %156 : vector<16x16x32xf32> to vector<256x32xf32>
    %c1_149 = arith.constant 1 : index
    %c0_150 = arith.constant 0 : index
    %c0_151 = arith.constant 0 : index
    %c0_152 = arith.constant 0 : index
    %158 = vector.load %arg13[%c1_149, %c0_150, %c0_151, %c0_152] : memref<3x3x32x32xf32, #tpu.memory_space<vmem>>, vector<1x1x32x32xf32>
    %159 = vector.shape_cast %158 : vector<1x1x32x32xf32> to vector<32x32xf32>
    %cst_153 = arith.constant dense<0.000000e+00> : vector<256x32xf32>
    %160 = tpu.matmul %157, %159, %cst_153 {dimension_numbers = #tpu.dot_dimension_numbers<[1], [0], [0], [1], [0, 0, 1, 1], [], []>} : vector<256x32xf32>, vector<32x32xf32>, vector<256x32xf32> -> vector<256x32xf32>
    %161 = arith.addf %155, %160 : vector<256x32xf32>
    %c1_154 = arith.constant 1 : index
    %c1_155 = arith.constant 1 : index
    %c0_156 = arith.constant 0 : index
    %162 = vector.load %arg19[%c1_154, %c1_155, %c0_156] : memref<18x18x32xf32, #tpu.memory_space<vmem>>, vector<16x16x32xf32>
    %163 = vector.shape_cast %162 : vector<16x16x32xf32> to vector<256x32xf32>
    %c1_157 = arith.constant 1 : index
    %c1_158 = arith.constant 1 : index
    %c0_159 = arith.constant 0 : index
    %c0_160 = arith.constant 0 : index
    %164 = vector.load %arg13[%c1_157, %c1_158, %c0_159, %c0_160] : memref<3x3x32x32xf32, #tpu.memory_space<vmem>>, vector<1x1x32x32xf32>
    %165 = vector.shape_cast %164 : vector<1x1x32x32xf32> to vector<32x32xf32>
    %cst_161 = arith.constant dense<0.000000e+00> : vector<256x32xf32>
    %166 = tpu.matmul %163, %165, %cst_161 {dimension_numbers = #tpu.dot_dimension_numbers<[1], [0], [0], [1], [0, 0, 1, 1], [], []>} : vector<256x32xf32>, vector<32x32xf32>, vector<256x32xf32> -> vector<256x32xf32>
    %167 = arith.addf %161, %166 : vector<256x32xf32>
    %c1_162 = arith.constant 1 : index
    %c2_163 = arith.constant 2 : index
    %c0_164 = arith.constant 0 : index
    %168 = vector.load %arg19[%c1_162, %c2_163, %c0_164] : memref<18x18x32xf32, #tpu.memory_space<vmem>>, vector<16x16x32xf32>
    %169 = vector.shape_cast %168 : vector<16x16x32xf32> to vector<256x32xf32>
    %c1_165 = arith.constant 1 : index
    %c2_166 = arith.constant 2 : index
    %c0_167 = arith.constant 0 : index
    %c0_168 = arith.constant 0 : index
    %170 = vector.load %arg13[%c1_165, %c2_166, %c0_167, %c0_168] : memref<3x3x32x32xf32, #tpu.memory_space<vmem>>, vector<1x1x32x32xf32>
    %171 = vector.shape_cast %170 : vector<1x1x32x32xf32> to vector<32x32xf32>
    %cst_169 = arith.constant dense<0.000000e+00> : vector<256x32xf32>
    %172 = tpu.matmul %169, %171, %cst_169 {dimension_numbers = #tpu.dot_dimension_numbers<[1], [0], [0], [1], [0, 0, 1, 1], [], []>} : vector<256x32xf32>, vector<32x32xf32>, vector<256x32xf32> -> vector<256x32xf32>
    %173 = arith.addf %167, %172 : vector<256x32xf32>
    %c2_170 = arith.constant 2 : index
    %c0_171 = arith.constant 0 : index
    %c0_172 = arith.constant 0 : index
    %174 = vector.load %arg19[%c2_170, %c0_171, %c0_172] : memref<18x18x32xf32, #tpu.memory_space<vmem>>, vector<16x16x32xf32>
    %175 = vector.shape_cast %174 : vector<16x16x32xf32> to vector<256x32xf32>
    %c2_173 = arith.constant 2 : index
    %c0_174 = arith.constant 0 : index
    %c0_175 = arith.constant 0 : index
    %c0_176 = arith.constant 0 : index
    %176 = vector.load %arg13[%c2_173, %c0_174, %c0_175, %c0_176] : memref<3x3x32x32xf32, #tpu.memory_space<vmem>>, vector<1x1x32x32xf32>
    %177 = vector.shape_cast %176 : vector<1x1x32x32xf32> to vector<32x32xf32>
    %cst_177 = arith.constant dense<0.000000e+00> : vector<256x32xf32>
    %178 = tpu.matmul %175, %177, %cst_177 {dimension_numbers = #tpu.dot_dimension_numbers<[1], [0], [0], [1], [0, 0, 1, 1], [], []>} : vector<256x32xf32>, vector<32x32xf32>, vector<256x32xf32> -> vector<256x32xf32>
    %179 = arith.addf %173, %178 : vector<256x32xf32>
    %c2_178 = arith.constant 2 : index
    %c1_179 = arith.constant 1 : index
    %c0_180 = arith.constant 0 : index
    %180 = vector.load %arg19[%c2_178, %c1_179, %c0_180] : memref<18x18x32xf32, #tpu.memory_space<vmem>>, vector<16x16x32xf32>
    %181 = vector.shape_cast %180 : vector<16x16x32xf32> to vector<256x32xf32>
    %c2_181 = arith.constant 2 : index
    %c1_182 = arith.constant 1 : index
    %c0_183 = arith.constant 0 : index
    %c0_184 = arith.constant 0 : index
    %182 = vector.load %arg13[%c2_181, %c1_182, %c0_183, %c0_184] : memref<3x3x32x32xf32, #tpu.memory_space<vmem>>, vector<1x1x32x32xf32>
    %183 = vector.shape_cast %182 : vector<1x1x32x32xf32> to vector<32x32xf32>
    %cst_185 = arith.constant dense<0.000000e+00> : vector<256x32xf32>
    %184 = tpu.matmul %181, %183, %cst_185 {dimension_numbers = #tpu.dot_dimension_numbers<[1], [0], [0], [1], [0, 0, 1, 1], [], []>} : vector<256x32xf32>, vector<32x32xf32>, vector<256x32xf32> -> vector<256x32xf32>
    %185 = arith.addf %179, %184 : vector<256x32xf32>
    %c2_186 = arith.constant 2 : index
    %c2_187 = arith.constant 2 : index
    %c0_188 = arith.constant 0 : index
    %186 = vector.load %arg19[%c2_186, %c2_187, %c0_188] : memref<18x18x32xf32, #tpu.memory_space<vmem>>, vector<16x16x32xf32>
    %187 = vector.shape_cast %186 : vector<16x16x32xf32> to vector<256x32xf32>
    %c2_189 = arith.constant 2 : index
    %c2_190 = arith.constant 2 : index
    %c0_191 = arith.constant 0 : index
    %c0_192 = arith.constant 0 : index
    %188 = vector.load %arg13[%c2_189, %c2_190, %c0_191, %c0_192] : memref<3x3x32x32xf32, #tpu.memory_space<vmem>>, vector<1x1x32x32xf32>
    %189 = vector.shape_cast %188 : vector<1x1x32x32xf32> to vector<32x32xf32>
    %cst_193 = arith.constant dense<0.000000e+00> : vector<256x32xf32>
    %190 = tpu.matmul %187, %189, %cst_193 {dimension_numbers = #tpu.dot_dimension_numbers<[1], [0], [0], [1], [0, 0, 1, 1], [], []>} : vector<256x32xf32>, vector<32x32xf32>, vector<256x32xf32> -> vector<256x32xf32>
    %191 = arith.addf %185, %190 : vector<256x32xf32>
    %c0_194 = arith.constant 0 : index
    %c0_195 = arith.constant 0 : index
    %192 = vector.load %arg14[%c0_194, %c0_195] : memref<1x32xf32, #tpu.memory_space<vmem>>, vector<1x32xf32>
    %193 = vector.broadcast %192 : vector<1x32xf32> to vector<256x32xf32>
    %194 = arith.addf %191, %193 : vector<256x32xf32>
    %c0_196 = arith.constant 0 : index
    %c0_197 = arith.constant 0 : index
    %195 = vector.load %arg15[%c0_196, %c0_197] : memref<48x32xf32, #tpu.memory_space<vmem>>, vector<48x32xf32>
    %cst_198 = arith.constant dense<0.000000e+00> : vector<256x32xf32>
    %196 = tpu.matmul %1, %195, %cst_198 {dimension_numbers = #tpu.dot_dimension_numbers<[1], [0], [0], [1], [0, 0, 1, 1], [], []>} : vector<256x48xf32>, vector<48x32xf32>, vector<256x32xf32> -> vector<256x32xf32>
    %c0_199 = arith.constant 0 : index
    %c0_200 = arith.constant 0 : index
    %197 = vector.load %arg16[%c0_199, %c0_200] : memref<1x32xf32, #tpu.memory_space<vmem>>, vector<1x32xf32>
    %198 = vector.broadcast %197 : vector<1x32xf32> to vector<256x32xf32>
    %199 = arith.addf %196, %198 : vector<256x32xf32>
    %200 = arith.addf %199, %194 : vector<256x32xf32>
    %c0_201 = arith.constant 0 : index
    %c0_202 = arith.constant 0 : index
    %c0_203 = arith.constant 0 : index
    %201 = vector.load %arg17[%c0_201, %c0_202, %c0_203] : memref<1x256x32xf32, #tpu.memory_space<vmem>>, vector<1x256x32xf32>
    %202 = vector.shape_cast %201 : vector<1x256x32xf32> to vector<256x32xf32>
    %203 = vector.shape_cast %200 : vector<256x32xf32> to vector<1x256x32xf32>
    tpu.vector_store %arg17[%c0_201, %c0_202, %c0_203], %203 {strides = array<i32>} : memref<1x256x32xf32, #tpu.memory_space<vmem>>, vector<1x256x32xf32>,
    return
  }
  func.func @transform_0(%arg0: i32) -> (i32, i32, i32) {
    %c0_i32 = arith.constant 0 : i32
    %c0_i32_0 = arith.constant 0 : i32
    %c0_i32_1 = arith.constant 0 : i32
    return %arg0, %c0_i32, %c0_i32_0 : i32, i32, i32
  }
  func.func @transform_1(%arg0: i32) -> (i32, i32, i32) {
    %c0_i32 = arith.constant 0 : i32
    %c0_i32_0 = arith.constant 0 : i32
    %c0_i32_1 = arith.constant 0 : i32
    return %arg0, %c0_i32, %c0_i32_0 : i32, i32, i32
  }
  func.func @transform_2(%arg0: i32) -> (i32, i32) {
    %c0_i32 = arith.constant 0 : i32
    %c0_i32_0 = arith.constant 0 : i32
    %c0_i32_1 = arith.constant 0 : i32
    return %c0_i32, %c0_i32_0 : i32, i32
  }
  func.func @transform_3(%arg0: i32) -> (i32, i32) {
    %c0_i32 = arith.constant 0 : i32
    %c0_i32_0 = arith.constant 0 : i32
    %c0_i32_1 = arith.constant 0 : i32
    return %c0_i32, %c0_i32_0 : i32, i32
  }
  func.func @transform_4(%arg0: i32) -> (i32, i32) {
    %c0_i32 = arith.constant 0 : i32
    %c0_i32_0 = arith.constant 0 : i32
    %c0_i32_1 = arith.constant 0 : i32
    return %c0_i32, %c0_i32_0 : i32, i32
  }
  func.func @transform_5(%arg0: i32) -> (i32, i32, i32, i32) {
    %c0_i32 = arith.constant 0 : i32
    %c0_i32_0 = arith.constant 0 : i32
    %c0_i32_1 = arith.constant 0 : i32
    %c0_i32_2 = arith.constant 0 : i32
    %c0_i32_3 = arith.constant 0 : i32
    return %c0_i32, %c0_i32_0, %c0_i32_1, %c0_i32_2 : i32, i32, i32, i32
  }
  func.func @transform_6(%arg0: i32) -> (i32, i32) {
    %c0_i32 = arith.constant 0 : i32
    %c0_i32_0 = arith.constant 0 : i32
    %c0_i32_1 = arith.constant 0 : i32
    return %c0_i32, %c0_i32_0 : i32, i32
  }
  func.func @transform_7(%arg0: i32) -> (i32, i32) {
    %c0_i32 = arith.constant 0 : i32
    %c0_i32_0 = arith.constant 0 : i32
    %c0_i32_1 = arith.constant 0 : i32
    return %c0_i32, %c0_i32_0 : i32, i32
  }
  func.func @transform_8(%arg0: i32) -> (i32, i32) {
    %c0_i32 = arith.constant 0 : i32
    %c0_i32_0 = arith.constant 0 : i32
    %c0_i32_1 = arith.constant 0 : i32
    return %c0_i32, %c0_i32_0 : i32, i32
  }
  func.func @transform_9(%arg0: i32) -> (i32, i32) {
    %c0_i32 = arith.constant 0 : i32
    %c0_i32_0 = arith.constant 0 : i32
    %c0_i32_1 = arith.constant 0 : i32
    return %c0_i32, %c0_i32_0 : i32, i32
  }
  func.func @transform_10(%arg0: i32) -> (i32, i32) {
    %c0_i32 = arith.constant 0 : i32
    %c0_i32_0 = arith.constant 0 : i32
    %c0_i32_1 = arith.constant 0 : i32
    return %c0_i32, %c0_i32_0 : i32, i32
  }
  func.func @transform_11(%arg0: i32) -> (i32, i32) {
    %c0_i32 = arith.constant 0 : i32
    %c0_i32_0 = arith.constant 0 : i32
    %c0_i32_1 = arith.constant 0 : i32
    return %c0_i32, %c0_i32_0 : i32, i32
  }
  func.func @transform_12(%arg0: i32) -> (i32, i32, i32, i32) {
    %c0_i32 = arith.constant 0 : i32
    %c0_i32_0 = arith.constant 0 : i32
    %c0_i32_1 = arith.constant 0 : i32
    %c0_i32_2 = arith.constant 0 : i32
    %c0_i32_3 = arith.constant 0 : i32
    return %c0_i32, %c0_i32_0, %c0_i32_1, %c0_i32_2 : i32, i32, i32, i32
  }
  func.func @transform_13(%arg0: i32) -> (i32, i32) {
    %c0_i32 = arith.constant 0 : i32
    %c0_i32_0 = arith.constant 0 : i32
    %c0_i32_1 = arith.constant 0 : i32
    return %c0_i32, %c0_i32_0 : i32, i32
  }
  func.func @transform_14(%arg0: i32) -> (i32, i32) {
    %c0_i32 = arith.constant 0 : i32
    %c0_i32_0 = arith.constant 0 : i32
    %c0_i32_1 = arith.constant 0 : i32
    return %c0_i32, %c0_i32_0 : i32, i32
  }
  func.func @transform_15(%arg0: i32) -> (i32, i32) {
    %c0_i32 = arith.constant 0 : i32
    %c0_i32_0 = arith.constant 0 : i32
    %c0_i32_1 = arith.constant 0 : i32
    return %c0_i32, %c0_i32_0 : i32, i32
  }
  func.func @transform_16(%arg0: i32) -> (i32, i32, i32) {
    %c0_i32 = arith.constant 0 : i32
    %c0_i32_0 = arith.constant 0 : i32
    %c0_i32_1 = arith.constant 0 : i32
    return %arg0, %c0_i32, %c0_i32_0 : i32, i32, i32
  }
}

</mosaic_0001>

<llo_original>
// kernel: tpu_custom_call.1
$region0: #{tpu_custom_call.1}
  #allocation0 [shape = 'u32[]', space=smem, size = 0x4, offset = 0x4, fixed_abs, tag = 'smem constant byte address 0x4 - core index']
  #allocation1 [shape = 'u32[72,128]{1,0:T(1,128)}', space=vmem, size = 0x9000, scoped, tag = 'internal scratch']
  #allocation2 [shape = 'f32[18,18,48]{2,1,0:T(8,128)}', space=vmem, size = 0x36000, scoped, tag = 'scratch operand']
  #allocation3 [shape = 'f32[18,18,32]{2,1,0:T(8,128)}', space=vmem, size = 0x36000, scoped, tag = 'scratch operand']
  %s0 = inlined_call_operand.vmem [shape: f32[2,256,48], index: 0, kind: input, shape index: {}]
  %s1 = inlined_call_operand.vmem [shape: f32[2,1,32], index: 1, kind: input, shape index: {}]
  %s2 = inlined_call_operand.vmem [shape: f32[1,48], index: 2, kind: input, shape index: {}]
  %s3 = inlined_call_operand.vmem [shape: f32[1,48], index: 3, kind: input, shape index: {}]
  %s4 = inlined_call_operand.vmem [shape: f32[48,48], index: 4, kind: input, shape index: {}]
  %s5 = inlined_call_operand.vmem [shape: f32[3,3,48,32], index: 5, kind: input, shape index: {}]
  %s6 = inlined_call_operand.vmem [shape: f32[1,32], index: 6, kind: input, shape index: {}]
  %s7 = inlined_call_operand.vmem [shape: f32[32,32], index: 7, kind: input, shape index: {}]
  %s8 = inlined_call_operand.vmem [shape: f32[1,32], index: 8, kind: input, shape index: {}]
  %s9 = inlined_call_operand.vmem [shape: f32[1,32], index: 9, kind: input, shape index: {}]
  %s10 = inlined_call_operand.vmem [shape: f32[1,32], index: 10, kind: input, shape index: {}]
  %s11 = inlined_call_operand.vmem [shape: f32[32,32], index: 11, kind: input, shape index: {}]
  %s12 = inlined_call_operand.vmem [shape: f32[3,3,32,32], index: 12, kind: input, shape index: {}]
  %s13 = inlined_call_operand.vmem [shape: f32[1,32], index: 13, kind: input, shape index: {}]
  %s14 = inlined_call_operand.vmem [shape: f32[48,32], index: 14, kind: input, shape index: {}]
  %s15 = inlined_call_operand.vmem [shape: f32[1,32], index: 15, kind: input, shape index: {}]
  %s16 = inlined_call_operand.vmem [shape: f32[2,256,32], index: 16, kind: output, shape index: {}]
  %s17 = sld [smem:[#allocation0]]
  $region97: #{tpu_custom_call.1} parent=0
    _
  %s19 = ssub.s32 1, %s17
  %s20 = scalar_select 0, %s19, %s17
  loop: start=0, step=1, limit=4
  $region2: #{tpu_custom_call.1} parent=0 // loop_pre_header
    _
  $region3: #{tpu_custom_call.1} parent=0 // loop_header
    %s22 = sphi 0, %s26
    %p23 = scmp.ge.s32.totalorder %s22, 4
    %s32 = sphi 0, %s34
    %s35 = sphi 0, %s32
    %s36 = sphi 0, %s35
    %s52 = sphi 0, %s36
    %s58 = sphi 0, %s60
    %s61 = sphi 0, %s58
    %s62 = sphi 0, %s61
    %s78 = sphi 0, %s62
    %s82 = sphi 0, %s82
    %s84 = sphi 0, %s82
    %s85 = sphi 0, %s84
    %s99 = sphi 0, %s85
    %s103 = sphi 0, %s103
    %s105 = sphi 0, %s103
    %s106 = sphi 0, %s105
    %s120 = sphi 0, %s106
    %s124 = sphi 0, %s124
    %s126 = sphi 0, %s124
    %s127 = sphi 0, %s126
    %s141 = sphi 0, %s127
    %s145 = sphi 0, %s145
    %s147 = sphi 0, %s145
    %s148 = sphi 0, %s147
    %s162 = sphi 0, %s148
    %s166 = sphi 0, %s166
    %s168 = sphi 0, %s166
    %s169 = sphi 0, %s168
    %s183 = sphi 0, %s169
    %s187 = sphi 0, %s187
    %s189 = sphi 0, %s187
    %s190 = sphi 0, %s189
    %s204 = sphi 0, %s190
    %s208 = sphi 0, %s208
    %s210 = sphi 0, %s208
    %s211 = sphi 0, %s210
    %s225 = sphi 0, %s211
    %s229 = sphi 0, %s229
    %s231 = sphi 0, %s229
    %s232 = sphi 0, %s231
    %s246 = sphi 0, %s232
    %s250 = sphi 0, %s250
    %s252 = sphi 0, %s250
    %s253 = sphi 0, %s252
    %s267 = sphi 0, %s253
    %s271 = sphi 0, %s271
    %s273 = sphi 0, %s271
    %s274 = sphi 0, %s273
    %s288 = sphi 0, %s274
    %s292 = sphi 0, %s292
    %s294 = sphi 0, %s292
    %s295 = sphi 0, %s294
    %s309 = sphi 0, %s295
    %s313 = sphi 0, %s313
    %s315 = sphi 0, %s313
    %s316 = sphi 0, %s315
    %s330 = sphi 0, %s316
    %s334 = sphi 0, %s334
    %s336 = sphi 0, %s334
    %s337 = sphi 0, %s336
    %s351 = sphi 0, %s337
    %s355 = sphi 0, %s355
    %s357 = sphi 0, %s355
    %s358 = sphi 0, %s357
    %s372 = sphi 0, %s358
    %s378 = sphi 0, %s380
    %s381 = sphi 0, %s378
    %s382 = sphi 0, %s381
    %s398 = sphi 0, %s382
  $region4: #{tpu_custom_call.1} parent=0 // loop_header_branch
    %25 = sbr.rel (%p23) target = $region8
  $region5: #{tpu_custom_call.1} parent=0 // loop_body
    %s27 = ssub.s32 %s22, 1
    %s28 = ssub.s32 %s22, 2
    %s29 = sadd.s32 %s22, 1
    %s30 = ssub.s32 %s22, %s29
    %p31 = scmp.eq.s32.totalorder %s30, 0
    %s33 = sadd.s32 %s32, 1
    %s34 = scalar_select %p31, %s32, %s33
    %p37 = pneg %p31
    %p38 = scmp.eq.s32.totalorder %s22, 1
    %p39 = por %p37, %p38
    %p40 = scmp.ne.s32.totalorder %s32, %s35
    %p41 = scmp.eq.s32.totalorder %s22, 0
    %p42 = por %p40, %p41
    %p43 = scmp.ne.s32.totalorder %s32, %s35
    %p44 = scmp.eq.s32.totalorder %s27, 1
    %p45 = por %p43, %p44
    %p46 = scmp.ne.s32.totalorder %s35, %s36
    %p47 = scmp.eq.s32.totalorder %s27, 0
    %p48 = por %p46, %p47
    %p49 = scmp.ne.s32.totalorder %s35, %s36
    %p50 = scmp.eq.s32.totalorder %s28, 1
    %p51 = por %p49, %p50
    %p53 = scmp.ne.s32.totalorder %s36, %s52
    %p54 = scmp.eq.s32.totalorder %s28, 0
    %p55 = por %p53, %p54
    %s56 = ssub.s32 %s22, %s29
    %p57 = scmp.eq.s32.totalorder %s56, 0
    %s59 = sadd.s32 %s58, 1
    %s60 = scalar_select %p57, %s58, %s59
    %p63 = pneg %p57
    %p64 = scmp.eq.s32.totalorder %s22, 1
    %p65 = por %p63, %p64
    %p66 = scmp.ne.s32.totalorder %s58, %s61
    %p67 = scmp.eq.s32.totalorder %s22, 0
    %p68 = por %p66, %p67
    %p69 = scmp.ne.s32.totalorder %s58, %s61
    %p70 = scmp.eq.s32.totalorder %s27, 1
    %p71 = por %p69, %p70
    %p72 = scmp.ne.s32.totalorder %s61, %s62
    %p73 = scmp.eq.s32.totalorder %s27, 0
    %p74 = por %p72, %p73
    %p75 = scmp.ne.s32.totalorder %s61, %s62
    %p76 = scmp.eq.s32.totalorder %s28, 1
    %p77 = por %p75, %p76
    %p79 = scmp.ne.s32.totalorder %s62, %s78
    %p80 = scmp.eq.s32.totalorder %s28, 0
    %p81 = por %p79, %p80
    %s83 = sadd.s32 %s82, 1
    %p86 = scmp.eq.s32.totalorder %s22, 1
    %p87 = scmp.ne.s32.totalorder %s82, %s84
    %p88 = scmp.eq.s32.totalorder %s22, 0
    %p89 = por %p87, %p88
    %p90 = scmp.ne.s32.totalorder %s82, %s84
    %p91 = scmp.eq.s32.totalorder %s27, 1
    %p92 = por %p90, %p91
    %p93 = scmp.ne.s32.totalorder %s84, %s85
    %p94 = scmp.eq.s32.totalorder %s27, 0
    %p95 = por %p93, %p94
    %p96 = scmp.ne.s32.totalorder %s84, %s85
    %p97 = scmp.eq.s32.totalorder %s28, 1
    %p98 = por %p96, %p97
    %p100 = scmp.ne.s32.totalorder %s85, %s99
    %p101 = scmp.eq.s32.totalorder %s28, 0
    %p102 = por %p100, %p101
    %s104 = sadd.s32 %s103, 1
    %p107 = scmp.eq.s32.totalorder %s22, 1
    %p108 = scmp.ne.s32.totalorder %s103, %s105
    %p109 = scmp.eq.s32.totalorder %s22, 0
    %p110 = por %p108, %p109
    %p111 = scmp.ne.s32.totalorder %s103, %s105
    %p112 = scmp.eq.s32.totalorder %s27, 1
    %p113 = por %p111, %p112
    %p114 = scmp.ne.s32.totalorder %s105, %s106
    %p115 = scmp.eq.s32.totalorder %s27, 0
    %p116 = por %p114, %p115
    %p117 = scmp.ne.s32.totalorder %s105, %s106
    %p118 = scmp.eq.s32.totalorder %s28, 1
    %p119 = por %p117, %p118
    %p121 = scmp.ne.s32.totalorder %s106, %s120
    %p122 = scmp.eq.s32.totalorder %s28, 0
    %p123 = por %p121, %p122
    %s125 = sadd.s32 %s124, 1
    %p128 = scmp.eq.s32.totalorder %s22, 1
    %p129 = scmp.ne.s32.totalorder %s124, %s126
    %p130 = scmp.eq.s32.totalorder %s22, 0
    %p131 = por %p129, %p130
    %p132 = scmp.ne.s32.totalorder %s124, %s126
    %p133 = scmp.eq.s32.totalorder %s27, 1
    %p134 = por %p132, %p133
    %p135 = scmp.ne.s32.totalorder %s126, %s127
    %p136 = scmp.eq.s32.totalorder %s27, 0
    %p137 = por %p135, %p136
    %p138 = scmp.ne.s32.totalorder %s126, %s127
    %p139 = scmp.eq.s32.totalorder %s28, 1
    %p140 = por %p138, %p139
    %p142 = scmp.ne.s32.totalorder %s127, %s141
    %p143 = scmp.eq.s32.totalorder %s28, 0
    %p144 = por %p142, %p143
    %s146 = sadd.s32 %s145, 1
    %p149 = scmp.eq.s32.totalorder %s22, 1
    %p150 = scmp.ne.s32.totalorder %s145, %s147
    %p151 = scmp.eq.s32.totalorder %s22, 0
    %p152 = por %p150, %p151
    %p153 = scmp.ne.s32.totalorder %s145, %s147
    %p154 = scmp.eq.s32.totalorder %s27, 1
    %p155 = por %p153, %p154
    %p156 = scmp.ne.s32.totalorder %s147, %s148
    %p157 = scmp.eq.s32.totalorder %s27, 0
    %p158 = por %p156, %p157
    %p159 = scmp.ne.s32.totalorder %s147, %s148
    %p160 = scmp.eq.s32.totalorder %s28, 1
    %p161 = por %p159, %p160
    %p163 = scmp.ne.s32.totalorder %s148, %s162
    %p164 = scmp.eq.s32.totalorder %s28, 0
    %p165 = por %p163, %p164
    %s167 = sadd.s32 %s166, 1
    %p170 = scmp.eq.s32.totalorder %s22, 1
    %p171 = scmp.ne.s32.totalorder %s166, %s168
    %p172 = scmp.eq.s32.totalorder %s22, 0
    %p173 = por %p171, %p172
    %p174 = scmp.ne.s32.totalorder %s166, %s168
    %p175 = scmp.eq.s32.totalorder %s27, 1
    %p176 = por %p174, %p175
    %p177 = scmp.ne.s32.totalorder %s168, %s169
    %p178 = scmp.eq.s32.totalorder %s27, 0
    %p179 = por %p177, %p178
    %p180 = scmp.ne.s32.totalorder %s168, %s169
    %p181 = scmp.eq.s32.totalorder %s28, 1
    %p182 = por %p180, %p181
    %p184 = scmp.ne.s32.totalorder %s169, %s183
    %p185 = scmp.eq.s32.totalorder %s28, 0
    %p186 = por %p184, %p185
    %s188 = sadd.s32 %s187, 1
    %p191 = scmp.eq.s32.totalorder %s22, 1
    %p192 = scmp.ne.s32.totalorder %s187, %s189
    %p193 = scmp.eq.s32.totalorder %s22, 0
    %p194 = por %p192, %p193
    %p195 = scmp.ne.s32.totalorder %s187, %s189
    %p196 = scmp.eq.s32.totalorder %s27, 1
    %p197 = por %p195, %p196
    %p198 = scmp.ne.s32.totalorder %s189, %s190
    %p199 = scmp.eq.s32.totalorder %s27, 0
    %p200 = por %p198, %p199
    %p201 = scmp.ne.s32.totalorder %s189, %s190
    %p202 = scmp.eq.s32.totalorder %s28, 1
    %p203 = por %p201, %p202
    %p205 = scmp.ne.s32.totalorder %s190, %s204
    %p206 = scmp.eq.s32.totalorder %s28, 0
    %p207 = por %p205, %p206
    %s209 = sadd.s32 %s208, 1
    %p212 = scmp.eq.s32.totalorder %s22, 1
    %p213 = scmp.ne.s32.totalorder %s208, %s210
    %p214 = scmp.eq.s32.totalorder %s22, 0
    %p215 = por %p213, %p214
    %p216 = scmp.ne.s32.totalorder %s208, %s210
    %p217 = scmp.eq.s32.totalorder %s27, 1
    %p218 = por %p216, %p217
    %p219 = scmp.ne.s32.totalorder %s210, %s211
    %p220 = scmp.eq.s32.totalorder %s27, 0
    %p221 = por %p219, %p220
    %p222 = scmp.ne.s32.totalorder %s210, %s211
    %p223 = scmp.eq.s32.totalorder %s28, 1
    %p224 = por %p222, %p223
    %p226 = scmp.ne.s32.totalorder %s211, %s225
    %p227 = scmp.eq.s32.totalorder %s28, 0
    %p228 = por %p226, %p227
    %s230 = sadd.s32 %s229, 1
    %p233 = scmp.eq.s32.totalorder %s22, 1
    %p234 = scmp.ne.s32.totalorder %s229, %s231
    %p235 = scmp.eq.s32.totalorder %s22, 0
    %p236 = por %p234, %p235
    %p237 = scmp.ne.s32.totalorder %s229, %s231
    %p238 = scmp.eq.s32.totalorder %s27, 1
    %p239 = por %p237, %p238
    %p240 = scmp.ne.s32.totalorder %s231, %s232
    %p241 = scmp.eq.s32.totalorder %s27, 0
    %p242 = por %p240, %p241
    %p243 = scmp.ne.s32.totalorder %s231, %s232
    %p244 = scmp.eq.s32.totalorder %s28, 1
    %p245 = por %p243, %p244
    %p247 = scmp.ne.s32.totalorder %s232, %s246
    %p248 = scmp.eq.s32.totalorder %s28, 0
    %p249 = por %p247, %p248
    %s251 = sadd.s32 %s250, 1
    %p254 = scmp.eq.s32.totalorder %s22, 1
    %p255 = scmp.ne.s32.totalorder %s250, %s252
    %p256 = scmp.eq.s32.totalorder %s22, 0
    %p257 = por %p255, %p256
    %p258 = scmp.ne.s32.totalorder %s250, %s252
    %p259 = scmp.eq.s32.totalorder %s27, 1
    %p260 = por %p258, %p259
    %p261 = scmp.ne.s32.totalorder %s252, %s253
    %p262 = scmp.eq.s32.totalorder %s27, 0
    %p263 = por %p261, %p262
    %p264 = scmp.ne.s32.totalorder %s252, %s253
    %p265 = scmp.eq.s32.totalorder %s28, 1
    %p266 = por %p264, %p265
    %p268 = scmp.ne.s32.totalorder %s253, %s267
    %p269 = scmp.eq.s32.totalorder %s28, 0
    %p270 = por %p268, %p269
    %s272 = sadd.s32 %s271, 1
    %p275 = scmp.eq.s32.totalorder %s22, 1
    %p276 = scmp.ne.s32.totalorder %s271, %s273
    %p277 = scmp.eq.s32.totalorder %s22, 0
    %p278 = por %p276, %p277
    %p279 = scmp.ne.s32.totalorder %s271, %s273
    %p280 = scmp.eq.s32.totalorder %s27, 1
    %p281 = por %p279, %p280
    %p282 = scmp.ne.s32.totalorder %s273, %s274
    %p283 = scmp.eq.s32.totalorder %s27, 0
    %p284 = por %p282, %p283
    %p285 = scmp.ne.s32.totalorder %s273, %s274
    %p286 = scmp.eq.s32.totalorder %s28, 1
    %p287 = por %p285, %p286
    %p289 = scmp.ne.s32.totalorder %s274, %s288
    %p290 = scmp.eq.s32.totalorder %s28, 0
    %p291 = por %p289, %p290
    %s293 = sadd.s32 %s292, 1
    %p296 = scmp.eq.s32.totalorder %s22, 1
    %p297 = scmp.ne.s32.totalorder %s292, %s294
    %p298 = scmp.eq.s32.totalorder %s22, 0
    %p299 = por %p297, %p298
    %p300 = scmp.ne.s32.totalorder %s292, %s294
    %p301 = scmp.eq.s32.totalorder %s27, 1
    %p302 = por %p300, %p301
    %p303 = scmp.ne.s32.totalorder %s294, %s295
    %p304 = scmp.eq.s32.totalorder %s27, 0
    %p305 = por %p303, %p304
    %p306 = scmp.ne.s32.totalorder %s294, %s295
    %p307 = scmp.eq.s32.totalorder %s28, 1
    %p308 = por %p306, %p307
    %p310 = scmp.ne.s32.totalorder %s295, %s309
    %p311 = scmp.eq.s32.totalorder %s28, 0
    %p312 = por %p310, %p311
    %s314 = sadd.s32 %s313, 1
    %p317 = scmp.eq.s32.totalorder %s22, 1
    %p318 = scmp.ne.s32.totalorder %s313, %s315
    %p319 = scmp.eq.s32.totalorder %s22, 0
    %p320 = por %p318, %p319
    %p321 = scmp.ne.s32.totalorder %s313, %s315
    %p322 = scmp.eq.s32.totalorder %s27, 1
    %p323 = por %p321, %p322
    %p324 = scmp.ne.s32.totalorder %s315, %s316
    %p325 = scmp.eq.s32.totalorder %s27, 0
    %p326 = por %p324, %p325
    %p327 = scmp.ne.s32.totalorder %s315, %s316
    %p328 = scmp.eq.s32.totalorder %s28, 1
    %p329 = por %p327, %p328
    %p331 = scmp.ne.s32.totalorder %s316, %s330
    %p332 = scmp.eq.s32.totalorder %s28, 0
    %p333 = por %p331, %p332
    %s335 = sadd.s32 %s334, 1
    %p338 = scmp.eq.s32.totalorder %s22, 1
    %p339 = scmp.ne.s32.totalorder %s334, %s336
    %p340 = scmp.eq.s32.totalorder %s22, 0
    %p341 = por %p339, %p340
    %p342 = scmp.ne.s32.totalorder %s334, %s336
    %p343 = scmp.eq.s32.totalorder %s27, 1
    %p344 = por %p342, %p343
    %p345 = scmp.ne.s32.totalorder %s336, %s337
    %p346 = scmp.eq.s32.totalorder %s27, 0
    %p347 = por %p345, %p346
    %p348 = scmp.ne.s32.totalorder %s336, %s337
    %p349 = scmp.eq.s32.totalorder %s28, 1
    %p350 = por %p348, %p349
    %p352 = scmp.ne.s32.totalorder %s337, %s351
    %p353 = scmp.eq.s32.totalorder %s28, 0
    %p354 = por %p352, %p353
    %s356 = sadd.s32 %s355, 1
    %p359 = scmp.eq.s32.totalorder %s22, 1
    %p360 = scmp.ne.s32.totalorder %s355, %s357
    %p361 = scmp.eq.s32.totalorder %s22, 0
    %p362 = por %p360, %p361
    %p363 = scmp.ne.s32.totalorder %s355, %s357
    %p364 = scmp.eq.s32.totalorder %s27, 1
    %p365 = por %p363, %p364
    %p366 = scmp.ne.s32.totalorder %s357, %s358
    %p367 = scmp.eq.s32.totalorder %s27, 0
    %p368 = por %p366, %p367
    %p369 = scmp.ne.s32.totalorder %s357, %s358
    %p370 = scmp.eq.s32.totalorder %s28, 1
    %p371 = por %p369, %p370
    %p373 = scmp.ne.s32.totalorder %s358, %s372
    %p374 = scmp.eq.s32.totalorder %s28, 0
    %p375 = por %p373, %p374
    %s376 = ssub.s32 %s22, %s29
    %p377 = scmp.eq.s32.totalorder %s376, 0
    %s379 = sadd.s32 %s378, 1
    %s380 = scalar_select %p377, %s378, %s379
    %p383 = pneg %p377
    %p384 = scmp.eq.s32.totalorder %s22, 1
    %p385 = por %p383, %p384
    %p386 = scmp.ne.s32.totalorder %s378, %s381
    %p387 = scmp.eq.s32.totalorder %s22, 0
    %p388 = por %p386, %p387
    %p389 = scmp.ne.s32.totalorder %s378, %s381
    %p390 = scmp.eq.s32.totalorder %s27, 1
    %p391 = por %p389, %p390
    %p392 = scmp.ne.s32.totalorder %s381, %s382
    %p393 = scmp.eq.s32.totalorder %s27, 0
    %p394 = por %p392, %p393
    %p395 = scmp.ne.s32.totalorder %s381, %s382
    %p396 = scmp.eq.s32.totalorder %s28, 1
    %p397 = por %p395, %p396
    %p399 = scmp.ne.s32.totalorder %s382, %s398
    %p400 = scmp.eq.s32.totalorder %s28, 0
    %p401 = por %p399, %p400
    %p402 = scmp.le.s32.totalorder 1, %s22
    %p403 = scmp.lt.s32.totalorder %s22, 3
    %p404 = pnand %p402, %p403
    %p405 = pneg %p404
    // Predicated region
    $region9: #{tpu_custom_call.1} parent=5 // pred_check
      _
    $region10: #{tpu_custom_call.1} parent=5 // pred_check_branch
      %407 = sbr.rel (%p404) target = $region12
    $region11: #{tpu_custom_call.1} parent=5 // pred_region
      %s408 = ssub.s32 %s22, 1
      // Predicated region
      $region13: #{tpu_custom_call.1} parent=11 // pred_check
        %p409 = pneg %p95
      $region14: #{tpu_custom_call.1} parent=11 // pred_check_branch
        %411 = sbr.rel (%p409) target = $region16
      $region15: #{tpu_custom_call.1} parent=11 // pred_region
        _
      $region16: #{tpu_custom_call.1} parent=11 // pred_fallthru
        _
      // Predicated region
      $region17: #{tpu_custom_call.1} parent=11 // pred_check
        %p412 = pneg %p116
      $region18: #{tpu_custom_call.1} parent=11 // pred_check_branch
        %414 = sbr.rel (%p412) target = $region20
      $region19: #{tpu_custom_call.1} parent=11 // pred_region
        _
      $region20: #{tpu_custom_call.1} parent=11 // pred_fallthru
        _
      // Predicated region
      $region21: #{tpu_custom_call.1} parent=11 // pred_check
        %p415 = pneg %p137
      $region22: #{tpu_custom_call.1} parent=11 // pred_check_branch
        %417 = sbr.rel (%p415) target = $region24
      $region23: #{tpu_custom_call.1} parent=11 // pred_region
        _
      $region24: #{tpu_custom_call.1} parent=11 // pred_fallthru
        _
      // Predicated region
      $region25: #{tpu_custom_call.1} parent=11 // pred_check
        %p418 = pneg %p158
      $region26: #{tpu_custom_call.1} parent=11 // pred_check_branch
        %420 = sbr.rel (%p418) target = $region28
      $region27: #{tpu_custom_call.1} parent=11 // pred_region
        _
      $region28: #{tpu_custom_call.1} parent=11 // pred_fallthru
        _
      // Predicated region
      $region29: #{tpu_custom_call.1} parent=11 // pred_check
        %p421 = pneg %p179
      $region30: #{tpu_custom_call.1} parent=11 // pred_check_branch
        %423 = sbr.rel (%p421) target = $region32
      $region31: #{tpu_custom_call.1} parent=11 // pred_region
        _
      $region32: #{tpu_custom_call.1} parent=11 // pred_fallthru
        _
      // Predicated region
      $region33: #{tpu_custom_call.1} parent=11 // pred_check
        %p424 = pneg %p200
      $region34: #{tpu_custom_call.1} parent=11 // pred_check_branch
        %426 = sbr.rel (%p424) target = $region36
      $region35: #{tpu_custom_call.1} parent=11 // pred_region
        _
      $region36: #{tpu_custom_call.1} parent=11 // pred_fallthru
        _
      // Predicated region
      $region37: #{tpu_custom_call.1} parent=11 // pred_check
        %p427 = pneg %p221
      $region38: #{tpu_custom_call.1} parent=11 // pred_check_branch
        %429 = sbr.rel (%p427) target = $region40
      $region39: #{tpu_custom_call.1} parent=11 // pred_region
        _
      $region40: #{tpu_custom_call.1} parent=11 // pred_fallthru
        _
      // Predicated region
      $region41: #{tpu_custom_call.1} parent=11 // pred_check
        %p430 = pneg %p242
      $region42: #{tpu_custom_call.1} parent=11 // pred_check_branch
        %432 = sbr.rel (%p430) target = $region44
      $region43: #{tpu_custom_call.1} parent=11 // pred_region
        _
      $region44: #{tpu_custom_call.1} parent=11 // pred_fallthru
        _
      // Predicated region
      $region45: #{tpu_custom_call.1} parent=11 // pred_check
        %p433 = pneg %p263
      $region46: #{tpu_custom_call.1} parent=11 // pred_check_branch
        %435 = sbr.rel (%p433) target = $region48
      $region47: #{tpu_custom_call.1} parent=11 // pred_region
        _
      $region48: #{tpu_custom_call.1} parent=11 // pred_fallthru
        _
      // Predicated region
      $region49: #{tpu_custom_call.1} parent=11 // pred_check
        %p436 = pneg %p284
      $region50: #{tpu_custom_call.1} parent=11 // pred_check_branch
        %438 = sbr.rel (%p436) target = $region52
      $region51: #{tpu_custom_call.1} parent=11 // pred_region
        _
      $region52: #{tpu_custom_call.1} parent=11 // pred_fallthru
        _
      // Predicated region
      $region53: #{tpu_custom_call.1} parent=11 // pred_check
        %p439 = pneg %p305
      $region54: #{tpu_custom_call.1} parent=11 // pred_check_branch
        %441 = sbr.rel (%p439) target = $region56
      $region55: #{tpu_custom_call.1} parent=11 // pred_region
        _
      $region56: #{tpu_custom_call.1} parent=11 // pred_fallthru
        _
      // Predicated region
      $region57: #{tpu_custom_call.1} parent=11 // pred_check
        %p442 = pneg %p326
      $region58: #{tpu_custom_call.1} parent=11 // pred_check_branch
        %444 = sbr.rel (%p442) target = $region60
      $region59: #{tpu_custom_call.1} parent=11 // pred_region
        _
      $region60: #{tpu_custom_call.1} parent=11 // pred_fallthru
        _
      // Predicated region
      $region61: #{tpu_custom_call.1} parent=11 // pred_check
        %p445 = pneg %p347
      $region62: #{tpu_custom_call.1} parent=11 // pred_check_branch
        %447 = sbr.rel (%p445) target = $region64
      $region63: #{tpu_custom_call.1} parent=11 // pred_region
        _
      $region64: #{tpu_custom_call.1} parent=11 // pred_fallthru
        _
      // Predicated region
      $region65: #{tpu_custom_call.1} parent=11 // pred_check
        %p448 = pneg %p368
      $region66: #{tpu_custom_call.1} parent=11 // pred_check_branch
        %450 = sbr.rel (%p448) target = $region68
      $region67: #{tpu_custom_call.1} parent=11 // pred_region
        _
      $region68: #{tpu_custom_call.1} parent=11 // pred_fallthru
        _
    $region12: #{tpu_custom_call.1} parent=5 // pred_fallthru
      _
    %p451 = scmp.lt.s32.totalorder %s22, 2
    // Predicated region
    $region69: #{tpu_custom_call.1} parent=5 // pred_check
      %p452 = pneg %p451
    $region70: #{tpu_custom_call.1} parent=5 // pred_check_branch
      %454 = sbr.rel (%p452) target = $region72
    $region71: #{tpu_custom_call.1} parent=5 // pred_region
      // Predicated region
      $region73: #{tpu_custom_call.1} parent=71 // pred_check
        %p455 = pneg %p42
      $region74: #{tpu_custom_call.1} parent=71 // pred_check_branch
        %457 = sbr.rel (%p455) target = $region76
      $region75: #{tpu_custom_call.1} parent=71 // pred_region
        %p458 = scmp.lt.s32.totalorder %s22, 1
        %s459 = scalar_select %p458, %s22, 1
        %s460 = smul.addr %s459, 32
        %s461 = smul.addr %s460, 8
        %s462 = scalar_lea.vmem %s0, %s461
      $region76: #{tpu_custom_call.1} parent=71 // pred_fallthru
        _
      // Predicated region
      $region77: #{tpu_custom_call.1} parent=71 // pred_check
        %p463 = pneg %p68
      $region78: #{tpu_custom_call.1} parent=71 // pred_check_branch
        %465 = sbr.rel (%p463) target = $region80
      $region79: #{tpu_custom_call.1} parent=71 // pred_region
        %p466 = scmp.lt.s32.totalorder %s22, 1
        %s467 = scalar_select %p466, %s22, 1
        %s468 = scalar_lea.vmem %s1, %s467
      $region80: #{tpu_custom_call.1} parent=71 // pred_fallthru
        _
    $region72: #{tpu_custom_call.1} parent=5 // pred_fallthru
      _
    %p469 = scmp.le.s32.totalorder 1, %s22
    %p470 = scmp.lt.s32.totalorder %s22, 3
    %p471 = pnand %p469, %p470
    %p472 = pneg %p471
    // Predicated region
    $region81: #{tpu_custom_call.1} parent=5 // pred_check
      _
    $region82: #{tpu_custom_call.1} parent=5 // pred_check_branch
      %474 = sbr.rel (%p471) target = $region84
    $region83: #{tpu_custom_call.1} parent=5 // pred_region
      %s475 = ssub.s32 %s22, 1
      %p476 = scmp.lt.s32.totalorder %s27, 1
      %s477 = scalar_select %p476, %s27, 1
      %s478 = smul.addr %s477, 32
      %s479 = smul.addr %s478, 8
      %s480 = scalar_lea.vmem %s0, %s479
      %p481 = pneg %p48
      %p482 = pneg %p45
      %p483 = scmp.lt.s32.totalorder %s27, 1
      %s484 = scalar_select %p483, %s27, 1
      %s485 = scalar_lea.vmem %s1, %s484
      %p486 = pneg %p74
      %p487 = pneg %p71
      %p488 = pneg %p95
      %p489 = pneg %p92
      %p490 = pneg %p116
      %p491 = pneg %p113
      %p492 = pneg %p137
      %p493 = pneg %p134
      %p494 = pneg %p158
      %p495 = pneg %p155
      %p496 = pneg %p179
      %p497 = pneg %p176
      %p498 = pneg %p200
      %p499 = pneg %p197
      %p500 = pneg %p221
      %p501 = pneg %p218
      %p502 = pneg %p242
      %p503 = pneg %p239
      %p504 = pneg %p263
      %p505 = pneg %p260
      %p506 = pneg %p284
      %p507 = pneg %p281
      %p508 = pneg %p305
      %p509 = pneg %p302
      %p510 = pneg %p326
      %p511 = pneg %p323
      %p512 = pneg %p347
      %p513 = pneg %p344
      %p514 = pneg %p368
      %p515 = pneg %p365
      %p516 = pneg %p394
      %p517 = pneg %p391
      %p518 = scmp.lt.s32.totalorder %s27, 1
      %s519 = scalar_select %p518, %s27, 1
      %s520 = smul.addr %s519, 32
      %s521 = smul.addr %s520, 8
      %s522 = scalar_lea.vmem %s16, %s521
      %p523 = scmp.lt.s32.totalorder %s27, 1
      %s524 = scalar_select %p523, %s27, 1
      %s525 = smul.addr %s524, 32
      %s526 = smul.addr %s525, 8
      %s527 = scalar_lea.vmem %s0, %s526
      %p528 = scmp.lt.s32.totalorder %s27, 1
      %s529 = scalar_select %p528, %s27, 1
      %s530 = scalar_lea.vmem %s1, %s529
      %p531 = scmp.lt.s32.totalorder %s27, 1
      %s532 = scalar_select %p531, %s27, 1
      %s533 = smul.addr %s532, 32
      %s534 = smul.addr %s533, 8
      %s535 = scalar_lea.vmem %s16, %s534
      %v536 = vld [vmem:[%s527] sm:$0xff]
      %v537 = vld [vmem:[%s527 + $0x8] sm:$0xff]
      %v538 = vld [vmem:[%s527 + $0x10] sm:$0xff]
      %v539 = vld [vmem:[%s527 + $0x18] sm:$0xff]
      %v540 = vld [vmem:[%s527 + $0x20] sm:$0xff]
      %v541 = vld [vmem:[%s527 + $0x28] sm:$0xff]
      %v542 = vld [vmem:[%s527 + $0x30] sm:$0xff]
      %v543 = vld [vmem:[%s527 + $0x38] sm:$0xff]
      %v544 = vld [vmem:[%s527 + $0x40] sm:$0xff]
      %v545 = vld [vmem:[%s527 + $0x48] sm:$0xff]
      %v546 = vld [vmem:[%s527 + $0x50] sm:$0xff]
      %v547 = vld [vmem:[%s527 + $0x58] sm:$0xff]
      %v548 = vld [vmem:[%s527 + $0x60] sm:$0xff]
      %v549 = vld [vmem:[%s527 + $0x68] sm:$0xff]
      %v550 = vld [vmem:[%s527 + $0x70] sm:$0xff]
      %v551 = vld [vmem:[%s527 + $0x78] sm:$0xff]
      %v552 = vld [vmem:[%s527 + $0x80] sm:$0xff]
      %v553 = vld [vmem:[%s527 + $0x88] sm:$0xff]
      %v554 = vld [vmem:[%s527 + $0x90] sm:$0xff]
      %v555 = vld [vmem:[%s527 + $0x98] sm:$0xff]
      %v556 = vld [vmem:[%s527 + $0xa0] sm:$0xff]
      %v557 = vld [vmem:[%s527 + $0xa8] sm:$0xff]
      %v558 = vld [vmem:[%s527 + $0xb0] sm:$0xff]
      %v559 = vld [vmem:[%s527 + $0xb8] sm:$0xff]
      %v560 = vld [vmem:[%s527 + $0xc0] sm:$0xff]
      %v561 = vld [vmem:[%s527 + $0xc8] sm:$0xff]
      %v562 = vld [vmem:[%s527 + $0xd0] sm:$0xff]
      %v563 = vld [vmem:[%s527 + $0xd8] sm:$0xff]
      %v564 = vld [vmem:[%s527 + $0xe0] sm:$0xff]
      %v565 = vld [vmem:[%s527 + $0xe8] sm:$0xff]
      %v566 = vld [vmem:[%s527 + $0xf0] sm:$0xff]
      %v567 = vld [vmem:[%s527 + $0xf8] sm:$0xff]
      %v568 = vld [vmem:[%s4] sm:$0xff]
      %v569 = vld [vmem:[%s4 + $0x8] sm:$0xff]
      %v570 = vld [vmem:[%s4 + $0x10] sm:$0xff]
      %v571 = vld [vmem:[%s4 + $0x18] sm:$0xff]
      %v572 = vld [vmem:[%s4 + $0x20] sm:$0xff]
      %v573 = vld [vmem:[%s4 + $0x28] sm:$0xff]
      %v574 = vld [vmem:[%s2] sm:$0x1]
      %v575 = vld [vmem:[%s3] sm:$0x1]
      %vm576 = vcmask 392192
      %v577 = vsel %vm576, %v536, 0.0
      %v578 = vsel %vm576, %v537, 0.0
      %v579 = vadd.f32 %v577, %v578
      %v580 = vsel %vm576, %v538, 0.0
      %v581 = vadd.f32 %v579, %v580
      %v582 = vsel %vm576, %v539, 0.0
      %v583 = vadd.f32 %v581, %v582
      %v584 = vsel %vm576, %v540, 0.0
      %v585 = vadd.f32 %v583, %v584
      %v586 = vsel %vm576, %v541, 0.0
      %v587 = vadd.f32 %v585, %v586
      %v588 = vsel %vm576, %v542, 0.0
      %v589 = vadd.f32 %v587, %v588
      %v590 = vsel %vm576, %v543, 0.0
      %v591 = vadd.f32 %v589, %v590
      %v592 = vsel %vm576, %v544, 0.0
      %v593 = vadd.f32 %v591, %v592
      %v594 = vsel %vm576, %v545, 0.0
      %v595 = vadd.f32 %v593, %v594
      %v596 = vsel %vm576, %v546, 0.0
      %v597 = vadd.f32 %v595, %v596
      %v598 = vsel %vm576, %v547, 0.0
      %v599 = vadd.f32 %v597, %v598
      %v600 = vsel %vm576, %v548, 0.0
      %v601 = vadd.f32 %v599, %v600
      %v602 = vsel %vm576, %v549, 0.0
      %v603 = vadd.f32 %v601, %v602
      %v604 = vsel %vm576, %v550, 0.0
      %v605 = vadd.f32 %v603, %v604
      %v606 = vsel %vm576, %v551, 0.0
      %v607 = vadd.f32 %v605, %v606
      %v608 = vsel %vm576, %v552, 0.0
      %v609 = vadd.f32 %v607, %v608
      %v610 = vsel %vm576, %v553, 0.0
      %v611 = vadd.f32 %v609, %v610
      %v612 = vsel %vm576, %v554, 0.0
      %v613 = vadd.f32 %v611, %v612
      %v614 = vsel %vm576, %v555, 0.0
      %v615 = vadd.f32 %v613, %v614
      %v616 = vsel %vm576, %v556, 0.0
      %v617 = vadd.f32 %v615, %v616
      %v618 = vsel %vm576, %v557, 0.0
      %v619 = vadd.f32 %v617, %v618
      %v620 = vsel %vm576, %v558, 0.0
      %v621 = vadd.f32 %v619, %v620
      %v622 = vsel %vm576, %v559, 0.0
      %v623 = vadd.f32 %v621, %v622
      %v624 = vsel %vm576, %v560, 0.0
      %v625 = vadd.f32 %v623, %v624
      %v626 = vsel %vm576, %v561, 0.0
      %v627 = vadd.f32 %v625, %v626
      %v628 = vsel %vm576, %v562, 0.0
      %v629 = vadd.f32 %v627, %v628
      %v630 = vsel %vm576, %v563, 0.0
      %v631 = vadd.f32 %v629, %v630
      %v632 = vsel %vm576, %v564, 0.0
      %v633 = vadd.f32 %v631, %v632
      %v634 = vsel %vm576, %v565, 0.0
      %v635 = vadd.f32 %v633, %v634
      %v636 = vsel %vm576, %v566, 0.0
      %v637 = vadd.f32 %v635, %v636
      %v638 = vsel %vm576, %v567, 0.0
      %v639 = vadd.f32 %v637, %v638
      %v640 = vrot.slane %v639, 4
      %v641 = vadd.f32 %v639, %v640
      %v642 = vrot.slane %v641, 2
      %v643 = vadd.f32 %v641, %v642
      %v644 = vrot.slane %v643, 1
      %v645 = vadd.f32 %v643, %v644
      %v647 = vsel %vm576, %v645, 0
      %649 = vmatpush.msra.mxu0 0.0
      %650 = vmatpush.msra.mxu0 0.0
      %651 = vmatpush.msra.mxu0 0.0
      %652 = vmatpush.msra.mxu0 0.0
      %653 = vmatpush.msra.mxu0 0.0
      %654 = vmatpush.msra.mxu0 0.0
      %655 = vmatpush.msra.mxu0 0.0
      %656 = vmatpush.msra.mxu0 0.0
      %657 = vmatpush.msra.mxu0 0.0
      %658 = vmatpush.msra.mxu0 0.0
      %659 = vmatpush.msra.mxu0 %v573
      %660 = vmatpush.msra.mxu0 %v572
      %661 = vmatpush.msra.mxu0 %v571
      %662 = vmatpush.msra.mxu0 %v570
      %663 = vmatpush.msra.mxu0 %v569
      %664 = vmatpush.msra.mxu0 %v568
      %665 = vmatmul.f32.gmra.mxu0 %v647
      %v666 = vpop.f32.mrf.mxu0
      %v667 = vadd.f32 0.0, %v666
      %668 = vdwg.mxu0
      %v669 = vperm.slane %v667, 0
      %v670 = vsub.f32 %v536, %v669
      %v671 = vsub.f32 %v537, %v669
      %v672 = vsub.f32 %v538, %v669
      %v673 = vsub.f32 %v539, %v669
      %v674 = vsub.f32 %v540, %v669
      %v675 = vsub.f32 %v541, %v669
      %v676 = vsub.f32 %v542, %v669
      %v677 = vsub.f32 %v543, %v669
      %v678 = vsub.f32 %v544, %v669
      %v679 = vsub.f32 %v545, %v669
      %v680 = vsub.f32 %v546, %v669
      %v681 = vsub.f32 %v547, %v669
      %v682 = vsub.f32 %v548, %v669
      %v683 = vsub.f32 %v549, %v669
      %v684 = vsub.f32 %v550, %v669
      %v685 = vsub.f32 %v551, %v669
      %v686 = vsub.f32 %v552, %v669
      %v687 = vsub.f32 %v553, %v669
      %v688 = vsub.f32 %v554, %v669
      %v689 = vsub.f32 %v555, %v669
      %v690 = vsub.f32 %v556, %v669
      %v691 = vsub.f32 %v557, %v669
      %v692 = vsub.f32 %v558, %v669
      %v693 = vsub.f32 %v559, %v669
      %v694 = vsub.f32 %v560, %v669
      %v695 = vsub.f32 %v561, %v669
      %v696 = vsub.f32 %v562, %v669
      %v697 = vsub.f32 %v563, %v669
      %v698 = vsub.f32 %v564, %v669
      %v699 = vsub.f32 %v565, %v669
      %v700 = vsub.f32 %v566, %v669
      %v701 = vsub.f32 %v567, %v669
      %v702 = vmul.f32 %v670, %v670
      %v703 = vmul.f32 %v671, %v671
      %v704 = vmul.f32 %v672, %v672
      %v705 = vmul.f32 %v673, %v673
      %v706 = vmul.f32 %v674, %v674
      %v707 = vmul.f32 %v675, %v675
      %v708 = vmul.f32 %v676, %v676
      %v709 = vmul.f32 %v677, %v677
      %v710 = vmul.f32 %v678, %v678
      %v711 = vmul.f32 %v679, %v679
      %v712 = vmul.f32 %v680, %v680
      %v713 = vmul.f32 %v681, %v681
      %v714 = vmul.f32 %v682, %v682
      %v715 = vmul.f32 %v683, %v683
      %v716 = vmul.f32 %v684, %v684
      %v717 = vmul.f32 %v685, %v685
      %v718 = vmul.f32 %v686, %v686
      %v719 = vmul.f32 %v687, %v687
      %v720 = vmul.f32 %v688, %v688
      %v721 = vmul.f32 %v689, %v689
      %v722 = vmul.f32 %v690, %v690
      %v723 = vmul.f32 %v691, %v691
      %v724 = vmul.f32 %v692, %v692
      %v725 = vmul.f32 %v693, %v693
      %v726 = vmul.f32 %v694, %v694
      %v727 = vmul.f32 %v695, %v695
      %v728 = vmul.f32 %v696, %v696
      %v729 = vmul.f32 %v697, %v697
      %v730 = vmul.f32 %v698, %v698
      %v731 = vmul.f32 %v699, %v699
      %v732 = vmul.f32 %v700, %v700
      %v733 = vmul.f32 %v701, %v701
      %v734 = vsel %vm576, %v702, 0.0
      %v735 = vsel %vm576, %v703, 0.0
      %v736 = vadd.f32 %v734, %v735
      %v737 = vsel %vm576, %v704, 0.0
      %v738 = vadd.f32 %v736, %v737
      %v739 = vsel %vm576, %v705, 0.0
      %v740 = vadd.f32 %v738, %v739
      %v741 = vsel %vm576, %v706, 0.0
      %v742 = vadd.f32 %v740, %v741
      %v743 = vsel %vm576, %v707, 0.0
      %v744 = vadd.f32 %v742, %v743
      %v745 = vsel %vm576, %v708, 0.0
      %v746 = vadd.f32 %v744, %v745
      %v747 = vsel %vm576, %v709, 0.0
      %v748 = vadd.f32 %v746, %v747
      %v749 = vsel %vm576, %v710, 0.0
      %v750 = vadd.f32 %v748, %v749
      %v751 = vsel %vm576, %v711, 0.0
      %v752 = vadd.f32 %v750, %v751
      %v753 = vsel %vm576, %v712, 0.0
      %v754 = vadd.f32 %v752, %v753
      %v755 = vsel %vm576, %v713, 0.0
      %v756 = vadd.f32 %v754, %v755
      %v757 = vsel %vm576, %v714, 0.0
      %v758 = vadd.f32 %v756, %v757
      %v759 = vsel %vm576, %v715, 0.0
      %v760 = vadd.f32 %v758, %v759
      %v761 = vsel %vm576, %v716, 0.0
      %v762 = vadd.f32 %v760, %v761
      %v763 = vsel %vm576, %v717, 0.0
      %v764 = vadd.f32 %v762, %v763
      %v765 = vsel %vm576, %v718, 0.0
      %v766 = vadd.f32 %v764, %v765
      %v767 = vsel %vm576, %v719, 0.0
      %v768 = vadd.f32 %v766, %v767
      %v769 = vsel %vm576, %v720, 0.0
      %v770 = vadd.f32 %v768, %v769
      %v771 = vsel %vm576, %v721, 0.0
      %v772 = vadd.f32 %v770, %v771
      %v773 = vsel %vm576, %v722, 0.0
      %v774 = vadd.f32 %v772, %v773
      %v775 = vsel %vm576, %v723, 0.0
      %v776 = vadd.f32 %v774, %v775
      %v777 = vsel %vm576, %v724, 0.0
      %v778 = vadd.f32 %v776, %v777
      %v779 = vsel %vm576, %v725, 0.0
      %v780 = vadd.f32 %v778, %v779
      %v781 = vsel %vm576, %v726, 0.0
      %v782 = vadd.f32 %v780, %v781
      %v783 = vsel %vm576, %v727, 0.0
      %v784 = vadd.f32 %v782, %v783
      %v785 = vsel %vm576, %v728, 0.0
      %v786 = vadd.f32 %v784, %v785
      %v787 = vsel %vm576, %v729, 0.0
      %v788 = vadd.f32 %v786, %v787
      %v789 = vsel %vm576, %v730, 0.0
      %v790 = vadd.f32 %v788, %v789
      %v791 = vsel %vm576, %v731, 0.0
      %v792 = vadd.f32 %v790, %v791
      %v793 = vsel %vm576, %v732, 0.0
      %v794 = vadd.f32 %v792, %v793
      %v795 = vsel %vm576, %v733, 0.0
      %v796 = vadd.f32 %v794, %v795
      %v797 = vrot.slane %v796, 4
      %v798 = vadd.f32 %v796, %v797
      %v799 = vrot.slane %v798, 2
      %v800 = vadd.f32 %v798, %v799
      %v801 = vrot.slane %v800, 1
      %v802 = vadd.f32 %v800, %v801
      %v804 = vsel %vm576, %v802, 0
      %806 = vmatpush.msra.mxu0 0.0
      %807 = vmatpush.msra.mxu0 0.0
      %808 = vmatpush.msra.mxu0 0.0
      %809 = vmatpush.msra.mxu0 0.0
      %810 = vmatpush.msra.mxu0 0.0
      %811 = vmatpush.msra.mxu0 0.0
      %812 = vmatpush.msra.mxu0 0.0
      %813 = vmatpush.msra.mxu0 0.0
      %814 = vmatpush.msra.mxu0 0.0
      %815 = vmatpush.msra.mxu0 0.0
      %816 = vmatpush.msra.mxu0 %v573
      %817 = vmatpush.msra.mxu0 %v572
      %818 = vmatpush.msra.mxu0 %v571
      %819 = vmatpush.msra.mxu0 %v570
      %820 = vmatpush.msra.mxu0 %v569
      %821 = vmatpush.msra.mxu0 %v568
      %822 = vmatmul.f32.gmra.mxu0 %v804
      %v823 = vpop.f32.mrf.mxu0
      %v824 = vadd.f32 1e-06, %v823
      %825 = vdwg.mxu0
      %v826 = vrsqrt.pop %v824
      %v827 = vmul.f32 %v826, %v824
      %v828 = vmul.f32 %v827, %v826
      %v829 = vmul.f32 0.5, %v828
      %v830 = vsub.f32 1.5, %v829
      %v831 = vmul.f32 %v826, %v830
      %vm832 = vweird.f32 %v824
      %vm833 = vweird.f32 %v826
      %vm834 = vmor %vm832, %vm833
      %v835 = vsel %vm834, %v826, %v831
      %v836 = vperm.slane %v835, 0
      %v837 = vmul.f32 %v670, %v836
      %v838 = vmul.f32 %v671, %v836
      %v839 = vmul.f32 %v672, %v836
      %v840 = vmul.f32 %v673, %v836
      %v841 = vmul.f32 %v674, %v836
      %v842 = vmul.f32 %v675, %v836
      %v843 = vmul.f32 %v676, %v836
      %v844 = vmul.f32 %v677, %v836
      %v845 = vmul.f32 %v678, %v836
      %v846 = vmul.f32 %v679, %v836
      %v847 = vmul.f32 %v680, %v836
      %v848 = vmul.f32 %v681, %v836
      %v849 = vmul.f32 %v682, %v836
      %v850 = vmul.f32 %v683, %v836
      %v851 = vmul.f32 %v684, %v836
      %v852 = vmul.f32 %v685, %v836
      %v853 = vmul.f32 %v686, %v836
      %v854 = vmul.f32 %v687, %v836
      %v855 = vmul.f32 %v688, %v836
      %v856 = vmul.f32 %v689, %v836
      %v857 = vmul.f32 %v690, %v836
      %v858 = vmul.f32 %v691, %v836
      %v859 = vmul.f32 %v692, %v836
      %v860 = vmul.f32 %v693, %v836
      %v861 = vmul.f32 %v694, %v836
      %v862 = vmul.f32 %v695, %v836
      %v863 = vmul.f32 %v696, %v836
      %v864 = vmul.f32 %v697, %v836
      %v865 = vmul.f32 %v698, %v836
      %v866 = vmul.f32 %v699, %v836
      %v867 = vmul.f32 %v700, %v836
      %v868 = vmul.f32 %v701, %v836
      %v870 = vperm.slane %v574, 0
      %v872 = vmul.f32 %v837, %v870
      %v873 = vmul.f32 %v838, %v870
      %v874 = vmul.f32 %v839, %v870
      %v875 = vmul.f32 %v840, %v870
      %v876 = vmul.f32 %v841, %v870
      %v877 = vmul.f32 %v842, %v870
      %v878 = vmul.f32 %v843, %v870
      %v879 = vmul.f32 %v844, %v870
      %v880 = vmul.f32 %v845, %v870
      %v881 = vmul.f32 %v846, %v870
      %v882 = vmul.f32 %v847, %v870
      %v883 = vmul.f32 %v848, %v870
      %v884 = vmul.f32 %v849, %v870
      %v885 = vmul.f32 %v850, %v870
      %v886 = vmul.f32 %v851, %v870
      %v887 = vmul.f32 %v852, %v870
      %v888 = vmul.f32 %v853, %v870
      %v889 = vmul.f32 %v854, %v870
      %v890 = vmul.f32 %v855, %v870
      %v891 = vmul.f32 %v856, %v870
      %v892 = vmul.f32 %v857, %v870
      %v893 = vmul.f32 %v858, %v870
      %v894 = vmul.f32 %v859, %v870
      %v895 = vmul.f32 %v860, %v870
      %v896 = vmul.f32 %v861, %v870
      %v897 = vmul.f32 %v862, %v870
      %v898 = vmul.f32 %v863, %v870
      %v899 = vmul.f32 %v864, %v870
      %v900 = vmul.f32 %v865, %v870
      %v901 = vmul.f32 %v866, %v870
      %v902 = vmul.f32 %v867, %v870
      %v903 = vmul.f32 %v868, %v870
      %v905 = vperm.slane %v575, 0
      %v907 = vadd.f32 %v872, %v905
      %v908 = vadd.f32 %v873, %v905
      %v909 = vadd.f32 %v874, %v905
      %v910 = vadd.f32 %v875, %v905
      %v911 = vadd.f32 %v876, %v905
      %v912 = vadd.f32 %v877, %v905
      %v913 = vadd.f32 %v878, %v905
      %v914 = vadd.f32 %v879, %v905
      %v915 = vadd.f32 %v880, %v905
      %v916 = vadd.f32 %v881, %v905
      %v917 = vadd.f32 %v882, %v905
      %v918 = vadd.f32 %v883, %v905
      %v919 = vadd.f32 %v884, %v905
      %v920 = vadd.f32 %v885, %v905
      %v921 = vadd.f32 %v886, %v905
      %v922 = vadd.f32 %v887, %v905
      %v923 = vadd.f32 %v888, %v905
      %v924 = vadd.f32 %v889, %v905
      %v925 = vadd.f32 %v890, %v905
      %v926 = vadd.f32 %v891, %v905
      %v927 = vadd.f32 %v892, %v905
      %v928 = vadd.f32 %v893, %v905
      %v929 = vadd.f32 %v894, %v905
      %v930 = vadd.f32 %v895, %v905
      %v931 = vadd.f32 %v896, %v905
      %v932 = vadd.f32 %v897, %v905
      %v933 = vadd.f32 %v898, %v905
      %v934 = vadd.f32 %v899, %v905
      %v935 = vadd.f32 %v900, %v905
      %v936 = vadd.f32 %v901, %v905
      %v937 = vadd.f32 %v902, %v905
      %v938 = vadd.f32 %v903, %v905
      %v939 = vxor.u32 %v907, 2147483648
      %v940 = vxor.u32 %v908, 2147483648
      %v941 = vxor.u32 %v909, 2147483648
      %v942 = vxor.u32 %v910, 2147483648
      %v943 = vxor.u32 %v911, 2147483648
      %v944 = vxor.u32 %v912, 2147483648
      %v945 = vxor.u32 %v913, 2147483648
      %v946 = vxor.u32 %v914, 2147483648
      %v947 = vxor.u32 %v915, 2147483648
      %v948 = vxor.u32 %v916, 2147483648
      %v949 = vxor.u32 %v917, 2147483648
      %v950 = vxor.u32 %v918, 2147483648
      %v951 = vxor.u32 %v919, 2147483648
      %v952 = vxor.u32 %v920, 2147483648
      %v953 = vxor.u32 %v921, 2147483648
      %v954 = vxor.u32 %v922, 2147483648
      %v955 = vxor.u32 %v923, 2147483648
      %v956 = vxor.u32 %v924, 2147483648
      %v957 = vxor.u32 %v925, 2147483648
      %v958 = vxor.u32 %v926, 2147483648
      %v959 = vxor.u32 %v927, 2147483648
      %v960 = vxor.u32 %v928, 2147483648
      %v961 = vxor.u32 %v929, 2147483648
      %v962 = vxor.u32 %v930, 2147483648
      %v963 = vxor.u32 %v931, 2147483648
      %v964 = vxor.u32 %v932, 2147483648
      %v965 = vxor.u32 %v933, 2147483648
      %v966 = vxor.u32 %v934, 2147483648
      %v967 = vxor.u32 %v935, 2147483648
      %v968 = vxor.u32 %v936, 2147483648
      %v969 = vxor.u32 %v937, 2147483648
      %v970 = vxor.u32 %v938, 2147483648
      %v971 = vmul.f32 %v939, 1.442695
      %v972 = vpow.pop %v971
      %v973 = vmul.f32 %v940, 1.442695
      %v974 = vpow.pop %v973
      %v975 = vmul.f32 %v941, 1.442695
      %v976 = vpow.pop %v975
      %v977 = vmul.f32 %v942, 1.442695
      %v978 = vpow.pop %v977
      %v979 = vmul.f32 %v943, 1.442695
      %v980 = vpow.pop %v979
      %v981 = vmul.f32 %v944, 1.442695
      %v982 = vpow.pop %v981
      %v983 = vmul.f32 %v945, 1.442695
      %v984 = vpow.pop %v983
      %v985 = vmul.f32 %v946, 1.442695
      %v986 = vpow.pop %v985
      %v987 = vmul.f32 %v947, 1.442695
      %v988 = vpow.pop %v987
      %v989 = vmul.f32 %v948, 1.442695
      %v990 = vpow.pop %v989
      %v991 = vmul.f32 %v949, 1.442695
      %v992 = vpow.pop %v991
      %v993 = vmul.f32 %v950, 1.442695
      %v994 = vpow.pop %v993
      %v995 = vmul.f32 %v951, 1.442695
      %v996 = vpow.pop %v995
      %v997 = vmul.f32 %v952, 1.442695
      %v998 = vpow.pop %v997
      %v999 = vmul.f32 %v953, 1.442695
      %v1000 = vpow.pop %v999
      %v1001 = vmul.f32 %v954, 1.442695
      %v1002 = vpow.pop %v1001
      %v1003 = vmul.f32 %v955, 1.442695
      %v1004 = vpow.pop %v1003
      %v1005 = vmul.f32 %v956, 1.442695
      %v1006 = vpow.pop %v1005
      %v1007 = vmul.f32 %v957, 1.442695
      %v1008 = vpow.pop %v1007
      %v1009 = vmul.f32 %v958, 1.442695
      %v1010 = vpow.pop %v1009
      %v1011 = vmul.f32 %v959, 1.442695
      %v1012 = vpow.pop %v1011
      %v1013 = vmul.f32 %v960, 1.442695
      %v1014 = vpow.pop %v1013
      %v1015 = vmul.f32 %v961, 1.442695
      %v1016 = vpow.pop %v1015
      %v1017 = vmul.f32 %v962, 1.442695
      %v1018 = vpow.pop %v1017
      %v1019 = vmul.f32 %v963, 1.442695
      %v1020 = vpow.pop %v1019
      %v1021 = vmul.f32 %v964, 1.442695
      %v1022 = vpow.pop %v1021
      %v1023 = vmul.f32 %v965, 1.442695
      %v1024 = vpow.pop %v1023
      %v1025 = vmul.f32 %v966, 1.442695
      %v1026 = vpow.pop %v1025
      %v1027 = vmul.f32 %v967, 1.442695
      %v1028 = vpow.pop %v1027
      %v1029 = vmul.f32 %v968, 1.442695
      %v1030 = vpow.pop %v1029
      %v1031 = vmul.f32 %v969, 1.442695
      %v1032 = vpow.pop %v1031
      %v1033 = vmul.f32 %v970, 1.442695
      %v1034 = vpow.pop %v1033
      %v1035 = vadd.f32 %v972, 1.0
      %v1036 = vadd.f32 %v974, 1.0
      %v1037 = vadd.f32 %v976, 1.0
      %v1038 = vadd.f32 %v978, 1.0
      %v1039 = vadd.f32 %v980, 1.0
      %v1040 = vadd.f32 %v982, 1.0
      %v1041 = vadd.f32 %v984, 1.0
      %v1042 = vadd.f32 %v986, 1.0
      %v1043 = vadd.f32 %v988, 1.0
      %v1044 = vadd.f32 %v990, 1.0
      %v1045 = vadd.f32 %v992, 1.0
      %v1046 = vadd.f32 %v994, 1.0
      %v1047 = vadd.f32 %v996, 1.0
      %v1048 = vadd.f32 %v998, 1.0
      %v1049 = vadd.f32 %v1000, 1.0
      %v1050 = vadd.f32 %v1002, 1.0
      %v1051 = vadd.f32 %v1004, 1.0
      %v1052 = vadd.f32 %v1006, 1.0
      %v1053 = vadd.f32 %v1008, 1.0
      %v1054 = vadd.f32 %v1010, 1.0
      %v1055 = vadd.f32 %v1012, 1.0
      %v1056 = vadd.f32 %v1014, 1.0
      %v1057 = vadd.f32 %v1016, 1.0
      %v1058 = vadd.f32 %v1018, 1.0
      %v1059 = vadd.f32 %v1020, 1.0
      %v1060 = vadd.f32 %v1022, 1.0
      %v1061 = vadd.f32 %v1024, 1.0
      %v1062 = vadd.f32 %v1026, 1.0
      %v1063 = vadd.f32 %v1028, 1.0
      %v1064 = vadd.f32 %v1030, 1.0
      %v1065 = vadd.f32 %v1032, 1.0
      %v1066 = vadd.f32 %v1034, 1.0
      %v1067 = vrcp.pop %v1035
      %v1068 = vmul.f32 %v1035, %v1067
      %v1069 = vsub.f32 1.0, %v1068
      %v1070 = vmul.f32 %v1067, %v1069
      %v1071 = vadd.f32 %v1067, %v1070
      %vm1072 = vweird.f32 %v1035
      %vm1073 = vweird.f32 %v1067
      %vm1074 = vmor %vm1072, %vm1073
      %v1075 = vsel %vm1074, %v1067, %v1071
      %v1076 = vand.u32 2147483647, %v1035
      %vm1077 = vcmp.eq.f32.partialorder %v1076, 8.507059e+37
      %v1078 = vand.u32 %v1035, 2147483648
      %v1079 = vor.u32 1.1754944e-38, %v1078
      %v1080 = vsel %vm1077, %v1079, %v1075
      %v1081 = vmul.f32 1.0, %v1080
      %v1082 = vrcp.pop %v1036
      %v1083 = vmul.f32 %v1036, %v1082
      %v1084 = vsub.f32 1.0, %v1083
      %v1085 = vmul.f32 %v1082, %v1084
      %v1086 = vadd.f32 %v1082, %v1085
      %vm1087 = vweird.f32 %v1036
      %vm1088 = vweird.f32 %v1082
      %vm1089 = vmor %vm1087, %vm1088
      %v1090 = vsel %vm1089, %v1082, %v1086
      %v1091 = vand.u32 2147483647, %v1036
      %vm1092 = vcmp.eq.f32.partialorder %v1091, 8.507059e+37
      %v1093 = vand.u32 %v1036, 2147483648
      %v1094 = vor.u32 1.1754944e-38, %v1093
      %v1095 = vsel %vm1092, %v1094, %v1090
      %v1096 = vmul.f32 1.0, %v1095
      %v1097 = vrcp.pop %v1037
      %v1098 = vmul.f32 %v1037, %v1097
      %v1099 = vsub.f32 1.0, %v1098
      %v1100 = vmul.f32 %v1097, %v1099
      %v1101 = vadd.f32 %v1097, %v1100
      %vm1102 = vweird.f32 %v1037
      %vm1103 = vweird.f32 %v1097
      %vm1104 = vmor %vm1102, %vm1103
      %v1105 = vsel %vm1104, %v1097, %v1101
      %v1106 = vand.u32 2147483647, %v1037
      %vm1107 = vcmp.eq.f32.partialorder %v1106, 8.507059e+37
      %v1108 = vand.u32 %v1037, 2147483648
      %v1109 = vor.u32 1.1754944e-38, %v1108
      %v1110 = vsel %vm1107, %v1109, %v1105
      %v1111 = vmul.f32 1.0, %v1110
      %v1112 = vrcp.pop %v1038
      %v1113 = vmul.f32 %v1038, %v1112
      %v1114 = vsub.f32 1.0, %v1113
      %v1115 = vmul.f32 %v1112, %v1114
      %v1116 = vadd.f32 %v1112, %v1115
      %vm1117 = vweird.f32 %v1038
      %vm1118 = vweird.f32 %v1112
      %vm1119 = vmor %vm1117, %vm1118
      %v1120 = vsel %vm1119, %v1112, %v1116
      %v1121 = vand.u32 2147483647, %v1038
      %vm1122 = vcmp.eq.f32.partialorder %v1121, 8.507059e+37
      %v1123 = vand.u32 %v1038, 2147483648
      %v1124 = vor.u32 1.1754944e-38, %v1123
      %v1125 = vsel %vm1122, %v1124, %v1120
      %v1126 = vmul.f32 1.0, %v1125
      %v1127 = vrcp.pop %v1039
      %v1128 = vmul.f32 %v1039, %v1127
      %v1129 = vsub.f32 1.0, %v1128
      %v1130 = vmul.f32 %v1127, %v1129
      %v1131 = vadd.f32 %v1127, %v1130
      %vm1132 = vweird.f32 %v1039
      %vm1133 = vweird.f32 %v1127
      %vm1134 = vmor %vm1132, %vm1133
      %v1135 = vsel %vm1134, %v1127, %v1131
      %v1136 = vand.u32 2147483647, %v1039
      %vm1137 = vcmp.eq.f32.partialorder %v1136, 8.507059e+37
      %v1138 = vand.u32 %v1039, 2147483648
      %v1139 = vor.u32 1.1754944e-38, %v1138
      %v1140 = vsel %vm1137, %v1139, %v1135
      %v1141 = vmul.f32 1.0, %v1140
      %v1142 = vrcp.pop %v1040
      %v1143 = vmul.f32 %v1040, %v1142
      %v1144 = vsub.f32 1.0, %v1143
      %v1145 = vmul.f32 %v1142, %v1144
      %v1146 = vadd.f32 %v1142, %v1145
      %vm1147 = vweird.f32 %v1040
      %vm1148 = vweird.f32 %v1142
      %vm1149 = vmor %vm1147, %vm1148
      %v1150 = vsel %vm1149, %v1142, %v1146
      %v1151 = vand.u32 2147483647, %v1040
      %vm1152 = vcmp.eq.f32.partialorder %v1151, 8.507059e+37
      %v1153 = vand.u32 %v1040, 2147483648
      %v1154 = vor.u32 1.1754944e-38, %v1153
      %v1155 = vsel %vm1152, %v1154, %v1150
      %v1156 = vmul.f32 1.0, %v1155
      %v1157 = vrcp.pop %v1041
      %v1158 = vmul.f32 %v1041, %v1157
      %v1159 = vsub.f32 1.0, %v1158
      %v1160 = vmul.f32 %v1157, %v1159
      %v1161 = vadd.f32 %v1157, %v1160
      %vm1162 = vweird.f32 %v1041
      %vm1163 = vweird.f32 %v1157
      %vm1164 = vmor %vm1162, %vm1163
      %v1165 = vsel %vm1164, %v1157, %v1161
      %v1166 = vand.u32 2147483647, %v1041
      %vm1167 = vcmp.eq.f32.partialorder %v1166, 8.507059e+37
      %v1168 = vand.u32 %v1041, 2147483648
      %v1169 = vor.u32 1.1754944e-38, %v1168
      %v1170 = vsel %vm1167, %v1169, %v1165
      %v1171 = vmul.f32 1.0, %v1170
      %v1172 = vrcp.pop %v1042
      %v1173 = vmul.f32 %v1042, %v1172
      %v1174 = vsub.f32 1.0, %v1173
      %v1175 = vmul.f32 %v1172, %v1174
      %v1176 = vadd.f32 %v1172, %v1175
      %vm1177 = vweird.f32 %v1042
      %vm1178 = vweird.f32 %v1172
      %vm1179 = vmor %vm1177, %vm1178
      %v1180 = vsel %vm1179, %v1172, %v1176
      %v1181 = vand.u32 2147483647, %v1042
      %vm1182 = vcmp.eq.f32.partialorder %v1181, 8.507059e+37
      %v1183 = vand.u32 %v1042, 2147483648
      %v1184 = vor.u32 1.1754944e-38, %v1183
      %v1185 = vsel %vm1182, %v1184, %v1180
      %v1186 = vmul.f32 1.0, %v1185
      %v1187 = vrcp.pop %v1043
      %v1188 = vmul.f32 %v1043, %v1187
      %v1189 = vsub.f32 1.0, %v1188
      %v1190 = vmul.f32 %v1187, %v1189
      %v1191 = vadd.f32 %v1187, %v1190
      %vm1192 = vweird.f32 %v1043
      %vm1193 = vweird.f32 %v1187
      %vm1194 = vmor %vm1192, %vm1193
      %v1195 = vsel %vm1194, %v1187, %v1191
      %v1196 = vand.u32 2147483647, %v1043
      %vm1197 = vcmp.eq.f32.partialorder %v1196, 8.507059e+37
      %v1198 = vand.u32 %v1043, 2147483648
      %v1199 = vor.u32 1.1754944e-38, %v1198
      %v1200 = vsel %vm1197, %v1199, %v1195
      %v1201 = vmul.f32 1.0, %v1200
      %v1202 = vrcp.pop %v1044
      %v1203 = vmul.f32 %v1044, %v1202
      %v1204 = vsub.f32 1.0, %v1203
      %v1205 = vmul.f32 %v1202, %v1204
      %v1206 = vadd.f32 %v1202, %v1205
      %vm1207 = vweird.f32 %v1044
      %vm1208 = vweird.f32 %v1202
      %vm1209 = vmor %vm1207, %vm1208
      %v1210 = vsel %vm1209, %v1202, %v1206
      %v1211 = vand.u32 2147483647, %v1044
      %vm1212 = vcmp.eq.f32.partialorder %v1211, 8.507059e+37
      %v1213 = vand.u32 %v1044, 2147483648
      %v1214 = vor.u32 1.1754944e-38, %v1213
      %v1215 = vsel %vm1212, %v1214, %v1210
      %v1216 = vmul.f32 1.0, %v1215
      %v1217 = vrcp.pop %v1045
      %v1218 = vmul.f32 %v1045, %v1217
      %v1219 = vsub.f32 1.0, %v1218
      %v1220 = vmul.f32 %v1217, %v1219
      %v1221 = vadd.f32 %v1217, %v1220
      %vm1222 = vweird.f32 %v1045
      %vm1223 = vweird.f32 %v1217
      %vm1224 = vmor %vm1222, %vm1223
      %v1225 = vsel %vm1224, %v1217, %v1221
      %v1226 = vand.u32 2147483647, %v1045
      %vm1227 = vcmp.eq.f32.partialorder %v1226, 8.507059e+37
      %v1228 = vand.u32 %v1045, 2147483648
      %v1229 = vor.u32 1.1754944e-38, %v1228
      %v1230 = vsel %vm1227, %v1229, %v1225
      %v1231 = vmul.f32 1.0, %v1230
      %v1232 = vrcp.pop %v1046
      %v1233 = vmul.f32 %v1046, %v1232
      %v1234 = vsub.f32 1.0, %v1233
      %v1235 = vmul.f32 %v1232, %v1234
      %v1236 = vadd.f32 %v1232, %v1235
      %vm1237 = vweird.f32 %v1046
      %vm1238 = vweird.f32 %v1232
      %vm1239 = vmor %vm1237, %vm1238
      %v1240 = vsel %vm1239, %v1232, %v1236
      %v1241 = vand.u32 2147483647, %v1046
      %vm1242 = vcmp.eq.f32.partialorder %v1241, 8.507059e+37
      %v1243 = vand.u32 %v1046, 2147483648
      %v1244 = vor.u32 1.1754944e-38, %v1243
      %v1245 = vsel %vm1242, %v1244, %v1240
      %v1246 = vmul.f32 1.0, %v1245
      %v1247 = vrcp.pop %v1047
      %v1248 = vmul.f32 %v1047, %v1247
      %v1249 = vsub.f32 1.0, %v1248
      %v1250 = vmul.f32 %v1247, %v1249
      %v1251 = vadd.f32 %v1247, %v1250
      %vm1252 = vweird.f32 %v1047
      %vm1253 = vweird.f32 %v1247
      %vm1254 = vmor %vm1252, %vm1253
      %v1255 = vsel %vm1254, %v1247, %v1251
      %v1256 = vand.u32 2147483647, %v1047
      %vm1257 = vcmp.eq.f32.partialorder %v1256, 8.507059e+37
      %v1258 = vand.u32 %v1047, 2147483648
      %v1259 = vor.u32 1.1754944e-38, %v1258
      %v1260 = vsel %vm1257, %v1259, %v1255
      %v1261 = vmul.f32 1.0, %v1260
      %v1262 = vrcp.pop %v1048
      %v1263 = vmul.f32 %v1048, %v1262
      %v1264 = vsub.f32 1.0, %v1263
      %v1265 = vmul.f32 %v1262, %v1264
      %v1266 = vadd.f32 %v1262, %v1265
      %vm1267 = vweird.f32 %v1048
      %vm1268 = vweird.f32 %v1262
      %vm1269 = vmor %vm1267, %vm1268
      %v1270 = vsel %vm1269, %v1262, %v1266
      %v1271 = vand.u32 2147483647, %v1048
      %vm1272 = vcmp.eq.f32.partialorder %v1271, 8.507059e+37
      %v1273 = vand.u32 %v1048, 2147483648
      %v1274 = vor.u32 1.1754944e-38, %v1273
      %v1275 = vsel %vm1272, %v1274, %v1270
      %v1276 = vmul.f32 1.0, %v1275
      %v1277 = vrcp.pop %v1049
      %v1278 = vmul.f32 %v1049, %v1277
      %v1279 = vsub.f32 1.0, %v1278
      %v1280 = vmul.f32 %v1277, %v1279
      %v1281 = vadd.f32 %v1277, %v1280
      %vm1282 = vweird.f32 %v1049
      %vm1283 = vweird.f32 %v1277
      %vm1284 = vmor %vm1282, %vm1283
      %v1285 = vsel %vm1284, %v1277, %v1281
      %v1286 = vand.u32 2147483647, %v1049
      %vm1287 = vcmp.eq.f32.partialorder %v1286, 8.507059e+37
      %v1288 = vand.u32 %v1049, 2147483648
      %v1289 = vor.u32 1.1754944e-38, %v1288
      %v1290 = vsel %vm1287, %v1289, %v1285
      %v1291 = vmul.f32 1.0, %v1290
      %v1292 = vrcp.pop %v1050
      %v1293 = vmul.f32 %v1050, %v1292
      %v1294 = vsub.f32 1.0, %v1293
      %v1295 = vmul.f32 %v1292, %v1294
      %v1296 = vadd.f32 %v1292, %v1295
      %vm1297 = vweird.f32 %v1050
      %vm1298 = vweird.f32 %v1292
      %vm1299 = vmor %vm1297, %vm1298
      %v1300 = vsel %vm1299, %v1292, %v1296
      %v1301 = vand.u32 2147483647, %v1050
      %vm1302 = vcmp.eq.f32.partialorder %v1301, 8.507059e+37
      %v1303 = vand.u32 %v1050, 2147483648
      %v1304 = vor.u32 1.1754944e-38, %v1303
      %v1305 = vsel %vm1302, %v1304, %v1300
      %v1306 = vmul.f32 1.0, %v1305
      %v1307 = vrcp.pop %v1051
      %v1308 = vmul.f32 %v1051, %v1307
      %v1309 = vsub.f32 1.0, %v1308
      %v1310 = vmul.f32 %v1307, %v1309
      %v1311 = vadd.f32 %v1307, %v1310
      %vm1312 = vweird.f32 %v1051
      %vm1313 = vweird.f32 %v1307
      %vm1314 = vmor %vm1312, %vm1313
      %v1315 = vsel %vm1314, %v1307, %v1311
      %v1316 = vand.u32 2147483647, %v1051
      %vm1317 = vcmp.eq.f32.partialorder %v1316, 8.507059e+37
      %v1318 = vand.u32 %v1051, 2147483648
      %v1319 = vor.u32 1.1754944e-38, %v1318
      %v1320 = vsel %vm1317, %v1319, %v1315
      %v1321 = vmul.f32 1.0, %v1320
      %v1322 = vrcp.pop %v1052
      %v1323 = vmul.f32 %v1052, %v1322
      %v1324 = vsub.f32 1.0, %v1323
      %v1325 = vmul.f32 %v1322, %v1324
      %v1326 = vadd.f32 %v1322, %v1325
      %vm1327 = vweird.f32 %v1052
      %vm1328 = vweird.f32 %v1322
      %vm1329 = vmor %vm1327, %vm1328
      %v1330 = vsel %vm1329, %v1322, %v1326
      %v1331 = vand.u32 2147483647, %v1052
      %vm1332 = vcmp.eq.f32.partialorder %v1331, 8.507059e+37
      %v1333 = vand.u32 %v1052, 2147483648
      %v1334 = vor.u32 1.1754944e-38, %v1333
      %v1335 = vsel %vm1332, %v1334, %v1330
      %v1336 = vmul.f32 1.0, %v1335
      %v1337 = vrcp.pop %v1053
      %v1338 = vmul.f32 %v1053, %v1337
      %v1339 = vsub.f32 1.0, %v1338
      %v1340 = vmul.f32 %v1337, %v1339
      %v1341 = vadd.f32 %v1337, %v1340
      %vm1342 = vweird.f32 %v1053
      %vm1343 = vweird.f32 %v1337
      %vm1344 = vmor %vm1342, %vm1343
      %v1345 = vsel %vm1344, %v1337, %v1341
      %v1346 = vand.u32 2147483647, %v1053
      %vm1347 = vcmp.eq.f32.partialorder %v1346, 8.507059e+37
      %v1348 = vand.u32 %v1053, 2147483648
      %v1349 = vor.u32 1.1754944e-38, %v1348
      %v1350 = vsel %vm1347, %v1349, %v1345
      %v1351 = vmul.f32 1.0, %v1350
      %v1352 = vrcp.pop %v1054
      %v1353 = vmul.f32 %v1054, %v1352
      %v1354 = vsub.f32 1.0, %v1353
      %v1355 = vmul.f32 %v1352, %v1354
      %v1356 = vadd.f32 %v1352, %v1355
      %vm1357 = vweird.f32 %v1054
      %vm1358 = vweird.f32 %v1352
      %vm1359 = vmor %vm1357, %vm1358
      %v1360 = vsel %vm1359, %v1352, %v1356
      %v1361 = vand.u32 2147483647, %v1054
      %vm1362 = vcmp.eq.f32.partialorder %v1361, 8.507059e+37
      %v1363 = vand.u32 %v1054, 2147483648
      %v1364 = vor.u32 1.1754944e-38, %v1363
      %v1365 = vsel %vm1362, %v1364, %v1360
      %v1366 = vmul.f32 1.0, %v1365
      %v1367 = vrcp.pop %v1055
      %v1368 = vmul.f32 %v1055, %v1367
      %v1369 = vsub.f32 1.0, %v1368
      %v1370 = vmul.f32 %v1367, %v1369
      %v1371 = vadd.f32 %v1367, %v1370
      %vm1372 = vweird.f32 %v1055
      %vm1373 = vweird.f32 %v1367
      %vm1374 = vmor %vm1372, %vm1373
      %v1375 = vsel %vm1374, %v1367, %v1371
      %v1376 = vand.u32 2147483647, %v1055
      %vm1377 = vcmp.eq.f32.partialorder %v1376, 8.507059e+37
      %v1378 = vand.u32 %v1055, 2147483648
      %v1379 = vor.u32 1.1754944e-38, %v1378
      %v1380 = vsel %vm1377, %v1379, %v1375
      %v1381 = vmul.f32 1.0, %v1380
      %v1382 = vrcp.pop %v1056
      %v1383 = vmul.f32 %v1056, %v1382
      %v1384 = vsub.f32 1.0, %v1383
      %v1385 = vmul.f32 %v1382, %v1384
      %v1386 = vadd.f32 %v1382, %v1385
      %vm1387 = vweird.f32 %v1056
      %vm1388 = vweird.f32 %v1382
      %vm1389 = vmor %vm1387, %vm1388
      %v1390 = vsel %vm1389, %v1382, %v1386
      %v1391 = vand.u32 2147483647, %v1056
      %vm1392 = vcmp.eq.f32.partialorder %v1391, 8.507059e+37
      %v1393 = vand.u32 %v1056, 2147483648
      %v1394 = vor.u32 1.1754944e-38, %v1393
      %v1395 = vsel %vm1392, %v1394, %v1390
      %v1396 = vmul.f32 1.0, %v1395
      %v1397 = vrcp.pop %v1057
      %v1398 = vmul.f32 %v1057, %v1397
      %v1399 = vsub.f32 1.0, %v1398
      %v1400 = vmul.f32 %v1397, %v1399
      %v1401 = vadd.f32 %v1397, %v1400
      %vm1402 = vweird.f32 %v1057
      %vm1403 = vweird.f32 %v1397
      %vm1404 = vmor %vm1402, %vm1403
      %v1405 = vsel %vm1404, %v1397, %v1401
      %v1406 = vand.u32 2147483647, %v1057
      %vm1407 = vcmp.eq.f32.partialorder %v1406, 8.507059e+37
      %v1408 = vand.u32 %v1057, 2147483648
      %v1409 = vor.u32 1.1754944e-38, %v1408
      %v1410 = vsel %vm1407, %v1409, %v1405
      %v1411 = vmul.f32 1.0, %v1410
      %v1412 = vrcp.pop %v1058
      %v1413 = vmul.f32 %v1058, %v1412
      %v1414 = vsub.f32 1.0, %v1413
      %v1415 = vmul.f32 %v1412, %v1414
      %v1416 = vadd.f32 %v1412, %v1415
      %vm1417 = vweird.f32 %v1058
      %vm1418 = vweird.f32 %v1412
      %vm1419 = vmor %vm1417, %vm1418
      %v1420 = vsel %vm1419, %v1412, %v1416
      %v1421 = vand.u32 2147483647, %v1058
      %vm1422 = vcmp.eq.f32.partialorder %v1421, 8.507059e+37
      %v1423 = vand.u32 %v1058, 2147483648
      %v1424 = vor.u32 1.1754944e-38, %v1423
      %v1425 = vsel %vm1422, %v1424, %v1420
      %v1426 = vmul.f32 1.0, %v1425
      %v1427 = vrcp.pop %v1059
      %v1428 = vmul.f32 %v1059, %v1427
      %v1429 = vsub.f32 1.0, %v1428
      %v1430 = vmul.f32 %v1427, %v1429
      %v1431 = vadd.f32 %v1427, %v1430
      %vm1432 = vweird.f32 %v1059
      %vm1433 = vweird.f32 %v1427
      %vm1434 = vmor %vm1432, %vm1433
      %v1435 = vsel %vm1434, %v1427, %v1431
      %v1436 = vand.u32 2147483647, %v1059
      %vm1437 = vcmp.eq.f32.partialorder %v1436, 8.507059e+37
      %v1438 = vand.u32 %v1059, 2147483648
      %v1439 = vor.u32 1.1754944e-38, %v1438
      %v1440 = vsel %vm1437, %v1439, %v1435
      %v1441 = vmul.f32 1.0, %v1440
      %v1442 = vrcp.pop %v1060
      %v1443 = vmul.f32 %v1060, %v1442
      %v1444 = vsub.f32 1.0, %v1443
      %v1445 = vmul.f32 %v1442, %v1444
      %v1446 = vadd.f32 %v1442, %v1445
      %vm1447 = vweird.f32 %v1060
      %vm1448 = vweird.f32 %v1442
      %vm1449 = vmor %vm1447, %vm1448
      %v1450 = vsel %vm1449, %v1442, %v1446
      %v1451 = vand.u32 2147483647, %v1060
      %vm1452 = vcmp.eq.f32.partialorder %v1451, 8.507059e+37
      %v1453 = vand.u32 %v1060, 2147483648
      %v1454 = vor.u32 1.1754944e-38, %v1453
      %v1455 = vsel %vm1452, %v1454, %v1450
      %v1456 = vmul.f32 1.0, %v1455
      %v1457 = vrcp.pop %v1061
      %v1458 = vmul.f32 %v1061, %v1457
      %v1459 = vsub.f32 1.0, %v1458
      %v1460 = vmul.f32 %v1457, %v1459
      %v1461 = vadd.f32 %v1457, %v1460
      %vm1462 = vweird.f32 %v1061
      %vm1463 = vweird.f32 %v1457
      %vm1464 = vmor %vm1462, %vm1463
      %v1465 = vsel %vm1464, %v1457, %v1461
      %v1466 = vand.u32 2147483647, %v1061
      %vm1467 = vcmp.eq.f32.partialorder %v1466, 8.507059e+37
      %v1468 = vand.u32 %v1061, 2147483648
      %v1469 = vor.u32 1.1754944e-38, %v1468
      %v1470 = vsel %vm1467, %v1469, %v1465
      %v1471 = vmul.f32 1.0, %v1470
      %v1472 = vrcp.pop %v1062
      %v1473 = vmul.f32 %v1062, %v1472
      %v1474 = vsub.f32 1.0, %v1473
      %v1475 = vmul.f32 %v1472, %v1474
      %v1476 = vadd.f32 %v1472, %v1475
      %vm1477 = vweird.f32 %v1062
      %vm1478 = vweird.f32 %v1472
      %vm1479 = vmor %vm1477, %vm1478
      %v1480 = vsel %vm1479, %v1472, %v1476
      %v1481 = vand.u32 2147483647, %v1062
      %vm1482 = vcmp.eq.f32.partialorder %v1481, 8.507059e+37
      %v1483 = vand.u32 %v1062, 2147483648
      %v1484 = vor.u32 1.1754944e-38, %v1483
      %v1485 = vsel %vm1482, %v1484, %v1480
      %v1486 = vmul.f32 1.0, %v1485
      %v1487 = vrcp.pop %v1063
      %v1488 = vmul.f32 %v1063, %v1487
      %v1489 = vsub.f32 1.0, %v1488
      %v1490 = vmul.f32 %v1487, %v1489
      %v1491 = vadd.f32 %v1487, %v1490
      %vm1492 = vweird.f32 %v1063
      %vm1493 = vweird.f32 %v1487
      %vm1494 = vmor %vm1492, %vm1493
      %v1495 = vsel %vm1494, %v1487, %v1491
      %v1496 = vand.u32 2147483647, %v1063
      %vm1497 = vcmp.eq.f32.partialorder %v1496, 8.507059e+37
      %v1498 = vand.u32 %v1063, 2147483648
      %v1499 = vor.u32 1.1754944e-38, %v1498
      %v1500 = vsel %vm1497, %v1499, %v1495
      %v1501 = vmul.f32 1.0, %v1500
      %v1502 = vrcp.pop %v1064
      %v1503 = vmul.f32 %v1064, %v1502
      %v1504 = vsub.f32 1.0, %v1503
      %v1505 = vmul.f32 %v1502, %v1504
      %v1506 = vadd.f32 %v1502, %v1505
      %vm1507 = vweird.f32 %v1064
      %vm1508 = vweird.f32 %v1502
      %vm1509 = vmor %vm1507, %vm1508
      %v1510 = vsel %vm1509, %v1502, %v1506
      %v1511 = vand.u32 2147483647, %v1064
      %vm1512 = vcmp.eq.f32.partialorder %v1511, 8.507059e+37
      %v1513 = vand.u32 %v1064, 2147483648
      %v1514 = vor.u32 1.1754944e-38, %v1513
      %v1515 = vsel %vm1512, %v1514, %v1510
      %v1516 = vmul.f32 1.0, %v1515
      %v1517 = vrcp.pop %v1065
      %v1518 = vmul.f32 %v1065, %v1517
      %v1519 = vsub.f32 1.0, %v1518
      %v1520 = vmul.f32 %v1517, %v1519
      %v1521 = vadd.f32 %v1517, %v1520
      %vm1522 = vweird.f32 %v1065
      %vm1523 = vweird.f32 %v1517
      %vm1524 = vmor %vm1522, %vm1523
      %v1525 = vsel %vm1524, %v1517, %v1521
      %v1526 = vand.u32 2147483647, %v1065
      %vm1527 = vcmp.eq.f32.partialorder %v1526, 8.507059e+37
      %v1528 = vand.u32 %v1065, 2147483648
      %v1529 = vor.u32 1.1754944e-38, %v1528
      %v1530 = vsel %vm1527, %v1529, %v1525
      %v1531 = vmul.f32 1.0, %v1530
      %v1532 = vrcp.pop %v1066
      %v1533 = vmul.f32 %v1066, %v1532
      %v1534 = vsub.f32 1.0, %v1533
      %v1535 = vmul.f32 %v1532, %v1534
      %v1536 = vadd.f32 %v1532, %v1535
      %vm1537 = vweird.f32 %v1066
      %vm1538 = vweird.f32 %v1532
      %vm1539 = vmor %vm1537, %vm1538
      %v1540 = vsel %vm1539, %v1532, %v1536
      %v1541 = vand.u32 2147483647, %v1066
      %vm1542 = vcmp.eq.f32.partialorder %v1541, 8.507059e+37
      %v1543 = vand.u32 %v1066, 2147483648
      %v1544 = vor.u32 1.1754944e-38, %v1543
      %v1545 = vsel %vm1542, %v1544, %v1540
      %v1546 = vmul.f32 1.0, %v1545
      %v1547 = vmul.f32 %v907, %v1081
      %v1548 = vmul.f32 %v908, %v1096
      %v1549 = vmul.f32 %v909, %v1111
      %v1550 = vmul.f32 %v910, %v1126
      %v1551 = vmul.f32 %v911, %v1141
      %v1552 = vmul.f32 %v912, %v1156
      %v1553 = vmul.f32 %v913, %v1171
      %v1554 = vmul.f32 %v914, %v1186
      %v1555 = vmul.f32 %v915, %v1201
      %v1556 = vmul.f32 %v916, %v1216
      %v1557 = vmul.f32 %v917, %v1231
      %v1558 = vmul.f32 %v918, %v1246
      %v1559 = vmul.f32 %v919, %v1261
      %v1560 = vmul.f32 %v920, %v1276
      %v1561 = vmul.f32 %v921, %v1291
      %v1562 = vmul.f32 %v922, %v1306
      %v1563 = vmul.f32 %v923, %v1321
      %v1564 = vmul.f32 %v924, %v1336
      %v1565 = vmul.f32 %v925, %v1351
      %v1566 = vmul.f32 %v926, %v1366
      %v1567 = vmul.f32 %v927, %v1381
      %v1568 = vmul.f32 %v928, %v1396
      %v1569 = vmul.f32 %v929, %v1411
      %v1570 = vmul.f32 %v930, %v1426
      %v1571 = vmul.f32 %v931, %v1441
      %v1572 = vmul.f32 %v932, %v1456
      %v1573 = vmul.f32 %v933, %v1471
      %v1574 = vmul.f32 %v934, %v1486
      %v1575 = vmul.f32 %v935, %v1501
      %v1576 = vmul.f32 %v936, %v1516
      %v1577 = vmul.f32 %v937, %v1531
      %v1578 = vmul.f32 %v938, %v1546
      %1579 = vst.msk [vmem:[#allocation2] sm:$0xff] %vm576, 0.0
      %1580 = vst.msk [vmem:[#allocation2 + $0x8] sm:$0xff] %vm576, 0.0
      %vm1581 = vcmask 386048
      %1582 = vst.msk [vmem:[#allocation2 + $0x10] sm:$0x3] %vm1581, 0.0
      %1583 = vst.msk [vmem:[#allocation2 + $0x18] sm:$0xff] %vm576, 0.0
      %1584 = vst.msk [vmem:[#allocation2 + $0x20] sm:$0xff] %vm576, 0.0
      %1585 = vst.msk [vmem:[#allocation2 + $0x28] sm:$0x3] %vm1581, 0.0
      %1586 = vst.msk [vmem:[#allocation2 + $0x30] sm:$0xff] %vm576, 0.0
      %1587 = vst.msk [vmem:[#allocation2 + $0x38] sm:$0xff] %vm576, 0.0
      %1588 = vst.msk [vmem:[#allocation2 + $0x40] sm:$0x3] %vm1581, 0.0
      %1589 = vst.msk [vmem:[#allocation2 + $0x48] sm:$0xff] %vm576, 0.0
      %1590 = vst.msk [vmem:[#allocation2 + $0x50] sm:$0xff] %vm576, 0.0
      %1591 = vst.msk [vmem:[#allocation2 + $0x58] sm:$0x3] %vm1581, 0.0
      %1592 = vst.msk [vmem:[#allocation2 + $0x60] sm:$0xff] %vm576, 0.0
      %1593 = vst.msk [vmem:[#allocation2 + $0x68] sm:$0xff] %vm576, 0.0
      %1594 = vst.msk [vmem:[#allocation2 + $0x70] sm:$0x3] %vm1581, 0.0
      %1595 = vst.msk [vmem:[#allocation2 + $0x78] sm:$0xff] %vm576, 0.0
      %1596 = vst.msk [vmem:[#allocation2 + $0x80] sm:$0xff] %vm576, 0.0
      %1597 = vst.msk [vmem:[#allocation2 + $0x88] sm:$0x3] %vm1581, 0.0
      %1598 = vst.msk [vmem:[#allocation2 + $0x90] sm:$0xff] %vm576, 0.0
      %1599 = vst.msk [vmem:[#allocation2 + $0x98] sm:$0xff] %vm576, 0.0
      %1600 = vst.msk [vmem:[#allocation2 + $0xa0] sm:$0x3] %vm1581, 0.0
      %1601 = vst.msk [vmem:[#allocation2 + $0xa8] sm:$0xff] %vm576, 0.0
      %1602 = vst.msk [vmem:[#allocation2 + $0xb0] sm:$0xff] %vm576, 0.0
      %1603 = vst.msk [vmem:[#allocation2 + $0xb8] sm:$0x3] %vm1581, 0.0
      %1604 = vst.msk [vmem:[#allocation2 + $0xc0] sm:$0xff] %vm576, 0.0
      %1605 = vst.msk [vmem:[#allocation2 + $0xc8] sm:$0xff] %vm576, 0.0
      %1606 = vst.msk [vmem:[#allocation2 + $0xd0] sm:$0x3] %vm1581, 0.0
      %1607 = vst.msk [vmem:[#allocation2 + $0xd8] sm:$0xff] %vm576, 0.0
      %1608 = vst.msk [vmem:[#allocation2 + $0xe0] sm:$0xff] %vm576, 0.0
      %1609 = vst.msk [vmem:[#allocation2 + $0xe8] sm:$0x3] %vm1581, 0.0
      %1610 = vst.msk [vmem:[#allocation2 + $0xf0] sm:$0xff] %vm576, 0.0
      %1611 = vst.msk [vmem:[#allocation2 + $0xf8] sm:$0xff] %vm576, 0.0
      %1612 = vst.msk [vmem:[#allocation2 + $0x100] sm:$0x3] %vm1581, 0.0
      %1613 = vst.msk [vmem:[#allocation2 + $0x108] sm:$0xff] %vm576, 0.0
      %1614 = vst.msk [vmem:[#allocation2 + $0x110] sm:$0xff] %vm576, 0.0
      %1615 = vst.msk [vmem:[#allocation2 + $0x118] sm:$0x3] %vm1581, 0.0
      %1616 = vst.msk [vmem:[#allocation2 + $0x120] sm:$0xff] %vm576, 0.0
      %1617 = vst.msk [vmem:[#allocation2 + $0x128] sm:$0xff] %vm576, 0.0
      %1618 = vst.msk [vmem:[#allocation2 + $0x130] sm:$0x3] %vm1581, 0.0
      %1619 = vst.msk [vmem:[#allocation2 + $0x138] sm:$0xff] %vm576, 0.0
      %1620 = vst.msk [vmem:[#allocation2 + $0x140] sm:$0xff] %vm576, 0.0
      %1621 = vst.msk [vmem:[#allocation2 + $0x148] sm:$0x3] %vm1581, 0.0
      %1622 = vst.msk [vmem:[#allocation2 + $0x150] sm:$0xff] %vm576, 0.0
      %1623 = vst.msk [vmem:[#allocation2 + $0x158] sm:$0xff] %vm576, 0.0
      %1624 = vst.msk [vmem:[#allocation2 + $0x160] sm:$0x3] %vm1581, 0.0
      %1625 = vst.msk [vmem:[#allocation2 + $0x168] sm:$0xff] %vm576, 0.0
      %1626 = vst.msk [vmem:[#allocation2 + $0x170] sm:$0xff] %vm576, 0.0
      %1627 = vst.msk [vmem:[#allocation2 + $0x178] sm:$0x3] %vm1581, 0.0
      %1628 = vst.msk [vmem:[#allocation2 + $0x180] sm:$0xff] %vm576, 0.0
      %1629 = vst.msk [vmem:[#allocation2 + $0x188] sm:$0xff] %vm576, 0.0
      %1630 = vst.msk [vmem:[#allocation2 + $0x190] sm:$0x3] %vm1581, 0.0
      %1631 = vst.msk [vmem:[#allocation2 + $0x198] sm:$0xff] %vm576, 0.0
      %1632 = vst.msk [vmem:[#allocation2 + $0x1a0] sm:$0xff] %vm576, 0.0
      %1633 = vst.msk [vmem:[#allocation2 + $0x1a8] sm:$0x3] %vm1581, 0.0
      %s1634 = scalar_lea.vmem [#allocation2], 24
      %1635 = vst.msk [vmem:[%s1634 + $0x1] sm:$0xff] %vm576, %v1547
      %1636 = vst.msk [vmem:[%s1634 + $0x9] sm:$0xff] %vm576, %v1548
      %1637 = vst.msk [vmem:[%s1634 + $0x19] sm:$0xff] %vm576, %v1549
      %1638 = vst.msk [vmem:[%s1634 + $0x21] sm:$0xff] %vm576, %v1550
      %1639 = vst.msk [vmem:[%s1634 + $0x31] sm:$0xff] %vm576, %v1551
      %1640 = vst.msk [vmem:[%s1634 + $0x39] sm:$0xff] %vm576, %v1552
      %1641 = vst.msk [vmem:[%s1634 + $0x49] sm:$0xff] %vm576, %v1553
      %1642 = vst.msk [vmem:[%s1634 + $0x51] sm:$0xff] %vm576, %v1554
      %1643 = vst.msk [vmem:[%s1634 + $0x61] sm:$0xff] %vm576, %v1555
      %1644 = vst.msk [vmem:[%s1634 + $0x69] sm:$0xff] %vm576, %v1556
      %1645 = vst.msk [vmem:[%s1634 + $0x79] sm:$0xff] %vm576, %v1557
      %1646 = vst.msk [vmem:[%s1634 + $0x81] sm:$0xff] %vm576, %v1558
      %1647 = vst.msk [vmem:[%s1634 + $0x91] sm:$0xff] %vm576, %v1559
      %1648 = vst.msk [vmem:[%s1634 + $0x99] sm:$0xff] %vm576, %v1560
      %1649 = vst.msk [vmem:[%s1634 + $0xa9] sm:$0xff] %vm576, %v1561
      %1650 = vst.msk [vmem:[%s1634 + $0xb1] sm:$0xff] %vm576, %v1562
      %1651 = vst.msk [vmem:[%s1634 + $0xc1] sm:$0xff] %vm576, %v1563
      %1652 = vst.msk [vmem:[%s1634 + $0xc9] sm:$0xff] %vm576, %v1564
      %1653 = vst.msk [vmem:[%s1634 + $0xd9] sm:$0xff] %vm576, %v1565
      %1654 = vst.msk [vmem:[%s1634 + $0xe1] sm:$0xff] %vm576, %v1566
      %1655 = vst.msk [vmem:[%s1634 + $0xf1] sm:$0xff] %vm576, %v1567
      %1656 = vst.msk [vmem:[%s1634 + $0xf9] sm:$0xff] %vm576, %v1568
      %1657 = vst.msk [vmem:[%s1634 + $0x109] sm:$0xff] %vm576, %v1569
      %1658 = vst.msk [vmem:[%s1634 + $0x111] sm:$0xff] %vm576, %v1570
      %1659 = vst.msk [vmem:[%s1634 + $0x121] sm:$0xff] %vm576, %v1571
      %1660 = vst.msk [vmem:[%s1634 + $0x129] sm:$0xff] %vm576, %v1572
      %1661 = vst.msk [vmem:[%s1634 + $0x139] sm:$0xff] %vm576, %v1573
      %1662 = vst.msk [vmem:[%s1634 + $0x141] sm:$0xff] %vm576, %v1574
      %1663 = vst.msk [vmem:[%s1634 + $0x151] sm:$0xff] %vm576, %v1575
      %1664 = vst.msk [vmem:[%s1634 + $0x159] sm:$0xff] %vm576, %v1576
      %1665 = vst.msk [vmem:[%s1634 + $0x169] sm:$0xff] %vm576, %v1577
      %1666 = vst.msk [vmem:[%s1634 + $0x171] sm:$0xff] %vm576, %v1578
      %v1667 = vld [vmem:[#allocation2] sm:$0xff]
      %v1668 = vld [vmem:[#allocation2 + $0x8] sm:$0xff]
      %v1669 = vld [vmem:[#allocation2 + $0x18] sm:$0xff]
      %v1670 = vld [vmem:[#allocation2 + $0x20] sm:$0xff]
      %v1671 = vld [vmem:[#allocation2 + $0x30] sm:$0xff]
      %v1672 = vld [vmem:[#allocation2 + $0x38] sm:$0xff]
      %v1673 = vld [vmem:[#allocation2 + $0x48] sm:$0xff]
      %v1674 = vld [vmem:[#allocation2 + $0x50] sm:$0xff]
      %v1675 = vld [vmem:[#allocation2 + $0x60] sm:$0xff]
      %v1676 = vld [vmem:[#allocation2 + $0x68] sm:$0xff]
      %v1677 = vld [vmem:[#allocation2 + $0x78] sm:$0xff]
      %v1678 = vld [vmem:[#allocation2 + $0x80] sm:$0xff]
      %v1679 = vld [vmem:[#allocation2 + $0x90] sm:$0xff]
      %v1680 = vld [vmem:[#allocation2 + $0x98] sm:$0xff]
      %v1681 = vld [vmem:[#allocation2 + $0xa8] sm:$0xff]
      %v1682 = vld [vmem:[#allocation2 + $0xb0] sm:$0xff]
      %v1683 = vld [vmem:[#allocation2 + $0xc0] sm:$0xff]
      %v1684 = vld [vmem:[#allocation2 + $0xc8] sm:$0xff]
      %v1685 = vld [vmem:[#allocation2 + $0xd8] sm:$0xff]
      %v1686 = vld [vmem:[#allocation2 + $0xe0] sm:$0xff]
      %v1687 = vld [vmem:[#allocation2 + $0xf0] sm:$0xff]
      %v1688 = vld [vmem:[#allocation2 + $0xf8] sm:$0xff]
      %v1689 = vld [vmem:[#allocation2 + $0x108] sm:$0xff]
      %v1690 = vld [vmem:[#allocation2 + $0x110] sm:$0xff]
      %v1691 = vld [vmem:[#allocation2 + $0x120] sm:$0xff]
      %v1692 = vld [vmem:[#allocation2 + $0x128] sm:$0xff]
      %v1693 = vld [vmem:[#allocation2 + $0x138] sm:$0xff]
      %v1694 = vld [vmem:[#allocation2 + $0x140] sm:$0xff]
      %v1695 = vld [vmem:[#allocation2 + $0x150] sm:$0xff]
      %v1696 = vld [vmem:[#allocation2 + $0x158] sm:$0xff]
      %v1697 = vld [vmem:[#allocation2 + $0x168] sm:$0xff]
      %v1698 = vld [vmem:[#allocation2 + $0x170] sm:$0xff]
      %v1699 = vld [vmem:[%s5] sm:$0xff]
      %v1700 = vld [vmem:[%s5 + $0x8] sm:$0xff]
      %v1701 = vld [vmem:[%s5 + $0x10] sm:$0xff]
      %v1702 = vld [vmem:[%s5 + $0x18] sm:$0xff]
      %v1703 = vld [vmem:[%s5 + $0x20] sm:$0xff]
      %v1704 = vld [vmem:[%s5 + $0x28] sm:$0xff]
      %v1705 = vld [vmem:[#allocation2 + $0x1] sm:$0xff]
      %v1706 = vld [vmem:[#allocation2 + $0x9] sm:$0xff]
      %v1707 = vld [vmem:[#allocation2 + $0x19] sm:$0xff]
      %v1708 = vld [vmem:[#allocation2 + $0x21] sm:$0xff]
      %v1709 = vld [vmem:[#allocation2 + $0x31] sm:$0xff]
      %v1710 = vld [vmem:[#allocation2 + $0x39] sm:$0xff]
      %v1711 = vld [vmem:[#allocation2 + $0x49] sm:$0xff]
      %v1712 = vld [vmem:[#allocation2 + $0x51] sm:$0xff]
      %v1713 = vld [vmem:[#allocation2 + $0x61] sm:$0xff]
      %v1714 = vld [vmem:[#allocation2 + $0x69] sm:$0xff]
      %v1715 = vld [vmem:[#allocation2 + $0x79] sm:$0xff]
      %v1716 = vld [vmem:[#allocation2 + $0x81] sm:$0xff]
      %v1717 = vld [vmem:[#allocation2 + $0x91] sm:$0xff]
      %v1718 = vld [vmem:[#allocation2 + $0x99] sm:$0xff]
      %v1719 = vld [vmem:[#allocation2 + $0xa9] sm:$0xff]
      %v1720 = vld [vmem:[#allocation2 + $0xb1] sm:$0xff]
      %v1721 = vld [vmem:[#allocation2 + $0xc1] sm:$0xff]
      %v1722 = vld [vmem:[#allocation2 + $0xc9] sm:$0xff]
      %v1723 = vld [vmem:[#allocation2 + $0xd9] sm:$0xff]
      %v1724 = vld [vmem:[#allocation2 + $0xe1] sm:$0xff]
      %v1725 = vld [vmem:[#allocation2 + $0xf1] sm:$0xff]
      %v1726 = vld [vmem:[#allocation2 + $0xf9] sm:$0xff]
      %v1727 = vld [vmem:[#allocation2 + $0x109] sm:$0xff]
      %v1728 = vld [vmem:[#allocation2 + $0x111] sm:$0xff]
      %v1729 = vld [vmem:[#allocation2 + $0x121] sm:$0xff]
      %v1730 = vld [vmem:[#allocation2 + $0x129] sm:$0xff]
      %v1731 = vld [vmem:[#allocation2 + $0x139] sm:$0xff]
      %v1732 = vld [vmem:[#allocation2 + $0x141] sm:$0xff]
      %v1733 = vld [vmem:[#allocation2 + $0x151] sm:$0xff]
      %v1734 = vld [vmem:[#allocation2 + $0x159] sm:$0xff]
      %v1735 = vld [vmem:[#allocation2 + $0x169] sm:$0xff]
      %v1736 = vld [vmem:[#allocation2 + $0x171] sm:$0xff]
      %s1737 = scalar_lea.vmem %s5, 48
      %v1738 = vld [vmem:[%s1737] sm:$0xff]
      %v1739 = vld [vmem:[%s1737 + $0x8] sm:$0xff]
      %v1740 = vld [vmem:[%s1737 + $0x10] sm:$0xff]
      %v1741 = vld [vmem:[%s1737 + $0x18] sm:$0xff]
      %v1742 = vld [vmem:[%s1737 + $0x20] sm:$0xff]
      %v1743 = vld [vmem:[%s1737 + $0x28] sm:$0xff]
      %v1745 = vsel %vm576, %v1705, 0
      %v1748 = vsel %vm576, %v1706, 0
      %v1751 = vsel %vm576, %v1707, 0
      %v1754 = vsel %vm576, %v1708, 0
      %v1757 = vsel %vm576, %v1709, 0
      %v1760 = vsel %vm576, %v1710, 0
      %v1763 = vsel %vm576, %v1711, 0
      %v1766 = vsel %vm576, %v1712, 0
      %v1769 = vsel %vm576, %v1713, 0
      %v1772 = vsel %vm576, %v1714, 0
      %v1775 = vsel %vm576, %v1715, 0
      %v1778 = vsel %vm576, %v1716, 0
      %v1781 = vsel %vm576, %v1717, 0
      %v1784 = vsel %vm576, %v1718, 0
      %v1787 = vsel %vm576, %v1719, 0
      %v1790 = vsel %vm576, %v1720, 0
      %v1793 = vsel %vm576, %v1721, 0
      %v1796 = vsel %vm576, %v1722, 0
      %v1799 = vsel %vm576, %v1723, 0
      %v1802 = vsel %vm576, %v1724, 0
      %v1805 = vsel %vm576, %v1725, 0
      %v1808 = vsel %vm576, %v1726, 0
      %v1811 = vsel %vm576, %v1727, 0
      %v1814 = vsel %vm576, %v1728, 0
      %v1817 = vsel %vm576, %v1729, 0
      %v1820 = vsel %vm576, %v1730, 0
      %v1823 = vsel %vm576, %v1731, 0
      %v1826 = vsel %vm576, %v1732, 0
      %v1829 = vsel %vm576, %v1733, 0
      %v1832 = vsel %vm576, %v1734, 0
      %v1835 = vsel %vm576, %v1735, 0
      %v1838 = vsel %vm576, %v1736, 0
      %1840 = vmatpush.msra.mxu0 0.0
      %1841 = vmatpush.msra.mxu0 0.0
      %1842 = vmatpush.msra.mxu0 0.0
      %1843 = vmatpush.msra.mxu0 0.0
      %1844 = vmatpush.msra.mxu0 0.0
      %1845 = vmatpush.msra.mxu0 0.0
      %1846 = vmatpush.msra.mxu0 0.0
      %1847 = vmatpush.msra.mxu0 0.0
      %1848 = vmatpush.msra.mxu0 0.0
      %1849 = vmatpush.msra.mxu0 0.0
      %1850 = vmatpush.msra.mxu0 %v1743
      %1851 = vmatpush.msra.mxu0 %v1742
      %1852 = vmatpush.msra.mxu0 %v1741
      %1853 = vmatpush.msra.mxu0 %v1740
      %1854 = vmatpush.msra.mxu0 %v1739
      %1855 = vmatpush.msra.mxu0 %v1738
      %1856 = vmatmul.f32.gmra.mxu0 %v1745
      %v1857 = vpop.f32.mrf.mxu0
      %v1858 = vadd.f32 0.0, %v1857
      %1859 = vmatmul.f32.gmra.mxu0 %v1748
      %v1860 = vpop.f32.mrf.mxu0
      %v1861 = vadd.f32 0.0, %v1860
      %1862 = vmatmul.f32.gmra.mxu0 %v1751
      %v1863 = vpop.f32.mrf.mxu0
      %v1864 = vadd.f32 0.0, %v1863
      %1865 = vmatmul.f32.gmra.mxu0 %v1754
      %v1866 = vpop.f32.mrf.mxu0
      %v1867 = vadd.f32 0.0, %v1866
      %1868 = vmatmul.f32.gmra.mxu0 %v1757
      %v1869 = vpop.f32.mrf.mxu0
      %v1870 = vadd.f32 0.0, %v1869
      %1871 = vmatmul.f32.gmra.mxu0 %v1760
      %v1872 = vpop.f32.mrf.mxu0
      %v1873 = vadd.f32 0.0, %v1872
      %1874 = vmatmul.f32.gmra.mxu0 %v1763
      %v1875 = vpop.f32.mrf.mxu0
      %v1876 = vadd.f32 0.0, %v1875
      %1877 = vmatmul.f32.gmra.mxu0 %v1766
      %v1878 = vpop.f32.mrf.mxu0
      %v1879 = vadd.f32 0.0, %v1878
      %1880 = vmatmul.f32.gmra.mxu0 %v1769
      %v1881 = vpop.f32.mrf.mxu0
      %v1882 = vadd.f32 0.0, %v1881
      %1883 = vmatmul.f32.gmra.mxu0 %v1772
      %v1884 = vpop.f32.mrf.mxu0
      %v1885 = vadd.f32 0.0, %v1884
      %1886 = vmatmul.f32.gmra.mxu0 %v1775
      %v1887 = vpop.f32.mrf.mxu0
      %v1888 = vadd.f32 0.0, %v1887
      %1889 = vmatmul.f32.gmra.mxu0 %v1778
      %v1890 = vpop.f32.mrf.mxu0
      %v1891 = vadd.f32 0.0, %v1890
      %1892 = vmatmul.f32.gmra.mxu0 %v1781
      %v1893 = vpop.f32.mrf.mxu0
      %v1894 = vadd.f32 0.0, %v1893
      %1895 = vmatmul.f32.gmra.mxu0 %v1784
      %v1896 = vpop.f32.mrf.mxu0
      %v1897 = vadd.f32 0.0, %v1896
      %1898 = vmatmul.f32.gmra.mxu0 %v1787
      %v1899 = vpop.f32.mrf.mxu0
      %v1900 = vadd.f32 0.0, %v1899
      %1901 = vmatmul.f32.gmra.mxu0 %v1790
      %v1902 = vpop.f32.mrf.mxu0
      %v1903 = vadd.f32 0.0, %v1902
      %1904 = vmatmul.f32.gmra.mxu0 %v1793
      %v1905 = vpop.f32.mrf.mxu0
      %v1906 = vadd.f32 0.0, %v1905
      %1907 = vmatmul.f32.gmra.mxu0 %v1796
      %v1908 = vpop.f32.mrf.mxu0
      %v1909 = vadd.f32 0.0, %v1908
      %1910 = vmatmul.f32.gmra.mxu0 %v1799
      %v1911 = vpop.f32.mrf.mxu0
      %v1912 = vadd.f32 0.0, %v1911
      %1913 = vmatmul.f32.gmra.mxu0 %v1802
      %v1914 = vpop.f32.mrf.mxu0
      %v1915 = vadd.f32 0.0, %v1914
      %1916 = vmatmul.f32.gmra.mxu0 %v1805
      %v1917 = vpop.f32.mrf.mxu0
      %v1918 = vadd.f32 0.0, %v1917
      %1919 = vmatmul.f32.gmra.mxu0 %v1808
      %v1920 = vpop.f32.mrf.mxu0
      %v1921 = vadd.f32 0.0, %v1920
      %1922 = vmatmul.f32.gmra.mxu0 %v1811
      %v1923 = vpop.f32.mrf.mxu0
      %v1924 = vadd.f32 0.0, %v1923
      %1925 = vmatmul.f32.gmra.mxu0 %v1814
      %v1926 = vpop.f32.mrf.mxu0
      %v1927 = vadd.f32 0.0, %v1926
      %1928 = vmatmul.f32.gmra.mxu0 %v1817
      %v1929 = vpop.f32.mrf.mxu0
      %v1930 = vadd.f32 0.0, %v1929
      %1931 = vmatmul.f32.gmra.mxu0 %v1820
      %v1932 = vpop.f32.mrf.mxu0
      %v1933 = vadd.f32 0.0, %v1932
      %1934 = vmatmul.f32.gmra.mxu0 %v1823
      %v1935 = vpop.f32.mrf.mxu0
      %v1936 = vadd.f32 0.0, %v1935
      %1937 = vmatmul.f32.gmra.mxu0 %v1826
      %v1938 = vpop.f32.mrf.mxu0
      %v1939 = vadd.f32 0.0, %v1938
      %1940 = vmatmul.f32.gmra.mxu0 %v1829
      %v1941 = vpop.f32.mrf.mxu0
      %v1942 = vadd.f32 0.0, %v1941
      %1943 = vmatmul.f32.gmra.mxu0 %v1832
      %v1944 = vpop.f32.mrf.mxu0
      %v1945 = vadd.f32 0.0, %v1944
      %1946 = vmatmul.f32.gmra.mxu0 %v1835
      %v1947 = vpop.f32.mrf.mxu0
      %v1948 = vadd.f32 0.0, %v1947
      %1949 = vmatmul.f32.gmra.mxu0 %v1838
      %v1950 = vpop.f32.mrf.mxu0
      %v1951 = vadd.f32 0.0, %v1950
      %1952 = vdwg.mxu0
      %v1954 = vsel %vm576, %v1667, 0
      %v1957 = vsel %vm576, %v1668, 0
      %v1960 = vsel %vm576, %v1669, 0
      %v1963 = vsel %vm576, %v1670, 0
      %v1966 = vsel %vm576, %v1671, 0
      %v1969 = vsel %vm576, %v1672, 0
      %v1972 = vsel %vm576, %v1673, 0
      %v1975 = vsel %vm576, %v1674, 0
      %v1978 = vsel %vm576, %v1675, 0
      %v1981 = vsel %vm576, %v1676, 0
      %v1984 = vsel %vm576, %v1677, 0
      %v1987 = vsel %vm576, %v1678, 0
      %v1990 = vsel %vm576, %v1679, 0
      %v1993 = vsel %vm576, %v1680, 0
      %v1996 = vsel %vm576, %v1681, 0
      %v1999 = vsel %vm576, %v1682, 0
      %v2002 = vsel %vm576, %v1683, 0
      %v2005 = vsel %vm576, %v1684, 0
      %v2008 = vsel %vm576, %v1685, 0
      %v2011 = vsel %vm576, %v1686, 0
      %v2014 = vsel %vm576, %v1687, 0
      %v2017 = vsel %vm576, %v1688, 0
      %v2020 = vsel %vm576, %v1689, 0
      %v2023 = vsel %vm576, %v1690, 0
      %v2026 = vsel %vm576, %v1691, 0
      %v2029 = vsel %vm576, %v1692, 0
      %v2032 = vsel %vm576, %v1693, 0
      %v2035 = vsel %vm576, %v1694, 0
      %v2038 = vsel %vm576, %v1695, 0
      %v2041 = vsel %vm576, %v1696, 0
      %v2044 = vsel %vm576, %v1697, 0
      %v2047 = vsel %vm576, %v1698, 0
      %2049 = vmatpush.msra.mxu0 0.0
      %2050 = vmatpush.msra.mxu0 0.0
      %2051 = vmatpush.msra.mxu0 0.0
      %2052 = vmatpush.msra.mxu0 0.0
      %2053 = vmatpush.msra.mxu0 0.0
      %2054 = vmatpush.msra.mxu0 0.0
      %2055 = vmatpush.msra.mxu0 0.0
      %2056 = vmatpush.msra.mxu0 0.0
      %2057 = vmatpush.msra.mxu0 0.0
      %2058 = vmatpush.msra.mxu0 0.0
      %2059 = vmatpush.msra.mxu0 %v1704
      %2060 = vmatpush.msra.mxu0 %v1703
      %2061 = vmatpush.msra.mxu0 %v1702
      %2062 = vmatpush.msra.mxu0 %v1701
      %2063 = vmatpush.msra.mxu0 %v1700
      %2064 = vmatpush.msra.mxu0 %v1699
      %2065 = vmatmul.f32.gmra.mxu0 %v1954
      %v2066 = vpop.f32.mrf.mxu0
      %v2067 = vadd.f32 %v1858, %v2066
      %2068 = vmatmul.f32.gmra.mxu0 %v1957
      %v2069 = vpop.f32.mrf.mxu0
      %v2070 = vadd.f32 %v1861, %v2069
      %2071 = vmatmul.f32.gmra.mxu0 %v1960
      %v2072 = vpop.f32.mrf.mxu0
      %v2073 = vadd.f32 %v1864, %v2072
      %2074 = vmatmul.f32.gmra.mxu0 %v1963
      %v2075 = vpop.f32.mrf.mxu0
      %v2076 = vadd.f32 %v1867, %v2075
      %2077 = vmatmul.f32.gmra.mxu0 %v1966
      %v2078 = vpop.f32.mrf.mxu0
      %v2079 = vadd.f32 %v1870, %v2078
      %2080 = vmatmul.f32.gmra.mxu0 %v1969
      %v2081 = vpop.f32.mrf.mxu0
      %v2082 = vadd.f32 %v1873, %v2081
      %2083 = vmatmul.f32.gmra.mxu0 %v1972
      %v2084 = vpop.f32.mrf.mxu0
      %v2085 = vadd.f32 %v1876, %v2084
      %2086 = vmatmul.f32.gmra.mxu0 %v1975
      %v2087 = vpop.f32.mrf.mxu0
      %v2088 = vadd.f32 %v1879, %v2087
      %2089 = vmatmul.f32.gmra.mxu0 %v1978
      %v2090 = vpop.f32.mrf.mxu0
      %v2091 = vadd.f32 %v1882, %v2090
      %2092 = vmatmul.f32.gmra.mxu0 %v1981
      %v2093 = vpop.f32.mrf.mxu0
      %v2094 = vadd.f32 %v1885, %v2093
      %2095 = vmatmul.f32.gmra.mxu0 %v1984
      %v2096 = vpop.f32.mrf.mxu0
      %v2097 = vadd.f32 %v1888, %v2096
      %2098 = vmatmul.f32.gmra.mxu0 %v1987
      %v2099 = vpop.f32.mrf.mxu0
      %v2100 = vadd.f32 %v1891, %v2099
      %2101 = vmatmul.f32.gmra.mxu0 %v1990
      %v2102 = vpop.f32.mrf.mxu0
      %v2103 = vadd.f32 %v1894, %v2102
      %2104 = vmatmul.f32.gmra.mxu0 %v1993
      %v2105 = vpop.f32.mrf.mxu0
      %v2106 = vadd.f32 %v1897, %v2105
      %2107 = vmatmul.f32.gmra.mxu0 %v1996
      %v2108 = vpop.f32.mrf.mxu0
      %v2109 = vadd.f32 %v1900, %v2108
      %2110 = vmatmul.f32.gmra.mxu0 %v1999
      %v2111 = vpop.f32.mrf.mxu0
      %v2112 = vadd.f32 %v1903, %v2111
      %2113 = vmatmul.f32.gmra.mxu0 %v2002
      %v2114 = vpop.f32.mrf.mxu0
      %v2115 = vadd.f32 %v1906, %v2114
      %2116 = vmatmul.f32.gmra.mxu0 %v2005
      %v2117 = vpop.f32.mrf.mxu0
      %v2118 = vadd.f32 %v1909, %v2117
      %2119 = vmatmul.f32.gmra.mxu0 %v2008
      %v2120 = vpop.f32.mrf.mxu0
      %v2121 = vadd.f32 %v1912, %v2120
      %2122 = vmatmul.f32.gmra.mxu0 %v2011
      %v2123 = vpop.f32.mrf.mxu0
      %v2124 = vadd.f32 %v1915, %v2123
      %2125 = vmatmul.f32.gmra.mxu0 %v2014
      %v2126 = vpop.f32.mrf.mxu0
      %v2127 = vadd.f32 %v1918, %v2126
      %2128 = vmatmul.f32.gmra.mxu0 %v2017
      %v2129 = vpop.f32.mrf.mxu0
      %v2130 = vadd.f32 %v1921, %v2129
      %2131 = vmatmul.f32.gmra.mxu0 %v2020
      %v2132 = vpop.f32.mrf.mxu0
      %v2133 = vadd.f32 %v1924, %v2132
      %2134 = vmatmul.f32.gmra.mxu0 %v2023
      %v2135 = vpop.f32.mrf.mxu0
      %v2136 = vadd.f32 %v1927, %v2135
      %2137 = vmatmul.f32.gmra.mxu0 %v2026
      %v2138 = vpop.f32.mrf.mxu0
      %v2139 = vadd.f32 %v1930, %v2138
      %2140 = vmatmul.f32.gmra.mxu0 %v2029
      %v2141 = vpop.f32.mrf.mxu0
      %v2142 = vadd.f32 %v1933, %v2141
      %2143 = vmatmul.f32.gmra.mxu0 %v2032
      %v2144 = vpop.f32.mrf.mxu0
      %v2145 = vadd.f32 %v1936, %v2144
      %2146 = vmatmul.f32.gmra.mxu0 %v2035
      %v2147 = vpop.f32.mrf.mxu0
      %v2148 = vadd.f32 %v1939, %v2147
      %2149 = vmatmul.f32.gmra.mxu0 %v2038
      %v2150 = vpop.f32.mrf.mxu0
      %v2151 = vadd.f32 %v1942, %v2150
      %2152 = vmatmul.f32.gmra.mxu0 %v2041
      %v2153 = vpop.f32.mrf.mxu0
      %v2154 = vadd.f32 %v1945, %v2153
      %2155 = vmatmul.f32.gmra.mxu0 %v2044
      %v2156 = vpop.f32.mrf.mxu0
      %v2157 = vadd.f32 %v1948, %v2156
      %2158 = vmatmul.f32.gmra.mxu0 %v2047
      %v2159 = vpop.f32.mrf.mxu0
      %v2160 = vadd.f32 %v1951, %v2159
      %2161 = vdwg.mxu0
      %v2162 = vld [vmem:[#allocation2 + $0x2] sm:$0xff]
      %v2163 = vld [vmem:[#allocation2 + $0xa] sm:$0xff]
      %v2164 = vld [vmem:[#allocation2 + $0x1a] sm:$0xff]
      %v2165 = vld [vmem:[#allocation2 + $0x22] sm:$0xff]
      %v2166 = vld [vmem:[#allocation2 + $0x32] sm:$0xff]
      %v2167 = vld [vmem:[#allocation2 + $0x3a] sm:$0xff]
      %v2168 = vld [vmem:[#allocation2 + $0x4a] sm:$0xff]
      %v2169 = vld [vmem:[#allocation2 + $0x52] sm:$0xff]
      %v2170 = vld [vmem:[#allocation2 + $0x62] sm:$0xff]
      %v2171 = vld [vmem:[#allocation2 + $0x6a] sm:$0xff]
      %v2172 = vld [vmem:[#allocation2 + $0x7a] sm:$0xff]
      %v2173 = vld [vmem:[#allocation2 + $0x82] sm:$0xff]
      %v2174 = vld [vmem:[#allocation2 + $0x92] sm:$0xff]
      %v2175 = vld [vmem:[#allocation2 + $0x9a] sm:$0xff]
      %v2176 = vld [vmem:[#allocation2 + $0xaa] sm:$0xff]
      %v2177 = vld [vmem:[#allocation2 + $0xb2] sm:$0xff]
      %v2178 = vld [vmem:[#allocation2 + $0xc2] sm:$0xff]
      %v2179 = vld [vmem:[#allocation2 + $0xca] sm:$0xff]
      %v2180 = vld [vmem:[#allocation2 + $0xda] sm:$0xff]
      %v2181 = vld [vmem:[#allocation2 + $0xe2] sm:$0xff]
      %v2182 = vld [vmem:[#allocation2 + $0xf2] sm:$0xff]
      %v2183 = vld [vmem:[#allocation2 + $0xfa] sm:$0xff]
      %v2184 = vld [vmem:[#allocation2 + $0x10a] sm:$0xff]
      %v2185 = vld [vmem:[#allocation2 + $0x112] sm:$0xff]
      %v2186 = vld [vmem:[#allocation2 + $0x122] sm:$0xff]
      %v2187 = vld [vmem:[#allocation2 + $0x12a] sm:$0xff]
      %v2188 = vld [vmem:[#allocation2 + $0x13a] sm:$0xff]
      %v2189 = vld [vmem:[#allocation2 + $0x142] sm:$0xff]
      %v2190 = vld [vmem:[#allocation2 + $0x152] sm:$0xff]
      %v2191 = vld [vmem:[#allocation2 + $0x15a] sm:$0xff]
      %v2192 = vld [vmem:[#allocation2 + $0x16a] sm:$0xff]
      %v2193 = vld [vmem:[#allocation2 + $0x172] sm:$0xff]
      %s2194 = scalar_lea.vmem %s5, 96
      %v2195 = vld [vmem:[%s2194] sm:$0xff]
      %v2196 = vld [vmem:[%s2194 + $0x8] sm:$0xff]
      %v2197 = vld [vmem:[%s2194 + $0x10] sm:$0xff]
      %v2198 = vld [vmem:[%s2194 + $0x18] sm:$0xff]
      %v2199 = vld [vmem:[%s2194 + $0x20] sm:$0xff]
      %v2200 = vld [vmem:[%s2194 + $0x28] sm:$0xff]
      %v2202 = vsel %vm576, %v2162, 0
      %v2205 = vsel %vm576, %v2163, 0
      %v2208 = vsel %vm576, %v2164, 0
      %v2211 = vsel %vm576, %v2165, 0
      %v2214 = vsel %vm576, %v2166, 0
      %v2217 = vsel %vm576, %v2167, 0
      %v2220 = vsel %vm576, %v2168, 0
      %v2223 = vsel %vm576, %v2169, 0
      %v2226 = vsel %vm576, %v2170, 0
      %v2229 = vsel %vm576, %v2171, 0
      %v2232 = vsel %vm576, %v2172, 0
      %v2235 = vsel %vm576, %v2173, 0
      %v2238 = vsel %vm576, %v2174, 0
      %v2241 = vsel %vm576, %v2175, 0
      %v2244 = vsel %vm576, %v2176, 0
      %v2247 = vsel %vm576, %v2177, 0
      %v2250 = vsel %vm576, %v2178, 0
      %v2253 = vsel %vm576, %v2179, 0
      %v2256 = vsel %vm576, %v2180, 0
      %v2259 = vsel %vm576, %v2181, 0
      %v2262 = vsel %vm576, %v2182, 0
      %v2265 = vsel %vm576, %v2183, 0
      %v2268 = vsel %vm576, %v2184, 0
      %v2271 = vsel %vm576, %v2185, 0
      %v2274 = vsel %vm576, %v2186, 0
      %v2277 = vsel %vm576, %v2187, 0
      %v2280 = vsel %vm576, %v2188, 0
      %v2283 = vsel %vm576, %v2189, 0
      %v2286 = vsel %vm576, %v2190, 0
      %v2289 = vsel %vm576, %v2191, 0
      %v2292 = vsel %vm576, %v2192, 0
      %v2295 = vsel %vm576, %v2193, 0
      %2297 = vmatpush.msra.mxu0 0.0
      %2298 = vmatpush.msra.mxu0 0.0
      %2299 = vmatpush.msra.mxu0 0.0
      %2300 = vmatpush.msra.mxu0 0.0
      %2301 = vmatpush.msra.mxu0 0.0
      %2302 = vmatpush.msra.mxu0 0.0
      %2303 = vmatpush.msra.mxu0 0.0
      %2304 = vmatpush.msra.mxu0 0.0
      %2305 = vmatpush.msra.mxu0 0.0
      %2306 = vmatpush.msra.mxu0 0.0
      %2307 = vmatpush.msra.mxu0 %v2200
      %2308 = vmatpush.msra.mxu0 %v2199
      %2309 = vmatpush.msra.mxu0 %v2198
      %2310 = vmatpush.msra.mxu0 %v2197
      %2311 = vmatpush.msra.mxu0 %v2196
      %2312 = vmatpush.msra.mxu0 %v2195
      %2313 = vmatmul.f32.gmra.mxu0 %v2202
      %v2314 = vpop.f32.mrf.mxu0
      %v2315 = vadd.f32 0.0, %v2314
      %2316 = vmatmul.f32.gmra.mxu0 %v2205
      %v2317 = vpop.f32.mrf.mxu0
      %v2318 = vadd.f32 0.0, %v2317
      %2319 = vmatmul.f32.gmra.mxu0 %v2208
      %v2320 = vpop.f32.mrf.mxu0
      %v2321 = vadd.f32 0.0, %v2320
      %2322 = vmatmul.f32.gmra.mxu0 %v2211
      %v2323 = vpop.f32.mrf.mxu0
      %v2324 = vadd.f32 0.0, %v2323
      %2325 = vmatmul.f32.gmra.mxu0 %v2214
      %v2326 = vpop.f32.mrf.mxu0
      %v2327 = vadd.f32 0.0, %v2326
      %2328 = vmatmul.f32.gmra.mxu0 %v2217
      %v2329 = vpop.f32.mrf.mxu0
      %v2330 = vadd.f32 0.0, %v2329
      %2331 = vmatmul.f32.gmra.mxu0 %v2220
      %v2332 = vpop.f32.mrf.mxu0
      %v2333 = vadd.f32 0.0, %v2332
      %2334 = vmatmul.f32.gmra.mxu0 %v2223
      %v2335 = vpop.f32.mrf.mxu0
      %v2336 = vadd.f32 0.0, %v2335
      %2337 = vmatmul.f32.gmra.mxu0 %v2226
      %v2338 = vpop.f32.mrf.mxu0
      %v2339 = vadd.f32 0.0, %v2338
      %2340 = vmatmul.f32.gmra.mxu0 %v2229
      %v2341 = vpop.f32.mrf.mxu0
      %v2342 = vadd.f32 0.0, %v2341
      %2343 = vmatmul.f32.gmra.mxu0 %v2232
      %v2344 = vpop.f32.mrf.mxu0
      %v2345 = vadd.f32 0.0, %v2344
      %2346 = vmatmul.f32.gmra.mxu0 %v2235
      %v2347 = vpop.f32.mrf.mxu0
      %v2348 = vadd.f32 0.0, %v2347
      %2349 = vmatmul.f32.gmra.mxu0 %v2238
      %v2350 = vpop.f32.mrf.mxu0
      %v2351 = vadd.f32 0.0, %v2350
      %2352 = vmatmul.f32.gmra.mxu0 %v2241
      %v2353 = vpop.f32.mrf.mxu0
      %v2354 = vadd.f32 0.0, %v2353
      %2355 = vmatmul.f32.gmra.mxu0 %v2244
      %v2356 = vpop.f32.mrf.mxu0
      %v2357 = vadd.f32 0.0, %v2356
      %2358 = vmatmul.f32.gmra.mxu0 %v2247
      %v2359 = vpop.f32.mrf.mxu0
      %v2360 = vadd.f32 0.0, %v2359
      %2361 = vmatmul.f32.gmra.mxu0 %v2250
      %v2362 = vpop.f32.mrf.mxu0
      %v2363 = vadd.f32 0.0, %v2362
      %2364 = vmatmul.f32.gmra.mxu0 %v2253
      %v2365 = vpop.f32.mrf.mxu0
      %v2366 = vadd.f32 0.0, %v2365
      %2367 = vmatmul.f32.gmra.mxu0 %v2256
      %v2368 = vpop.f32.mrf.mxu0
      %v2369 = vadd.f32 0.0, %v2368
      %2370 = vmatmul.f32.gmra.mxu0 %v2259
      %v2371 = vpop.f32.mrf.mxu0
      %v2372 = vadd.f32 0.0, %v2371
      %2373 = vmatmul.f32.gmra.mxu0 %v2262
      %v2374 = vpop.f32.mrf.mxu0
      %v2375 = vadd.f32 0.0, %v2374
      %2376 = vmatmul.f32.gmra.mxu0 %v2265
      %v2377 = vpop.f32.mrf.mxu0
      %v2378 = vadd.f32 0.0, %v2377
      %2379 = vmatmul.f32.gmra.mxu0 %v2268
      %v2380 = vpop.f32.mrf.mxu0
      %v2381 = vadd.f32 0.0, %v2380
      %2382 = vmatmul.f32.gmra.mxu0 %v2271
      %v2383 = vpop.f32.mrf.mxu0
      %v2384 = vadd.f32 0.0, %v2383
      %2385 = vmatmul.f32.gmra.mxu0 %v2274
      %v2386 = vpop.f32.mrf.mxu0
      %v2387 = vadd.f32 0.0, %v2386
      %2388 = vmatmul.f32.gmra.mxu0 %v2277
      %v2389 = vpop.f32.mrf.mxu0
      %v2390 = vadd.f32 0.0, %v2389
      %2391 = vmatmul.f32.gmra.mxu0 %v2280
      %v2392 = vpop.f32.mrf.mxu0
      %v2393 = vadd.f32 0.0, %v2392
      %2394 = vmatmul.f32.gmra.mxu0 %v2283
      %v2395 = vpop.f32.mrf.mxu0
      %v2396 = vadd.f32 0.0, %v2395
      %2397 = vmatmul.f32.gmra.mxu0 %v2286
      %v2398 = vpop.f32.mrf.mxu0
      %v2399 = vadd.f32 0.0, %v2398
      %2400 = vmatmul.f32.gmra.mxu0 %v2289
      %v2401 = vpop.f32.mrf.mxu0
      %v2402 = vadd.f32 0.0, %v2401
      %2403 = vmatmul.f32.gmra.mxu0 %v2292
      %v2404 = vpop.f32.mrf.mxu0
      %v2405 = vadd.f32 0.0, %v2404
      %2406 = vmatmul.f32.gmra.mxu0 %v2295
      %v2407 = vpop.f32.mrf.mxu0
      %v2408 = vadd.f32 0.0, %v2407
      %2409 = vdwg.mxu0
      %v2410 = vadd.f32 %v2067, %v2315
      %v2411 = vadd.f32 %v2070, %v2318
      %v2412 = vadd.f32 %v2073, %v2321
      %v2413 = vadd.f32 %v2076, %v2324
      %v2414 = vadd.f32 %v2079, %v2327
      %v2415 = vadd.f32 %v2082, %v2330
      %v2416 = vadd.f32 %v2085, %v2333
      %v2417 = vadd.f32 %v2088, %v2336
      %v2418 = vadd.f32 %v2091, %v2339
      %v2419 = vadd.f32 %v2094, %v2342
      %v2420 = vadd.f32 %v2097, %v2345
      %v2421 = vadd.f32 %v2100, %v2348
      %v2422 = vadd.f32 %v2103, %v2351
      %v2423 = vadd.f32 %v2106, %v2354
      %v2424 = vadd.f32 %v2109, %v2357
      %v2425 = vadd.f32 %v2112, %v2360
      %v2426 = vadd.f32 %v2115, %v2363
      %v2427 = vadd.f32 %v2118, %v2366
      %v2428 = vadd.f32 %v2121, %v2369
      %v2429 = vadd.f32 %v2124, %v2372
      %v2430 = vadd.f32 %v2127, %v2375
      %v2431 = vadd.f32 %v2130, %v2378
      %v2432 = vadd.f32 %v2133, %v2381
      %v2433 = vadd.f32 %v2136, %v2384
      %v2434 = vadd.f32 %v2139, %v2387
      %v2435 = vadd.f32 %v2142, %v2390
      %v2436 = vadd.f32 %v2145, %v2393
      %v2437 = vadd.f32 %v2148, %v2396
      %v2438 = vadd.f32 %v2151, %v2399
      %v2439 = vadd.f32 %v2154, %v2402
      %v2440 = vadd.f32 %v2157, %v2405
      %v2441 = vadd.f32 %v2160, %v2408
      %v2442 = vld [vmem:[%s1634] sm:$0xff]
      %v2443 = vld [vmem:[%s1634 + $0x8] sm:$0xff]
      %v2444 = vld [vmem:[%s1634 + $0x18] sm:$0xff]
      %v2445 = vld [vmem:[%s1634 + $0x20] sm:$0xff]
      %v2446 = vld [vmem:[%s1634 + $0x30] sm:$0xff]
      %v2447 = vld [vmem:[%s1634 + $0x38] sm:$0xff]
      %v2448 = vld [vmem:[%s1634 + $0x48] sm:$0xff]
      %v2449 = vld [vmem:[%s1634 + $0x50] sm:$0xff]
      %v2450 = vld [vmem:[%s1634 + $0x60] sm:$0xff]
      %v2451 = vld [vmem:[%s1634 + $0x68] sm:$0xff]
      %v2452 = vld [vmem:[%s1634 + $0x78] sm:$0xff]
      %v2453 = vld [vmem:[%s1634 + $0x80] sm:$0xff]
      %v2454 = vld [vmem:[%s1634 + $0x90] sm:$0xff]
      %v2455 = vld [vmem:[%s1634 + $0x98] sm:$0xff]
      %v2456 = vld [vmem:[%s1634 + $0xa8] sm:$0xff]
      %v2457 = vld [vmem:[%s1634 + $0xb0] sm:$0xff]
      %v2458 = vld [vmem:[%s1634 + $0xc0] sm:$0xff]
      %v2459 = vld [vmem:[%s1634 + $0xc8] sm:$0xff]
      %v2460 = vld [vmem:[%s1634 + $0xd8] sm:$0xff]
      %v2461 = vld [vmem:[%s1634 + $0xe0] sm:$0xff]
      %v2462 = vld [vmem:[%s1634 + $0xf0] sm:$0xff]
      %v2463 = vld [vmem:[%s1634 + $0xf8] sm:$0xff]
      %v2464 = vld [vmem:[%s1634 + $0x108] sm:$0xff]
      %v2465 = vld [vmem:[%s1634 + $0x110] sm:$0xff]
      %v2466 = vld [vmem:[%s1634 + $0x120] sm:$0xff]
      %v2467 = vld [vmem:[%s1634 + $0x128] sm:$0xff]
      %v2468 = vld [vmem:[%s1634 + $0x138] sm:$0xff]
      %v2469 = vld [vmem:[%s1634 + $0x140] sm:$0xff]
      %v2470 = vld [vmem:[%s1634 + $0x150] sm:$0xff]
      %v2471 = vld [vmem:[%s1634 + $0x158] sm:$0xff]
      %v2472 = vld [vmem:[%s1634 + $0x168] sm:$0xff]
      %v2473 = vld [vmem:[%s1634 + $0x170] sm:$0xff]
      %s2474 = scalar_lea.vmem %s5, 144
      %v2475 = vld [vmem:[%s2474] sm:$0xff]
      %v2476 = vld [vmem:[%s2474 + $0x8] sm:$0xff]
      %v2477 = vld [vmem:[%s2474 + $0x10] sm:$0xff]
      %v2478 = vld [vmem:[%s2474 + $0x18] sm:$0xff]
      %v2479 = vld [vmem:[%s2474 + $0x20] sm:$0xff]
      %v2480 = vld [vmem:[%s2474 + $0x28] sm:$0xff]
      %v2482 = vsel %vm576, %v2442, 0
      %v2485 = vsel %vm576, %v2443, 0
      %v2488 = vsel %vm576, %v2444, 0
      %v2491 = vsel %vm576, %v2445, 0
      %v2494 = vsel %vm576, %v2446, 0
      %v2497 = vsel %vm576, %v2447, 0
      %v2500 = vsel %vm576, %v2448, 0
      %v2503 = vsel %vm576, %v2449, 0
      %v2506 = vsel %vm576, %v2450, 0
      %v2509 = vsel %vm576, %v2451, 0
      %v2512 = vsel %vm576, %v2452, 0
      %v2515 = vsel %vm576, %v2453, 0
      %v2518 = vsel %vm576, %v2454, 0
      %v2521 = vsel %vm576, %v2455, 0
      %v2524 = vsel %vm576, %v2456, 0
      %v2527 = vsel %vm576, %v2457, 0
      %v2530 = vsel %vm576, %v2458, 0
      %v2533 = vsel %vm576, %v2459, 0
      %v2536 = vsel %vm576, %v2460, 0
      %v2539 = vsel %vm576, %v2461, 0
      %v2542 = vsel %vm576, %v2462, 0
      %v2545 = vsel %vm576, %v2463, 0
      %v2548 = vsel %vm576, %v2464, 0
      %v2551 = vsel %vm576, %v2465, 0
      %v2554 = vsel %vm576, %v2466, 0
      %v2557 = vsel %vm576, %v2467, 0
      %v2560 = vsel %vm576, %v2468, 0
      %v2563 = vsel %vm576, %v2469, 0
      %v2566 = vsel %vm576, %v2470, 0
      %v2569 = vsel %vm576, %v2471, 0
      %v2572 = vsel %vm576, %v2472, 0
      %v2575 = vsel %vm576, %v2473, 0
      %2577 = vmatpush.msra.mxu0 0.0
      %2578 = vmatpush.msra.mxu0 0.0
      %2579 = vmatpush.msra.mxu0 0.0
      %2580 = vmatpush.msra.mxu0 0.0
      %2581 = vmatpush.msra.mxu0 0.0
      %2582 = vmatpush.msra.mxu0 0.0
      %2583 = vmatpush.msra.mxu0 0.0
      %2584 = vmatpush.msra.mxu0 0.0
      %2585 = vmatpush.msra.mxu0 0.0
      %2586 = vmatpush.msra.mxu0 0.0
      %2587 = vmatpush.msra.mxu0 %v2480
      %2588 = vmatpush.msra.mxu0 %v2479
      %2589 = vmatpush.msra.mxu0 %v2478
      %2590 = vmatpush.msra.mxu0 %v2477
      %2591 = vmatpush.msra.mxu0 %v2476
      %2592 = vmatpush.msra.mxu0 %v2475
      %2593 = vmatmul.f32.gmra.mxu0 %v2482
      %v2594 = vpop.f32.mrf.mxu0
      %v2595 = vadd.f32 0.0, %v2594
      %2596 = vmatmul.f32.gmra.mxu0 %v2485
      %v2597 = vpop.f32.mrf.mxu0
      %v2598 = vadd.f32 0.0, %v2597
      %2599 = vmatmul.f32.gmra.mxu0 %v2488
      %v2600 = vpop.f32.mrf.mxu0
      %v2601 = vadd.f32 0.0, %v2600
      %2602 = vmatmul.f32.gmra.mxu0 %v2491
      %v2603 = vpop.f32.mrf.mxu0
      %v2604 = vadd.f32 0.0, %v2603
      %2605 = vmatmul.f32.gmra.mxu0 %v2494
      %v2606 = vpop.f32.mrf.mxu0
      %v2607 = vadd.f32 0.0, %v2606
      %2608 = vmatmul.f32.gmra.mxu0 %v2497
      %v2609 = vpop.f32.mrf.mxu0
      %v2610 = vadd.f32 0.0, %v2609
      %2611 = vmatmul.f32.gmra.mxu0 %v2500
      %v2612 = vpop.f32.mrf.mxu0
      %v2613 = vadd.f32 0.0, %v2612
      %2614 = vmatmul.f32.gmra.mxu0 %v2503
      %v2615 = vpop.f32.mrf.mxu0
      %v2616 = vadd.f32 0.0, %v2615
      %2617 = vmatmul.f32.gmra.mxu0 %v2506
      %v2618 = vpop.f32.mrf.mxu0
      %v2619 = vadd.f32 0.0, %v2618
      %2620 = vmatmul.f32.gmra.mxu0 %v2509
      %v2621 = vpop.f32.mrf.mxu0
      %v2622 = vadd.f32 0.0, %v2621
      %2623 = vmatmul.f32.gmra.mxu0 %v2512
      %v2624 = vpop.f32.mrf.mxu0
      %v2625 = vadd.f32 0.0, %v2624
      %2626 = vmatmul.f32.gmra.mxu0 %v2515
      %v2627 = vpop.f32.mrf.mxu0
      %v2628 = vadd.f32 0.0, %v2627
      %2629 = vmatmul.f32.gmra.mxu0 %v2518
      %v2630 = vpop.f32.mrf.mxu0
      %v2631 = vadd.f32 0.0, %v2630
      %2632 = vmatmul.f32.gmra.mxu0 %v2521
      %v2633 = vpop.f32.mrf.mxu0
      %v2634 = vadd.f32 0.0, %v2633
      %2635 = vmatmul.f32.gmra.mxu0 %v2524
      %v2636 = vpop.f32.mrf.mxu0
      %v2637 = vadd.f32 0.0, %v2636
      %2638 = vmatmul.f32.gmra.mxu0 %v2527
      %v2639 = vpop.f32.mrf.mxu0
      %v2640 = vadd.f32 0.0, %v2639
      %2641 = vmatmul.f32.gmra.mxu0 %v2530
      %v2642 = vpop.f32.mrf.mxu0
      %v2643 = vadd.f32 0.0, %v2642
      %2644 = vmatmul.f32.gmra.mxu0 %v2533
      %v2645 = vpop.f32.mrf.mxu0
      %v2646 = vadd.f32 0.0, %v2645
      %2647 = vmatmul.f32.gmra.mxu0 %v2536
      %v2648 = vpop.f32.mrf.mxu0
      %v2649 = vadd.f32 0.0, %v2648
      %2650 = vmatmul.f32.gmra.mxu0 %v2539
      %v2651 = vpop.f32.mrf.mxu0
      %v2652 = vadd.f32 0.0, %v2651
      %2653 = vmatmul.f32.gmra.mxu0 %v2542
      %v2654 = vpop.f32.mrf.mxu0
      %v2655 = vadd.f32 0.0, %v2654
      %2656 = vmatmul.f32.gmra.mxu0 %v2545
      %v2657 = vpop.f32.mrf.mxu0
      %v2658 = vadd.f32 0.0, %v2657
      %2659 = vmatmul.f32.gmra.mxu0 %v2548
      %v2660 = vpop.f32.mrf.mxu0
      %v2661 = vadd.f32 0.0, %v2660
      %2662 = vmatmul.f32.gmra.mxu0 %v2551
      %v2663 = vpop.f32.mrf.mxu0
      %v2664 = vadd.f32 0.0, %v2663
      %2665 = vmatmul.f32.gmra.mxu0 %v2554
      %v2666 = vpop.f32.mrf.mxu0
      %v2667 = vadd.f32 0.0, %v2666
      %2668 = vmatmul.f32.gmra.mxu0 %v2557
      %v2669 = vpop.f32.mrf.mxu0
      %v2670 = vadd.f32 0.0, %v2669
      %2671 = vmatmul.f32.gmra.mxu0 %v2560
      %v2672 = vpop.f32.mrf.mxu0
      %v2673 = vadd.f32 0.0, %v2672
      %2674 = vmatmul.f32.gmra.mxu0 %v2563
      %v2675 = vpop.f32.mrf.mxu0
      %v2676 = vadd.f32 0.0, %v2675
      %2677 = vmatmul.f32.gmra.mxu0 %v2566
      %v2678 = vpop.f32.mrf.mxu0
      %v2679 = vadd.f32 0.0, %v2678
      %2680 = vmatmul.f32.gmra.mxu0 %v2569
      %v2681 = vpop.f32.mrf.mxu0
      %v2682 = vadd.f32 0.0, %v2681
      %2683 = vmatmul.f32.gmra.mxu0 %v2572
      %v2684 = vpop.f32.mrf.mxu0
      %v2685 = vadd.f32 0.0, %v2684
      %2686 = vmatmul.f32.gmra.mxu0 %v2575
      %v2687 = vpop.f32.mrf.mxu0
      %v2688 = vadd.f32 0.0, %v2687
      %2689 = vdwg.mxu0
      %v2690 = vadd.f32 %v2410, %v2595
      %v2691 = vadd.f32 %v2411, %v2598
      %v2692 = vadd.f32 %v2412, %v2601
      %v2693 = vadd.f32 %v2413, %v2604
      %v2694 = vadd.f32 %v2414, %v2607
      %v2695 = vadd.f32 %v2415, %v2610
      %v2696 = vadd.f32 %v2416, %v2613
      %v2697 = vadd.f32 %v2417, %v2616
      %v2698 = vadd.f32 %v2418, %v2619
      %v2699 = vadd.f32 %v2419, %v2622
      %v2700 = vadd.f32 %v2420, %v2625
      %v2701 = vadd.f32 %v2421, %v2628
      %v2702 = vadd.f32 %v2422, %v2631
      %v2703 = vadd.f32 %v2423, %v2634
      %v2704 = vadd.f32 %v2424, %v2637
      %v2705 = vadd.f32 %v2425, %v2640
      %v2706 = vadd.f32 %v2426, %v2643
      %v2707 = vadd.f32 %v2427, %v2646
      %v2708 = vadd.f32 %v2428, %v2649
      %v2709 = vadd.f32 %v2429, %v2652
      %v2710 = vadd.f32 %v2430, %v2655
      %v2711 = vadd.f32 %v2431, %v2658
      %v2712 = vadd.f32 %v2432, %v2661
      %v2713 = vadd.f32 %v2433, %v2664
      %v2714 = vadd.f32 %v2434, %v2667
      %v2715 = vadd.f32 %v2435, %v2670
      %v2716 = vadd.f32 %v2436, %v2673
      %v2717 = vadd.f32 %v2437, %v2676
      %v2718 = vadd.f32 %v2438, %v2679
      %v2719 = vadd.f32 %v2439, %v2682
      %v2720 = vadd.f32 %v2440, %v2685
      %v2721 = vadd.f32 %v2441, %v2688
      %v2722 = vld [vmem:[%s1634 + $0x1] sm:$0xff]
      %v2723 = vld [vmem:[%s1634 + $0x9] sm:$0xff]
      %v2724 = vld [vmem:[%s1634 + $0x19] sm:$0xff]
      %v2725 = vld [vmem:[%s1634 + $0x21] sm:$0xff]
      %v2726 = vld [vmem:[%s1634 + $0x31] sm:$0xff]
      %v2727 = vld [vmem:[%s1634 + $0x39] sm:$0xff]
      %v2728 = vld [vmem:[%s1634 + $0x49] sm:$0xff]
      %v2729 = vld [vmem:[%s1634 + $0x51] sm:$0xff]
      %v2730 = vld [vmem:[%s1634 + $0x61] sm:$0xff]
      %v2731 = vld [vmem:[%s1634 + $0x69] sm:$0xff]
      %v2732 = vld [vmem:[%s1634 + $0x79] sm:$0xff]
      %v2733 = vld [vmem:[%s1634 + $0x81] sm:$0xff]
      %v2734 = vld [vmem:[%s1634 + $0x91] sm:$0xff]
      %v2735 = vld [vmem:[%s1634 + $0x99] sm:$0xff]
      %v2736 = vld [vmem:[%s1634 + $0xa9] sm:$0xff]
      %v2737 = vld [vmem:[%s1634 + $0xb1] sm:$0xff]
      %v2738 = vld [vmem:[%s1634 + $0xc1] sm:$0xff]
      %v2739 = vld [vmem:[%s1634 + $0xc9] sm:$0xff]
      %v2740 = vld [vmem:[%s1634 + $0xd9] sm:$0xff]
      %v2741 = vld [vmem:[%s1634 + $0xe1] sm:$0xff]
      %v2742 = vld [vmem:[%s1634 + $0xf1] sm:$0xff]
      %v2743 = vld [vmem:[%s1634 + $0xf9] sm:$0xff]
      %v2744 = vld [vmem:[%s1634 + $0x109] sm:$0xff]
      %v2745 = vld [vmem:[%s1634 + $0x111] sm:$0xff]
      %v2746 = vld [vmem:[%s1634 + $0x121] sm:$0xff]
      %v2747 = vld [vmem:[%s1634 + $0x129] sm:$0xff]
      %v2748 = vld [vmem:[%s1634 + $0x139] sm:$0xff]
      %v2749 = vld [vmem:[%s1634 + $0x141] sm:$0xff]
      %v2750 = vld [vmem:[%s1634 + $0x151] sm:$0xff]
      %v2751 = vld [vmem:[%s1634 + $0x159] sm:$0xff]
      %v2752 = vld [vmem:[%s1634 + $0x169] sm:$0xff]
      %v2753 = vld [vmem:[%s1634 + $0x171] sm:$0xff]
      %s2754 = scalar_lea.vmem %s5, 192
      %v2755 = vld [vmem:[%s2754] sm:$0xff]
      %v2756 = vld [vmem:[%s2754 + $0x8] sm:$0xff]
      %v2757 = vld [vmem:[%s2754 + $0x10] sm:$0xff]
      %v2758 = vld [vmem:[%s2754 + $0x18] sm:$0xff]
      %v2759 = vld [vmem:[%s2754 + $0x20] sm:$0xff]
      %v2760 = vld [vmem:[%s2754 + $0x28] sm:$0xff]
      %v2762 = vsel %vm576, %v2722, 0
      %v2765 = vsel %vm576, %v2723, 0
      %v2768 = vsel %vm576, %v2724, 0
      %v2771 = vsel %vm576, %v2725, 0
      %v2774 = vsel %vm576, %v2726, 0
      %v2777 = vsel %vm576, %v2727, 0
      %v2780 = vsel %vm576, %v2728, 0
      %v2783 = vsel %vm576, %v2729, 0
      %v2786 = vsel %vm576, %v2730, 0
      %v2789 = vsel %vm576, %v2731, 0
      %v2792 = vsel %vm576, %v2732, 0
      %v2795 = vsel %vm576, %v2733, 0
      %v2798 = vsel %vm576, %v2734, 0
      %v2801 = vsel %vm576, %v2735, 0
      %v2804 = vsel %vm576, %v2736, 0
      %v2807 = vsel %vm576, %v2737, 0
      %v2810 = vsel %vm576, %v2738, 0
      %v2813 = vsel %vm576, %v2739, 0
      %v2816 = vsel %vm576, %v2740, 0
      %v2819 = vsel %vm576, %v2741, 0
      %v2822 = vsel %vm576, %v2742, 0
      %v2825 = vsel %vm576, %v2743, 0
      %v2828 = vsel %vm576, %v2744, 0
      %v2831 = vsel %vm576, %v2745, 0
      %v2834 = vsel %vm576, %v2746, 0
      %v2837 = vsel %vm576, %v2747, 0
      %v2840 = vsel %vm576, %v2748, 0
      %v2843 = vsel %vm576, %v2749, 0
      %v2846 = vsel %vm576, %v2750, 0
      %v2849 = vsel %vm576, %v2751, 0
      %v2852 = vsel %vm576, %v2752, 0
      %v2855 = vsel %vm576, %v2753, 0
      %2857 = vmatpush.msra.mxu0 0.0
      %2858 = vmatpush.msra.mxu0 0.0
      %2859 = vmatpush.msra.mxu0 0.0
      %2860 = vmatpush.msra.mxu0 0.0
      %2861 = vmatpush.msra.mxu0 0.0
      %2862 = vmatpush.msra.mxu0 0.0
      %2863 = vmatpush.msra.mxu0 0.0
      %2864 = vmatpush.msra.mxu0 0.0
      %2865 = vmatpush.msra.mxu0 0.0
      %2866 = vmatpush.msra.mxu0 0.0
      %2867 = vmatpush.msra.mxu0 %v2760
      %2868 = vmatpush.msra.mxu0 %v2759
      %2869 = vmatpush.msra.mxu0 %v2758
      %2870 = vmatpush.msra.mxu0 %v2757
      %2871 = vmatpush.msra.mxu0 %v2756
      %2872 = vmatpush.msra.mxu0 %v2755
      %2873 = vmatmul.f32.gmra.mxu0 %v2762
      %v2874 = vpop.f32.mrf.mxu0
      %v2875 = vadd.f32 0.0, %v2874
      %2876 = vmatmul.f32.gmra.mxu0 %v2765
      %v2877 = vpop.f32.mrf.mxu0
      %v2878 = vadd.f32 0.0, %v2877
      %2879 = vmatmul.f32.gmra.mxu0 %v2768
      %v2880 = vpop.f32.mrf.mxu0
      %v2881 = vadd.f32 0.0, %v2880
      %2882 = vmatmul.f32.gmra.mxu0 %v2771
      %v2883 = vpop.f32.mrf.mxu0
      %v2884 = vadd.f32 0.0, %v2883
      %2885 = vmatmul.f32.gmra.mxu0 %v2774
      %v2886 = vpop.f32.mrf.mxu0
      %v2887 = vadd.f32 0.0, %v2886
      %2888 = vmatmul.f32.gmra.mxu0 %v2777
      %v2889 = vpop.f32.mrf.mxu0
      %v2890 = vadd.f32 0.0, %v2889
      %2891 = vmatmul.f32.gmra.mxu0 %v2780
      %v2892 = vpop.f32.mrf.mxu0
      %v2893 = vadd.f32 0.0, %v2892
      %2894 = vmatmul.f32.gmra.mxu0 %v2783
      %v2895 = vpop.f32.mrf.mxu0
      %v2896 = vadd.f32 0.0, %v2895
      %2897 = vmatmul.f32.gmra.mxu0 %v2786
      %v2898 = vpop.f32.mrf.mxu0
      %v2899 = vadd.f32 0.0, %v2898
      %2900 = vmatmul.f32.gmra.mxu0 %v2789
      %v2901 = vpop.f32.mrf.mxu0
      %v2902 = vadd.f32 0.0, %v2901
      %2903 = vmatmul.f32.gmra.mxu0 %v2792
      %v2904 = vpop.f32.mrf.mxu0
      %v2905 = vadd.f32 0.0, %v2904
      %2906 = vmatmul.f32.gmra.mxu0 %v2795
      %v2907 = vpop.f32.mrf.mxu0
      %v2908 = vadd.f32 0.0, %v2907
      %2909 = vmatmul.f32.gmra.mxu0 %v2798
      %v2910 = vpop.f32.mrf.mxu0
      %v2911 = vadd.f32 0.0, %v2910
      %2912 = vmatmul.f32.gmra.mxu0 %v2801
      %v2913 = vpop.f32.mrf.mxu0
      %v2914 = vadd.f32 0.0, %v2913
      %2915 = vmatmul.f32.gmra.mxu0 %v2804
      %v2916 = vpop.f32.mrf.mxu0
      %v2917 = vadd.f32 0.0, %v2916
      %2918 = vmatmul.f32.gmra.mxu0 %v2807
      %v2919 = vpop.f32.mrf.mxu0
      %v2920 = vadd.f32 0.0, %v2919
      %2921 = vmatmul.f32.gmra.mxu0 %v2810
      %v2922 = vpop.f32.mrf.mxu0
      %v2923 = vadd.f32 0.0, %v2922
      %2924 = vmatmul.f32.gmra.mxu0 %v2813
      %v2925 = vpop.f32.mrf.mxu0
      %v2926 = vadd.f32 0.0, %v2925
      %2927 = vmatmul.f32.gmra.mxu0 %v2816
      %v2928 = vpop.f32.mrf.mxu0
      %v2929 = vadd.f32 0.0, %v2928
      %2930 = vmatmul.f32.gmra.mxu0 %v2819
      %v2931 = vpop.f32.mrf.mxu0
      %v2932 = vadd.f32 0.0, %v2931
      %2933 = vmatmul.f32.gmra.mxu0 %v2822
      %v2934 = vpop.f32.mrf.mxu0
      %v2935 = vadd.f32 0.0, %v2934
      %2936 = vmatmul.f32.gmra.mxu0 %v2825
      %v2937 = vpop.f32.mrf.mxu0
      %v2938 = vadd.f32 0.0, %v2937
      %2939 = vmatmul.f32.gmra.mxu0 %v2828
      %v2940 = vpop.f32.mrf.mxu0
      %v2941 = vadd.f32 0.0, %v2940
      %2942 = vmatmul.f32.gmra.mxu0 %v2831
      %v2943 = vpop.f32.mrf.mxu0
      %v2944 = vadd.f32 0.0, %v2943
      %2945 = vmatmul.f32.gmra.mxu0 %v2834
      %v2946 = vpop.f32.mrf.mxu0
      %v2947 = vadd.f32 0.0, %v2946
      %2948 = vmatmul.f32.gmra.mxu0 %v2837
      %v2949 = vpop.f32.mrf.mxu0
      %v2950 = vadd.f32 0.0, %v2949
      %2951 = vmatmul.f32.gmra.mxu0 %v2840
      %v2952 = vpop.f32.mrf.mxu0
      %v2953 = vadd.f32 0.0, %v2952
      %2954 = vmatmul.f32.gmra.mxu0 %v2843
      %v2955 = vpop.f32.mrf.mxu0
      %v2956 = vadd.f32 0.0, %v2955
      %2957 = vmatmul.f32.gmra.mxu0 %v2846
      %v2958 = vpop.f32.mrf.mxu0
      %v2959 = vadd.f32 0.0, %v2958
      %2960 = vmatmul.f32.gmra.mxu0 %v2849
      %v2961 = vpop.f32.mrf.mxu0
      %v2962 = vadd.f32 0.0, %v2961
      %2963 = vmatmul.f32.gmra.mxu0 %v2852
      %v2964 = vpop.f32.mrf.mxu0
      %v2965 = vadd.f32 0.0, %v2964
      %2966 = vmatmul.f32.gmra.mxu0 %v2855
      %v2967 = vpop.f32.mrf.mxu0
      %v2968 = vadd.f32 0.0, %v2967
      %2969 = vdwg.mxu0
      %v2970 = vadd.f32 %v2690, %v2875
      %v2971 = vadd.f32 %v2691, %v2878
      %v2972 = vadd.f32 %v2692, %v2881
      %v2973 = vadd.f32 %v2693, %v2884
      %v2974 = vadd.f32 %v2694, %v2887
      %v2975 = vadd.f32 %v2695, %v2890
      %v2976 = vadd.f32 %v2696, %v2893
      %v2977 = vadd.f32 %v2697, %v2896
      %v2978 = vadd.f32 %v2698, %v2899
      %v2979 = vadd.f32 %v2699, %v2902
      %v2980 = vadd.f32 %v2700, %v2905
      %v2981 = vadd.f32 %v2701, %v2908
      %v2982 = vadd.f32 %v2702, %v2911
      %v2983 = vadd.f32 %v2703, %v2914
      %v2984 = vadd.f32 %v2704, %v2917
      %v2985 = vadd.f32 %v2705, %v2920
      %v2986 = vadd.f32 %v2706, %v2923
      %v2987 = vadd.f32 %v2707, %v2926
      %v2988 = vadd.f32 %v2708, %v2929
      %v2989 = vadd.f32 %v2709, %v2932
      %v2990 = vadd.f32 %v2710, %v2935
      %v2991 = vadd.f32 %v2711, %v2938
      %v2992 = vadd.f32 %v2712, %v2941
      %v2993 = vadd.f32 %v2713, %v2944
      %v2994 = vadd.f32 %v2714, %v2947
      %v2995 = vadd.f32 %v2715, %v2950
      %v2996 = vadd.f32 %v2716, %v2953
      %v2997 = vadd.f32 %v2717, %v2956
      %v2998 = vadd.f32 %v2718, %v2959
      %v2999 = vadd.f32 %v2719, %v2962
      %v3000 = vadd.f32 %v2720, %v2965
      %v3001 = vadd.f32 %v2721, %v2968
      %v3002 = vld [vmem:[%s1634 + $0x2] sm:$0xff]
      %v3003 = vld [vmem:[%s1634 + $0xa] sm:$0xff]
      %v3004 = vld [vmem:[%s1634 + $0x1a] sm:$0xff]
      %v3005 = vld [vmem:[%s1634 + $0x22] sm:$0xff]
      %v3006 = vld [vmem:[%s1634 + $0x32] sm:$0xff]
      %v3007 = vld [vmem:[%s1634 + $0x3a] sm:$0xff]
      %v3008 = vld [vmem:[%s1634 + $0x4a] sm:$0xff]
      %v3009 = vld [vmem:[%s1634 + $0x52] sm:$0xff]
      %v3010 = vld [vmem:[%s1634 + $0x62] sm:$0xff]
      %v3011 = vld [vmem:[%s1634 + $0x6a] sm:$0xff]
      %v3012 = vld [vmem:[%s1634 + $0x7a] sm:$0xff]
      %v3013 = vld [vmem:[%s1634 + $0x82] sm:$0xff]
      %v3014 = vld [vmem:[%s1634 + $0x92] sm:$0xff]
      %v3015 = vld [vmem:[%s1634 + $0x9a] sm:$0xff]
      %v3016 = vld [vmem:[%s1634 + $0xaa] sm:$0xff]
      %v3017 = vld [vmem:[%s1634 + $0xb2] sm:$0xff]
      %v3018 = vld [vmem:[%s1634 + $0xc2] sm:$0xff]
      %v3019 = vld [vmem:[%s1634 + $0xca] sm:$0xff]
      %v3020 = vld [vmem:[%s1634 + $0xda] sm:$0xff]
      %v3021 = vld [vmem:[%s1634 + $0xe2] sm:$0xff]
      %v3022 = vld [vmem:[%s1634 + $0xf2] sm:$0xff]
      %v3023 = vld [vmem:[%s1634 + $0xfa] sm:$0xff]
      %v3024 = vld [vmem:[%s1634 + $0x10a] sm:$0xff]
      %v3025 = vld [vmem:[%s1634 + $0x112] sm:$0xff]
      %v3026 = vld [vmem:[%s1634 + $0x122] sm:$0xff]
      %v3027 = vld [vmem:[%s1634 + $0x12a] sm:$0xff]
      %v3028 = vld [vmem:[%s1634 + $0x13a] sm:$0xff]
      %v3029 = vld [vmem:[%s1634 + $0x142] sm:$0xff]
      %v3030 = vld [vmem:[%s1634 + $0x152] sm:$0xff]
      %v3031 = vld [vmem:[%s1634 + $0x15a] sm:$0xff]
      %v3032 = vld [vmem:[%s1634 + $0x16a] sm:$0xff]
      %v3033 = vld [vmem:[%s1634 + $0x172] sm:$0xff]
      %s3034 = scalar_lea.vmem %s5, 240
      %v3035 = vld [vmem:[%s3034] sm:$0xff]
      %v3036 = vld [vmem:[%s3034 + $0x8] sm:$0xff]
      %v3037 = vld [vmem:[%s3034 + $0x10] sm:$0xff]
      %v3038 = vld [vmem:[%s3034 + $0x18] sm:$0xff]
      %v3039 = vld [vmem:[%s3034 + $0x20] sm:$0xff]
      %v3040 = vld [vmem:[%s3034 + $0x28] sm:$0xff]
      %v3042 = vsel %vm576, %v3002, 0
      %v3045 = vsel %vm576, %v3003, 0
      %v3048 = vsel %vm576, %v3004, 0
      %v3051 = vsel %vm576, %v3005, 0
      %v3054 = vsel %vm576, %v3006, 0
      %v3057 = vsel %vm576, %v3007, 0
      %v3060 = vsel %vm576, %v3008, 0
      %v3063 = vsel %vm576, %v3009, 0
      %v3066 = vsel %vm576, %v3010, 0
      %v3069 = vsel %vm576, %v3011, 0
      %v3072 = vsel %vm576, %v3012, 0
      %v3075 = vsel %vm576, %v3013, 0
      %v3078 = vsel %vm576, %v3014, 0
      %v3081 = vsel %vm576, %v3015, 0
      %v3084 = vsel %vm576, %v3016, 0
      %v3087 = vsel %vm576, %v3017, 0
      %v3090 = vsel %vm576, %v3018, 0
      %v3093 = vsel %vm576, %v3019, 0
      %v3096 = vsel %vm576, %v3020, 0
      %v3099 = vsel %vm576, %v3021, 0
      %v3102 = vsel %vm576, %v3022, 0
      %v3105 = vsel %vm576, %v3023, 0
      %v3108 = vsel %vm576, %v3024, 0
      %v3111 = vsel %vm576, %v3025, 0
      %v3114 = vsel %vm576, %v3026, 0
      %v3117 = vsel %vm576, %v3027, 0
      %v3120 = vsel %vm576, %v3028, 0
      %v3123 = vsel %vm576, %v3029, 0
      %v3126 = vsel %vm576, %v3030, 0
      %v3129 = vsel %vm576, %v3031, 0
      %v3132 = vsel %vm576, %v3032, 0
      %v3135 = vsel %vm576, %v3033, 0
      %3137 = vmatpush.msra.mxu0 0.0
      %3138 = vmatpush.msra.mxu0 0.0
      %3139 = vmatpush.msra.mxu0 0.0
      %3140 = vmatpush.msra.mxu0 0.0
      %3141 = vmatpush.msra.mxu0 0.0
      %3142 = vmatpush.msra.mxu0 0.0
      %3143 = vmatpush.msra.mxu0 0.0
      %3144 = vmatpush.msra.mxu0 0.0
      %3145 = vmatpush.msra.mxu0 0.0
      %3146 = vmatpush.msra.mxu0 0.0
      %3147 = vmatpush.msra.mxu0 %v3040
      %3148 = vmatpush.msra.mxu0 %v3039
      %3149 = vmatpush.msra.mxu0 %v3038
      %3150 = vmatpush.msra.mxu0 %v3037
      %3151 = vmatpush.msra.mxu0 %v3036
      %3152 = vmatpush.msra.mxu0 %v3035
      %3153 = vmatmul.f32.gmra.mxu0 %v3042
      %v3154 = vpop.f32.mrf.mxu0
      %v3155 = vadd.f32 0.0, %v3154
      %3156 = vmatmul.f32.gmra.mxu0 %v3045
      %v3157 = vpop.f32.mrf.mxu0
      %v3158 = vadd.f32 0.0, %v3157
      %3159 = vmatmul.f32.gmra.mxu0 %v3048
      %v3160 = vpop.f32.mrf.mxu0
      %v3161 = vadd.f32 0.0, %v3160
      %3162 = vmatmul.f32.gmra.mxu0 %v3051
      %v3163 = vpop.f32.mrf.mxu0
      %v3164 = vadd.f32 0.0, %v3163
      %3165 = vmatmul.f32.gmra.mxu0 %v3054
      %v3166 = vpop.f32.mrf.mxu0
      %v3167 = vadd.f32 0.0, %v3166
      %3168 = vmatmul.f32.gmra.mxu0 %v3057
      %v3169 = vpop.f32.mrf.mxu0
      %v3170 = vadd.f32 0.0, %v3169
      %3171 = vmatmul.f32.gmra.mxu0 %v3060
      %v3172 = vpop.f32.mrf.mxu0
      %v3173 = vadd.f32 0.0, %v3172
      %3174 = vmatmul.f32.gmra.mxu0 %v3063
      %v3175 = vpop.f32.mrf.mxu0
      %v3176 = vadd.f32 0.0, %v3175
      %3177 = vmatmul.f32.gmra.mxu0 %v3066
      %v3178 = vpop.f32.mrf.mxu0
      %v3179 = vadd.f32 0.0, %v3178
      %3180 = vmatmul.f32.gmra.mxu0 %v3069
      %v3181 = vpop.f32.mrf.mxu0
      %v3182 = vadd.f32 0.0, %v3181
      %3183 = vmatmul.f32.gmra.mxu0 %v3072
      %v3184 = vpop.f32.mrf.mxu0
      %v3185 = vadd.f32 0.0, %v3184
      %3186 = vmatmul.f32.gmra.mxu0 %v3075
      %v3187 = vpop.f32.mrf.mxu0
      %v3188 = vadd.f32 0.0, %v3187
      %3189 = vmatmul.f32.gmra.mxu0 %v3078
      %v3190 = vpop.f32.mrf.mxu0
      %v3191 = vadd.f32 0.0, %v3190
      %3192 = vmatmul.f32.gmra.mxu0 %v3081
      %v3193 = vpop.f32.mrf.mxu0
      %v3194 = vadd.f32 0.0, %v3193
      %3195 = vmatmul.f32.gmra.mxu0 %v3084
      %v3196 = vpop.f32.mrf.mxu0
      %v3197 = vadd.f32 0.0, %v3196
      %3198 = vmatmul.f32.gmra.mxu0 %v3087
      %v3199 = vpop.f32.mrf.mxu0
      %v3200 = vadd.f32 0.0, %v3199
      %3201 = vmatmul.f32.gmra.mxu0 %v3090
      %v3202 = vpop.f32.mrf.mxu0
      %v3203 = vadd.f32 0.0, %v3202
      %3204 = vmatmul.f32.gmra.mxu0 %v3093
      %v3205 = vpop.f32.mrf.mxu0
      %v3206 = vadd.f32 0.0, %v3205
      %3207 = vmatmul.f32.gmra.mxu0 %v3096
      %v3208 = vpop.f32.mrf.mxu0
      %v3209 = vadd.f32 0.0, %v3208
      %3210 = vmatmul.f32.gmra.mxu0 %v3099
      %v3211 = vpop.f32.mrf.mxu0
      %v3212 = vadd.f32 0.0, %v3211
      %3213 = vmatmul.f32.gmra.mxu0 %v3102
      %v3214 = vpop.f32.mrf.mxu0
      %v3215 = vadd.f32 0.0, %v3214
      %3216 = vmatmul.f32.gmra.mxu0 %v3105
      %v3217 = vpop.f32.mrf.mxu0
      %v3218 = vadd.f32 0.0, %v3217
      %3219 = vmatmul.f32.gmra.mxu0 %v3108
      %v3220 = vpop.f32.mrf.mxu0
      %v3221 = vadd.f32 0.0, %v3220
      %3222 = vmatmul.f32.gmra.mxu0 %v3111
      %v3223 = vpop.f32.mrf.mxu0
      %v3224 = vadd.f32 0.0, %v3223
      %3225 = vmatmul.f32.gmra.mxu0 %v3114
      %v3226 = vpop.f32.mrf.mxu0
      %v3227 = vadd.f32 0.0, %v3226
      %3228 = vmatmul.f32.gmra.mxu0 %v3117
      %v3229 = vpop.f32.mrf.mxu0
      %v3230 = vadd.f32 0.0, %v3229
      %3231 = vmatmul.f32.gmra.mxu0 %v3120
      %v3232 = vpop.f32.mrf.mxu0
      %v3233 = vadd.f32 0.0, %v3232
      %3234 = vmatmul.f32.gmra.mxu0 %v3123
      %v3235 = vpop.f32.mrf.mxu0
      %v3236 = vadd.f32 0.0, %v3235
      %3237 = vmatmul.f32.gmra.mxu0 %v3126
      %v3238 = vpop.f32.mrf.mxu0
      %v3239 = vadd.f32 0.0, %v3238
      %3240 = vmatmul.f32.gmra.mxu0 %v3129
      %v3241 = vpop.f32.mrf.mxu0
      %v3242 = vadd.f32 0.0, %v3241
      %3243 = vmatmul.f32.gmra.mxu0 %v3132
      %v3244 = vpop.f32.mrf.mxu0
      %v3245 = vadd.f32 0.0, %v3244
      %3246 = vmatmul.f32.gmra.mxu0 %v3135
      %v3247 = vpop.f32.mrf.mxu0
      %v3248 = vadd.f32 0.0, %v3247
      %3249 = vdwg.mxu0
      %v3250 = vadd.f32 %v2970, %v3155
      %v3251 = vadd.f32 %v2971, %v3158
      %v3252 = vadd.f32 %v2972, %v3161
      %v3253 = vadd.f32 %v2973, %v3164
      %v3254 = vadd.f32 %v2974, %v3167
      %v3255 = vadd.f32 %v2975, %v3170
      %v3256 = vadd.f32 %v2976, %v3173
      %v3257 = vadd.f32 %v2977, %v3176
      %v3258 = vadd.f32 %v2978, %v3179
      %v3259 = vadd.f32 %v2979, %v3182
      %v3260 = vadd.f32 %v2980, %v3185
      %v3261 = vadd.f32 %v2981, %v3188
      %v3262 = vadd.f32 %v2982, %v3191
      %v3263 = vadd.f32 %v2983, %v3194
      %v3264 = vadd.f32 %v2984, %v3197
      %v3265 = vadd.f32 %v2985, %v3200
      %v3266 = vadd.f32 %v2986, %v3203
      %v3267 = vadd.f32 %v2987, %v3206
      %v3268 = vadd.f32 %v2988, %v3209
      %v3269 = vadd.f32 %v2989, %v3212
      %v3270 = vadd.f32 %v2990, %v3215
      %v3271 = vadd.f32 %v2991, %v3218
      %v3272 = vadd.f32 %v2992, %v3221
      %v3273 = vadd.f32 %v2993, %v3224
      %v3274 = vadd.f32 %v2994, %v3227
      %v3275 = vadd.f32 %v2995, %v3230
      %v3276 = vadd.f32 %v2996, %v3233
      %v3277 = vadd.f32 %v2997, %v3236
      %v3278 = vadd.f32 %v2998, %v3239
      %v3279 = vadd.f32 %v2999, %v3242
      %v3280 = vadd.f32 %v3000, %v3245
      %v3281 = vadd.f32 %v3001, %v3248
      %s3282 = scalar_lea.vmem [#allocation2], 48
      %v3283 = vld [vmem:[%s3282] sm:$0xff]
      %v3284 = vld [vmem:[%s3282 + $0x8] sm:$0xff]
      %v3285 = vld [vmem:[%s3282 + $0x18] sm:$0xff]
      %v3286 = vld [vmem:[%s3282 + $0x20] sm:$0xff]
      %v3287 = vld [vmem:[%s3282 + $0x30] sm:$0xff]
      %v3288 = vld [vmem:[%s3282 + $0x38] sm:$0xff]
      %v3289 = vld [vmem:[%s3282 + $0x48] sm:$0xff]
      %v3290 = vld [vmem:[%s3282 + $0x50] sm:$0xff]
      %v3291 = vld [vmem:[%s3282 + $0x60] sm:$0xff]
      %v3292 = vld [vmem:[%s3282 + $0x68] sm:$0xff]
      %v3293 = vld [vmem:[%s3282 + $0x78] sm:$0xff]
      %v3294 = vld [vmem:[%s3282 + $0x80] sm:$0xff]
      %v3295 = vld [vmem:[%s3282 + $0x90] sm:$0xff]
      %v3296 = vld [vmem:[%s3282 + $0x98] sm:$0xff]
      %v3297 = vld [vmem:[%s3282 + $0xa8] sm:$0xff]
      %v3298 = vld [vmem:[%s3282 + $0xb0] sm:$0xff]
      %v3299 = vld [vmem:[%s3282 + $0xc0] sm:$0xff]
      %v3300 = vld [vmem:[%s3282 + $0xc8] sm:$0xff]
      %v3301 = vld [vmem:[%s3282 + $0xd8] sm:$0xff]
      %v3302 = vld [vmem:[%s3282 + $0xe0] sm:$0xff]
      %v3303 = vld [vmem:[%s3282 + $0xf0] sm:$0xff]
      %v3304 = vld [vmem:[%s3282 + $0xf8] sm:$0xff]
      %v3305 = vld [vmem:[%s3282 + $0x108] sm:$0xff]
      %v3306 = vld [vmem:[%s3282 + $0x110] sm:$0xff]
      %v3307 = vld [vmem:[%s3282 + $0x120] sm:$0xff]
      %v3308 = vld [vmem:[%s3282 + $0x128] sm:$0xff]
      %v3309 = vld [vmem:[%s3282 + $0x138] sm:$0xff]
      %v3310 = vld [vmem:[%s3282 + $0x140] sm:$0xff]
      %v3311 = vld [vmem:[%s3282 + $0x150] sm:$0xff]
      %v3312 = vld [vmem:[%s3282 + $0x158] sm:$0xff]
      %v3313 = vld [vmem:[%s3282 + $0x168] sm:$0xff]
      %v3314 = vld [vmem:[%s3282 + $0x170] sm:$0xff]
      %s3315 = scalar_lea.vmem %s5, 288
      %v3316 = vld [vmem:[%s3315] sm:$0xff]
      %v3317 = vld [vmem:[%s3315 + $0x8] sm:$0xff]
      %v3318 = vld [vmem:[%s3315 + $0x10] sm:$0xff]
      %v3319 = vld [vmem:[%s3315 + $0x18] sm:$0xff]
      %v3320 = vld [vmem:[%s3315 + $0x20] sm:$0xff]
      %v3321 = vld [vmem:[%s3315 + $0x28] sm:$0xff]
      %v3323 = vsel %vm576, %v3283, 0
      %v3326 = vsel %vm576, %v3284, 0
      %v3329 = vsel %vm576, %v3285, 0
      %v3332 = vsel %vm576, %v3286, 0
      %v3335 = vsel %vm576, %v3287, 0
      %v3338 = vsel %vm576, %v3288, 0
      %v3341 = vsel %vm576, %v3289, 0
      %v3344 = vsel %vm576, %v3290, 0
      %v3347 = vsel %vm576, %v3291, 0
      %v3350 = vsel %vm576, %v3292, 0
      %v3353 = vsel %vm576, %v3293, 0
      %v3356 = vsel %vm576, %v3294, 0
      %v3359 = vsel %vm576, %v3295, 0
      %v3362 = vsel %vm576, %v3296, 0
      %v3365 = vsel %vm576, %v3297, 0
      %v3368 = vsel %vm576, %v3298, 0
      %v3371 = vsel %vm576, %v3299, 0
      %v3374 = vsel %vm576, %v3300, 0
      %v3377 = vsel %vm576, %v3301, 0
      %v3380 = vsel %vm576, %v3302, 0
      %v3383 = vsel %vm576, %v3303, 0
      %v3386 = vsel %vm576, %v3304, 0
      %v3389 = vsel %vm576, %v3305, 0
      %v3392 = vsel %vm576, %v3306, 0
      %v3395 = vsel %vm576, %v3307, 0
      %v3398 = vsel %vm576, %v3308, 0
      %v3401 = vsel %vm576, %v3309, 0
      %v3404 = vsel %vm576, %v3310, 0
      %v3407 = vsel %vm576, %v3311, 0
      %v3410 = vsel %vm576, %v3312, 0
      %v3413 = vsel %vm576, %v3313, 0
      %v3416 = vsel %vm576, %v3314, 0
      %3418 = vmatpush.msra.mxu0 0.0
      %3419 = vmatpush.msra.mxu0 0.0
      %3420 = vmatpush.msra.mxu0 0.0
      %3421 = vmatpush.msra.mxu0 0.0
      %3422 = vmatpush.msra.mxu0 0.0
      %3423 = vmatpush.msra.mxu0 0.0
      %3424 = vmatpush.msra.mxu0 0.0
      %3425 = vmatpush.msra.mxu0 0.0
      %3426 = vmatpush.msra.mxu0 0.0
      %3427 = vmatpush.msra.mxu0 0.0
      %3428 = vmatpush.msra.mxu0 %v3321
      %3429 = vmatpush.msra.mxu0 %v3320
      %3430 = vmatpush.msra.mxu0 %v3319
      %3431 = vmatpush.msra.mxu0 %v3318
      %3432 = vmatpush.msra.mxu0 %v3317
      %3433 = vmatpush.msra.mxu0 %v3316
      %3434 = vmatmul.f32.gmra.mxu0 %v3323
      %v3435 = vpop.f32.mrf.mxu0
      %v3436 = vadd.f32 0.0, %v3435
      %3437 = vmatmul.f32.gmra.mxu0 %v3326
      %v3438 = vpop.f32.mrf.mxu0
      %v3439 = vadd.f32 0.0, %v3438
      %3440 = vmatmul.f32.gmra.mxu0 %v3329
      %v3441 = vpop.f32.mrf.mxu0
      %v3442 = vadd.f32 0.0, %v3441
      %3443 = vmatmul.f32.gmra.mxu0 %v3332
      %v3444 = vpop.f32.mrf.mxu0
      %v3445 = vadd.f32 0.0, %v3444
      %3446 = vmatmul.f32.gmra.mxu0 %v3335
      %v3447 = vpop.f32.mrf.mxu0
      %v3448 = vadd.f32 0.0, %v3447
      %3449 = vmatmul.f32.gmra.mxu0 %v3338
      %v3450 = vpop.f32.mrf.mxu0
      %v3451 = vadd.f32 0.0, %v3450
      %3452 = vmatmul.f32.gmra.mxu0 %v3341
      %v3453 = vpop.f32.mrf.mxu0
      %v3454 = vadd.f32 0.0, %v3453
      %3455 = vmatmul.f32.gmra.mxu0 %v3344
      %v3456 = vpop.f32.mrf.mxu0
      %v3457 = vadd.f32 0.0, %v3456
      %3458 = vmatmul.f32.gmra.mxu0 %v3347
      %v3459 = vpop.f32.mrf.mxu0
      %v3460 = vadd.f32 0.0, %v3459
      %3461 = vmatmul.f32.gmra.mxu0 %v3350
      %v3462 = vpop.f32.mrf.mxu0
      %v3463 = vadd.f32 0.0, %v3462
      %3464 = vmatmul.f32.gmra.mxu0 %v3353
      %v3465 = vpop.f32.mrf.mxu0
      %v3466 = vadd.f32 0.0, %v3465
      %3467 = vmatmul.f32.gmra.mxu0 %v3356
      %v3468 = vpop.f32.mrf.mxu0
      %v3469 = vadd.f32 0.0, %v3468
      %3470 = vmatmul.f32.gmra.mxu0 %v3359
      %v3471 = vpop.f32.mrf.mxu0
      %v3472 = vadd.f32 0.0, %v3471
      %3473 = vmatmul.f32.gmra.mxu0 %v3362
      %v3474 = vpop.f32.mrf.mxu0
      %v3475 = vadd.f32 0.0, %v3474
      %3476 = vmatmul.f32.gmra.mxu0 %v3365
      %v3477 = vpop.f32.mrf.mxu0
      %v3478 = vadd.f32 0.0, %v3477
      %3479 = vmatmul.f32.gmra.mxu0 %v3368
      %v3480 = vpop.f32.mrf.mxu0
      %v3481 = vadd.f32 0.0, %v3480
      %3482 = vmatmul.f32.gmra.mxu0 %v3371
      %v3483 = vpop.f32.mrf.mxu0
      %v3484 = vadd.f32 0.0, %v3483
      %3485 = vmatmul.f32.gmra.mxu0 %v3374
      %v3486 = vpop.f32.mrf.mxu0
      %v3487 = vadd.f32 0.0, %v3486
      %3488 = vmatmul.f32.gmra.mxu0 %v3377
      %v3489 = vpop.f32.mrf.mxu0
      %v3490 = vadd.f32 0.0, %v3489
      %3491 = vmatmul.f32.gmra.mxu0 %v3380
      %v3492 = vpop.f32.mrf.mxu0
      %v3493 = vadd.f32 0.0, %v3492
      %3494 = vmatmul.f32.gmra.mxu0 %v3383
      %v3495 = vpop.f32.mrf.mxu0
      %v3496 = vadd.f32 0.0, %v3495
      %3497 = vmatmul.f32.gmra.mxu0 %v3386
      %v3498 = vpop.f32.mrf.mxu0
      %v3499 = vadd.f32 0.0, %v3498
      %3500 = vmatmul.f32.gmra.mxu0 %v3389
      %v3501 = vpop.f32.mrf.mxu0
      %v3502 = vadd.f32 0.0, %v3501
      %3503 = vmatmul.f32.gmra.mxu0 %v3392
      %v3504 = vpop.f32.mrf.mxu0
      %v3505 = vadd.f32 0.0, %v3504
      %3506 = vmatmul.f32.gmra.mxu0 %v3395
      %v3507 = vpop.f32.mrf.mxu0
      %v3508 = vadd.f32 0.0, %v3507
      %3509 = vmatmul.f32.gmra.mxu0 %v3398
      %v3510 = vpop.f32.mrf.mxu0
      %v3511 = vadd.f32 0.0, %v3510
      %3512 = vmatmul.f32.gmra.mxu0 %v3401
      %v3513 = vpop.f32.mrf.mxu0
      %v3514 = vadd.f32 0.0, %v3513
      %3515 = vmatmul.f32.gmra.mxu0 %v3404
      %v3516 = vpop.f32.mrf.mxu0
      %v3517 = vadd.f32 0.0, %v3516
      %3518 = vmatmul.f32.gmra.mxu0 %v3407
      %v3519 = vpop.f32.mrf.mxu0
      %v3520 = vadd.f32 0.0, %v3519
      %3521 = vmatmul.f32.gmra.mxu0 %v3410
      %v3522 = vpop.f32.mrf.mxu0
      %v3523 = vadd.f32 0.0, %v3522
      %3524 = vmatmul.f32.gmra.mxu0 %v3413
      %v3525 = vpop.f32.mrf.mxu0
      %v3526 = vadd.f32 0.0, %v3525
      %3527 = vmatmul.f32.gmra.mxu0 %v3416
      %v3528 = vpop.f32.mrf.mxu0
      %v3529 = vadd.f32 0.0, %v3528
      %3530 = vdwg.mxu0
      %v3531 = vadd.f32 %v3250, %v3436
      %v3532 = vadd.f32 %v3251, %v3439
      %v3533 = vadd.f32 %v3252, %v3442
      %v3534 = vadd.f32 %v3253, %v3445
      %v3535 = vadd.f32 %v3254, %v3448
      %v3536 = vadd.f32 %v3255, %v3451
      %v3537 = vadd.f32 %v3256, %v3454
      %v3538 = vadd.f32 %v3257, %v3457
      %v3539 = vadd.f32 %v3258, %v3460
      %v3540 = vadd.f32 %v3259, %v3463
      %v3541 = vadd.f32 %v3260, %v3466
      %v3542 = vadd.f32 %v3261, %v3469
      %v3543 = vadd.f32 %v3262, %v3472
      %v3544 = vadd.f32 %v3263, %v3475
      %v3545 = vadd.f32 %v3264, %v3478
      %v3546 = vadd.f32 %v3265, %v3481
      %v3547 = vadd.f32 %v3266, %v3484
      %v3548 = vadd.f32 %v3267, %v3487
      %v3549 = vadd.f32 %v3268, %v3490
      %v3550 = vadd.f32 %v3269, %v3493
      %v3551 = vadd.f32 %v3270, %v3496
      %v3552 = vadd.f32 %v3271, %v3499
      %v3553 = vadd.f32 %v3272, %v3502
      %v3554 = vadd.f32 %v3273, %v3505
      %v3555 = vadd.f32 %v3274, %v3508
      %v3556 = vadd.f32 %v3275, %v3511
      %v3557 = vadd.f32 %v3276, %v3514
      %v3558 = vadd.f32 %v3277, %v3517
      %v3559 = vadd.f32 %v3278, %v3520
      %v3560 = vadd.f32 %v3279, %v3523
      %v3561 = vadd.f32 %v3280, %v3526
      %v3562 = vadd.f32 %v3281, %v3529
      %v3563 = vld [vmem:[%s3282 + $0x1] sm:$0xff]
      %v3564 = vld [vmem:[%s3282 + $0x9] sm:$0xff]
      %v3565 = vld [vmem:[%s3282 + $0x19] sm:$0xff]
      %v3566 = vld [vmem:[%s3282 + $0x21] sm:$0xff]
      %v3567 = vld [vmem:[%s3282 + $0x31] sm:$0xff]
      %v3568 = vld [vmem:[%s3282 + $0x39] sm:$0xff]
      %v3569 = vld [vmem:[%s3282 + $0x49] sm:$0xff]
      %v3570 = vld [vmem:[%s3282 + $0x51] sm:$0xff]
      %v3571 = vld [vmem:[%s3282 + $0x61] sm:$0xff]
      %v3572 = vld [vmem:[%s3282 + $0x69] sm:$0xff]
      %v3573 = vld [vmem:[%s3282 + $0x79] sm:$0xff]
      %v3574 = vld [vmem:[%s3282 + $0x81] sm:$0xff]
      %v3575 = vld [vmem:[%s3282 + $0x91] sm:$0xff]
      %v3576 = vld [vmem:[%s3282 + $0x99] sm:$0xff]
      %v3577 = vld [vmem:[%s3282 + $0xa9] sm:$0xff]
      %v3578 = vld [vmem:[%s3282 + $0xb1] sm:$0xff]
      %v3579 = vld [vmem:[%s3282 + $0xc1] sm:$0xff]
      %v3580 = vld [vmem:[%s3282 + $0xc9] sm:$0xff]
      %v3581 = vld [vmem:[%s3282 + $0xd9] sm:$0xff]
      %v3582 = vld [vmem:[%s3282 + $0xe1] sm:$0xff]
      %v3583 = vld [vmem:[%s3282 + $0xf1] sm:$0xff]
      %v3584 = vld [vmem:[%s3282 + $0xf9] sm:$0xff]
      %v3585 = vld [vmem:[%s3282 + $0x109] sm:$0xff]
      %v3586 = vld [vmem:[%s3282 + $0x111] sm:$0xff]
      %v3587 = vld [vmem:[%s3282 + $0x121] sm:$0xff]
      %v3588 = vld [vmem:[%s3282 + $0x129] sm:$0xff]
      %v3589 = vld [vmem:[%s3282 + $0x139] sm:$0xff]
      %v3590 = vld [vmem:[%s3282 + $0x141] sm:$0xff]
      %v3591 = vld [vmem:[%s3282 + $0x151] sm:$0xff]
      %v3592 = vld [vmem:[%s3282 + $0x159] sm:$0xff]
      %v3593 = vld [vmem:[%s3282 + $0x169] sm:$0xff]
      %v3594 = vld [vmem:[%s3282 + $0x171] sm:$0xff]
      %s3595 = scalar_lea.vmem %s5, 336
      %v3596 = vld [vmem:[%s3595] sm:$0xff]
      %v3597 = vld [vmem:[%s3595 + $0x8] sm:$0xff]
      %v3598 = vld [vmem:[%s3595 + $0x10] sm:$0xff]
      %v3599 = vld [vmem:[%s3595 + $0x18] sm:$0xff]
      %v3600 = vld [vmem:[%s3595 + $0x20] sm:$0xff]
      %v3601 = vld [vmem:[%s3595 + $0x28] sm:$0xff]
      %v3603 = vsel %vm576, %v3563, 0
      %v3606 = vsel %vm576, %v3564, 0
      %v3609 = vsel %vm576, %v3565, 0
      %v3612 = vsel %vm576, %v3566, 0
      %v3615 = vsel %vm576, %v3567, 0
      %v3618 = vsel %vm576, %v3568, 0
      %v3621 = vsel %vm576, %v3569, 0
      %v3624 = vsel %vm576, %v3570, 0
      %v3627 = vsel %vm576, %v3571, 0
      %v3630 = vsel %vm576, %v3572, 0
      %v3633 = vsel %vm576, %v3573, 0
      %v3636 = vsel %vm576, %v3574, 0
      %v3639 = vsel %vm576, %v3575, 0
      %v3642 = vsel %vm576, %v3576, 0
      %v3645 = vsel %vm576, %v3577, 0
      %v3648 = vsel %vm576, %v3578, 0
      %v3651 = vsel %vm576, %v3579, 0
      %v3654 = vsel %vm576, %v3580, 0
      %v3657 = vsel %vm576, %v3581, 0
      %v3660 = vsel %vm576, %v3582, 0
      %v3663 = vsel %vm576, %v3583, 0
      %v3666 = vsel %vm576, %v3584, 0
      %v3669 = vsel %vm576, %v3585, 0
      %v3672 = vsel %vm576, %v3586, 0
      %v3675 = vsel %vm576, %v3587, 0
      %v3678 = vsel %vm576, %v3588, 0
      %v3681 = vsel %vm576, %v3589, 0
      %v3684 = vsel %vm576, %v3590, 0
      %v3687 = vsel %vm576, %v3591, 0
      %v3690 = vsel %vm576, %v3592, 0
      %v3693 = vsel %vm576, %v3593, 0
      %v3696 = vsel %vm576, %v3594, 0
      %3698 = vmatpush.msra.mxu0 0.0
      %3699 = vmatpush.msra.mxu0 0.0
      %3700 = vmatpush.msra.mxu0 0.0
      %3701 = vmatpush.msra.mxu0 0.0
      %3702 = vmatpush.msra.mxu0 0.0
      %3703 = vmatpush.msra.mxu0 0.0
      %3704 = vmatpush.msra.mxu0 0.0
      %3705 = vmatpush.msra.mxu0 0.0
      %3706 = vmatpush.msra.mxu0 0.0
      %3707 = vmatpush.msra.mxu0 0.0
      %3708 = vmatpush.msra.mxu0 %v3601
      %3709 = vmatpush.msra.mxu0 %v3600
      %3710 = vmatpush.msra.mxu0 %v3599
      %3711 = vmatpush.msra.mxu0 %v3598
      %3712 = vmatpush.msra.mxu0 %v3597
      %3713 = vmatpush.msra.mxu0 %v3596
      %3714 = vmatmul.f32.gmra.mxu0 %v3603
      %v3715 = vpop.f32.mrf.mxu0
      %v3716 = vadd.f32 0.0, %v3715
      %3717 = vmatmul.f32.gmra.mxu0 %v3606
      %v3718 = vpop.f32.mrf.mxu0
      %v3719 = vadd.f32 0.0, %v3718
      %3720 = vmatmul.f32.gmra.mxu0 %v3609
      %v3721 = vpop.f32.mrf.mxu0
      %v3722 = vadd.f32 0.0, %v3721
      %3723 = vmatmul.f32.gmra.mxu0 %v3612
      %v3724 = vpop.f32.mrf.mxu0
      %v3725 = vadd.f32 0.0, %v3724
      %3726 = vmatmul.f32.gmra.mxu0 %v3615
      %v3727 = vpop.f32.mrf.mxu0
      %v3728 = vadd.f32 0.0, %v3727
      %3729 = vmatmul.f32.gmra.mxu0 %v3618
      %v3730 = vpop.f32.mrf.mxu0
      %v3731 = vadd.f32 0.0, %v3730
      %3732 = vmatmul.f32.gmra.mxu0 %v3621
      %v3733 = vpop.f32.mrf.mxu0
      %v3734 = vadd.f32 0.0, %v3733
      %3735 = vmatmul.f32.gmra.mxu0 %v3624
      %v3736 = vpop.f32.mrf.mxu0
      %v3737 = vadd.f32 0.0, %v3736
      %3738 = vmatmul.f32.gmra.mxu0 %v3627
      %v3739 = vpop.f32.mrf.mxu0
      %v3740 = vadd.f32 0.0, %v3739
      %3741 = vmatmul.f32.gmra.mxu0 %v3630
      %v3742 = vpop.f32.mrf.mxu0
      %v3743 = vadd.f32 0.0, %v3742
      %3744 = vmatmul.f32.gmra.mxu0 %v3633
      %v3745 = vpop.f32.mrf.mxu0
      %v3746 = vadd.f32 0.0, %v3745
      %3747 = vmatmul.f32.gmra.mxu0 %v3636
      %v3748 = vpop.f32.mrf.mxu0
      %v3749 = vadd.f32 0.0, %v3748
      %3750 = vmatmul.f32.gmra.mxu0 %v3639
      %v3751 = vpop.f32.mrf.mxu0
      %v3752 = vadd.f32 0.0, %v3751
      %3753 = vmatmul.f32.gmra.mxu0 %v3642
      %v3754 = vpop.f32.mrf.mxu0
      %v3755 = vadd.f32 0.0, %v3754
      %3756 = vmatmul.f32.gmra.mxu0 %v3645
      %v3757 = vpop.f32.mrf.mxu0
      %v3758 = vadd.f32 0.0, %v3757
      %3759 = vmatmul.f32.gmra.mxu0 %v3648
      %v3760 = vpop.f32.mrf.mxu0
      %v3761 = vadd.f32 0.0, %v3760
      %3762 = vmatmul.f32.gmra.mxu0 %v3651
      %v3763 = vpop.f32.mrf.mxu0
      %v3764 = vadd.f32 0.0, %v3763
      %3765 = vmatmul.f32.gmra.mxu0 %v3654
      %v3766 = vpop.f32.mrf.mxu0
      %v3767 = vadd.f32 0.0, %v3766
      %3768 = vmatmul.f32.gmra.mxu0 %v3657
      %v3769 = vpop.f32.mrf.mxu0
      %v3770 = vadd.f32 0.0, %v3769
      %3771 = vmatmul.f32.gmra.mxu0 %v3660
      %v3772 = vpop.f32.mrf.mxu0
      %v3773 = vadd.f32 0.0, %v3772
      %3774 = vmatmul.f32.gmra.mxu0 %v3663
      %v3775 = vpop.f32.mrf.mxu0
      %v3776 = vadd.f32 0.0, %v3775
      %3777 = vmatmul.f32.gmra.mxu0 %v3666
      %v3778 = vpop.f32.mrf.mxu0
      %v3779 = vadd.f32 0.0, %v3778
      %3780 = vmatmul.f32.gmra.mxu0 %v3669
      %v3781 = vpop.f32.mrf.mxu0
      %v3782 = vadd.f32 0.0, %v3781
      %3783 = vmatmul.f32.gmra.mxu0 %v3672
      %v3784 = vpop.f32.mrf.mxu0
      %v3785 = vadd.f32 0.0, %v3784
      %3786 = vmatmul.f32.gmra.mxu0 %v3675
      %v3787 = vpop.f32.mrf.mxu0
      %v3788 = vadd.f32 0.0, %v3787
      %3789 = vmatmul.f32.gmra.mxu0 %v3678
      %v3790 = vpop.f32.mrf.mxu0
      %v3791 = vadd.f32 0.0, %v3790
      %3792 = vmatmul.f32.gmra.mxu0 %v3681
      %v3793 = vpop.f32.mrf.mxu0
      %v3794 = vadd.f32 0.0, %v3793
      %3795 = vmatmul.f32.gmra.mxu0 %v3684
      %v3796 = vpop.f32.mrf.mxu0
      %v3797 = vadd.f32 0.0, %v3796
      %3798 = vmatmul.f32.gmra.mxu0 %v3687
      %v3799 = vpop.f32.mrf.mxu0
      %v3800 = vadd.f32 0.0, %v3799
      %3801 = vmatmul.f32.gmra.mxu0 %v3690
      %v3802 = vpop.f32.mrf.mxu0
      %v3803 = vadd.f32 0.0, %v3802
      %3804 = vmatmul.f32.gmra.mxu0 %v3693
      %v3805 = vpop.f32.mrf.mxu0
      %v3806 = vadd.f32 0.0, %v3805
      %3807 = vmatmul.f32.gmra.mxu0 %v3696
      %v3808 = vpop.f32.mrf.mxu0
      %v3809 = vadd.f32 0.0, %v3808
      %3810 = vdwg.mxu0
      %v3811 = vadd.f32 %v3531, %v3716
      %v3812 = vadd.f32 %v3532, %v3719
      %v3813 = vadd.f32 %v3533, %v3722
      %v3814 = vadd.f32 %v3534, %v3725
      %v3815 = vadd.f32 %v3535, %v3728
      %v3816 = vadd.f32 %v3536, %v3731
      %v3817 = vadd.f32 %v3537, %v3734
      %v3818 = vadd.f32 %v3538, %v3737
      %v3819 = vadd.f32 %v3539, %v3740
      %v3820 = vadd.f32 %v3540, %v3743
      %v3821 = vadd.f32 %v3541, %v3746
      %v3822 = vadd.f32 %v3542, %v3749
      %v3823 = vadd.f32 %v3543, %v3752
      %v3824 = vadd.f32 %v3544, %v3755
      %v3825 = vadd.f32 %v3545, %v3758
      %v3826 = vadd.f32 %v3546, %v3761
      %v3827 = vadd.f32 %v3547, %v3764
      %v3828 = vadd.f32 %v3548, %v3767
      %v3829 = vadd.f32 %v3549, %v3770
      %v3830 = vadd.f32 %v3550, %v3773
      %v3831 = vadd.f32 %v3551, %v3776
      %v3832 = vadd.f32 %v3552, %v3779
      %v3833 = vadd.f32 %v3553, %v3782
      %v3834 = vadd.f32 %v3554, %v3785
      %v3835 = vadd.f32 %v3555, %v3788
      %v3836 = vadd.f32 %v3556, %v3791
      %v3837 = vadd.f32 %v3557, %v3794
      %v3838 = vadd.f32 %v3558, %v3797
      %v3839 = vadd.f32 %v3559, %v3800
      %v3840 = vadd.f32 %v3560, %v3803
      %v3841 = vadd.f32 %v3561, %v3806
      %v3842 = vadd.f32 %v3562, %v3809
      %v3843 = vld [vmem:[%s3282 + $0x2] sm:$0xff]
      %v3844 = vld [vmem:[%s3282 + $0xa] sm:$0xff]
      %v3845 = vld [vmem:[%s3282 + $0x1a] sm:$0xff]
      %v3846 = vld [vmem:[%s3282 + $0x22] sm:$0xff]
      %v3847 = vld [vmem:[%s3282 + $0x32] sm:$0xff]
      %v3848 = vld [vmem:[%s3282 + $0x3a] sm:$0xff]
      %v3849 = vld [vmem:[%s3282 + $0x4a] sm:$0xff]
      %v3850 = vld [vmem:[%s3282 + $0x52] sm:$0xff]
      %v3851 = vld [vmem:[%s3282 + $0x62] sm:$0xff]
      %v3852 = vld [vmem:[%s3282 + $0x6a] sm:$0xff]
      %v3853 = vld [vmem:[%s3282 + $0x7a] sm:$0xff]
      %v3854 = vld [vmem:[%s3282 + $0x82] sm:$0xff]
      %v3855 = vld [vmem:[%s3282 + $0x92] sm:$0xff]
      %v3856 = vld [vmem:[%s3282 + $0x9a] sm:$0xff]
      %v3857 = vld [vmem:[%s3282 + $0xaa] sm:$0xff]
      %v3858 = vld [vmem:[%s3282 + $0xb2] sm:$0xff]
      %v3859 = vld [vmem:[%s3282 + $0xc2] sm:$0xff]
      %v3860 = vld [vmem:[%s3282 + $0xca] sm:$0xff]
      %v3861 = vld [vmem:[%s3282 + $0xda] sm:$0xff]
      %v3862 = vld [vmem:[%s3282 + $0xe2] sm:$0xff]
      %v3863 = vld [vmem:[%s3282 + $0xf2] sm:$0xff]
      %v3864 = vld [vmem:[%s3282 + $0xfa] sm:$0xff]
      %v3865 = vld [vmem:[%s3282 + $0x10a] sm:$0xff]
      %v3866 = vld [vmem:[%s3282 + $0x112] sm:$0xff]
      %v3867 = vld [vmem:[%s3282 + $0x122] sm:$0xff]
      %v3868 = vld [vmem:[%s3282 + $0x12a] sm:$0xff]
      %v3869 = vld [vmem:[%s3282 + $0x13a] sm:$0xff]
      %v3870 = vld [vmem:[%s3282 + $0x142] sm:$0xff]
      %v3871 = vld [vmem:[%s3282 + $0x152] sm:$0xff]
      %v3872 = vld [vmem:[%s3282 + $0x15a] sm:$0xff]
      %v3873 = vld [vmem:[%s3282 + $0x16a] sm:$0xff]
      %v3874 = vld [vmem:[%s3282 + $0x172] sm:$0xff]
      %s3875 = scalar_lea.vmem %s5, 384
      %v3876 = vld [vmem:[%s3875] sm:$0xff]
      %v3877 = vld [vmem:[%s3875 + $0x8] sm:$0xff]
      %v3878 = vld [vmem:[%s3875 + $0x10] sm:$0xff]
      %v3879 = vld [vmem:[%s3875 + $0x18] sm:$0xff]
      %v3880 = vld [vmem:[%s3875 + $0x20] sm:$0xff]
      %v3881 = vld [vmem:[%s3875 + $0x28] sm:$0xff]
      %v3883 = vsel %vm576, %v3843, 0
      %v3886 = vsel %vm576, %v3844, 0
      %v3889 = vsel %vm576, %v3845, 0
      %v3892 = vsel %vm576, %v3846, 0
      %v3895 = vsel %vm576, %v3847, 0
      %v3898 = vsel %vm576, %v3848, 0
      %v3901 = vsel %vm576, %v3849, 0
      %v3904 = vsel %vm576, %v3850, 0
      %v3907 = vsel %vm576, %v3851, 0
      %v3910 = vsel %vm576, %v3852, 0
      %v3913 = vsel %vm576, %v3853, 0
      %v3916 = vsel %vm576, %v3854, 0
      %v3919 = vsel %vm576, %v3855, 0
      %v3922 = vsel %vm576, %v3856, 0
      %v3925 = vsel %vm576, %v3857, 0
      %v3928 = vsel %vm576, %v3858, 0
      %v3931 = vsel %vm576, %v3859, 0
      %v3934 = vsel %vm576, %v3860, 0
      %v3937 = vsel %vm576, %v3861, 0
      %v3940 = vsel %vm576, %v3862, 0
      %v3943 = vsel %vm576, %v3863, 0
      %v3946 = vsel %vm576, %v3864, 0
      %v3949 = vsel %vm576, %v3865, 0
      %v3952 = vsel %vm576, %v3866, 0
      %v3955 = vsel %vm576, %v3867, 0
      %v3958 = vsel %vm576, %v3868, 0
      %v3961 = vsel %vm576, %v3869, 0
      %v3964 = vsel %vm576, %v3870, 0
      %v3967 = vsel %vm576, %v3871, 0
      %v3970 = vsel %vm576, %v3872, 0
      %v3973 = vsel %vm576, %v3873, 0
      %v3976 = vsel %vm576, %v3874, 0
      %3978 = vmatpush.msra.mxu0 0.0
      %3979 = vmatpush.msra.mxu0 0.0
      %3980 = vmatpush.msra.mxu0 0.0
      %3981 = vmatpush.msra.mxu0 0.0
      %3982 = vmatpush.msra.mxu0 0.0
      %3983 = vmatpush.msra.mxu0 0.0
      %3984 = vmatpush.msra.mxu0 0.0
      %3985 = vmatpush.msra.mxu0 0.0
      %3986 = vmatpush.msra.mxu0 0.0
      %3987 = vmatpush.msra.mxu0 0.0
      %3988 = vmatpush.msra.mxu0 %v3881
      %3989 = vmatpush.msra.mxu0 %v3880
      %3990 = vmatpush.msra.mxu0 %v3879
      %3991 = vmatpush.msra.mxu0 %v3878
      %3992 = vmatpush.msra.mxu0 %v3877
      %3993 = vmatpush.msra.mxu0 %v3876
      %3994 = vmatmul.f32.gmra.mxu0 %v3883
      %v3995 = vpop.f32.mrf.mxu0
      %v3996 = vadd.f32 0.0, %v3995
      %3997 = vmatmul.f32.gmra.mxu0 %v3886
      %v3998 = vpop.f32.mrf.mxu0
      %v3999 = vadd.f32 0.0, %v3998
      %4000 = vmatmul.f32.gmra.mxu0 %v3889
      %v4001 = vpop.f32.mrf.mxu0
      %v4002 = vadd.f32 0.0, %v4001
      %4003 = vmatmul.f32.gmra.mxu0 %v3892
      %v4004 = vpop.f32.mrf.mxu0
      %v4005 = vadd.f32 0.0, %v4004
      %4006 = vmatmul.f32.gmra.mxu0 %v3895
      %v4007 = vpop.f32.mrf.mxu0
      %v4008 = vadd.f32 0.0, %v4007
      %4009 = vmatmul.f32.gmra.mxu0 %v3898
      %v4010 = vpop.f32.mrf.mxu0
      %v4011 = vadd.f32 0.0, %v4010
      %4012 = vmatmul.f32.gmra.mxu0 %v3901
      %v4013 = vpop.f32.mrf.mxu0
      %v4014 = vadd.f32 0.0, %v4013
      %4015 = vmatmul.f32.gmra.mxu0 %v3904
      %v4016 = vpop.f32.mrf.mxu0
      %v4017 = vadd.f32 0.0, %v4016
      %4018 = vmatmul.f32.gmra.mxu0 %v3907
      %v4019 = vpop.f32.mrf.mxu0
      %v4020 = vadd.f32 0.0, %v4019
      %4021 = vmatmul.f32.gmra.mxu0 %v3910
      %v4022 = vpop.f32.mrf.mxu0
      %v4023 = vadd.f32 0.0, %v4022
      %4024 = vmatmul.f32.gmra.mxu0 %v3913
      %v4025 = vpop.f32.mrf.mxu0
      %v4026 = vadd.f32 0.0, %v4025
      %4027 = vmatmul.f32.gmra.mxu0 %v3916
      %v4028 = vpop.f32.mrf.mxu0
      %v4029 = vadd.f32 0.0, %v4028
      %4030 = vmatmul.f32.gmra.mxu0 %v3919
      %v4031 = vpop.f32.mrf.mxu0
      %v4032 = vadd.f32 0.0, %v4031
      %4033 = vmatmul.f32.gmra.mxu0 %v3922
      %v4034 = vpop.f32.mrf.mxu0
      %v4035 = vadd.f32 0.0, %v4034
      %4036 = vmatmul.f32.gmra.mxu0 %v3925
      %v4037 = vpop.f32.mrf.mxu0
      %v4038 = vadd.f32 0.0, %v4037
      %4039 = vmatmul.f32.gmra.mxu0 %v3928
      %v4040 = vpop.f32.mrf.mxu0
      %v4041 = vadd.f32 0.0, %v4040
      %4042 = vmatmul.f32.gmra.mxu0 %v3931
      %v4043 = vpop.f32.mrf.mxu0
      %v4044 = vadd.f32 0.0, %v4043
      %4045 = vmatmul.f32.gmra.mxu0 %v3934
      %v4046 = vpop.f32.mrf.mxu0
      %v4047 = vadd.f32 0.0, %v4046
      %4048 = vmatmul.f32.gmra.mxu0 %v3937
      %v4049 = vpop.f32.mrf.mxu0
      %v4050 = vadd.f32 0.0, %v4049
      %4051 = vmatmul.f32.gmra.mxu0 %v3940
      %v4052 = vpop.f32.mrf.mxu0
      %v4053 = vadd.f32 0.0, %v4052
      %4054 = vmatmul.f32.gmra.mxu0 %v3943
      %v4055 = vpop.f32.mrf.mxu0
      %v4056 = vadd.f32 0.0, %v4055
      %4057 = vmatmul.f32.gmra.mxu0 %v3946
      %v4058 = vpop.f32.mrf.mxu0
      %v4059 = vadd.f32 0.0, %v4058
      %4060 = vmatmul.f32.gmra.mxu0 %v3949
      %v4061 = vpop.f32.mrf.mxu0
      %v4062 = vadd.f32 0.0, %v4061
      %4063 = vmatmul.f32.gmra.mxu0 %v3952
      %v4064 = vpop.f32.mrf.mxu0
      %v4065 = vadd.f32 0.0, %v4064
      %4066 = vmatmul.f32.gmra.mxu0 %v3955
      %v4067 = vpop.f32.mrf.mxu0
      %v4068 = vadd.f32 0.0, %v4067
      %4069 = vmatmul.f32.gmra.mxu0 %v3958
      %v4070 = vpop.f32.mrf.mxu0
      %v4071 = vadd.f32 0.0, %v4070
      %4072 = vmatmul.f32.gmra.mxu0 %v3961
      %v4073 = vpop.f32.mrf.mxu0
      %v4074 = vadd.f32 0.0, %v4073
      %4075 = vmatmul.f32.gmra.mxu0 %v3964
      %v4076 = vpop.f32.mrf.mxu0
      %v4077 = vadd.f32 0.0, %v4076
      %4078 = vmatmul.f32.gmra.mxu0 %v3967
      %v4079 = vpop.f32.mrf.mxu0
      %v4080 = vadd.f32 0.0, %v4079
      %4081 = vmatmul.f32.gmra.mxu0 %v3970
      %v4082 = vpop.f32.mrf.mxu0
      %v4083 = vadd.f32 0.0, %v4082
      %4084 = vmatmul.f32.gmra.mxu0 %v3973
      %v4085 = vpop.f32.mrf.mxu0
      %v4086 = vadd.f32 0.0, %v4085
      %4087 = vmatmul.f32.gmra.mxu0 %v3976
      %v4088 = vpop.f32.mrf.mxu0
      %v4089 = vadd.f32 0.0, %v4088
      %4090 = vdwg.mxu0
      %v4091 = vadd.f32 %v3811, %v3996
      %v4092 = vadd.f32 %v3812, %v3999
      %v4093 = vadd.f32 %v3813, %v4002
      %v4094 = vadd.f32 %v3814, %v4005
      %v4095 = vadd.f32 %v3815, %v4008
      %v4096 = vadd.f32 %v3816, %v4011
      %v4097 = vadd.f32 %v3817, %v4014
      %v4098 = vadd.f32 %v3818, %v4017
      %v4099 = vadd.f32 %v3819, %v4020
      %v4100 = vadd.f32 %v3820, %v4023
      %v4101 = vadd.f32 %v3821, %v4026
      %v4102 = vadd.f32 %v3822, %v4029
      %v4103 = vadd.f32 %v3823, %v4032
      %v4104 = vadd.f32 %v3824, %v4035
      %v4105 = vadd.f32 %v3825, %v4038
      %v4106 = vadd.f32 %v3826, %v4041
      %v4107 = vadd.f32 %v3827, %v4044
      %v4108 = vadd.f32 %v3828, %v4047
      %v4109 = vadd.f32 %v3829, %v4050
      %v4110 = vadd.f32 %v3830, %v4053
      %v4111 = vadd.f32 %v3831, %v4056
      %v4112 = vadd.f32 %v3832, %v4059
      %v4113 = vadd.f32 %v3833, %v4062
      %v4114 = vadd.f32 %v3834, %v4065
      %v4115 = vadd.f32 %v3835, %v4068
      %v4116 = vadd.f32 %v3836, %v4071
      %v4117 = vadd.f32 %v3837, %v4074
      %v4118 = vadd.f32 %v3838, %v4077
      %v4119 = vadd.f32 %v3839, %v4080
      %v4120 = vadd.f32 %v3840, %v4083
      %v4121 = vadd.f32 %v3841, %v4086
      %v4122 = vadd.f32 %v3842, %v4089
      %v4123 = vld [vmem:[%s6] sm:$0x1]
      %v4125 = vperm.slane %v4123, 0
      %v4127 = vadd.f32 %v4091, %v4125
      %v4128 = vadd.f32 %v4092, %v4125
      %v4129 = vadd.f32 %v4093, %v4125
      %v4130 = vadd.f32 %v4094, %v4125
      %v4131 = vadd.f32 %v4095, %v4125
      %v4132 = vadd.f32 %v4096, %v4125
      %v4133 = vadd.f32 %v4097, %v4125
      %v4134 = vadd.f32 %v4098, %v4125
      %v4135 = vadd.f32 %v4099, %v4125
      %v4136 = vadd.f32 %v4100, %v4125
      %v4137 = vadd.f32 %v4101, %v4125
      %v4138 = vadd.f32 %v4102, %v4125
      %v4139 = vadd.f32 %v4103, %v4125
      %v4140 = vadd.f32 %v4104, %v4125
      %v4141 = vadd.f32 %v4105, %v4125
      %v4142 = vadd.f32 %v4106, %v4125
      %v4143 = vadd.f32 %v4107, %v4125
      %v4144 = vadd.f32 %v4108, %v4125
      %v4145 = vadd.f32 %v4109, %v4125
      %v4146 = vadd.f32 %v4110, %v4125
      %v4147 = vadd.f32 %v4111, %v4125
      %v4148 = vadd.f32 %v4112, %v4125
      %v4149 = vadd.f32 %v4113, %v4125
      %v4150 = vadd.f32 %v4114, %v4125
      %v4151 = vadd.f32 %v4115, %v4125
      %v4152 = vadd.f32 %v4116, %v4125
      %v4153 = vadd.f32 %v4117, %v4125
      %v4154 = vadd.f32 %v4118, %v4125
      %v4155 = vadd.f32 %v4119, %v4125
      %v4156 = vadd.f32 %v4120, %v4125
      %v4157 = vadd.f32 %v4121, %v4125
      %v4158 = vadd.f32 %v4122, %v4125
      %v4159 = vld [vmem:[%s530] sm:$0x1]
      %v4160 = vxor.u32 %v4159, 2147483648
      %v4161 = vmul.f32 %v4160, 1.442695
      %v4162 = vpow.pop %v4161
      %v4163 = vadd.f32 %v4162, 1.0
      %v4164 = vrcp.pop %v4163
      %v4165 = vmul.f32 %v4163, %v4164
      %v4166 = vsub.f32 1.0, %v4165
      %v4167 = vmul.f32 %v4164, %v4166
      %v4168 = vadd.f32 %v4164, %v4167
      %vm4169 = vweird.f32 %v4163
      %vm4170 = vweird.f32 %v4164
      %vm4171 = vmor %vm4169, %vm4170
      %v4172 = vsel %vm4171, %v4164, %v4168
      %v4173 = vand.u32 2147483647, %v4163
      %vm4174 = vcmp.eq.f32.partialorder %v4173, 8.507059e+37
      %v4175 = vand.u32 %v4163, 2147483648
      %v4176 = vor.u32 1.1754944e-38, %v4175
      %v4177 = vsel %vm4174, %v4176, %v4172
      %v4178 = vmul.f32 1.0, %v4177
      %v4179 = vmul.f32 %v4159, %v4178
      %v4180 = vld [vmem:[%s7] sm:$0xff]
      %v4181 = vld [vmem:[%s7 + $0x8] sm:$0xff]
      %v4182 = vld [vmem:[%s7 + $0x10] sm:$0xff]
      %v4183 = vld [vmem:[%s7 + $0x18] sm:$0xff]
      %vm4184 = vcmask 261120
      %v4186 = vsel %vm4184, %v4179, 0
      %4188 = vmatpush.msra.mxu0 0.0
      %4189 = vmatpush.msra.mxu0 0.0
      %4190 = vmatpush.msra.mxu0 0.0
      %4191 = vmatpush.msra.mxu0 0.0
      %4192 = vmatpush.msra.mxu0 0.0
      %4193 = vmatpush.msra.mxu0 0.0
      %4194 = vmatpush.msra.mxu0 0.0
      %4195 = vmatpush.msra.mxu0 0.0
      %4196 = vmatpush.msra.mxu0 0.0
      %4197 = vmatpush.msra.mxu0 0.0
      %4198 = vmatpush.msra.mxu0 0.0
      %4199 = vmatpush.msra.mxu0 0.0
      %4200 = vmatpush.msra.mxu0 %v4183
      %4201 = vmatpush.msra.mxu0 %v4182
      %4202 = vmatpush.msra.mxu0 %v4181
      %4203 = vmatpush.msra.mxu0 %v4180
      %4204 = vmatmul.f32.gmra.mxu0 %v4186
      %v4205 = vpop.f32.mrf.mxu0
      %v4206 = vadd.f32 0.0, %v4205
      %4207 = vdwg.mxu0
      %v4208 = vperm.slane %v4206, 0
      %v4209 = vadd.f32 %v4127, %v4208
      %v4210 = vadd.f32 %v4128, %v4208
      %v4211 = vadd.f32 %v4129, %v4208
      %v4212 = vadd.f32 %v4130, %v4208
      %v4213 = vadd.f32 %v4131, %v4208
      %v4214 = vadd.f32 %v4132, %v4208
      %v4215 = vadd.f32 %v4133, %v4208
      %v4216 = vadd.f32 %v4134, %v4208
      %v4217 = vadd.f32 %v4135, %v4208
      %v4218 = vadd.f32 %v4136, %v4208
      %v4219 = vadd.f32 %v4137, %v4208
      %v4220 = vadd.f32 %v4138, %v4208
      %v4221 = vadd.f32 %v4139, %v4208
      %v4222 = vadd.f32 %v4140, %v4208
      %v4223 = vadd.f32 %v4141, %v4208
      %v4224 = vadd.f32 %v4142, %v4208
      %v4225 = vadd.f32 %v4143, %v4208
      %v4226 = vadd.f32 %v4144, %v4208
      %v4227 = vadd.f32 %v4145, %v4208
      %v4228 = vadd.f32 %v4146, %v4208
      %v4229 = vadd.f32 %v4147, %v4208
      %v4230 = vadd.f32 %v4148, %v4208
      %v4231 = vadd.f32 %v4149, %v4208
      %v4232 = vadd.f32 %v4150, %v4208
      %v4233 = vadd.f32 %v4151, %v4208
      %v4234 = vadd.f32 %v4152, %v4208
      %v4235 = vadd.f32 %v4153, %v4208
      %v4236 = vadd.f32 %v4154, %v4208
      %v4237 = vadd.f32 %v4155, %v4208
      %v4238 = vadd.f32 %v4156, %v4208
      %v4239 = vadd.f32 %v4157, %v4208
      %v4240 = vadd.f32 %v4158, %v4208
      %v4241 = vld [vmem:[%s8] sm:$0x1]
      %v4243 = vperm.slane %v4241, 0
      %v4245 = vadd.f32 %v4209, %v4243
      %v4246 = vadd.f32 %v4210, %v4243
      %v4247 = vadd.f32 %v4211, %v4243
      %v4248 = vadd.f32 %v4212, %v4243
      %v4249 = vadd.f32 %v4213, %v4243
      %v4250 = vadd.f32 %v4214, %v4243
      %v4251 = vadd.f32 %v4215, %v4243
      %v4252 = vadd.f32 %v4216, %v4243
      %v4253 = vadd.f32 %v4217, %v4243
      %v4254 = vadd.f32 %v4218, %v4243
      %v4255 = vadd.f32 %v4219, %v4243
      %v4256 = vadd.f32 %v4220, %v4243
      %v4257 = vadd.f32 %v4221, %v4243
      %v4258 = vadd.f32 %v4222, %v4243
      %v4259 = vadd.f32 %v4223, %v4243
      %v4260 = vadd.f32 %v4224, %v4243
      %v4261 = vadd.f32 %v4225, %v4243
      %v4262 = vadd.f32 %v4226, %v4243
      %v4263 = vadd.f32 %v4227, %v4243
      %v4264 = vadd.f32 %v4228, %v4243
      %v4265 = vadd.f32 %v4229, %v4243
      %v4266 = vadd.f32 %v4230, %v4243
      %v4267 = vadd.f32 %v4231, %v4243
      %v4268 = vadd.f32 %v4232, %v4243
      %v4269 = vadd.f32 %v4233, %v4243
      %v4270 = vadd.f32 %v4234, %v4243
      %v4271 = vadd.f32 %v4235, %v4243
      %v4272 = vadd.f32 %v4236, %v4243
      %v4273 = vadd.f32 %v4237, %v4243
      %v4274 = vadd.f32 %v4238, %v4243
      %v4275 = vadd.f32 %v4239, %v4243
      %v4276 = vadd.f32 %v4240, %v4243
      %v4277 = vld [vmem:[%s11] sm:$0xff]
      %v4278 = vld [vmem:[%s11 + $0x8] sm:$0xff]
      %v4279 = vld [vmem:[%s11 + $0x10] sm:$0xff]
      %v4280 = vld [vmem:[%s11 + $0x18] sm:$0xff]
      %v4281 = vld [vmem:[%s9] sm:$0x1]
      %v4282 = vld [vmem:[%s10] sm:$0x1]
      %v4283 = vsel %vm4184, %v4245, 0.0
      %v4284 = vsel %vm4184, %v4246, 0.0
      %v4285 = vadd.f32 %v4283, %v4284
      %v4286 = vsel %vm4184, %v4247, 0.0
      %v4287 = vadd.f32 %v4285, %v4286
      %v4288 = vsel %vm4184, %v4248, 0.0
      %v4289 = vadd.f32 %v4287, %v4288
      %v4290 = vsel %vm4184, %v4249, 0.0
      %v4291 = vadd.f32 %v4289, %v4290
      %v4292 = vsel %vm4184, %v4250, 0.0
      %v4293 = vadd.f32 %v4291, %v4292
      %v4294 = vsel %vm4184, %v4251, 0.0
      %v4295 = vadd.f32 %v4293, %v4294
      %v4296 = vsel %vm4184, %v4252, 0.0
      %v4297 = vadd.f32 %v4295, %v4296
      %v4298 = vsel %vm4184, %v4253, 0.0
      %v4299 = vadd.f32 %v4297, %v4298
      %v4300 = vsel %vm4184, %v4254, 0.0
      %v4301 = vadd.f32 %v4299, %v4300
      %v4302 = vsel %vm4184, %v4255, 0.0
      %v4303 = vadd.f32 %v4301, %v4302
      %v4304 = vsel %vm4184, %v4256, 0.0
      %v4305 = vadd.f32 %v4303, %v4304
      %v4306 = vsel %vm4184, %v4257, 0.0
      %v4307 = vadd.f32 %v4305, %v4306
      %v4308 = vsel %vm4184, %v4258, 0.0
      %v4309 = vadd.f32 %v4307, %v4308
      %v4310 = vsel %vm4184, %v4259, 0.0
      %v4311 = vadd.f32 %v4309, %v4310
      %v4312 = vsel %vm4184, %v4260, 0.0
      %v4313 = vadd.f32 %v4311, %v4312
      %v4314 = vsel %vm4184, %v4261, 0.0
      %v4315 = vadd.f32 %v4313, %v4314
      %v4316 = vsel %vm4184, %v4262, 0.0
      %v4317 = vadd.f32 %v4315, %v4316
      %v4318 = vsel %vm4184, %v4263, 0.0
      %v4319 = vadd.f32 %v4317, %v4318
      %v4320 = vsel %vm4184, %v4264, 0.0
      %v4321 = vadd.f32 %v4319, %v4320
      %v4322 = vsel %vm4184, %v4265, 0.0
      %v4323 = vadd.f32 %v4321, %v4322
      %v4324 = vsel %vm4184, %v4266, 0.0
      %v4325 = vadd.f32 %v4323, %v4324
      %v4326 = vsel %vm4184, %v4267, 0.0
      %v4327 = vadd.f32 %v4325, %v4326
      %v4328 = vsel %vm4184, %v4268, 0.0
      %v4329 = vadd.f32 %v4327, %v4328
      %v4330 = vsel %vm4184, %v4269, 0.0
      %v4331 = vadd.f32 %v4329, %v4330
      %v4332 = vsel %vm4184, %v4270, 0.0
      %v4333 = vadd.f32 %v4331, %v4332
      %v4334 = vsel %vm4184, %v4271, 0.0
      %v4335 = vadd.f32 %v4333, %v4334
      %v4336 = vsel %vm4184, %v4272, 0.0
      %v4337 = vadd.f32 %v4335, %v4336
      %v4338 = vsel %vm4184, %v4273, 0.0
      %v4339 = vadd.f32 %v4337, %v4338
      %v4340 = vsel %vm4184, %v4274, 0.0
      %v4341 = vadd.f32 %v4339, %v4340
      %v4342 = vsel %vm4184, %v4275, 0.0
      %v4343 = vadd.f32 %v4341, %v4342
      %v4344 = vsel %vm4184, %v4276, 0.0
      %v4345 = vadd.f32 %v4343, %v4344
      %v4346 = vrot.slane %v4345, 4
      %v4347 = vadd.f32 %v4345, %v4346
      %v4348 = vrot.slane %v4347, 2
      %v4349 = vadd.f32 %v4347, %v4348
      %v4350 = vrot.slane %v4349, 1
      %v4351 = vadd.f32 %v4349, %v4350
      %v4353 = vsel %vm4184, %v4351, 0
      %4355 = vmatpush.msra.mxu0 0.0
      %4356 = vmatpush.msra.mxu0 0.0
      %4357 = vmatpush.msra.mxu0 0.0
      %4358 = vmatpush.msra.mxu0 0.0
      %4359 = vmatpush.msra.mxu0 0.0
      %4360 = vmatpush.msra.mxu0 0.0
      %4361 = vmatpush.msra.mxu0 0.0
      %4362 = vmatpush.msra.mxu0 0.0
      %4363 = vmatpush.msra.mxu0 0.0
      %4364 = vmatpush.msra.mxu0 0.0
      %4365 = vmatpush.msra.mxu0 0.0
      %4366 = vmatpush.msra.mxu0 0.0
      %4367 = vmatpush.msra.mxu0 %v4280
      %4368 = vmatpush.msra.mxu0 %v4279
      %4369 = vmatpush.msra.mxu0 %v4278
      %4370 = vmatpush.msra.mxu0 %v4277
      %4371 = vmatmul.f32.gmra.mxu0 %v4353
      %v4372 = vpop.f32.mrf.mxu0
      %v4373 = vadd.f32 0.0, %v4372
      %4374 = vdwg.mxu0
      %v4375 = vperm.slane %v4373, 0
      %v4376 = vsub.f32 %v4245, %v4375
      %v4377 = vsub.f32 %v4246, %v4375
      %v4378 = vsub.f32 %v4247, %v4375
      %v4379 = vsub.f32 %v4248, %v4375
      %v4380 = vsub.f32 %v4249, %v4375
      %v4381 = vsub.f32 %v4250, %v4375
      %v4382 = vsub.f32 %v4251, %v4375
      %v4383 = vsub.f32 %v4252, %v4375
      %v4384 = vsub.f32 %v4253, %v4375
      %v4385 = vsub.f32 %v4254, %v4375
      %v4386 = vsub.f32 %v4255, %v4375
      %v4387 = vsub.f32 %v4256, %v4375
      %v4388 = vsub.f32 %v4257, %v4375
      %v4389 = vsub.f32 %v4258, %v4375
      %v4390 = vsub.f32 %v4259, %v4375
      %v4391 = vsub.f32 %v4260, %v4375
      %v4392 = vsub.f32 %v4261, %v4375
      %v4393 = vsub.f32 %v4262, %v4375
      %v4394 = vsub.f32 %v4263, %v4375
      %v4395 = vsub.f32 %v4264, %v4375
      %v4396 = vsub.f32 %v4265, %v4375
      %v4397 = vsub.f32 %v4266, %v4375
      %v4398 = vsub.f32 %v4267, %v4375
      %v4399 = vsub.f32 %v4268, %v4375
      %v4400 = vsub.f32 %v4269, %v4375
      %v4401 = vsub.f32 %v4270, %v4375
      %v4402 = vsub.f32 %v4271, %v4375
      %v4403 = vsub.f32 %v4272, %v4375
      %v4404 = vsub.f32 %v4273, %v4375
      %v4405 = vsub.f32 %v4274, %v4375
      %v4406 = vsub.f32 %v4275, %v4375
      %v4407 = vsub.f32 %v4276, %v4375
      %v4408 = vmul.f32 %v4376, %v4376
      %v4409 = vmul.f32 %v4377, %v4377
      %v4410 = vmul.f32 %v4378, %v4378
      %v4411 = vmul.f32 %v4379, %v4379
      %v4412 = vmul.f32 %v4380, %v4380
      %v4413 = vmul.f32 %v4381, %v4381
      %v4414 = vmul.f32 %v4382, %v4382
      %v4415 = vmul.f32 %v4383, %v4383
      %v4416 = vmul.f32 %v4384, %v4384
      %v4417 = vmul.f32 %v4385, %v4385
      %v4418 = vmul.f32 %v4386, %v4386
      %v4419 = vmul.f32 %v4387, %v4387
      %v4420 = vmul.f32 %v4388, %v4388
      %v4421 = vmul.f32 %v4389, %v4389
      %v4422 = vmul.f32 %v4390, %v4390
      %v4423 = vmul.f32 %v4391, %v4391
      %v4424 = vmul.f32 %v4392, %v4392
      %v4425 = vmul.f32 %v4393, %v4393
      %v4426 = vmul.f32 %v4394, %v4394
      %v4427 = vmul.f32 %v4395, %v4395
      %v4428 = vmul.f32 %v4396, %v4396
      %v4429 = vmul.f32 %v4397, %v4397
      %v4430 = vmul.f32 %v4398, %v4398
      %v4431 = vmul.f32 %v4399, %v4399
      %v4432 = vmul.f32 %v4400, %v4400
      %v4433 = vmul.f32 %v4401, %v4401
      %v4434 = vmul.f32 %v4402, %v4402
      %v4435 = vmul.f32 %v4403, %v4403
      %v4436 = vmul.f32 %v4404, %v4404
      %v4437 = vmul.f32 %v4405, %v4405
      %v4438 = vmul.f32 %v4406, %v4406
      %v4439 = vmul.f32 %v4407, %v4407
      %v4440 = vsel %vm4184, %v4408, 0.0
      %v4441 = vsel %vm4184, %v4409, 0.0
      %v4442 = vadd.f32 %v4440, %v4441
      %v4443 = vsel %vm4184, %v4410, 0.0
      %v4444 = vadd.f32 %v4442, %v4443
      %v4445 = vsel %vm4184, %v4411, 0.0
      %v4446 = vadd.f32 %v4444, %v4445
      %v4447 = vsel %vm4184, %v4412, 0.0
      %v4448 = vadd.f32 %v4446, %v4447
      %v4449 = vsel %vm4184, %v4413, 0.0
      %v4450 = vadd.f32 %v4448, %v4449
      %v4451 = vsel %vm4184, %v4414, 0.0
      %v4452 = vadd.f32 %v4450, %v4451
      %v4453 = vsel %vm4184, %v4415, 0.0
      %v4454 = vadd.f32 %v4452, %v4453
      %v4455 = vsel %vm4184, %v4416, 0.0
      %v4456 = vadd.f32 %v4454, %v4455
      %v4457 = vsel %vm4184, %v4417, 0.0
      %v4458 = vadd.f32 %v4456, %v4457
      %v4459 = vsel %vm4184, %v4418, 0.0
      %v4460 = vadd.f32 %v4458, %v4459
      %v4461 = vsel %vm4184, %v4419, 0.0
      %v4462 = vadd.f32 %v4460, %v4461
      %v4463 = vsel %vm4184, %v4420, 0.0
      %v4464 = vadd.f32 %v4462, %v4463
      %v4465 = vsel %vm4184, %v4421, 0.0
      %v4466 = vadd.f32 %v4464, %v4465
      %v4467 = vsel %vm4184, %v4422, 0.0
      %v4468 = vadd.f32 %v4466, %v4467
      %v4469 = vsel %vm4184, %v4423, 0.0
      %v4470 = vadd.f32 %v4468, %v4469
      %v4471 = vsel %vm4184, %v4424, 0.0
      %v4472 = vadd.f32 %v4470, %v4471
      %v4473 = vsel %vm4184, %v4425, 0.0
      %v4474 = vadd.f32 %v4472, %v4473
      %v4475 = vsel %vm4184, %v4426, 0.0
      %v4476 = vadd.f32 %v4474, %v4475
      %v4477 = vsel %vm4184, %v4427, 0.0
      %v4478 = vadd.f32 %v4476, %v4477
      %v4479 = vsel %vm4184, %v4428, 0.0
      %v4480 = vadd.f32 %v4478, %v4479
      %v4481 = vsel %vm4184, %v4429, 0.0
      %v4482 = vadd.f32 %v4480, %v4481
      %v4483 = vsel %vm4184, %v4430, 0.0
      %v4484 = vadd.f32 %v4482, %v4483
      %v4485 = vsel %vm4184, %v4431, 0.0
      %v4486 = vadd.f32 %v4484, %v4485
      %v4487 = vsel %vm4184, %v4432, 0.0
      %v4488 = vadd.f32 %v4486, %v4487
      %v4489 = vsel %vm4184, %v4433, 0.0
      %v4490 = vadd.f32 %v4488, %v4489
      %v4491 = vsel %vm4184, %v4434, 0.0
      %v4492 = vadd.f32 %v4490, %v4491
      %v4493 = vsel %vm4184, %v4435, 0.0
      %v4494 = vadd.f32 %v4492, %v4493
      %v4495 = vsel %vm4184, %v4436, 0.0
      %v4496 = vadd.f32 %v4494, %v4495
      %v4497 = vsel %vm4184, %v4437, 0.0
      %v4498 = vadd.f32 %v4496, %v4497
      %v4499 = vsel %vm4184, %v4438, 0.0
      %v4500 = vadd.f32 %v4498, %v4499
      %v4501 = vsel %vm4184, %v4439, 0.0
      %v4502 = vadd.f32 %v4500, %v4501
      %v4503 = vrot.slane %v4502, 4
      %v4504 = vadd.f32 %v4502, %v4503
      %v4505 = vrot.slane %v4504, 2
      %v4506 = vadd.f32 %v4504, %v4505
      %v4507 = vrot.slane %v4506, 1
      %v4508 = vadd.f32 %v4506, %v4507
      %v4510 = vsel %vm4184, %v4508, 0
      %4512 = vmatpush.msra.mxu0 0.0
      %4513 = vmatpush.msra.mxu0 0.0
      %4514 = vmatpush.msra.mxu0 0.0
      %4515 = vmatpush.msra.mxu0 0.0
      %4516 = vmatpush.msra.mxu0 0.0
      %4517 = vmatpush.msra.mxu0 0.0
      %4518 = vmatpush.msra.mxu0 0.0
      %4519 = vmatpush.msra.mxu0 0.0
      %4520 = vmatpush.msra.mxu0 0.0
      %4521 = vmatpush.msra.mxu0 0.0
      %4522 = vmatpush.msra.mxu0 0.0
      %4523 = vmatpush.msra.mxu0 0.0
      %4524 = vmatpush.msra.mxu0 %v4280
      %4525 = vmatpush.msra.mxu0 %v4279
      %4526 = vmatpush.msra.mxu0 %v4278
      %4527 = vmatpush.msra.mxu0 %v4277
      %4528 = vmatmul.f32.gmra.mxu0 %v4510
      %v4529 = vpop.f32.mrf.mxu0
      %v4530 = vadd.f32 1e-06, %v4529
      %4531 = vdwg.mxu0
      %v4532 = vrsqrt.pop %v4530
      %v4533 = vmul.f32 %v4532, %v4530
      %v4534 = vmul.f32 %v4533, %v4532
      %v4535 = vmul.f32 0.5, %v4534
      %v4536 = vsub.f32 1.5, %v4535
      %v4537 = vmul.f32 %v4532, %v4536
      %vm4538 = vweird.f32 %v4530
      %vm4539 = vweird.f32 %v4532
      %vm4540 = vmor %vm4538, %vm4539
      %v4541 = vsel %vm4540, %v4532, %v4537
      %v4542 = vperm.slane %v4541, 0
      %v4543 = vmul.f32 %v4376, %v4542
      %v4544 = vmul.f32 %v4377, %v4542
      %v4545 = vmul.f32 %v4378, %v4542
      %v4546 = vmul.f32 %v4379, %v4542
      %v4547 = vmul.f32 %v4380, %v4542
      %v4548 = vmul.f32 %v4381, %v4542
      %v4549 = vmul.f32 %v4382, %v4542
      %v4550 = vmul.f32 %v4383, %v4542
      %v4551 = vmul.f32 %v4384, %v4542
      %v4552 = vmul.f32 %v4385, %v4542
      %v4553 = vmul.f32 %v4386, %v4542
      %v4554 = vmul.f32 %v4387, %v4542
      %v4555 = vmul.f32 %v4388, %v4542
      %v4556 = vmul.f32 %v4389, %v4542
      %v4557 = vmul.f32 %v4390, %v4542
      %v4558 = vmul.f32 %v4391, %v4542
      %v4559 = vmul.f32 %v4392, %v4542
      %v4560 = vmul.f32 %v4393, %v4542
      %v4561 = vmul.f32 %v4394, %v4542
      %v4562 = vmul.f32 %v4395, %v4542
      %v4563 = vmul.f32 %v4396, %v4542
      %v4564 = vmul.f32 %v4397, %v4542
      %v4565 = vmul.f32 %v4398, %v4542
      %v4566 = vmul.f32 %v4399, %v4542
      %v4567 = vmul.f32 %v4400, %v4542
      %v4568 = vmul.f32 %v4401, %v4542
      %v4569 = vmul.f32 %v4402, %v4542
      %v4570 = vmul.f32 %v4403, %v4542
      %v4571 = vmul.f32 %v4404, %v4542
      %v4572 = vmul.f32 %v4405, %v4542
      %v4573 = vmul.f32 %v4406, %v4542
      %v4574 = vmul.f32 %v4407, %v4542
      %v4576 = vperm.slane %v4281, 0
      %v4578 = vmul.f32 %v4543, %v4576
      %v4579 = vmul.f32 %v4544, %v4576
      %v4580 = vmul.f32 %v4545, %v4576
      %v4581 = vmul.f32 %v4546, %v4576
      %v4582 = vmul.f32 %v4547, %v4576
      %v4583 = vmul.f32 %v4548, %v4576
      %v4584 = vmul.f32 %v4549, %v4576
      %v4585 = vmul.f32 %v4550, %v4576
      %v4586 = vmul.f32 %v4551, %v4576
      %v4587 = vmul.f32 %v4552, %v4576
      %v4588 = vmul.f32 %v4553, %v4576
      %v4589 = vmul.f32 %v4554, %v4576
      %v4590 = vmul.f32 %v4555, %v4576
      %v4591 = vmul.f32 %v4556, %v4576
      %v4592 = vmul.f32 %v4557, %v4576
      %v4593 = vmul.f32 %v4558, %v4576
      %v4594 = vmul.f32 %v4559, %v4576
      %v4595 = vmul.f32 %v4560, %v4576
      %v4596 = vmul.f32 %v4561, %v4576
      %v4597 = vmul.f32 %v4562, %v4576
      %v4598 = vmul.f32 %v4563, %v4576
      %v4599 = vmul.f32 %v4564, %v4576
      %v4600 = vmul.f32 %v4565, %v4576
      %v4601 = vmul.f32 %v4566, %v4576
      %v4602 = vmul.f32 %v4567, %v4576
      %v4603 = vmul.f32 %v4568, %v4576
      %v4604 = vmul.f32 %v4569, %v4576
      %v4605 = vmul.f32 %v4570, %v4576
      %v4606 = vmul.f32 %v4571, %v4576
      %v4607 = vmul.f32 %v4572, %v4576
      %v4608 = vmul.f32 %v4573, %v4576
      %v4609 = vmul.f32 %v4574, %v4576
      %v4611 = vperm.slane %v4282, 0
      %v4613 = vadd.f32 %v4578, %v4611
      %v4614 = vadd.f32 %v4579, %v4611
      %v4615 = vadd.f32 %v4580, %v4611
      %v4616 = vadd.f32 %v4581, %v4611
      %v4617 = vadd.f32 %v4582, %v4611
      %v4618 = vadd.f32 %v4583, %v4611
      %v4619 = vadd.f32 %v4584, %v4611
      %v4620 = vadd.f32 %v4585, %v4611
      %v4621 = vadd.f32 %v4586, %v4611
      %v4622 = vadd.f32 %v4587, %v4611
      %v4623 = vadd.f32 %v4588, %v4611
      %v4624 = vadd.f32 %v4589, %v4611
      %v4625 = vadd.f32 %v4590, %v4611
      %v4626 = vadd.f32 %v4591, %v4611
      %v4627 = vadd.f32 %v4592, %v4611
      %v4628 = vadd.f32 %v4593, %v4611
      %v4629 = vadd.f32 %v4594, %v4611
      %v4630 = vadd.f32 %v4595, %v4611
      %v4631 = vadd.f32 %v4596, %v4611
      %v4632 = vadd.f32 %v4597, %v4611
      %v4633 = vadd.f32 %v4598, %v4611
      %v4634 = vadd.f32 %v4599, %v4611
      %v4635 = vadd.f32 %v4600, %v4611
      %v4636 = vadd.f32 %v4601, %v4611
      %v4637 = vadd.f32 %v4602, %v4611
      %v4638 = vadd.f32 %v4603, %v4611
      %v4639 = vadd.f32 %v4604, %v4611
      %v4640 = vadd.f32 %v4605, %v4611
      %v4641 = vadd.f32 %v4606, %v4611
      %v4642 = vadd.f32 %v4607, %v4611
      %v4643 = vadd.f32 %v4608, %v4611
      %v4644 = vadd.f32 %v4609, %v4611
      %v4645 = vxor.u32 %v4613, 2147483648
      %v4646 = vxor.u32 %v4614, 2147483648
      %v4647 = vxor.u32 %v4615, 2147483648
      %v4648 = vxor.u32 %v4616, 2147483648
      %v4649 = vxor.u32 %v4617, 2147483648
      %v4650 = vxor.u32 %v4618, 2147483648
      %v4651 = vxor.u32 %v4619, 2147483648
      %v4652 = vxor.u32 %v4620, 2147483648
      %v4653 = vxor.u32 %v4621, 2147483648
      %v4654 = vxor.u32 %v4622, 2147483648
      %v4655 = vxor.u32 %v4623, 2147483648
      %v4656 = vxor.u32 %v4624, 2147483648
      %v4657 = vxor.u32 %v4625, 2147483648
      %v4658 = vxor.u32 %v4626, 2147483648
      %v4659 = vxor.u32 %v4627, 2147483648
      %v4660 = vxor.u32 %v4628, 2147483648
      %v4661 = vxor.u32 %v4629, 2147483648
      %v4662 = vxor.u32 %v4630, 2147483648
      %v4663 = vxor.u32 %v4631, 2147483648
      %v4664 = vxor.u32 %v4632, 2147483648
      %v4665 = vxor.u32 %v4633, 2147483648
      %v4666 = vxor.u32 %v4634, 2147483648
      %v4667 = vxor.u32 %v4635, 2147483648
      %v4668 = vxor.u32 %v4636, 2147483648
      %v4669 = vxor.u32 %v4637, 2147483648
      %v4670 = vxor.u32 %v4638, 2147483648
      %v4671 = vxor.u32 %v4639, 2147483648
      %v4672 = vxor.u32 %v4640, 2147483648
      %v4673 = vxor.u32 %v4641, 2147483648
      %v4674 = vxor.u32 %v4642, 2147483648
      %v4675 = vxor.u32 %v4643, 2147483648
      %v4676 = vxor.u32 %v4644, 2147483648
      %v4677 = vmul.f32 %v4645, 1.442695
      %v4678 = vpow.pop %v4677
      %v4679 = vmul.f32 %v4646, 1.442695
      %v4680 = vpow.pop %v4679
      %v4681 = vmul.f32 %v4647, 1.442695
      %v4682 = vpow.pop %v4681
      %v4683 = vmul.f32 %v4648, 1.442695
      %v4684 = vpow.pop %v4683
      %v4685 = vmul.f32 %v4649, 1.442695
      %v4686 = vpow.pop %v4685
      %v4687 = vmul.f32 %v4650, 1.442695
      %v4688 = vpow.pop %v4687
      %v4689 = vmul.f32 %v4651, 1.442695
      %v4690 = vpow.pop %v4689
      %v4691 = vmul.f32 %v4652, 1.442695
      %v4692 = vpow.pop %v4691
      %v4693 = vmul.f32 %v4653, 1.442695
      %v4694 = vpow.pop %v4693
      %v4695 = vmul.f32 %v4654, 1.442695
      %v4696 = vpow.pop %v4695
      %v4697 = vmul.f32 %v4655, 1.442695
      %v4698 = vpow.pop %v4697
      %v4699 = vmul.f32 %v4656, 1.442695
      %v4700 = vpow.pop %v4699
      %v4701 = vmul.f32 %v4657, 1.442695
      %v4702 = vpow.pop %v4701
      %v4703 = vmul.f32 %v4658, 1.442695
      %v4704 = vpow.pop %v4703
      %v4705 = vmul.f32 %v4659, 1.442695
      %v4706 = vpow.pop %v4705
      %v4707 = vmul.f32 %v4660, 1.442695
      %v4708 = vpow.pop %v4707
      %v4709 = vmul.f32 %v4661, 1.442695
      %v4710 = vpow.pop %v4709
      %v4711 = vmul.f32 %v4662, 1.442695
      %v4712 = vpow.pop %v4711
      %v4713 = vmul.f32 %v4663, 1.442695
      %v4714 = vpow.pop %v4713
      %v4715 = vmul.f32 %v4664, 1.442695
      %v4716 = vpow.pop %v4715
      %v4717 = vmul.f32 %v4665, 1.442695
      %v4718 = vpow.pop %v4717
      %v4719 = vmul.f32 %v4666, 1.442695
      %v4720 = vpow.pop %v4719
      %v4721 = vmul.f32 %v4667, 1.442695
      %v4722 = vpow.pop %v4721
      %v4723 = vmul.f32 %v4668, 1.442695
      %v4724 = vpow.pop %v4723
      %v4725 = vmul.f32 %v4669, 1.442695
      %v4726 = vpow.pop %v4725
      %v4727 = vmul.f32 %v4670, 1.442695
      %v4728 = vpow.pop %v4727
      %v4729 = vmul.f32 %v4671, 1.442695
      %v4730 = vpow.pop %v4729
      %v4731 = vmul.f32 %v4672, 1.442695
      %v4732 = vpow.pop %v4731
      %v4733 = vmul.f32 %v4673, 1.442695
      %v4734 = vpow.pop %v4733
      %v4735 = vmul.f32 %v4674, 1.442695
      %v4736 = vpow.pop %v4735
      %v4737 = vmul.f32 %v4675, 1.442695
      %v4738 = vpow.pop %v4737
      %v4739 = vmul.f32 %v4676, 1.442695
      %v4740 = vpow.pop %v4739
      %v4741 = vadd.f32 %v4678, 1.0
      %v4742 = vadd.f32 %v4680, 1.0
      %v4743 = vadd.f32 %v4682, 1.0
      %v4744 = vadd.f32 %v4684, 1.0
      %v4745 = vadd.f32 %v4686, 1.0
      %v4746 = vadd.f32 %v4688, 1.0
      %v4747 = vadd.f32 %v4690, 1.0
      %v4748 = vadd.f32 %v4692, 1.0
      %v4749 = vadd.f32 %v4694, 1.0
      %v4750 = vadd.f32 %v4696, 1.0
      %v4751 = vadd.f32 %v4698, 1.0
      %v4752 = vadd.f32 %v4700, 1.0
      %v4753 = vadd.f32 %v4702, 1.0
      %v4754 = vadd.f32 %v4704, 1.0
      %v4755 = vadd.f32 %v4706, 1.0
      %v4756 = vadd.f32 %v4708, 1.0
      %v4757 = vadd.f32 %v4710, 1.0
      %v4758 = vadd.f32 %v4712, 1.0
      %v4759 = vadd.f32 %v4714, 1.0
      %v4760 = vadd.f32 %v4716, 1.0
      %v4761 = vadd.f32 %v4718, 1.0
      %v4762 = vadd.f32 %v4720, 1.0
      %v4763 = vadd.f32 %v4722, 1.0
      %v4764 = vadd.f32 %v4724, 1.0
      %v4765 = vadd.f32 %v4726, 1.0
      %v4766 = vadd.f32 %v4728, 1.0
      %v4767 = vadd.f32 %v4730, 1.0
      %v4768 = vadd.f32 %v4732, 1.0
      %v4769 = vadd.f32 %v4734, 1.0
      %v4770 = vadd.f32 %v4736, 1.0
      %v4771 = vadd.f32 %v4738, 1.0
      %v4772 = vadd.f32 %v4740, 1.0
      %v4773 = vrcp.pop %v4741
      %v4774 = vmul.f32 %v4741, %v4773
      %v4775 = vsub.f32 1.0, %v4774
      %v4776 = vmul.f32 %v4773, %v4775
      %v4777 = vadd.f32 %v4773, %v4776
      %vm4778 = vweird.f32 %v4741
      %vm4779 = vweird.f32 %v4773
      %vm4780 = vmor %vm4778, %vm4779
      %v4781 = vsel %vm4780, %v4773, %v4777
      %v4782 = vand.u32 2147483647, %v4741
      %vm4783 = vcmp.eq.f32.partialorder %v4782, 8.507059e+37
      %v4784 = vand.u32 %v4741, 2147483648
      %v4785 = vor.u32 1.1754944e-38, %v4784
      %v4786 = vsel %vm4783, %v4785, %v4781
      %v4787 = vmul.f32 1.0, %v4786
      %v4788 = vrcp.pop %v4742
      %v4789 = vmul.f32 %v4742, %v4788
      %v4790 = vsub.f32 1.0, %v4789
      %v4791 = vmul.f32 %v4788, %v4790
      %v4792 = vadd.f32 %v4788, %v4791
      %vm4793 = vweird.f32 %v4742
      %vm4794 = vweird.f32 %v4788
      %vm4795 = vmor %vm4793, %vm4794
      %v4796 = vsel %vm4795, %v4788, %v4792
      %v4797 = vand.u32 2147483647, %v4742
      %vm4798 = vcmp.eq.f32.partialorder %v4797, 8.507059e+37
      %v4799 = vand.u32 %v4742, 2147483648
      %v4800 = vor.u32 1.1754944e-38, %v4799
      %v4801 = vsel %vm4798, %v4800, %v4796
      %v4802 = vmul.f32 1.0, %v4801
      %v4803 = vrcp.pop %v4743
      %v4804 = vmul.f32 %v4743, %v4803
      %v4805 = vsub.f32 1.0, %v4804
      %v4806 = vmul.f32 %v4803, %v4805
      %v4807 = vadd.f32 %v4803, %v4806
      %vm4808 = vweird.f32 %v4743
      %vm4809 = vweird.f32 %v4803
      %vm4810 = vmor %vm4808, %vm4809
      %v4811 = vsel %vm4810, %v4803, %v4807
      %v4812 = vand.u32 2147483647, %v4743
      %vm4813 = vcmp.eq.f32.partialorder %v4812, 8.507059e+37
      %v4814 = vand.u32 %v4743, 2147483648
      %v4815 = vor.u32 1.1754944e-38, %v4814
      %v4816 = vsel %vm4813, %v4815, %v4811
      %v4817 = vmul.f32 1.0, %v4816
      %v4818 = vrcp.pop %v4744
      %v4819 = vmul.f32 %v4744, %v4818
      %v4820 = vsub.f32 1.0, %v4819
      %v4821 = vmul.f32 %v4818, %v4820
      %v4822 = vadd.f32 %v4818, %v4821
      %vm4823 = vweird.f32 %v4744
      %vm4824 = vweird.f32 %v4818
      %vm4825 = vmor %vm4823, %vm4824
      %v4826 = vsel %vm4825, %v4818, %v4822
      %v4827 = vand.u32 2147483647, %v4744
      %vm4828 = vcmp.eq.f32.partialorder %v4827, 8.507059e+37
      %v4829 = vand.u32 %v4744, 2147483648
      %v4830 = vor.u32 1.1754944e-38, %v4829
      %v4831 = vsel %vm4828, %v4830, %v4826
      %v4832 = vmul.f32 1.0, %v4831
      %v4833 = vrcp.pop %v4745
      %v4834 = vmul.f32 %v4745, %v4833
      %v4835 = vsub.f32 1.0, %v4834
      %v4836 = vmul.f32 %v4833, %v4835
      %v4837 = vadd.f32 %v4833, %v4836
      %vm4838 = vweird.f32 %v4745
      %vm4839 = vweird.f32 %v4833
      %vm4840 = vmor %vm4838, %vm4839
      %v4841 = vsel %vm4840, %v4833, %v4837
      %v4842 = vand.u32 2147483647, %v4745
      %vm4843 = vcmp.eq.f32.partialorder %v4842, 8.507059e+37
      %v4844 = vand.u32 %v4745, 2147483648
      %v4845 = vor.u32 1.1754944e-38, %v4844
      %v4846 = vsel %vm4843, %v4845, %v4841
      %v4847 = vmul.f32 1.0, %v4846
      %v4848 = vrcp.pop %v4746
      %v4849 = vmul.f32 %v4746, %v4848
      %v4850 = vsub.f32 1.0, %v4849
      %v4851 = vmul.f32 %v4848, %v4850
      %v4852 = vadd.f32 %v4848, %v4851
      %vm4853 = vweird.f32 %v4746
      %vm4854 = vweird.f32 %v4848
      %vm4855 = vmor %vm4853, %vm4854
      %v4856 = vsel %vm4855, %v4848, %v4852
      %v4857 = vand.u32 2147483647, %v4746
      %vm4858 = vcmp.eq.f32.partialorder %v4857, 8.507059e+37
      %v4859 = vand.u32 %v4746, 2147483648
      %v4860 = vor.u32 1.1754944e-38, %v4859
      %v4861 = vsel %vm4858, %v4860, %v4856
      %v4862 = vmul.f32 1.0, %v4861
      %v4863 = vrcp.pop %v4747
      %v4864 = vmul.f32 %v4747, %v4863
      %v4865 = vsub.f32 1.0, %v4864
      %v4866 = vmul.f32 %v4863, %v4865
      %v4867 = vadd.f32 %v4863, %v4866
      %vm4868 = vweird.f32 %v4747
      %vm4869 = vweird.f32 %v4863
      %vm4870 = vmor %vm4868, %vm4869
      %v4871 = vsel %vm4870, %v4863, %v4867
      %v4872 = vand.u32 2147483647, %v4747
      %vm4873 = vcmp.eq.f32.partialorder %v4872, 8.507059e+37
      %v4874 = vand.u32 %v4747, 2147483648
      %v4875 = vor.u32 1.1754944e-38, %v4874
      %v4876 = vsel %vm4873, %v4875, %v4871
      %v4877 = vmul.f32 1.0, %v4876
      %v4878 = vrcp.pop %v4748
      %v4879 = vmul.f32 %v4748, %v4878
      %v4880 = vsub.f32 1.0, %v4879
      %v4881 = vmul.f32 %v4878, %v4880
      %v4882 = vadd.f32 %v4878, %v4881
      %vm4883 = vweird.f32 %v4748
      %vm4884 = vweird.f32 %v4878
      %vm4885 = vmor %vm4883, %vm4884
      %v4886 = vsel %vm4885, %v4878, %v4882
      %v4887 = vand.u32 2147483647, %v4748
      %vm4888 = vcmp.eq.f32.partialorder %v4887, 8.507059e+37
      %v4889 = vand.u32 %v4748, 2147483648
      %v4890 = vor.u32 1.1754944e-38, %v4889
      %v4891 = vsel %vm4888, %v4890, %v4886
      %v4892 = vmul.f32 1.0, %v4891
      %v4893 = vrcp.pop %v4749
      %v4894 = vmul.f32 %v4749, %v4893
      %v4895 = vsub.f32 1.0, %v4894
      %v4896 = vmul.f32 %v4893, %v4895
      %v4897 = vadd.f32 %v4893, %v4896
      %vm4898 = vweird.f32 %v4749
      %vm4899 = vweird.f32 %v4893
      %vm4900 = vmor %vm4898, %vm4899
      %v4901 = vsel %vm4900, %v4893, %v4897
      %v4902 = vand.u32 2147483647, %v4749
      %vm4903 = vcmp.eq.f32.partialorder %v4902, 8.507059e+37
      %v4904 = vand.u32 %v4749, 2147483648
      %v4905 = vor.u32 1.1754944e-38, %v4904
      %v4906 = vsel %vm4903, %v4905, %v4901
      %v4907 = vmul.f32 1.0, %v4906
      %v4908 = vrcp.pop %v4750
      %v4909 = vmul.f32 %v4750, %v4908
      %v4910 = vsub.f32 1.0, %v4909
      %v4911 = vmul.f32 %v4908, %v4910
      %v4912 = vadd.f32 %v4908, %v4911
      %vm4913 = vweird.f32 %v4750
      %vm4914 = vweird.f32 %v4908
      %vm4915 = vmor %vm4913, %vm4914
      %v4916 = vsel %vm4915, %v4908, %v4912
      %v4917 = vand.u32 2147483647, %v4750
      %vm4918 = vcmp.eq.f32.partialorder %v4917, 8.507059e+37
      %v4919 = vand.u32 %v4750, 2147483648
      %v4920 = vor.u32 1.1754944e-38, %v4919
      %v4921 = vsel %vm4918, %v4920, %v4916
      %v4922 = vmul.f32 1.0, %v4921
      %v4923 = vrcp.pop %v4751
      %v4924 = vmul.f32 %v4751, %v4923
      %v4925 = vsub.f32 1.0, %v4924
      %v4926 = vmul.f32 %v4923, %v4925
      %v4927 = vadd.f32 %v4923, %v4926
      %vm4928 = vweird.f32 %v4751
      %vm4929 = vweird.f32 %v4923
      %vm4930 = vmor %vm4928, %vm4929
      %v4931 = vsel %vm4930, %v4923, %v4927
      %v4932 = vand.u32 2147483647, %v4751
      %vm4933 = vcmp.eq.f32.partialorder %v4932, 8.507059e+37
      %v4934 = vand.u32 %v4751, 2147483648
      %v4935 = vor.u32 1.1754944e-38, %v4934
      %v4936 = vsel %vm4933, %v4935, %v4931
      %v4937 = vmul.f32 1.0, %v4936
      %v4938 = vrcp.pop %v4752
      %v4939 = vmul.f32 %v4752, %v4938
      %v4940 = vsub.f32 1.0, %v4939
      %v4941 = vmul.f32 %v4938, %v4940
      %v4942 = vadd.f32 %v4938, %v4941
      %vm4943 = vweird.f32 %v4752
      %vm4944 = vweird.f32 %v4938
      %vm4945 = vmor %vm4943, %vm4944
      %v4946 = vsel %vm4945, %v4938, %v4942
      %v4947 = vand.u32 2147483647, %v4752
      %vm4948 = vcmp.eq.f32.partialorder %v4947, 8.507059e+37
      %v4949 = vand.u32 %v4752, 2147483648
      %v4950 = vor.u32 1.1754944e-38, %v4949
      %v4951 = vsel %vm4948, %v4950, %v4946
      %v4952 = vmul.f32 1.0, %v4951
      %v4953 = vrcp.pop %v4753
      %v4954 = vmul.f32 %v4753, %v4953
      %v4955 = vsub.f32 1.0, %v4954
      %v4956 = vmul.f32 %v4953, %v4955
      %v4957 = vadd.f32 %v4953, %v4956
      %vm4958 = vweird.f32 %v4753
      %vm4959 = vweird.f32 %v4953
      %vm4960 = vmor %vm4958, %vm4959
      %v4961 = vsel %vm4960, %v4953, %v4957
      %v4962 = vand.u32 2147483647, %v4753
      %vm4963 = vcmp.eq.f32.partialorder %v4962, 8.507059e+37
      %v4964 = vand.u32 %v4753, 2147483648
      %v4965 = vor.u32 1.1754944e-38, %v4964
      %v4966 = vsel %vm4963, %v4965, %v4961
      %v4967 = vmul.f32 1.0, %v4966
      %v4968 = vrcp.pop %v4754
      %v4969 = vmul.f32 %v4754, %v4968
      %v4970 = vsub.f32 1.0, %v4969
      %v4971 = vmul.f32 %v4968, %v4970
      %v4972 = vadd.f32 %v4968, %v4971
      %vm4973 = vweird.f32 %v4754
      %vm4974 = vweird.f32 %v4968
      %vm4975 = vmor %vm4973, %vm4974
      %v4976 = vsel %vm4975, %v4968, %v4972
      %v4977 = vand.u32 2147483647, %v4754
      %vm4978 = vcmp.eq.f32.partialorder %v4977, 8.507059e+37
      %v4979 = vand.u32 %v4754, 2147483648
      %v4980 = vor.u32 1.1754944e-38, %v4979
      %v4981 = vsel %vm4978, %v4980, %v4976
      %v4982 = vmul.f32 1.0, %v4981
      %v4983 = vrcp.pop %v4755
      %v4984 = vmul.f32 %v4755, %v4983
      %v4985 = vsub.f32 1.0, %v4984
      %v4986 = vmul.f32 %v4983, %v4985
      %v4987 = vadd.f32 %v4983, %v4986
      %vm4988 = vweird.f32 %v4755
      %vm4989 = vweird.f32 %v4983
      %vm4990 = vmor %vm4988, %vm4989
      %v4991 = vsel %vm4990, %v4983, %v4987
      %v4992 = vand.u32 2147483647, %v4755
      %vm4993 = vcmp.eq.f32.partialorder %v4992, 8.507059e+37
      %v4994 = vand.u32 %v4755, 2147483648
      %v4995 = vor.u32 1.1754944e-38, %v4994
      %v4996 = vsel %vm4993, %v4995, %v4991
      %v4997 = vmul.f32 1.0, %v4996
      %v4998 = vrcp.pop %v4756
      %v4999 = vmul.f32 %v4756, %v4998
      %v5000 = vsub.f32 1.0, %v4999
      %v5001 = vmul.f32 %v4998, %v5000
      %v5002 = vadd.f32 %v4998, %v5001
      %vm5003 = vweird.f32 %v4756
      %vm5004 = vweird.f32 %v4998
      %vm5005 = vmor %vm5003, %vm5004
      %v5006 = vsel %vm5005, %v4998, %v5002
      %v5007 = vand.u32 2147483647, %v4756
      %vm5008 = vcmp.eq.f32.partialorder %v5007, 8.507059e+37
      %v5009 = vand.u32 %v4756, 2147483648
      %v5010 = vor.u32 1.1754944e-38, %v5009
      %v5011 = vsel %vm5008, %v5010, %v5006
      %v5012 = vmul.f32 1.0, %v5011
      %v5013 = vrcp.pop %v4757
      %v5014 = vmul.f32 %v4757, %v5013
      %v5015 = vsub.f32 1.0, %v5014
      %v5016 = vmul.f32 %v5013, %v5015
      %v5017 = vadd.f32 %v5013, %v5016
      %vm5018 = vweird.f32 %v4757
      %vm5019 = vweird.f32 %v5013
      %vm5020 = vmor %vm5018, %vm5019
      %v5021 = vsel %vm5020, %v5013, %v5017
      %v5022 = vand.u32 2147483647, %v4757
      %vm5023 = vcmp.eq.f32.partialorder %v5022, 8.507059e+37
      %v5024 = vand.u32 %v4757, 2147483648
      %v5025 = vor.u32 1.1754944e-38, %v5024
      %v5026 = vsel %vm5023, %v5025, %v5021
      %v5027 = vmul.f32 1.0, %v5026
      %v5028 = vrcp.pop %v4758
      %v5029 = vmul.f32 %v4758, %v5028
      %v5030 = vsub.f32 1.0, %v5029
      %v5031 = vmul.f32 %v5028, %v5030
      %v5032 = vadd.f32 %v5028, %v5031
      %vm5033 = vweird.f32 %v4758
      %vm5034 = vweird.f32 %v5028
      %vm5035 = vmor %vm5033, %vm5034
      %v5036 = vsel %vm5035, %v5028, %v5032
      %v5037 = vand.u32 2147483647, %v4758
      %vm5038 = vcmp.eq.f32.partialorder %v5037, 8.507059e+37
      %v5039 = vand.u32 %v4758, 2147483648
      %v5040 = vor.u32 1.1754944e-38, %v5039
      %v5041 = vsel %vm5038, %v5040, %v5036
      %v5042 = vmul.f32 1.0, %v5041
      %v5043 = vrcp.pop %v4759
      %v5044 = vmul.f32 %v4759, %v5043
      %v5045 = vsub.f32 1.0, %v5044
      %v5046 = vmul.f32 %v5043, %v5045
      %v5047 = vadd.f32 %v5043, %v5046
      %vm5048 = vweird.f32 %v4759
      %vm5049 = vweird.f32 %v5043
      %vm5050 = vmor %vm5048, %vm5049
      %v5051 = vsel %vm5050, %v5043, %v5047
      %v5052 = vand.u32 2147483647, %v4759
      %vm5053 = vcmp.eq.f32.partialorder %v5052, 8.507059e+37
      %v5054 = vand.u32 %v4759, 2147483648
      %v5055 = vor.u32 1.1754944e-38, %v5054
      %v5056 = vsel %vm5053, %v5055, %v5051
      %v5057 = vmul.f32 1.0, %v5056
      %v5058 = vrcp.pop %v4760
      %v5059 = vmul.f32 %v4760, %v5058
      %v5060 = vsub.f32 1.0, %v5059
      %v5061 = vmul.f32 %v5058, %v5060
      %v5062 = vadd.f32 %v5058, %v5061
      %vm5063 = vweird.f32 %v4760
      %vm5064 = vweird.f32 %v5058
      %vm5065 = vmor %vm5063, %vm5064
      %v5066 = vsel %vm5065, %v5058, %v5062
      %v5067 = vand.u32 2147483647, %v4760
      %vm5068 = vcmp.eq.f32.partialorder %v5067, 8.507059e+37
      %v5069 = vand.u32 %v4760, 2147483648
      %v5070 = vor.u32 1.1754944e-38, %v5069
      %v5071 = vsel %vm5068, %v5070, %v5066
      %v5072 = vmul.f32 1.0, %v5071
      %v5073 = vrcp.pop %v4761
      %v5074 = vmul.f32 %v4761, %v5073
      %v5075 = vsub.f32 1.0, %v5074
      %v5076 = vmul.f32 %v5073, %v5075
      %v5077 = vadd.f32 %v5073, %v5076
      %vm5078 = vweird.f32 %v4761
      %vm5079 = vweird.f32 %v5073
      %vm5080 = vmor %vm5078, %vm5079
      %v5081 = vsel %vm5080, %v5073, %v5077
      %v5082 = vand.u32 2147483647, %v4761
      %vm5083 = vcmp.eq.f32.partialorder %v5082, 8.507059e+37
      %v5084 = vand.u32 %v4761, 2147483648
      %v5085 = vor.u32 1.1754944e-38, %v5084
      %v5086 = vsel %vm5083, %v5085, %v5081
      %v5087 = vmul.f32 1.0, %v5086
      %v5088 = vrcp.pop %v4762
      %v5089 = vmul.f32 %v4762, %v5088
      %v5090 = vsub.f32 1.0, %v5089
      %v5091 = vmul.f32 %v5088, %v5090
      %v5092 = vadd.f32 %v5088, %v5091
      %vm5093 = vweird.f32 %v4762
      %vm5094 = vweird.f32 %v5088
      %vm5095 = vmor %vm5093, %vm5094
      %v5096 = vsel %vm5095, %v5088, %v5092
      %v5097 = vand.u32 2147483647, %v4762
      %vm5098 = vcmp.eq.f32.partialorder %v5097, 8.507059e+37
      %v5099 = vand.u32 %v4762, 2147483648
      %v5100 = vor.u32 1.1754944e-38, %v5099
      %v5101 = vsel %vm5098, %v5100, %v5096
      %v5102 = vmul.f32 1.0, %v5101
      %v5103 = vrcp.pop %v4763
      %v5104 = vmul.f32 %v4763, %v5103
      %v5105 = vsub.f32 1.0, %v5104
      %v5106 = vmul.f32 %v5103, %v5105
      %v5107 = vadd.f32 %v5103, %v5106
      %vm5108 = vweird.f32 %v4763
      %vm5109 = vweird.f32 %v5103
      %vm5110 = vmor %vm5108, %vm5109
      %v5111 = vsel %vm5110, %v5103, %v5107
      %v5112 = vand.u32 2147483647, %v4763
      %vm5113 = vcmp.eq.f32.partialorder %v5112, 8.507059e+37
      %v5114 = vand.u32 %v4763, 2147483648
      %v5115 = vor.u32 1.1754944e-38, %v5114
      %v5116 = vsel %vm5113, %v5115, %v5111
      %v5117 = vmul.f32 1.0, %v5116
      %v5118 = vrcp.pop %v4764
      %v5119 = vmul.f32 %v4764, %v5118
      %v5120 = vsub.f32 1.0, %v5119
      %v5121 = vmul.f32 %v5118, %v5120
      %v5122 = vadd.f32 %v5118, %v5121
      %vm5123 = vweird.f32 %v4764
      %vm5124 = vweird.f32 %v5118
      %vm5125 = vmor %vm5123, %vm5124
      %v5126 = vsel %vm5125, %v5118, %v5122
      %v5127 = vand.u32 2147483647, %v4764
      %vm5128 = vcmp.eq.f32.partialorder %v5127, 8.507059e+37
      %v5129 = vand.u32 %v4764, 2147483648
      %v5130 = vor.u32 1.1754944e-38, %v5129
      %v5131 = vsel %vm5128, %v5130, %v5126
      %v5132 = vmul.f32 1.0, %v5131
      %v5133 = vrcp.pop %v4765
      %v5134 = vmul.f32 %v4765, %v5133
      %v5135 = vsub.f32 1.0, %v5134
      %v5136 = vmul.f32 %v5133, %v5135
      %v5137 = vadd.f32 %v5133, %v5136
      %vm5138 = vweird.f32 %v4765
      %vm5139 = vweird.f32 %v5133
      %vm5140 = vmor %vm5138, %vm5139
      %v5141 = vsel %vm5140, %v5133, %v5137
      %v5142 = vand.u32 2147483647, %v4765
      %vm5143 = vcmp.eq.f32.partialorder %v5142, 8.507059e+37
      %v5144 = vand.u32 %v4765, 2147483648
      %v5145 = vor.u32 1.1754944e-38, %v5144
      %v5146 = vsel %vm5143, %v5145, %v5141
      %v5147 = vmul.f32 1.0, %v5146
      %v5148 = vrcp.pop %v4766
      %v5149 = vmul.f32 %v4766, %v5148
      %v5150 = vsub.f32 1.0, %v5149
      %v5151 = vmul.f32 %v5148, %v5150
      %v5152 = vadd.f32 %v5148, %v5151
      %vm5153 = vweird.f32 %v4766
      %vm5154 = vweird.f32 %v5148
      %vm5155 = vmor %vm5153, %vm5154
      %v5156 = vsel %vm5155, %v5148, %v5152
      %v5157 = vand.u32 2147483647, %v4766
      %vm5158 = vcmp.eq.f32.partialorder %v5157, 8.507059e+37
      %v5159 = vand.u32 %v4766, 2147483648
      %v5160 = vor.u32 1.1754944e-38, %v5159
      %v5161 = vsel %vm5158, %v5160, %v5156
      %v5162 = vmul.f32 1.0, %v5161
      %v5163 = vrcp.pop %v4767
      %v5164 = vmul.f32 %v4767, %v5163
      %v5165 = vsub.f32 1.0, %v5164
      %v5166 = vmul.f32 %v5163, %v5165
      %v5167 = vadd.f32 %v5163, %v5166
      %vm5168 = vweird.f32 %v4767
      %vm5169 = vweird.f32 %v5163
      %vm5170 = vmor %vm5168, %vm5169
      %v5171 = vsel %vm5170, %v5163, %v5167
      %v5172 = vand.u32 2147483647, %v4767
      %vm5173 = vcmp.eq.f32.partialorder %v5172, 8.507059e+37
      %v5174 = vand.u32 %v4767, 2147483648
      %v5175 = vor.u32 1.1754944e-38, %v5174
      %v5176 = vsel %vm5173, %v5175, %v5171
      %v5177 = vmul.f32 1.0, %v5176
      %v5178 = vrcp.pop %v4768
      %v5179 = vmul.f32 %v4768, %v5178
      %v5180 = vsub.f32 1.0, %v5179
      %v5181 = vmul.f32 %v5178, %v5180
      %v5182 = vadd.f32 %v5178, %v5181
      %vm5183 = vweird.f32 %v4768
      %vm5184 = vweird.f32 %v5178
      %vm5185 = vmor %vm5183, %vm5184
      %v5186 = vsel %vm5185, %v5178, %v5182
      %v5187 = vand.u32 2147483647, %v4768
      %vm5188 = vcmp.eq.f32.partialorder %v5187, 8.507059e+37
      %v5189 = vand.u32 %v4768, 2147483648
      %v5190 = vor.u32 1.1754944e-38, %v5189
      %v5191 = vsel %vm5188, %v5190, %v5186
      %v5192 = vmul.f32 1.0, %v5191
      %v5193 = vrcp.pop %v4769
      %v5194 = vmul.f32 %v4769, %v5193
      %v5195 = vsub.f32 1.0, %v5194
      %v5196 = vmul.f32 %v5193, %v5195
      %v5197 = vadd.f32 %v5193, %v5196
      %vm5198 = vweird.f32 %v4769
      %vm5199 = vweird.f32 %v5193
      %vm5200 = vmor %vm5198, %vm5199
      %v5201 = vsel %vm5200, %v5193, %v5197
      %v5202 = vand.u32 2147483647, %v4769
      %vm5203 = vcmp.eq.f32.partialorder %v5202, 8.507059e+37
      %v5204 = vand.u32 %v4769, 2147483648
      %v5205 = vor.u32 1.1754944e-38, %v5204
      %v5206 = vsel %vm5203, %v5205, %v5201
      %v5207 = vmul.f32 1.0, %v5206
      %v5208 = vrcp.pop %v4770
      %v5209 = vmul.f32 %v4770, %v5208
      %v5210 = vsub.f32 1.0, %v5209
      %v5211 = vmul.f32 %v5208, %v5210
      %v5212 = vadd.f32 %v5208, %v5211
      %vm5213 = vweird.f32 %v4770
      %vm5214 = vweird.f32 %v5208
      %vm5215 = vmor %vm5213, %vm5214
      %v5216 = vsel %vm5215, %v5208, %v5212
      %v5217 = vand.u32 2147483647, %v4770
      %vm5218 = vcmp.eq.f32.partialorder %v5217, 8.507059e+37
      %v5219 = vand.u32 %v4770, 2147483648
      %v5220 = vor.u32 1.1754944e-38, %v5219
      %v5221 = vsel %vm5218, %v5220, %v5216
      %v5222 = vmul.f32 1.0, %v5221
      %v5223 = vrcp.pop %v4771
      %v5224 = vmul.f32 %v4771, %v5223
      %v5225 = vsub.f32 1.0, %v5224
      %v5226 = vmul.f32 %v5223, %v5225
      %v5227 = vadd.f32 %v5223, %v5226
      %vm5228 = vweird.f32 %v4771
      %vm5229 = vweird.f32 %v5223
      %vm5230 = vmor %vm5228, %vm5229
      %v5231 = vsel %vm5230, %v5223, %v5227
      %v5232 = vand.u32 2147483647, %v4771
      %vm5233 = vcmp.eq.f32.partialorder %v5232, 8.507059e+37
      %v5234 = vand.u32 %v4771, 2147483648
      %v5235 = vor.u32 1.1754944e-38, %v5234
      %v5236 = vsel %vm5233, %v5235, %v5231
      %v5237 = vmul.f32 1.0, %v5236
      %v5238 = vrcp.pop %v4772
      %v5239 = vmul.f32 %v4772, %v5238
      %v5240 = vsub.f32 1.0, %v5239
      %v5241 = vmul.f32 %v5238, %v5240
      %v5242 = vadd.f32 %v5238, %v5241
      %vm5243 = vweird.f32 %v4772
      %vm5244 = vweird.f32 %v5238
      %vm5245 = vmor %vm5243, %vm5244
      %v5246 = vsel %vm5245, %v5238, %v5242
      %v5247 = vand.u32 2147483647, %v4772
      %vm5248 = vcmp.eq.f32.partialorder %v5247, 8.507059e+37
      %v5249 = vand.u32 %v4772, 2147483648
      %v5250 = vor.u32 1.1754944e-38, %v5249
      %v5251 = vsel %vm5248, %v5250, %v5246
      %v5252 = vmul.f32 1.0, %v5251
      %v5253 = vmul.f32 %v4613, %v4787
      %v5254 = vmul.f32 %v4614, %v4802
      %v5255 = vmul.f32 %v4615, %v4817
      %v5256 = vmul.f32 %v4616, %v4832
      %v5257 = vmul.f32 %v4617, %v4847
      %v5258 = vmul.f32 %v4618, %v4862
      %v5259 = vmul.f32 %v4619, %v4877
      %v5260 = vmul.f32 %v4620, %v4892
      %v5261 = vmul.f32 %v4621, %v4907
      %v5262 = vmul.f32 %v4622, %v4922
      %v5263 = vmul.f32 %v4623, %v4937
      %v5264 = vmul.f32 %v4624, %v4952
      %v5265 = vmul.f32 %v4625, %v4967
      %v5266 = vmul.f32 %v4626, %v4982
      %v5267 = vmul.f32 %v4627, %v4997
      %v5268 = vmul.f32 %v4628, %v5012
      %v5269 = vmul.f32 %v4629, %v5027
      %v5270 = vmul.f32 %v4630, %v5042
      %v5271 = vmul.f32 %v4631, %v5057
      %v5272 = vmul.f32 %v4632, %v5072
      %v5273 = vmul.f32 %v4633, %v5087
      %v5274 = vmul.f32 %v4634, %v5102
      %v5275 = vmul.f32 %v4635, %v5117
      %v5276 = vmul.f32 %v4636, %v5132
      %v5277 = vmul.f32 %v4637, %v5147
      %v5278 = vmul.f32 %v4638, %v5162
      %v5279 = vmul.f32 %v4639, %v5177
      %v5280 = vmul.f32 %v4640, %v5192
      %v5281 = vmul.f32 %v4641, %v5207
      %v5282 = vmul.f32 %v4642, %v5222
      %v5283 = vmul.f32 %v4643, %v5237
      %v5284 = vmul.f32 %v4644, %v5252
      %5285 = vst.msk [vmem:[#allocation3] sm:$0xff] %vm4184, 0.0
      %5286 = vst.msk [vmem:[#allocation3 + $0x8] sm:$0xff] %vm4184, 0.0
      %vm5287 = vcmask 254976
      %5288 = vst.msk [vmem:[#allocation3 + $0x10] sm:$0x3] %vm5287, 0.0
      %5289 = vst.msk [vmem:[#allocation3 + $0x18] sm:$0xff] %vm4184, 0.0
      %5290 = vst.msk [vmem:[#allocation3 + $0x20] sm:$0xff] %vm4184, 0.0
      %5291 = vst.msk [vmem:[#allocation3 + $0x28] sm:$0x3] %vm5287, 0.0
      %5292 = vst.msk [vmem:[#allocation3 + $0x30] sm:$0xff] %vm4184, 0.0
      %5293 = vst.msk [vmem:[#allocation3 + $0x38] sm:$0xff] %vm4184, 0.0
      %5294 = vst.msk [vmem:[#allocation3 + $0x40] sm:$0x3] %vm5287, 0.0
      %5295 = vst.msk [vmem:[#allocation3 + $0x48] sm:$0xff] %vm4184, 0.0
      %5296 = vst.msk [vmem:[#allocation3 + $0x50] sm:$0xff] %vm4184, 0.0
      %5297 = vst.msk [vmem:[#allocation3 + $0x58] sm:$0x3] %vm5287, 0.0
      %5298 = vst.msk [vmem:[#allocation3 + $0x60] sm:$0xff] %vm4184, 0.0
      %5299 = vst.msk [vmem:[#allocation3 + $0x68] sm:$0xff] %vm4184, 0.0
      %5300 = vst.msk [vmem:[#allocation3 + $0x70] sm:$0x3] %vm5287, 0.0
      %5301 = vst.msk [vmem:[#allocation3 + $0x78] sm:$0xff] %vm4184, 0.0
      %5302 = vst.msk [vmem:[#allocation3 + $0x80] sm:$0xff] %vm4184, 0.0
      %5303 = vst.msk [vmem:[#allocation3 + $0x88] sm:$0x3] %vm5287, 0.0
      %5304 = vst.msk [vmem:[#allocation3 + $0x90] sm:$0xff] %vm4184, 0.0
      %5305 = vst.msk [vmem:[#allocation3 + $0x98] sm:$0xff] %vm4184, 0.0
      %5306 = vst.msk [vmem:[#allocation3 + $0xa0] sm:$0x3] %vm5287, 0.0
      %5307 = vst.msk [vmem:[#allocation3 + $0xa8] sm:$0xff] %vm4184, 0.0
      %5308 = vst.msk [vmem:[#allocation3 + $0xb0] sm:$0xff] %vm4184, 0.0
      %5309 = vst.msk [vmem:[#allocation3 + $0xb8] sm:$0x3] %vm5287, 0.0
      %5310 = vst.msk [vmem:[#allocation3 + $0xc0] sm:$0xff] %vm4184, 0.0
      %5311 = vst.msk [vmem:[#allocation3 + $0xc8] sm:$0xff] %vm4184, 0.0
      %5312 = vst.msk [vmem:[#allocation3 + $0xd0] sm:$0x3] %vm5287, 0.0
      %5313 = vst.msk [vmem:[#allocation3 + $0xd8] sm:$0xff] %vm4184, 0.0
      %5314 = vst.msk [vmem:[#allocation3 + $0xe0] sm:$0xff] %vm4184, 0.0
      %5315 = vst.msk [vmem:[#allocation3 + $0xe8] sm:$0x3] %vm5287, 0.0
      %5316 = vst.msk [vmem:[#allocation3 + $0xf0] sm:$0xff] %vm4184, 0.0
      %5317 = vst.msk [vmem:[#allocation3 + $0xf8] sm:$0xff] %vm4184, 0.0
      %5318 = vst.msk [vmem:[#allocation3 + $0x100] sm:$0x3] %vm5287, 0.0
      %5319 = vst.msk [vmem:[#allocation3 + $0x108] sm:$0xff] %vm4184, 0.0
      %5320 = vst.msk [vmem:[#allocation3 + $0x110] sm:$0xff] %vm4184, 0.0
      %5321 = vst.msk [vmem:[#allocation3 + $0x118] sm:$0x3] %vm5287, 0.0
      %5322 = vst.msk [vmem:[#allocation3 + $0x120] sm:$0xff] %vm4184, 0.0
      %5323 = vst.msk [vmem:[#allocation3 + $0x128] sm:$0xff] %vm4184, 0.0
      %5324 = vst.msk [vmem:[#allocation3 + $0x130] sm:$0x3] %vm5287, 0.0
      %5325 = vst.msk [vmem:[#allocation3 + $0x138] sm:$0xff] %vm4184, 0.0
      %5326 = vst.msk [vmem:[#allocation3 + $0x140] sm:$0xff] %vm4184, 0.0
      %5327 = vst.msk [vmem:[#allocation3 + $0x148] sm:$0x3] %vm5287, 0.0
      %5328 = vst.msk [vmem:[#allocation3 + $0x150] sm:$0xff] %vm4184, 0.0
      %5329 = vst.msk [vmem:[#allocation3 + $0x158] sm:$0xff] %vm4184, 0.0
      %5330 = vst.msk [vmem:[#allocation3 + $0x160] sm:$0x3] %vm5287, 0.0
      %5331 = vst.msk [vmem:[#allocation3 + $0x168] sm:$0xff] %vm4184, 0.0
      %5332 = vst.msk [vmem:[#allocation3 + $0x170] sm:$0xff] %vm4184, 0.0
      %5333 = vst.msk [vmem:[#allocation3 + $0x178] sm:$0x3] %vm5287, 0.0
      %5334 = vst.msk [vmem:[#allocation3 + $0x180] sm:$0xff] %vm4184, 0.0
      %5335 = vst.msk [vmem:[#allocation3 + $0x188] sm:$0xff] %vm4184, 0.0
      %5336 = vst.msk [vmem:[#allocation3 + $0x190] sm:$0x3] %vm5287, 0.0
      %5337 = vst.msk [vmem:[#allocation3 + $0x198] sm:$0xff] %vm4184, 0.0
      %5338 = vst.msk [vmem:[#allocation3 + $0x1a0] sm:$0xff] %vm4184, 0.0
      %5339 = vst.msk [vmem:[#allocation3 + $0x1a8] sm:$0x3] %vm5287, 0.0
      %s5340 = scalar_lea.vmem [#allocation3], 24
      %5341 = vst.msk [vmem:[%s5340 + $0x1] sm:$0xff] %vm4184, %v5253
      %5342 = vst.msk [vmem:[%s5340 + $0x9] sm:$0xff] %vm4184, %v5254
      %5343 = vst.msk [vmem:[%s5340 + $0x19] sm:$0xff] %vm4184, %v5255
      %5344 = vst.msk [vmem:[%s5340 + $0x21] sm:$0xff] %vm4184, %v5256
      %5345 = vst.msk [vmem:[%s5340 + $0x31] sm:$0xff] %vm4184, %v5257
      %5346 = vst.msk [vmem:[%s5340 + $0x39] sm:$0xff] %vm4184, %v5258
      %5347 = vst.msk [vmem:[%s5340 + $0x49] sm:$0xff] %vm4184, %v5259
      %5348 = vst.msk [vmem:[%s5340 + $0x51] sm:$0xff] %vm4184, %v5260
      %5349 = vst.msk [vmem:[%s5340 + $0x61] sm:$0xff] %vm4184, %v5261
      %5350 = vst.msk [vmem:[%s5340 + $0x69] sm:$0xff] %vm4184, %v5262
      %5351 = vst.msk [vmem:[%s5340 + $0x79] sm:$0xff] %vm4184, %v5263
      %5352 = vst.msk [vmem:[%s5340 + $0x81] sm:$0xff] %vm4184, %v5264
      %5353 = vst.msk [vmem:[%s5340 + $0x91] sm:$0xff] %vm4184, %v5265
      %5354 = vst.msk [vmem:[%s5340 + $0x99] sm:$0xff] %vm4184, %v5266
      %5355 = vst.msk [vmem:[%s5340 + $0xa9] sm:$0xff] %vm4184, %v5267
      %5356 = vst.msk [vmem:[%s5340 + $0xb1] sm:$0xff] %vm4184, %v5268
      %5357 = vst.msk [vmem:[%s5340 + $0xc1] sm:$0xff] %vm4184, %v5269
      %5358 = vst.msk [vmem:[%s5340 + $0xc9] sm:$0xff] %vm4184, %v5270
      %5359 = vst.msk [vmem:[%s5340 + $0xd9] sm:$0xff] %vm4184, %v5271
      %5360 = vst.msk [vmem:[%s5340 + $0xe1] sm:$0xff] %vm4184, %v5272
      %5361 = vst.msk [vmem:[%s5340 + $0xf1] sm:$0xff] %vm4184, %v5273
      %5362 = vst.msk [vmem:[%s5340 + $0xf9] sm:$0xff] %vm4184, %v5274
      %5363 = vst.msk [vmem:[%s5340 + $0x109] sm:$0xff] %vm4184, %v5275
      %5364 = vst.msk [vmem:[%s5340 + $0x111] sm:$0xff] %vm4184, %v5276
      %5365 = vst.msk [vmem:[%s5340 + $0x121] sm:$0xff] %vm4184, %v5277
      %5366 = vst.msk [vmem:[%s5340 + $0x129] sm:$0xff] %vm4184, %v5278
      %5367 = vst.msk [vmem:[%s5340 + $0x139] sm:$0xff] %vm4184, %v5279
      %5368 = vst.msk [vmem:[%s5340 + $0x141] sm:$0xff] %vm4184, %v5280
      %5369 = vst.msk [vmem:[%s5340 + $0x151] sm:$0xff] %vm4184, %v5281
      %5370 = vst.msk [vmem:[%s5340 + $0x159] sm:$0xff] %vm4184, %v5282
      %5371 = vst.msk [vmem:[%s5340 + $0x169] sm:$0xff] %vm4184, %v5283
      %5372 = vst.msk [vmem:[%s5340 + $0x171] sm:$0xff] %vm4184, %v5284
      %v5373 = vld [vmem:[#allocation3] sm:$0xff]
      %v5374 = vld [vmem:[#allocation3 + $0x8] sm:$0xff]
      %v5375 = vld [vmem:[#allocation3 + $0x18] sm:$0xff]
      %v5376 = vld [vmem:[#allocation3 + $0x20] sm:$0xff]
      %v5377 = vld [vmem:[#allocation3 + $0x30] sm:$0xff]
      %v5378 = vld [vmem:[#allocation3 + $0x38] sm:$0xff]
      %v5379 = vld [vmem:[#allocation3 + $0x48] sm:$0xff]
      %v5380 = vld [vmem:[#allocation3 + $0x50] sm:$0xff]
      %v5381 = vld [vmem:[#allocation3 + $0x60] sm:$0xff]
      %v5382 = vld [vmem:[#allocation3 + $0x68] sm:$0xff]
      %v5383 = vld [vmem:[#allocation3 + $0x78] sm:$0xff]
      %v5384 = vld [vmem:[#allocation3 + $0x80] sm:$0xff]
      %v5385 = vld [vmem:[#allocation3 + $0x90] sm:$0xff]
      %v5386 = vld [vmem:[#allocation3 + $0x98] sm:$0xff]
      %v5387 = vld [vmem:[#allocation3 + $0xa8] sm:$0xff]
      %v5388 = vld [vmem:[#allocation3 + $0xb0] sm:$0xff]
      %v5389 = vld [vmem:[#allocation3 + $0xc0] sm:$0xff]
      %v5390 = vld [vmem:[#allocation3 + $0xc8] sm:$0xff]
      %v5391 = vld [vmem:[#allocation3 + $0xd8] sm:$0xff]
      %v5392 = vld [vmem:[#allocation3 + $0xe0] sm:$0xff]
      %v5393 = vld [vmem:[#allocation3 + $0xf0] sm:$0xff]
      %v5394 = vld [vmem:[#allocation3 + $0xf8] sm:$0xff]
      %v5395 = vld [vmem:[#allocation3 + $0x108] sm:$0xff]
      %v5396 = vld [vmem:[#allocation3 + $0x110] sm:$0xff]
      %v5397 = vld [vmem:[#allocation3 + $0x120] sm:$0xff]
      %v5398 = vld [vmem:[#allocation3 + $0x128] sm:$0xff]
      %v5399 = vld [vmem:[#allocation3 + $0x138] sm:$0xff]
      %v5400 = vld [vmem:[#allocation3 + $0x140] sm:$0xff]
      %v5401 = vld [vmem:[#allocation3 + $0x150] sm:$0xff]
      %v5402 = vld [vmem:[#allocation3 + $0x158] sm:$0xff]
      %v5403 = vld [vmem:[#allocation3 + $0x168] sm:$0xff]
      %v5404 = vld [vmem:[#allocation3 + $0x170] sm:$0xff]
      %v5405 = vld [vmem:[%s12] sm:$0xff]
      %v5406 = vld [vmem:[%s12 + $0x8] sm:$0xff]
      %v5407 = vld [vmem:[%s12 + $0x10] sm:$0xff]
      %v5408 = vld [vmem:[%s12 + $0x18] sm:$0xff]
      %v5409 = vld [vmem:[#allocation3 + $0x1] sm:$0xff]
      %v5410 = vld [vmem:[#allocation3 + $0x9] sm:$0xff]
      %v5411 = vld [vmem:[#allocation3 + $0x19] sm:$0xff]
      %v5412 = vld [vmem:[#allocation3 + $0x21] sm:$0xff]
      %v5413 = vld [vmem:[#allocation3 + $0x31] sm:$0xff]
      %v5414 = vld [vmem:[#allocation3 + $0x39] sm:$0xff]
      %v5415 = vld [vmem:[#allocation3 + $0x49] sm:$0xff]
      %v5416 = vld [vmem:[#allocation3 + $0x51] sm:$0xff]
      %v5417 = vld [vmem:[#allocation3 + $0x61] sm:$0xff]
      %v5418 = vld [vmem:[#allocation3 + $0x69] sm:$0xff]
      %v5419 = vld [vmem:[#allocation3 + $0x79] sm:$0xff]
      %v5420 = vld [vmem:[#allocation3 + $0x81] sm:$0xff]
      %v5421 = vld [vmem:[#allocation3 + $0x91] sm:$0xff]
      %v5422 = vld [vmem:[#allocation3 + $0x99] sm:$0xff]
      %v5423 = vld [vmem:[#allocation3 + $0xa9] sm:$0xff]
      %v5424 = vld [vmem:[#allocation3 + $0xb1] sm:$0xff]
      %v5425 = vld [vmem:[#allocation3 + $0xc1] sm:$0xff]
      %v5426 = vld [vmem:[#allocation3 + $0xc9] sm:$0xff]
      %v5427 = vld [vmem:[#allocation3 + $0xd9] sm:$0xff]
      %v5428 = vld [vmem:[#allocation3 + $0xe1] sm:$0xff]
      %v5429 = vld [vmem:[#allocation3 + $0xf1] sm:$0xff]
      %v5430 = vld [vmem:[#allocation3 + $0xf9] sm:$0xff]
      %v5431 = vld [vmem:[#allocation3 + $0x109] sm:$0xff]
      %v5432 = vld [vmem:[#allocation3 + $0x111] sm:$0xff]
      %v5433 = vld [vmem:[#allocation3 + $0x121] sm:$0xff]
      %v5434 = vld [vmem:[#allocation3 + $0x129] sm:$0xff]
      %v5435 = vld [vmem:[#allocation3 + $0x139] sm:$0xff]
      %v5436 = vld [vmem:[#allocation3 + $0x141] sm:$0xff]
      %v5437 = vld [vmem:[#allocation3 + $0x151] sm:$0xff]
      %v5438 = vld [vmem:[#allocation3 + $0x159] sm:$0xff]
      %v5439 = vld [vmem:[#allocation3 + $0x169] sm:$0xff]
      %v5440 = vld [vmem:[#allocation3 + $0x171] sm:$0xff]
      %s5441 = scalar_lea.vmem %s12, 32
      %v5442 = vld [vmem:[%s5441] sm:$0xff]
      %v5443 = vld [vmem:[%s5441 + $0x8] sm:$0xff]
      %v5444 = vld [vmem:[%s5441 + $0x10] sm:$0xff]
      %v5445 = vld [vmem:[%s5441 + $0x18] sm:$0xff]
      %v5447 = vsel %vm4184, %v5409, 0
      %v5450 = vsel %vm4184, %v5410, 0
      %v5453 = vsel %vm4184, %v5411, 0
      %v5456 = vsel %vm4184, %v5412, 0
      %v5459 = vsel %vm4184, %v5413, 0
      %v5462 = vsel %vm4184, %v5414, 0
      %v5465 = vsel %vm4184, %v5415, 0
      %v5468 = vsel %vm4184, %v5416, 0
      %v5471 = vsel %vm4184, %v5417, 0
      %v5474 = vsel %vm4184, %v5418, 0
      %v5477 = vsel %vm4184, %v5419, 0
      %v5480 = vsel %vm4184, %v5420, 0
      %v5483 = vsel %vm4184, %v5421, 0
      %v5486 = vsel %vm4184, %v5422, 0
      %v5489 = vsel %vm4184, %v5423, 0
      %v5492 = vsel %vm4184, %v5424, 0
      %v5495 = vsel %vm4184, %v5425, 0
      %v5498 = vsel %vm4184, %v5426, 0
      %v5501 = vsel %vm4184, %v5427, 0
      %v5504 = vsel %vm4184, %v5428, 0
      %v5507 = vsel %vm4184, %v5429, 0
      %v5510 = vsel %vm4184, %v5430, 0
      %v5513 = vsel %vm4184, %v5431, 0
      %v5516 = vsel %vm4184, %v5432, 0
      %v5519 = vsel %vm4184, %v5433, 0
      %v5522 = vsel %vm4184, %v5434, 0
      %v5525 = vsel %vm4184, %v5435, 0
      %v5528 = vsel %vm4184, %v5436, 0
      %v5531 = vsel %vm4184, %v5437, 0
      %v5534 = vsel %vm4184, %v5438, 0
      %v5537 = vsel %vm4184, %v5439, 0
      %v5540 = vsel %vm4184, %v5440, 0
      %5542 = vmatpush.msra.mxu0 0.0
      %5543 = vmatpush.msra.mxu0 0.0
      %5544 = vmatpush.msra.mxu0 0.0
      %5545 = vmatpush.msra.mxu0 0.0
      %5546 = vmatpush.msra.mxu0 0.0
      %5547 = vmatpush.msra.mxu0 0.0
      %5548 = vmatpush.msra.mxu0 0.0
      %5549 = vmatpush.msra.mxu0 0.0
      %5550 = vmatpush.msra.mxu0 0.0
      %5551 = vmatpush.msra.mxu0 0.0
      %5552 = vmatpush.msra.mxu0 0.0
      %5553 = vmatpush.msra.mxu0 0.0
      %5554 = vmatpush.msra.mxu0 %v5445
      %5555 = vmatpush.msra.mxu0 %v5444
      %5556 = vmatpush.msra.mxu0 %v5443
      %5557 = vmatpush.msra.mxu0 %v5442
      %5558 = vmatmul.f32.gmra.mxu0 %v5447
      %v5559 = vpop.f32.mrf.mxu0
      %v5560 = vadd.f32 0.0, %v5559
      %5561 = vmatmul.f32.gmra.mxu0 %v5450
      %v5562 = vpop.f32.mrf.mxu0
      %v5563 = vadd.f32 0.0, %v5562
      %5564 = vmatmul.f32.gmra.mxu0 %v5453
      %v5565 = vpop.f32.mrf.mxu0
      %v5566 = vadd.f32 0.0, %v5565
      %5567 = vmatmul.f32.gmra.mxu0 %v5456
      %v5568 = vpop.f32.mrf.mxu0
      %v5569 = vadd.f32 0.0, %v5568
      %5570 = vmatmul.f32.gmra.mxu0 %v5459
      %v5571 = vpop.f32.mrf.mxu0
      %v5572 = vadd.f32 0.0, %v5571
      %5573 = vmatmul.f32.gmra.mxu0 %v5462
      %v5574 = vpop.f32.mrf.mxu0
      %v5575 = vadd.f32 0.0, %v5574
      %5576 = vmatmul.f32.gmra.mxu0 %v5465
      %v5577 = vpop.f32.mrf.mxu0
      %v5578 = vadd.f32 0.0, %v5577
      %5579 = vmatmul.f32.gmra.mxu0 %v5468
      %v5580 = vpop.f32.mrf.mxu0
      %v5581 = vadd.f32 0.0, %v5580
      %5582 = vmatmul.f32.gmra.mxu0 %v5471
      %v5583 = vpop.f32.mrf.mxu0
      %v5584 = vadd.f32 0.0, %v5583
      %5585 = vmatmul.f32.gmra.mxu0 %v5474
      %v5586 = vpop.f32.mrf.mxu0
      %v5587 = vadd.f32 0.0, %v5586
      %5588 = vmatmul.f32.gmra.mxu0 %v5477
      %v5589 = vpop.f32.mrf.mxu0
      %v5590 = vadd.f32 0.0, %v5589
      %5591 = vmatmul.f32.gmra.mxu0 %v5480
      %v5592 = vpop.f32.mrf.mxu0
      %v5593 = vadd.f32 0.0, %v5592
      %5594 = vmatmul.f32.gmra.mxu0 %v5483
      %v5595 = vpop.f32.mrf.mxu0
      %v5596 = vadd.f32 0.0, %v5595
      %5597 = vmatmul.f32.gmra.mxu0 %v5486
      %v5598 = vpop.f32.mrf.mxu0
      %v5599 = vadd.f32 0.0, %v5598
      %5600 = vmatmul.f32.gmra.mxu0 %v5489
      %v5601 = vpop.f32.mrf.mxu0
      %v5602 = vadd.f32 0.0, %v5601
      %5603 = vmatmul.f32.gmra.mxu0 %v5492
      %v5604 = vpop.f32.mrf.mxu0
      %v5605 = vadd.f32 0.0, %v5604
      %5606 = vmatmul.f32.gmra.mxu0 %v5495
      %v5607 = vpop.f32.mrf.mxu0
      %v5608 = vadd.f32 0.0, %v5607
      %5609 = vmatmul.f32.gmra.mxu0 %v5498
      %v5610 = vpop.f32.mrf.mxu0
      %v5611 = vadd.f32 0.0, %v5610
      %5612 = vmatmul.f32.gmra.mxu0 %v5501
      %v5613 = vpop.f32.mrf.mxu0
      %v5614 = vadd.f32 0.0, %v5613
      %5615 = vmatmul.f32.gmra.mxu0 %v5504
      %v5616 = vpop.f32.mrf.mxu0
      %v5617 = vadd.f32 0.0, %v5616
      %5618 = vmatmul.f32.gmra.mxu0 %v5507
      %v5619 = vpop.f32.mrf.mxu0
      %v5620 = vadd.f32 0.0, %v5619
      %5621 = vmatmul.f32.gmra.mxu0 %v5510
      %v5622 = vpop.f32.mrf.mxu0
      %v5623 = vadd.f32 0.0, %v5622
      %5624 = vmatmul.f32.gmra.mxu0 %v5513
      %v5625 = vpop.f32.mrf.mxu0
      %v5626 = vadd.f32 0.0, %v5625
      %5627 = vmatmul.f32.gmra.mxu0 %v5516
      %v5628 = vpop.f32.mrf.mxu0
      %v5629 = vadd.f32 0.0, %v5628
      %5630 = vmatmul.f32.gmra.mxu0 %v5519
      %v5631 = vpop.f32.mrf.mxu0
      %v5632 = vadd.f32 0.0, %v5631
      %5633 = vmatmul.f32.gmra.mxu0 %v5522
      %v5634 = vpop.f32.mrf.mxu0
      %v5635 = vadd.f32 0.0, %v5634
      %5636 = vmatmul.f32.gmra.mxu0 %v5525
      %v5637 = vpop.f32.mrf.mxu0
      %v5638 = vadd.f32 0.0, %v5637
      %5639 = vmatmul.f32.gmra.mxu0 %v5528
      %v5640 = vpop.f32.mrf.mxu0
      %v5641 = vadd.f32 0.0, %v5640
      %5642 = vmatmul.f32.gmra.mxu0 %v5531
      %v5643 = vpop.f32.mrf.mxu0
      %v5644 = vadd.f32 0.0, %v5643
      %5645 = vmatmul.f32.gmra.mxu0 %v5534
      %v5646 = vpop.f32.mrf.mxu0
      %v5647 = vadd.f32 0.0, %v5646
      %5648 = vmatmul.f32.gmra.mxu0 %v5537
      %v5649 = vpop.f32.mrf.mxu0
      %v5650 = vadd.f32 0.0, %v5649
      %5651 = vmatmul.f32.gmra.mxu0 %v5540
      %v5652 = vpop.f32.mrf.mxu0
      %v5653 = vadd.f32 0.0, %v5652
      %5654 = vdwg.mxu0
      %v5656 = vsel %vm4184, %v5373, 0
      %v5659 = vsel %vm4184, %v5374, 0
      %v5662 = vsel %vm4184, %v5375, 0
      %v5665 = vsel %vm4184, %v5376, 0
      %v5668 = vsel %vm4184, %v5377, 0
      %v5671 = vsel %vm4184, %v5378, 0
      %v5674 = vsel %vm4184, %v5379, 0
      %v5677 = vsel %vm4184, %v5380, 0
      %v5680 = vsel %vm4184, %v5381, 0
      %v5683 = vsel %vm4184, %v5382, 0
      %v5686 = vsel %vm4184, %v5383, 0
      %v5689 = vsel %vm4184, %v5384, 0
      %v5692 = vsel %vm4184, %v5385, 0
      %v5695 = vsel %vm4184, %v5386, 0
      %v5698 = vsel %vm4184, %v5387, 0
      %v5701 = vsel %vm4184, %v5388, 0
      %v5704 = vsel %vm4184, %v5389, 0
      %v5707 = vsel %vm4184, %v5390, 0
      %v5710 = vsel %vm4184, %v5391, 0
      %v5713 = vsel %vm4184, %v5392, 0
      %v5716 = vsel %vm4184, %v5393, 0
      %v5719 = vsel %vm4184, %v5394, 0
      %v5722 = vsel %vm4184, %v5395, 0
      %v5725 = vsel %vm4184, %v5396, 0
      %v5728 = vsel %vm4184, %v5397, 0
      %v5731 = vsel %vm4184, %v5398, 0
      %v5734 = vsel %vm4184, %v5399, 0
      %v5737 = vsel %vm4184, %v5400, 0
      %v5740 = vsel %vm4184, %v5401, 0
      %v5743 = vsel %vm4184, %v5402, 0
      %v5746 = vsel %vm4184, %v5403, 0
      %v5749 = vsel %vm4184, %v5404, 0
      %5751 = vmatpush.msra.mxu0 0.0
      %5752 = vmatpush.msra.mxu0 0.0
      %5753 = vmatpush.msra.mxu0 0.0
      %5754 = vmatpush.msra.mxu0 0.0
      %5755 = vmatpush.msra.mxu0 0.0
      %5756 = vmatpush.msra.mxu0 0.0
      %5757 = vmatpush.msra.mxu0 0.0
      %5758 = vmatpush.msra.mxu0 0.0
      %5759 = vmatpush.msra.mxu0 0.0
      %5760 = vmatpush.msra.mxu0 0.0
      %5761 = vmatpush.msra.mxu0 0.0
      %5762 = vmatpush.msra.mxu0 0.0
      %5763 = vmatpush.msra.mxu0 %v5408
      %5764 = vmatpush.msra.mxu0 %v5407
      %5765 = vmatpush.msra.mxu0 %v5406
      %5766 = vmatpush.msra.mxu0 %v5405
      %5767 = vmatmul.f32.gmra.mxu0 %v5656
      %v5768 = vpop.f32.mrf.mxu0
      %v5769 = vadd.f32 %v5560, %v5768
      %5770 = vmatmul.f32.gmra.mxu0 %v5659
      %v5771 = vpop.f32.mrf.mxu0
      %v5772 = vadd.f32 %v5563, %v5771
      %5773 = vmatmul.f32.gmra.mxu0 %v5662
      %v5774 = vpop.f32.mrf.mxu0
      %v5775 = vadd.f32 %v5566, %v5774
      %5776 = vmatmul.f32.gmra.mxu0 %v5665
      %v5777 = vpop.f32.mrf.mxu0
      %v5778 = vadd.f32 %v5569, %v5777
      %5779 = vmatmul.f32.gmra.mxu0 %v5668
      %v5780 = vpop.f32.mrf.mxu0
      %v5781 = vadd.f32 %v5572, %v5780
      %5782 = vmatmul.f32.gmra.mxu0 %v5671
      %v5783 = vpop.f32.mrf.mxu0
      %v5784 = vadd.f32 %v5575, %v5783
      %5785 = vmatmul.f32.gmra.mxu0 %v5674
      %v5786 = vpop.f32.mrf.mxu0
      %v5787 = vadd.f32 %v5578, %v5786
      %5788 = vmatmul.f32.gmra.mxu0 %v5677
      %v5789 = vpop.f32.mrf.mxu0
      %v5790 = vadd.f32 %v5581, %v5789
      %5791 = vmatmul.f32.gmra.mxu0 %v5680
      %v5792 = vpop.f32.mrf.mxu0
      %v5793 = vadd.f32 %v5584, %v5792
      %5794 = vmatmul.f32.gmra.mxu0 %v5683
      %v5795 = vpop.f32.mrf.mxu0
      %v5796 = vadd.f32 %v5587, %v5795
      %5797 = vmatmul.f32.gmra.mxu0 %v5686
      %v5798 = vpop.f32.mrf.mxu0
      %v5799 = vadd.f32 %v5590, %v5798
      %5800 = vmatmul.f32.gmra.mxu0 %v5689
      %v5801 = vpop.f32.mrf.mxu0
      %v5802 = vadd.f32 %v5593, %v5801
      %5803 = vmatmul.f32.gmra.mxu0 %v5692
      %v5804 = vpop.f32.mrf.mxu0
      %v5805 = vadd.f32 %v5596, %v5804
      %5806 = vmatmul.f32.gmra.mxu0 %v5695
      %v5807 = vpop.f32.mrf.mxu0
      %v5808 = vadd.f32 %v5599, %v5807
      %5809 = vmatmul.f32.gmra.mxu0 %v5698
      %v5810 = vpop.f32.mrf.mxu0
      %v5811 = vadd.f32 %v5602, %v5810
      %5812 = vmatmul.f32.gmra.mxu0 %v5701
      %v5813 = vpop.f32.mrf.mxu0
      %v5814 = vadd.f32 %v5605, %v5813
      %5815 = vmatmul.f32.gmra.mxu0 %v5704
      %v5816 = vpop.f32.mrf.mxu0
      %v5817 = vadd.f32 %v5608, %v5816
      %5818 = vmatmul.f32.gmra.mxu0 %v5707
      %v5819 = vpop.f32.mrf.mxu0
      %v5820 = vadd.f32 %v5611, %v5819
      %5821 = vmatmul.f32.gmra.mxu0 %v5710
      %v5822 = vpop.f32.mrf.mxu0
      %v5823 = vadd.f32 %v5614, %v5822
      %5824 = vmatmul.f32.gmra.mxu0 %v5713
      %v5825 = vpop.f32.mrf.mxu0
      %v5826 = vadd.f32 %v5617, %v5825
      %5827 = vmatmul.f32.gmra.mxu0 %v5716
      %v5828 = vpop.f32.mrf.mxu0
      %v5829 = vadd.f32 %v5620, %v5828
      %5830 = vmatmul.f32.gmra.mxu0 %v5719
      %v5831 = vpop.f32.mrf.mxu0
      %v5832 = vadd.f32 %v5623, %v5831
      %5833 = vmatmul.f32.gmra.mxu0 %v5722
      %v5834 = vpop.f32.mrf.mxu0
      %v5835 = vadd.f32 %v5626, %v5834
      %5836 = vmatmul.f32.gmra.mxu0 %v5725
      %v5837 = vpop.f32.mrf.mxu0
      %v5838 = vadd.f32 %v5629, %v5837
      %5839 = vmatmul.f32.gmra.mxu0 %v5728
      %v5840 = vpop.f32.mrf.mxu0
      %v5841 = vadd.f32 %v5632, %v5840
      %5842 = vmatmul.f32.gmra.mxu0 %v5731
      %v5843 = vpop.f32.mrf.mxu0
      %v5844 = vadd.f32 %v5635, %v5843
      %5845 = vmatmul.f32.gmra.mxu0 %v5734
      %v5846 = vpop.f32.mrf.mxu0
      %v5847 = vadd.f32 %v5638, %v5846
      %5848 = vmatmul.f32.gmra.mxu0 %v5737
      %v5849 = vpop.f32.mrf.mxu0
      %v5850 = vadd.f32 %v5641, %v5849
      %5851 = vmatmul.f32.gmra.mxu0 %v5740
      %v5852 = vpop.f32.mrf.mxu0
      %v5853 = vadd.f32 %v5644, %v5852
      %5854 = vmatmul.f32.gmra.mxu0 %v5743
      %v5855 = vpop.f32.mrf.mxu0
      %v5856 = vadd.f32 %v5647, %v5855
      %5857 = vmatmul.f32.gmra.mxu0 %v5746
      %v5858 = vpop.f32.mrf.mxu0
      %v5859 = vadd.f32 %v5650, %v5858
      %5860 = vmatmul.f32.gmra.mxu0 %v5749
      %v5861 = vpop.f32.mrf.mxu0
      %v5862 = vadd.f32 %v5653, %v5861
      %5863 = vdwg.mxu0
      %v5864 = vld [vmem:[#allocation3 + $0x2] sm:$0xff]
      %v5865 = vld [vmem:[#allocation3 + $0xa] sm:$0xff]
      %v5866 = vld [vmem:[#allocation3 + $0x1a] sm:$0xff]
      %v5867 = vld [vmem:[#allocation3 + $0x22] sm:$0xff]
      %v5868 = vld [vmem:[#allocation3 + $0x32] sm:$0xff]
      %v5869 = vld [vmem:[#allocation3 + $0x3a] sm:$0xff]
      %v5870 = vld [vmem:[#allocation3 + $0x4a] sm:$0xff]
      %v5871 = vld [vmem:[#allocation3 + $0x52] sm:$0xff]
      %v5872 = vld [vmem:[#allocation3 + $0x62] sm:$0xff]
      %v5873 = vld [vmem:[#allocation3 + $0x6a] sm:$0xff]
      %v5874 = vld [vmem:[#allocation3 + $0x7a] sm:$0xff]
      %v5875 = vld [vmem:[#allocation3 + $0x82] sm:$0xff]
      %v5876 = vld [vmem:[#allocation3 + $0x92] sm:$0xff]
      %v5877 = vld [vmem:[#allocation3 + $0x9a] sm:$0xff]
      %v5878 = vld [vmem:[#allocation3 + $0xaa] sm:$0xff]
      %v5879 = vld [vmem:[#allocation3 + $0xb2] sm:$0xff]
      %v5880 = vld [vmem:[#allocation3 + $0xc2] sm:$0xff]
      %v5881 = vld [vmem:[#allocation3 + $0xca] sm:$0xff]
      %v5882 = vld [vmem:[#allocation3 + $0xda] sm:$0xff]
      %v5883 = vld [vmem:[#allocation3 + $0xe2] sm:$0xff]
      %v5884 = vld [vmem:[#allocation3 + $0xf2] sm:$0xff]
      %v5885 = vld [vmem:[#allocation3 + $0xfa] sm:$0xff]
      %v5886 = vld [vmem:[#allocation3 + $0x10a] sm:$0xff]
      %v5887 = vld [vmem:[#allocation3 + $0x112] sm:$0xff]
      %v5888 = vld [vmem:[#allocation3 + $0x122] sm:$0xff]
      %v5889 = vld [vmem:[#allocation3 + $0x12a] sm:$0xff]
      %v5890 = vld [vmem:[#allocation3 + $0x13a] sm:$0xff]
      %v5891 = vld [vmem:[#allocation3 + $0x142] sm:$0xff]
      %v5892 = vld [vmem:[#allocation3 + $0x152] sm:$0xff]
      %v5893 = vld [vmem:[#allocation3 + $0x15a] sm:$0xff]
      %v5894 = vld [vmem:[#allocation3 + $0x16a] sm:$0xff]
      %v5895 = vld [vmem:[#allocation3 + $0x172] sm:$0xff]
      %s5896 = scalar_lea.vmem %s12, 64
      %v5897 = vld [vmem:[%s5896] sm:$0xff]
      %v5898 = vld [vmem:[%s5896 + $0x8] sm:$0xff]
      %v5899 = vld [vmem:[%s5896 + $0x10] sm:$0xff]
      %v5900 = vld [vmem:[%s5896 + $0x18] sm:$0xff]
      %v5902 = vsel %vm4184, %v5864, 0
      %v5905 = vsel %vm4184, %v5865, 0
      %v5908 = vsel %vm4184, %v5866, 0
      %v5911 = vsel %vm4184, %v5867, 0
      %v5914 = vsel %vm4184, %v5868, 0
      %v5917 = vsel %vm4184, %v5869, 0
      %v5920 = vsel %vm4184, %v5870, 0
      %v5923 = vsel %vm4184, %v5871, 0
      %v5926 = vsel %vm4184, %v5872, 0
      %v5929 = vsel %vm4184, %v5873, 0
      %v5932 = vsel %vm4184, %v5874, 0
      %v5935 = vsel %vm4184, %v5875, 0
      %v5938 = vsel %vm4184, %v5876, 0
      %v5941 = vsel %vm4184, %v5877, 0
      %v5944 = vsel %vm4184, %v5878, 0
      %v5947 = vsel %vm4184, %v5879, 0
      %v5950 = vsel %vm4184, %v5880, 0
      %v5953 = vsel %vm4184, %v5881, 0
      %v5956 = vsel %vm4184, %v5882, 0
      %v5959 = vsel %vm4184, %v5883, 0
      %v5962 = vsel %vm4184, %v5884, 0
      %v5965 = vsel %vm4184, %v5885, 0
      %v5968 = vsel %vm4184, %v5886, 0
      %v5971 = vsel %vm4184, %v5887, 0
      %v5974 = vsel %vm4184, %v5888, 0
      %v5977 = vsel %vm4184, %v5889, 0
      %v5980 = vsel %vm4184, %v5890, 0
      %v5983 = vsel %vm4184, %v5891, 0
      %v5986 = vsel %vm4184, %v5892, 0
      %v5989 = vsel %vm4184, %v5893, 0
      %v5992 = vsel %vm4184, %v5894, 0
      %v5995 = vsel %vm4184, %v5895, 0
      %5997 = vmatpush.msra.mxu0 0.0
      %5998 = vmatpush.msra.mxu0 0.0
      %5999 = vmatpush.msra.mxu0 0.0
      %6000 = vmatpush.msra.mxu0 0.0
      %6001 = vmatpush.msra.mxu0 0.0
      %6002 = vmatpush.msra.mxu0 0.0
      %6003 = vmatpush.msra.mxu0 0.0
      %6004 = vmatpush.msra.mxu0 0.0
      %6005 = vmatpush.msra.mxu0 0.0
      %6006 = vmatpush.msra.mxu0 0.0
      %6007 = vmatpush.msra.mxu0 0.0
      %6008 = vmatpush.msra.mxu0 0.0
      %6009 = vmatpush.msra.mxu0 %v5900
      %6010 = vmatpush.msra.mxu0 %v5899
      %6011 = vmatpush.msra.mxu0 %v5898
      %6012 = vmatpush.msra.mxu0 %v5897
      %6013 = vmatmul.f32.gmra.mxu0 %v5902
      %v6014 = vpop.f32.mrf.mxu0
      %v6015 = vadd.f32 0.0, %v6014
      %6016 = vmatmul.f32.gmra.mxu0 %v5905
      %v6017 = vpop.f32.mrf.mxu0
      %v6018 = vadd.f32 0.0, %v6017
      %6019 = vmatmul.f32.gmra.mxu0 %v5908
      %v6020 = vpop.f32.mrf.mxu0
      %v6021 = vadd.f32 0.0, %v6020
      %6022 = vmatmul.f32.gmra.mxu0 %v5911
      %v6023 = vpop.f32.mrf.mxu0
      %v6024 = vadd.f32 0.0, %v6023
      %6025 = vmatmul.f32.gmra.mxu0 %v5914
      %v6026 = vpop.f32.mrf.mxu0
      %v6027 = vadd.f32 0.0, %v6026
      %6028 = vmatmul.f32.gmra.mxu0 %v5917
      %v6029 = vpop.f32.mrf.mxu0
      %v6030 = vadd.f32 0.0, %v6029
      %6031 = vmatmul.f32.gmra.mxu0 %v5920
      %v6032 = vpop.f32.mrf.mxu0
      %v6033 = vadd.f32 0.0, %v6032
      %6034 = vmatmul.f32.gmra.mxu0 %v5923
      %v6035 = vpop.f32.mrf.mxu0
      %v6036 = vadd.f32 0.0, %v6035
      %6037 = vmatmul.f32.gmra.mxu0 %v5926
      %v6038 = vpop.f32.mrf.mxu0
      %v6039 = vadd.f32 0.0, %v6038
      %6040 = vmatmul.f32.gmra.mxu0 %v5929
      %v6041 = vpop.f32.mrf.mxu0
      %v6042 = vadd.f32 0.0, %v6041
      %6043 = vmatmul.f32.gmra.mxu0 %v5932
      %v6044 = vpop.f32.mrf.mxu0
      %v6045 = vadd.f32 0.0, %v6044
      %6046 = vmatmul.f32.gmra.mxu0 %v5935
      %v6047 = vpop.f32.mrf.mxu0
      %v6048 = vadd.f32 0.0, %v6047
      %6049 = vmatmul.f32.gmra.mxu0 %v5938
      %v6050 = vpop.f32.mrf.mxu0
      %v6051 = vadd.f32 0.0, %v6050
      %6052 = vmatmul.f32.gmra.mxu0 %v5941
      %v6053 = vpop.f32.mrf.mxu0
      %v6054 = vadd.f32 0.0, %v6053
      %6055 = vmatmul.f32.gmra.mxu0 %v5944
      %v6056 = vpop.f32.mrf.mxu0
      %v6057 = vadd.f32 0.0, %v6056
      %6058 = vmatmul.f32.gmra.mxu0 %v5947
      %v6059 = vpop.f32.mrf.mxu0
      %v6060 = vadd.f32 0.0, %v6059
      %6061 = vmatmul.f32.gmra.mxu0 %v5950
      %v6062 = vpop.f32.mrf.mxu0
      %v6063 = vadd.f32 0.0, %v6062
      %6064 = vmatmul.f32.gmra.mxu0 %v5953
      %v6065 = vpop.f32.mrf.mxu0
      %v6066 = vadd.f32 0.0, %v6065
      %6067 = vmatmul.f32.gmra.mxu0 %v5956
      %v6068 = vpop.f32.mrf.mxu0
      %v6069 = vadd.f32 0.0, %v6068
      %6070 = vmatmul.f32.gmra.mxu0 %v5959
      %v6071 = vpop.f32.mrf.mxu0
      %v6072 = vadd.f32 0.0, %v6071
      %6073 = vmatmul.f32.gmra.mxu0 %v5962
      %v6074 = vpop.f32.mrf.mxu0
      %v6075 = vadd.f32 0.0, %v6074
      %6076 = vmatmul.f32.gmra.mxu0 %v5965
      %v6077 = vpop.f32.mrf.mxu0
      %v6078 = vadd.f32 0.0, %v6077
      %6079 = vmatmul.f32.gmra.mxu0 %v5968
      %v6080 = vpop.f32.mrf.mxu0
      %v6081 = vadd.f32 0.0, %v6080
      %6082 = vmatmul.f32.gmra.mxu0 %v5971
      %v6083 = vpop.f32.mrf.mxu0
      %v6084 = vadd.f32 0.0, %v6083
      %6085 = vmatmul.f32.gmra.mxu0 %v5974
      %v6086 = vpop.f32.mrf.mxu0
      %v6087 = vadd.f32 0.0, %v6086
      %6088 = vmatmul.f32.gmra.mxu0 %v5977
      %v6089 = vpop.f32.mrf.mxu0
      %v6090 = vadd.f32 0.0, %v6089
      %6091 = vmatmul.f32.gmra.mxu0 %v5980
      %v6092 = vpop.f32.mrf.mxu0
      %v6093 = vadd.f32 0.0, %v6092
      %6094 = vmatmul.f32.gmra.mxu0 %v5983
      %v6095 = vpop.f32.mrf.mxu0
      %v6096 = vadd.f32 0.0, %v6095
      %6097 = vmatmul.f32.gmra.mxu0 %v5986
      %v6098 = vpop.f32.mrf.mxu0
      %v6099 = vadd.f32 0.0, %v6098
      %6100 = vmatmul.f32.gmra.mxu0 %v5989
      %v6101 = vpop.f32.mrf.mxu0
      %v6102 = vadd.f32 0.0, %v6101
      %6103 = vmatmul.f32.gmra.mxu0 %v5992
      %v6104 = vpop.f32.mrf.mxu0
      %v6105 = vadd.f32 0.0, %v6104
      %6106 = vmatmul.f32.gmra.mxu0 %v5995
      %v6107 = vpop.f32.mrf.mxu0
      %v6108 = vadd.f32 0.0, %v6107
      %6109 = vdwg.mxu0
      %v6110 = vadd.f32 %v5769, %v6015
      %v6111 = vadd.f32 %v5772, %v6018
      %v6112 = vadd.f32 %v5775, %v6021
      %v6113 = vadd.f32 %v5778, %v6024
      %v6114 = vadd.f32 %v5781, %v6027
      %v6115 = vadd.f32 %v5784, %v6030
      %v6116 = vadd.f32 %v5787, %v6033
      %v6117 = vadd.f32 %v5790, %v6036
      %v6118 = vadd.f32 %v5793, %v6039
      %v6119 = vadd.f32 %v5796, %v6042
      %v6120 = vadd.f32 %v5799, %v6045
      %v6121 = vadd.f32 %v5802, %v6048
      %v6122 = vadd.f32 %v5805, %v6051
      %v6123 = vadd.f32 %v5808, %v6054
      %v6124 = vadd.f32 %v5811, %v6057
      %v6125 = vadd.f32 %v5814, %v6060
      %v6126 = vadd.f32 %v5817, %v6063
      %v6127 = vadd.f32 %v5820, %v6066
      %v6128 = vadd.f32 %v5823, %v6069
      %v6129 = vadd.f32 %v5826, %v6072
      %v6130 = vadd.f32 %v5829, %v6075
      %v6131 = vadd.f32 %v5832, %v6078
      %v6132 = vadd.f32 %v5835, %v6081
      %v6133 = vadd.f32 %v5838, %v6084
      %v6134 = vadd.f32 %v5841, %v6087
      %v6135 = vadd.f32 %v5844, %v6090
      %v6136 = vadd.f32 %v5847, %v6093
      %v6137 = vadd.f32 %v5850, %v6096
      %v6138 = vadd.f32 %v5853, %v6099
      %v6139 = vadd.f32 %v5856, %v6102
      %v6140 = vadd.f32 %v5859, %v6105
      %v6141 = vadd.f32 %v5862, %v6108
      %v6142 = vld [vmem:[%s5340] sm:$0xff]
      %v6143 = vld [vmem:[%s5340 + $0x8] sm:$0xff]
      %v6144 = vld [vmem:[%s5340 + $0x18] sm:$0xff]
      %v6145 = vld [vmem:[%s5340 + $0x20] sm:$0xff]
      %v6146 = vld [vmem:[%s5340 + $0x30] sm:$0xff]
      %v6147 = vld [vmem:[%s5340 + $0x38] sm:$0xff]
      %v6148 = vld [vmem:[%s5340 + $0x48] sm:$0xff]
      %v6149 = vld [vmem:[%s5340 + $0x50] sm:$0xff]
      %v6150 = vld [vmem:[%s5340 + $0x60] sm:$0xff]
      %v6151 = vld [vmem:[%s5340 + $0x68] sm:$0xff]
      %v6152 = vld [vmem:[%s5340 + $0x78] sm:$0xff]
      %v6153 = vld [vmem:[%s5340 + $0x80] sm:$0xff]
      %v6154 = vld [vmem:[%s5340 + $0x90] sm:$0xff]
      %v6155 = vld [vmem:[%s5340 + $0x98] sm:$0xff]
      %v6156 = vld [vmem:[%s5340 + $0xa8] sm:$0xff]
      %v6157 = vld [vmem:[%s5340 + $0xb0] sm:$0xff]
      %v6158 = vld [vmem:[%s5340 + $0xc0] sm:$0xff]
      %v6159 = vld [vmem:[%s5340 + $0xc8] sm:$0xff]
      %v6160 = vld [vmem:[%s5340 + $0xd8] sm:$0xff]
      %v6161 = vld [vmem:[%s5340 + $0xe0] sm:$0xff]
      %v6162 = vld [vmem:[%s5340 + $0xf0] sm:$0xff]
      %v6163 = vld [vmem:[%s5340 + $0xf8] sm:$0xff]
      %v6164 = vld [vmem:[%s5340 + $0x108] sm:$0xff]
      %v6165 = vld [vmem:[%s5340 + $0x110] sm:$0xff]
      %v6166 = vld [vmem:[%s5340 + $0x120] sm:$0xff]
      %v6167 = vld [vmem:[%s5340 + $0x128] sm:$0xff]
      %v6168 = vld [vmem:[%s5340 + $0x138] sm:$0xff]
      %v6169 = vld [vmem:[%s5340 + $0x140] sm:$0xff]
      %v6170 = vld [vmem:[%s5340 + $0x150] sm:$0xff]
      %v6171 = vld [vmem:[%s5340 + $0x158] sm:$0xff]
      %v6172 = vld [vmem:[%s5340 + $0x168] sm:$0xff]
      %v6173 = vld [vmem:[%s5340 + $0x170] sm:$0xff]
      %s6174 = scalar_lea.vmem %s12, 96
      %v6175 = vld [vmem:[%s6174] sm:$0xff]
      %v6176 = vld [vmem:[%s6174 + $0x8] sm:$0xff]
      %v6177 = vld [vmem:[%s6174 + $0x10] sm:$0xff]
      %v6178 = vld [vmem:[%s6174 + $0x18] sm:$0xff]
      %v6180 = vsel %vm4184, %v6142, 0
      %v6183 = vsel %vm4184, %v6143, 0
      %v6186 = vsel %vm4184, %v6144, 0
      %v6189 = vsel %vm4184, %v6145, 0
      %v6192 = vsel %vm4184, %v6146, 0
      %v6195 = vsel %vm4184, %v6147, 0
      %v6198 = vsel %vm4184, %v6148, 0
      %v6201 = vsel %vm4184, %v6149, 0
      %v6204 = vsel %vm4184, %v6150, 0
      %v6207 = vsel %vm4184, %v6151, 0
      %v6210 = vsel %vm4184, %v6152, 0
      %v6213 = vsel %vm4184, %v6153, 0
      %v6216 = vsel %vm4184, %v6154, 0
      %v6219 = vsel %vm4184, %v6155, 0
      %v6222 = vsel %vm4184, %v6156, 0
      %v6225 = vsel %vm4184, %v6157, 0
      %v6228 = vsel %vm4184, %v6158, 0
      %v6231 = vsel %vm4184, %v6159, 0
      %v6234 = vsel %vm4184, %v6160, 0
      %v6237 = vsel %vm4184, %v6161, 0
      %v6240 = vsel %vm4184, %v6162, 0
      %v6243 = vsel %vm4184, %v6163, 0
      %v6246 = vsel %vm4184, %v6164, 0
      %v6249 = vsel %vm4184, %v6165, 0
      %v6252 = vsel %vm4184, %v6166, 0
      %v6255 = vsel %vm4184, %v6167, 0
      %v6258 = vsel %vm4184, %v6168, 0
      %v6261 = vsel %vm4184, %v6169, 0
      %v6264 = vsel %vm4184, %v6170, 0
      %v6267 = vsel %vm4184, %v6171, 0
      %v6270 = vsel %vm4184, %v6172, 0
      %v6273 = vsel %vm4184, %v6173, 0
      %6275 = vmatpush.msra.mxu0 0.0
      %6276 = vmatpush.msra.mxu0 0.0
      %6277 = vmatpush.msra.mxu0 0.0
      %6278 = vmatpush.msra.mxu0 0.0
      %6279 = vmatpush.msra.mxu0 0.0
      %6280 = vmatpush.msra.mxu0 0.0
      %6281 = vmatpush.msra.mxu0 0.0
      %6282 = vmatpush.msra.mxu0 0.0
      %6283 = vmatpush.msra.mxu0 0.0
      %6284 = vmatpush.msra.mxu0 0.0
      %6285 = vmatpush.msra.mxu0 0.0
      %6286 = vmatpush.msra.mxu0 0.0
      %6287 = vmatpush.msra.mxu0 %v6178
      %6288 = vmatpush.msra.mxu0 %v6177
      %6289 = vmatpush.msra.mxu0 %v6176
      %6290 = vmatpush.msra.mxu0 %v6175
      %6291 = vmatmul.f32.gmra.mxu0 %v6180
      %v6292 = vpop.f32.mrf.mxu0
      %v6293 = vadd.f32 0.0, %v6292
      %6294 = vmatmul.f32.gmra.mxu0 %v6183
      %v6295 = vpop.f32.mrf.mxu0
      %v6296 = vadd.f32 0.0, %v6295
      %6297 = vmatmul.f32.gmra.mxu0 %v6186
      %v6298 = vpop.f32.mrf.mxu0
      %v6299 = vadd.f32 0.0, %v6298
      %6300 = vmatmul.f32.gmra.mxu0 %v6189
      %v6301 = vpop.f32.mrf.mxu0
      %v6302 = vadd.f32 0.0, %v6301
      %6303 = vmatmul.f32.gmra.mxu0 %v6192
      %v6304 = vpop.f32.mrf.mxu0
      %v6305 = vadd.f32 0.0, %v6304
      %6306 = vmatmul.f32.gmra.mxu0 %v6195
      %v6307 = vpop.f32.mrf.mxu0
      %v6308 = vadd.f32 0.0, %v6307
      %6309 = vmatmul.f32.gmra.mxu0 %v6198
      %v6310 = vpop.f32.mrf.mxu0
      %v6311 = vadd.f32 0.0, %v6310
      %6312 = vmatmul.f32.gmra.mxu0 %v6201
      %v6313 = vpop.f32.mrf.mxu0
      %v6314 = vadd.f32 0.0, %v6313
      %6315 = vmatmul.f32.gmra.mxu0 %v6204
      %v6316 = vpop.f32.mrf.mxu0
      %v6317 = vadd.f32 0.0, %v6316
      %6318 = vmatmul.f32.gmra.mxu0 %v6207
      %v6319 = vpop.f32.mrf.mxu0
      %v6320 = vadd.f32 0.0, %v6319
      %6321 = vmatmul.f32.gmra.mxu0 %v6210
      %v6322 = vpop.f32.mrf.mxu0
      %v6323 = vadd.f32 0.0, %v6322
      %6324 = vmatmul.f32.gmra.mxu0 %v6213
      %v6325 = vpop.f32.mrf.mxu0
      %v6326 = vadd.f32 0.0, %v6325
      %6327 = vmatmul.f32.gmra.mxu0 %v6216
      %v6328 = vpop.f32.mrf.mxu0
      %v6329 = vadd.f32 0.0, %v6328
      %6330 = vmatmul.f32.gmra.mxu0 %v6219
      %v6331 = vpop.f32.mrf.mxu0
      %v6332 = vadd.f32 0.0, %v6331
      %6333 = vmatmul.f32.gmra.mxu0 %v6222
      %v6334 = vpop.f32.mrf.mxu0
      %v6335 = vadd.f32 0.0, %v6334
      %6336 = vmatmul.f32.gmra.mxu0 %v6225
      %v6337 = vpop.f32.mrf.mxu0
      %v6338 = vadd.f32 0.0, %v6337
      %6339 = vmatmul.f32.gmra.mxu0 %v6228
      %v6340 = vpop.f32.mrf.mxu0
      %v6341 = vadd.f32 0.0, %v6340
      %6342 = vmatmul.f32.gmra.mxu0 %v6231
      %v6343 = vpop.f32.mrf.mxu0
      %v6344 = vadd.f32 0.0, %v6343
      %6345 = vmatmul.f32.gmra.mxu0 %v6234
      %v6346 = vpop.f32.mrf.mxu0
      %v6347 = vadd.f32 0.0, %v6346
      %6348 = vmatmul.f32.gmra.mxu0 %v6237
      %v6349 = vpop.f32.mrf.mxu0
      %v6350 = vadd.f32 0.0, %v6349
      %6351 = vmatmul.f32.gmra.mxu0 %v6240
      %v6352 = vpop.f32.mrf.mxu0
      %v6353 = vadd.f32 0.0, %v6352
      %6354 = vmatmul.f32.gmra.mxu0 %v6243
      %v6355 = vpop.f32.mrf.mxu0
      %v6356 = vadd.f32 0.0, %v6355
      %6357 = vmatmul.f32.gmra.mxu0 %v6246
      %v6358 = vpop.f32.mrf.mxu0
      %v6359 = vadd.f32 0.0, %v6358
      %6360 = vmatmul.f32.gmra.mxu0 %v6249
      %v6361 = vpop.f32.mrf.mxu0
      %v6362 = vadd.f32 0.0, %v6361
      %6363 = vmatmul.f32.gmra.mxu0 %v6252
      %v6364 = vpop.f32.mrf.mxu0
      %v6365 = vadd.f32 0.0, %v6364
      %6366 = vmatmul.f32.gmra.mxu0 %v6255
      %v6367 = vpop.f32.mrf.mxu0
      %v6368 = vadd.f32 0.0, %v6367
      %6369 = vmatmul.f32.gmra.mxu0 %v6258
      %v6370 = vpop.f32.mrf.mxu0
      %v6371 = vadd.f32 0.0, %v6370
      %6372 = vmatmul.f32.gmra.mxu0 %v6261
      %v6373 = vpop.f32.mrf.mxu0
      %v6374 = vadd.f32 0.0, %v6373
      %6375 = vmatmul.f32.gmra.mxu0 %v6264
      %v6376 = vpop.f32.mrf.mxu0
      %v6377 = vadd.f32 0.0, %v6376
      %6378 = vmatmul.f32.gmra.mxu0 %v6267
      %v6379 = vpop.f32.mrf.mxu0
      %v6380 = vadd.f32 0.0, %v6379
      %6381 = vmatmul.f32.gmra.mxu0 %v6270
      %v6382 = vpop.f32.mrf.mxu0
      %v6383 = vadd.f32 0.0, %v6382
      %6384 = vmatmul.f32.gmra.mxu0 %v6273
      %v6385 = vpop.f32.mrf.mxu0
      %v6386 = vadd.f32 0.0, %v6385
      %6387 = vdwg.mxu0
      %v6388 = vadd.f32 %v6110, %v6293
      %v6389 = vadd.f32 %v6111, %v6296
      %v6390 = vadd.f32 %v6112, %v6299
      %v6391 = vadd.f32 %v6113, %v6302
      %v6392 = vadd.f32 %v6114, %v6305
      %v6393 = vadd.f32 %v6115, %v6308
      %v6394 = vadd.f32 %v6116, %v6311
      %v6395 = vadd.f32 %v6117, %v6314
      %v6396 = vadd.f32 %v6118, %v6317
      %v6397 = vadd.f32 %v6119, %v6320
      %v6398 = vadd.f32 %v6120, %v6323
      %v6399 = vadd.f32 %v6121, %v6326
      %v6400 = vadd.f32 %v6122, %v6329
      %v6401 = vadd.f32 %v6123, %v6332
      %v6402 = vadd.f32 %v6124, %v6335
      %v6403 = vadd.f32 %v6125, %v6338
      %v6404 = vadd.f32 %v6126, %v6341
      %v6405 = vadd.f32 %v6127, %v6344
      %v6406 = vadd.f32 %v6128, %v6347
      %v6407 = vadd.f32 %v6129, %v6350
      %v6408 = vadd.f32 %v6130, %v6353
      %v6409 = vadd.f32 %v6131, %v6356
      %v6410 = vadd.f32 %v6132, %v6359
      %v6411 = vadd.f32 %v6133, %v6362
      %v6412 = vadd.f32 %v6134, %v6365
      %v6413 = vadd.f32 %v6135, %v6368
      %v6414 = vadd.f32 %v6136, %v6371
      %v6415 = vadd.f32 %v6137, %v6374
      %v6416 = vadd.f32 %v6138, %v6377
      %v6417 = vadd.f32 %v6139, %v6380
      %v6418 = vadd.f32 %v6140, %v6383
      %v6419 = vadd.f32 %v6141, %v6386
      %v6420 = vld [vmem:[%s5340 + $0x1] sm:$0xff]
      %v6421 = vld [vmem:[%s5340 + $0x9] sm:$0xff]
      %v6422 = vld [vmem:[%s5340 + $0x19] sm:$0xff]
      %v6423 = vld [vmem:[%s5340 + $0x21] sm:$0xff]
      %v6424 = vld [vmem:[%s5340 + $0x31] sm:$0xff]
      %v6425 = vld [vmem:[%s5340 + $0x39] sm:$0xff]
      %v6426 = vld [vmem:[%s5340 + $0x49] sm:$0xff]
      %v6427 = vld [vmem:[%s5340 + $0x51] sm:$0xff]
      %v6428 = vld [vmem:[%s5340 + $0x61] sm:$0xff]
      %v6429 = vld [vmem:[%s5340 + $0x69] sm:$0xff]
      %v6430 = vld [vmem:[%s5340 + $0x79] sm:$0xff]
      %v6431 = vld [vmem:[%s5340 + $0x81] sm:$0xff]
      %v6432 = vld [vmem:[%s5340 + $0x91] sm:$0xff]
      %v6433 = vld [vmem:[%s5340 + $0x99] sm:$0xff]
      %v6434 = vld [vmem:[%s5340 + $0xa9] sm:$0xff]
      %v6435 = vld [vmem:[%s5340 + $0xb1] sm:$0xff]
      %v6436 = vld [vmem:[%s5340 + $0xc1] sm:$0xff]
      %v6437 = vld [vmem:[%s5340 + $0xc9] sm:$0xff]
      %v6438 = vld [vmem:[%s5340 + $0xd9] sm:$0xff]
      %v6439 = vld [vmem:[%s5340 + $0xe1] sm:$0xff]
      %v6440 = vld [vmem:[%s5340 + $0xf1] sm:$0xff]
      %v6441 = vld [vmem:[%s5340 + $0xf9] sm:$0xff]
      %v6442 = vld [vmem:[%s5340 + $0x109] sm:$0xff]
      %v6443 = vld [vmem:[%s5340 + $0x111] sm:$0xff]
      %v6444 = vld [vmem:[%s5340 + $0x121] sm:$0xff]
      %v6445 = vld [vmem:[%s5340 + $0x129] sm:$0xff]
      %v6446 = vld [vmem:[%s5340 + $0x139] sm:$0xff]
      %v6447 = vld [vmem:[%s5340 + $0x141] sm:$0xff]
      %v6448 = vld [vmem:[%s5340 + $0x151] sm:$0xff]
      %v6449 = vld [vmem:[%s5340 + $0x159] sm:$0xff]
      %v6450 = vld [vmem:[%s5340 + $0x169] sm:$0xff]
      %v6451 = vld [vmem:[%s5340 + $0x171] sm:$0xff]
      %s6452 = scalar_lea.vmem %s12, 128
      %v6453 = vld [vmem:[%s6452] sm:$0xff]
      %v6454 = vld [vmem:[%s6452 + $0x8] sm:$0xff]
      %v6455 = vld [vmem:[%s6452 + $0x10] sm:$0xff]
      %v6456 = vld [vmem:[%s6452 + $0x18] sm:$0xff]
      %v6458 = vsel %vm4184, %v6420, 0
      %v6461 = vsel %vm4184, %v6421, 0
      %v6464 = vsel %vm4184, %v6422, 0
      %v6467 = vsel %vm4184, %v6423, 0
      %v6470 = vsel %vm4184, %v6424, 0
      %v6473 = vsel %vm4184, %v6425, 0
      %v6476 = vsel %vm4184, %v6426, 0
      %v6479 = vsel %vm4184, %v6427, 0
      %v6482 = vsel %vm4184, %v6428, 0
      %v6485 = vsel %vm4184, %v6429, 0
      %v6488 = vsel %vm4184, %v6430, 0
      %v6491 = vsel %vm4184, %v6431, 0
      %v6494 = vsel %vm4184, %v6432, 0
      %v6497 = vsel %vm4184, %v6433, 0
      %v6500 = vsel %vm4184, %v6434, 0
      %v6503 = vsel %vm4184, %v6435, 0
      %v6506 = vsel %vm4184, %v6436, 0
      %v6509 = vsel %vm4184, %v6437, 0
      %v6512 = vsel %vm4184, %v6438, 0
      %v6515 = vsel %vm4184, %v6439, 0
      %v6518 = vsel %vm4184, %v6440, 0
      %v6521 = vsel %vm4184, %v6441, 0
      %v6524 = vsel %vm4184, %v6442, 0
      %v6527 = vsel %vm4184, %v6443, 0
      %v6530 = vsel %vm4184, %v6444, 0
      %v6533 = vsel %vm4184, %v6445, 0
      %v6536 = vsel %vm4184, %v6446, 0
      %v6539 = vsel %vm4184, %v6447, 0
      %v6542 = vsel %vm4184, %v6448, 0
      %v6545 = vsel %vm4184, %v6449, 0
      %v6548 = vsel %vm4184, %v6450, 0
      %v6551 = vsel %vm4184, %v6451, 0
      %6553 = vmatpush.msra.mxu0 0.0
      %6554 = vmatpush.msra.mxu0 0.0
      %6555 = vmatpush.msra.mxu0 0.0
      %6556 = vmatpush.msra.mxu0 0.0
      %6557 = vmatpush.msra.mxu0 0.0
      %6558 = vmatpush.msra.mxu0 0.0
      %6559 = vmatpush.msra.mxu0 0.0
      %6560 = vmatpush.msra.mxu0 0.0
      %6561 = vmatpush.msra.mxu0 0.0
      %6562 = vmatpush.msra.mxu0 0.0
      %6563 = vmatpush.msra.mxu0 0.0
      %6564 = vmatpush.msra.mxu0 0.0
      %6565 = vmatpush.msra.mxu0 %v6456
      %6566 = vmatpush.msra.mxu0 %v6455
      %6567 = vmatpush.msra.mxu0 %v6454
      %6568 = vmatpush.msra.mxu0 %v6453
      %6569 = vmatmul.f32.gmra.mxu0 %v6458
      %v6570 = vpop.f32.mrf.mxu0
      %v6571 = vadd.f32 0.0, %v6570
      %6572 = vmatmul.f32.gmra.mxu0 %v6461
      %v6573 = vpop.f32.mrf.mxu0
      %v6574 = vadd.f32 0.0, %v6573
      %6575 = vmatmul.f32.gmra.mxu0 %v6464
      %v6576 = vpop.f32.mrf.mxu0
      %v6577 = vadd.f32 0.0, %v6576
      %6578 = vmatmul.f32.gmra.mxu0 %v6467
      %v6579 = vpop.f32.mrf.mxu0
      %v6580 = vadd.f32 0.0, %v6579
      %6581 = vmatmul.f32.gmra.mxu0 %v6470
      %v6582 = vpop.f32.mrf.mxu0
      %v6583 = vadd.f32 0.0, %v6582
      %6584 = vmatmul.f32.gmra.mxu0 %v6473
      %v6585 = vpop.f32.mrf.mxu0
      %v6586 = vadd.f32 0.0, %v6585
      %6587 = vmatmul.f32.gmra.mxu0 %v6476
      %v6588 = vpop.f32.mrf.mxu0
      %v6589 = vadd.f32 0.0, %v6588
      %6590 = vmatmul.f32.gmra.mxu0 %v6479
      %v6591 = vpop.f32.mrf.mxu0
      %v6592 = vadd.f32 0.0, %v6591
      %6593 = vmatmul.f32.gmra.mxu0 %v6482
      %v6594 = vpop.f32.mrf.mxu0
      %v6595 = vadd.f32 0.0, %v6594
      %6596 = vmatmul.f32.gmra.mxu0 %v6485
      %v6597 = vpop.f32.mrf.mxu0
      %v6598 = vadd.f32 0.0, %v6597
      %6599 = vmatmul.f32.gmra.mxu0 %v6488
      %v6600 = vpop.f32.mrf.mxu0
      %v6601 = vadd.f32 0.0, %v6600
      %6602 = vmatmul.f32.gmra.mxu0 %v6491
      %v6603 = vpop.f32.mrf.mxu0
      %v6604 = vadd.f32 0.0, %v6603
      %6605 = vmatmul.f32.gmra.mxu0 %v6494
      %v6606 = vpop.f32.mrf.mxu0
      %v6607 = vadd.f32 0.0, %v6606
      %6608 = vmatmul.f32.gmra.mxu0 %v6497
      %v6609 = vpop.f32.mrf.mxu0
      %v6610 = vadd.f32 0.0, %v6609
      %6611 = vmatmul.f32.gmra.mxu0 %v6500
      %v6612 = vpop.f32.mrf.mxu0
      %v6613 = vadd.f32 0.0, %v6612
      %6614 = vmatmul.f32.gmra.mxu0 %v6503
      %v6615 = vpop.f32.mrf.mxu0
      %v6616 = vadd.f32 0.0, %v6615
      %6617 = vmatmul.f32.gmra.mxu0 %v6506
      %v6618 = vpop.f32.mrf.mxu0
      %v6619 = vadd.f32 0.0, %v6618
      %6620 = vmatmul.f32.gmra.mxu0 %v6509
      %v6621 = vpop.f32.mrf.mxu0
      %v6622 = vadd.f32 0.0, %v6621
      %6623 = vmatmul.f32.gmra.mxu0 %v6512
      %v6624 = vpop.f32.mrf.mxu0
      %v6625 = vadd.f32 0.0, %v6624
      %6626 = vmatmul.f32.gmra.mxu0 %v6515
      %v6627 = vpop.f32.mrf.mxu0
      %v6628 = vadd.f32 0.0, %v6627
      %6629 = vmatmul.f32.gmra.mxu0 %v6518
      %v6630 = vpop.f32.mrf.mxu0
      %v6631 = vadd.f32 0.0, %v6630
      %6632 = vmatmul.f32.gmra.mxu0 %v6521
      %v6633 = vpop.f32.mrf.mxu0
      %v6634 = vadd.f32 0.0, %v6633
      %6635 = vmatmul.f32.gmra.mxu0 %v6524
      %v6636 = vpop.f32.mrf.mxu0
      %v6637 = vadd.f32 0.0, %v6636
      %6638 = vmatmul.f32.gmra.mxu0 %v6527
      %v6639 = vpop.f32.mrf.mxu0
      %v6640 = vadd.f32 0.0, %v6639
      %6641 = vmatmul.f32.gmra.mxu0 %v6530
      %v6642 = vpop.f32.mrf.mxu0
      %v6643 = vadd.f32 0.0, %v6642
      %6644 = vmatmul.f32.gmra.mxu0 %v6533
      %v6645 = vpop.f32.mrf.mxu0
      %v6646 = vadd.f32 0.0, %v6645
      %6647 = vmatmul.f32.gmra.mxu0 %v6536
      %v6648 = vpop.f32.mrf.mxu0
      %v6649 = vadd.f32 0.0, %v6648
      %6650 = vmatmul.f32.gmra.mxu0 %v6539
      %v6651 = vpop.f32.mrf.mxu0
      %v6652 = vadd.f32 0.0, %v6651
      %6653 = vmatmul.f32.gmra.mxu0 %v6542
      %v6654 = vpop.f32.mrf.mxu0
      %v6655 = vadd.f32 0.0, %v6654
      %6656 = vmatmul.f32.gmra.mxu0 %v6545
      %v6657 = vpop.f32.mrf.mxu0
      %v6658 = vadd.f32 0.0, %v6657
      %6659 = vmatmul.f32.gmra.mxu0 %v6548
      %v6660 = vpop.f32.mrf.mxu0
      %v6661 = vadd.f32 0.0, %v6660
      %6662 = vmatmul.f32.gmra.mxu0 %v6551
      %v6663 = vpop.f32.mrf.mxu0
      %v6664 = vadd.f32 0.0, %v6663
      %6665 = vdwg.mxu0
      %v6666 = vadd.f32 %v6388, %v6571
      %v6667 = vadd.f32 %v6389, %v6574
      %v6668 = vadd.f32 %v6390, %v6577
      %v6669 = vadd.f32 %v6391, %v6580
      %v6670 = vadd.f32 %v6392, %v6583
      %v6671 = vadd.f32 %v6393, %v6586
      %v6672 = vadd.f32 %v6394, %v6589
      %v6673 = vadd.f32 %v6395, %v6592
      %v6674 = vadd.f32 %v6396, %v6595
      %v6675 = vadd.f32 %v6397, %v6598
      %v6676 = vadd.f32 %v6398, %v6601
      %v6677 = vadd.f32 %v6399, %v6604
      %v6678 = vadd.f32 %v6400, %v6607
      %v6679 = vadd.f32 %v6401, %v6610
      %v6680 = vadd.f32 %v6402, %v6613
      %v6681 = vadd.f32 %v6403, %v6616
      %v6682 = vadd.f32 %v6404, %v6619
      %v6683 = vadd.f32 %v6405, %v6622
      %v6684 = vadd.f32 %v6406, %v6625
      %v6685 = vadd.f32 %v6407, %v6628
      %v6686 = vadd.f32 %v6408, %v6631
      %v6687 = vadd.f32 %v6409, %v6634
      %v6688 = vadd.f32 %v6410, %v6637
      %v6689 = vadd.f32 %v6411, %v6640
      %v6690 = vadd.f32 %v6412, %v6643
      %v6691 = vadd.f32 %v6413, %v6646
      %v6692 = vadd.f32 %v6414, %v6649
      %v6693 = vadd.f32 %v6415, %v6652
      %v6694 = vadd.f32 %v6416, %v6655
      %v6695 = vadd.f32 %v6417, %v6658
      %v6696 = vadd.f32 %v6418, %v6661
      %v6697 = vadd.f32 %v6419, %v6664
      %v6698 = vld [vmem:[%s5340 + $0x2] sm:$0xff]
      %v6699 = vld [vmem:[%s5340 + $0xa] sm:$0xff]
      %v6700 = vld [vmem:[%s5340 + $0x1a] sm:$0xff]
      %v6701 = vld [vmem:[%s5340 + $0x22] sm:$0xff]
      %v6702 = vld [vmem:[%s5340 + $0x32] sm:$0xff]
      %v6703 = vld [vmem:[%s5340 + $0x3a] sm:$0xff]
      %v6704 = vld [vmem:[%s5340 + $0x4a] sm:$0xff]
      %v6705 = vld [vmem:[%s5340 + $0x52] sm:$0xff]
      %v6706 = vld [vmem:[%s5340 + $0x62] sm:$0xff]
      %v6707 = vld [vmem:[%s5340 + $0x6a] sm:$0xff]
      %v6708 = vld [vmem:[%s5340 + $0x7a] sm:$0xff]
      %v6709 = vld [vmem:[%s5340 + $0x82] sm:$0xff]
      %v6710 = vld [vmem:[%s5340 + $0x92] sm:$0xff]
      %v6711 = vld [vmem:[%s5340 + $0x9a] sm:$0xff]
      %v6712 = vld [vmem:[%s5340 + $0xaa] sm:$0xff]
      %v6713 = vld [vmem:[%s5340 + $0xb2] sm:$0xff]
      %v6714 = vld [vmem:[%s5340 + $0xc2] sm:$0xff]
      %v6715 = vld [vmem:[%s5340 + $0xca] sm:$0xff]
      %v6716 = vld [vmem:[%s5340 + $0xda] sm:$0xff]
      %v6717 = vld [vmem:[%s5340 + $0xe2] sm:$0xff]
      %v6718 = vld [vmem:[%s5340 + $0xf2] sm:$0xff]
      %v6719 = vld [vmem:[%s5340 + $0xfa] sm:$0xff]
      %v6720 = vld [vmem:[%s5340 + $0x10a] sm:$0xff]
      %v6721 = vld [vmem:[%s5340 + $0x112] sm:$0xff]
      %v6722 = vld [vmem:[%s5340 + $0x122] sm:$0xff]
      %v6723 = vld [vmem:[%s5340 + $0x12a] sm:$0xff]
      %v6724 = vld [vmem:[%s5340 + $0x13a] sm:$0xff]
      %v6725 = vld [vmem:[%s5340 + $0x142] sm:$0xff]
      %v6726 = vld [vmem:[%s5340 + $0x152] sm:$0xff]
      %v6727 = vld [vmem:[%s5340 + $0x15a] sm:$0xff]
      %v6728 = vld [vmem:[%s5340 + $0x16a] sm:$0xff]
      %v6729 = vld [vmem:[%s5340 + $0x172] sm:$0xff]
      %s6730 = scalar_lea.vmem %s12, 160
      %v6731 = vld [vmem:[%s6730] sm:$0xff]
      %v6732 = vld [vmem:[%s6730 + $0x8] sm:$0xff]
      %v6733 = vld [vmem:[%s6730 + $0x10] sm:$0xff]
      %v6734 = vld [vmem:[%s6730 + $0x18] sm:$0xff]
      %v6736 = vsel %vm4184, %v6698, 0
      %v6739 = vsel %vm4184, %v6699, 0
      %v6742 = vsel %vm4184, %v6700, 0
      %v6745 = vsel %vm4184, %v6701, 0
      %v6748 = vsel %vm4184, %v6702, 0
      %v6751 = vsel %vm4184, %v6703, 0
      %v6754 = vsel %vm4184, %v6704, 0
      %v6757 = vsel %vm4184, %v6705, 0
      %v6760 = vsel %vm4184, %v6706, 0
      %v6763 = vsel %vm4184, %v6707, 0
      %v6766 = vsel %vm4184, %v6708, 0
      %v6769 = vsel %vm4184, %v6709, 0
      %v6772 = vsel %vm4184, %v6710, 0
      %v6775 = vsel %vm4184, %v6711, 0
      %v6778 = vsel %vm4184, %v6712, 0
      %v6781 = vsel %vm4184, %v6713, 0
      %v6784 = vsel %vm4184, %v6714, 0
      %v6787 = vsel %vm4184, %v6715, 0
      %v6790 = vsel %vm4184, %v6716, 0
      %v6793 = vsel %vm4184, %v6717, 0
      %v6796 = vsel %vm4184, %v6718, 0
      %v6799 = vsel %vm4184, %v6719, 0
      %v6802 = vsel %vm4184, %v6720, 0
      %v6805 = vsel %vm4184, %v6721, 0
      %v6808 = vsel %vm4184, %v6722, 0
      %v6811 = vsel %vm4184, %v6723, 0
      %v6814 = vsel %vm4184, %v6724, 0
      %v6817 = vsel %vm4184, %v6725, 0
      %v6820 = vsel %vm4184, %v6726, 0
      %v6823 = vsel %vm4184, %v6727, 0
      %v6826 = vsel %vm4184, %v6728, 0
      %v6829 = vsel %vm4184, %v6729, 0
      %6831 = vmatpush.msra.mxu0 0.0
      %6832 = vmatpush.msra.mxu0 0.0
      %6833 = vmatpush.msra.mxu0 0.0
      %6834 = vmatpush.msra.mxu0 0.0
      %6835 = vmatpush.msra.mxu0 0.0
      %6836 = vmatpush.msra.mxu0 0.0
      %6837 = vmatpush.msra.mxu0 0.0
      %6838 = vmatpush.msra.mxu0 0.0
      %6839 = vmatpush.msra.mxu0 0.0
      %6840 = vmatpush.msra.mxu0 0.0
      %6841 = vmatpush.msra.mxu0 0.0
      %6842 = vmatpush.msra.mxu0 0.0
      %6843 = vmatpush.msra.mxu0 %v6734
      %6844 = vmatpush.msra.mxu0 %v6733
      %6845 = vmatpush.msra.mxu0 %v6732
      %6846 = vmatpush.msra.mxu0 %v6731
      %6847 = vmatmul.f32.gmra.mxu0 %v6736
      %v6848 = vpop.f32.mrf.mxu0
      %v6849 = vadd.f32 0.0, %v6848
      %6850 = vmatmul.f32.gmra.mxu0 %v6739
      %v6851 = vpop.f32.mrf.mxu0
      %v6852 = vadd.f32 0.0, %v6851
      %6853 = vmatmul.f32.gmra.mxu0 %v6742
      %v6854 = vpop.f32.mrf.mxu0
      %v6855 = vadd.f32 0.0, %v6854
      %6856 = vmatmul.f32.gmra.mxu0 %v6745
      %v6857 = vpop.f32.mrf.mxu0
      %v6858 = vadd.f32 0.0, %v6857
      %6859 = vmatmul.f32.gmra.mxu0 %v6748
      %v6860 = vpop.f32.mrf.mxu0
      %v6861 = vadd.f32 0.0, %v6860
      %6862 = vmatmul.f32.gmra.mxu0 %v6751
      %v6863 = vpop.f32.mrf.mxu0
      %v6864 = vadd.f32 0.0, %v6863
      %6865 = vmatmul.f32.gmra.mxu0 %v6754
      %v6866 = vpop.f32.mrf.mxu0
      %v6867 = vadd.f32 0.0, %v6866
      %6868 = vmatmul.f32.gmra.mxu0 %v6757
      %v6869 = vpop.f32.mrf.mxu0
      %v6870 = vadd.f32 0.0, %v6869
      %6871 = vmatmul.f32.gmra.mxu0 %v6760
      %v6872 = vpop.f32.mrf.mxu0
      %v6873 = vadd.f32 0.0, %v6872
      %6874 = vmatmul.f32.gmra.mxu0 %v6763
      %v6875 = vpop.f32.mrf.mxu0
      %v6876 = vadd.f32 0.0, %v6875
      %6877 = vmatmul.f32.gmra.mxu0 %v6766
      %v6878 = vpop.f32.mrf.mxu0
      %v6879 = vadd.f32 0.0, %v6878
      %6880 = vmatmul.f32.gmra.mxu0 %v6769
      %v6881 = vpop.f32.mrf.mxu0
      %v6882 = vadd.f32 0.0, %v6881
      %6883 = vmatmul.f32.gmra.mxu0 %v6772
      %v6884 = vpop.f32.mrf.mxu0
      %v6885 = vadd.f32 0.0, %v6884
      %6886 = vmatmul.f32.gmra.mxu0 %v6775
      %v6887 = vpop.f32.mrf.mxu0
      %v6888 = vadd.f32 0.0, %v6887
      %6889 = vmatmul.f32.gmra.mxu0 %v6778
      %v6890 = vpop.f32.mrf.mxu0
      %v6891 = vadd.f32 0.0, %v6890
      %6892 = vmatmul.f32.gmra.mxu0 %v6781
      %v6893 = vpop.f32.mrf.mxu0
      %v6894 = vadd.f32 0.0, %v6893
      %6895 = vmatmul.f32.gmra.mxu0 %v6784
      %v6896 = vpop.f32.mrf.mxu0
      %v6897 = vadd.f32 0.0, %v6896
      %6898 = vmatmul.f32.gmra.mxu0 %v6787
      %v6899 = vpop.f32.mrf.mxu0
      %v6900 = vadd.f32 0.0, %v6899
      %6901 = vmatmul.f32.gmra.mxu0 %v6790
      %v6902 = vpop.f32.mrf.mxu0
      %v6903 = vadd.f32 0.0, %v6902
      %6904 = vmatmul.f32.gmra.mxu0 %v6793
      %v6905 = vpop.f32.mrf.mxu0
      %v6906 = vadd.f32 0.0, %v6905
      %6907 = vmatmul.f32.gmra.mxu0 %v6796
      %v6908 = vpop.f32.mrf.mxu0
      %v6909 = vadd.f32 0.0, %v6908
      %6910 = vmatmul.f32.gmra.mxu0 %v6799
      %v6911 = vpop.f32.mrf.mxu0
      %v6912 = vadd.f32 0.0, %v6911
      %6913 = vmatmul.f32.gmra.mxu0 %v6802
      %v6914 = vpop.f32.mrf.mxu0
      %v6915 = vadd.f32 0.0, %v6914
      %6916 = vmatmul.f32.gmra.mxu0 %v6805
      %v6917 = vpop.f32.mrf.mxu0
      %v6918 = vadd.f32 0.0, %v6917
      %6919 = vmatmul.f32.gmra.mxu0 %v6808
      %v6920 = vpop.f32.mrf.mxu0
      %v6921 = vadd.f32 0.0, %v6920
      %6922 = vmatmul.f32.gmra.mxu0 %v6811
      %v6923 = vpop.f32.mrf.mxu0
      %v6924 = vadd.f32 0.0, %v6923
      %6925 = vmatmul.f32.gmra.mxu0 %v6814
      %v6926 = vpop.f32.mrf.mxu0
      %v6927 = vadd.f32 0.0, %v6926
      %6928 = vmatmul.f32.gmra.mxu0 %v6817
      %v6929 = vpop.f32.mrf.mxu0
      %v6930 = vadd.f32 0.0, %v6929
      %6931 = vmatmul.f32.gmra.mxu0 %v6820
      %v6932 = vpop.f32.mrf.mxu0
      %v6933 = vadd.f32 0.0, %v6932
      %6934 = vmatmul.f32.gmra.mxu0 %v6823
      %v6935 = vpop.f32.mrf.mxu0
      %v6936 = vadd.f32 0.0, %v6935
      %6937 = vmatmul.f32.gmra.mxu0 %v6826
      %v6938 = vpop.f32.mrf.mxu0
      %v6939 = vadd.f32 0.0, %v6938
      %6940 = vmatmul.f32.gmra.mxu0 %v6829
      %v6941 = vpop.f32.mrf.mxu0
      %v6942 = vadd.f32 0.0, %v6941
      %6943 = vdwg.mxu0
      %v6944 = vadd.f32 %v6666, %v6849
      %v6945 = vadd.f32 %v6667, %v6852
      %v6946 = vadd.f32 %v6668, %v6855
      %v6947 = vadd.f32 %v6669, %v6858
      %v6948 = vadd.f32 %v6670, %v6861
      %v6949 = vadd.f32 %v6671, %v6864
      %v6950 = vadd.f32 %v6672, %v6867
      %v6951 = vadd.f32 %v6673, %v6870
      %v6952 = vadd.f32 %v6674, %v6873
      %v6953 = vadd.f32 %v6675, %v6876
      %v6954 = vadd.f32 %v6676, %v6879
      %v6955 = vadd.f32 %v6677, %v6882
      %v6956 = vadd.f32 %v6678, %v6885
      %v6957 = vadd.f32 %v6679, %v6888
      %v6958 = vadd.f32 %v6680, %v6891
      %v6959 = vadd.f32 %v6681, %v6894
      %v6960 = vadd.f32 %v6682, %v6897
      %v6961 = vadd.f32 %v6683, %v6900
      %v6962 = vadd.f32 %v6684, %v6903
      %v6963 = vadd.f32 %v6685, %v6906
      %v6964 = vadd.f32 %v6686, %v6909
      %v6965 = vadd.f32 %v6687, %v6912
      %v6966 = vadd.f32 %v6688, %v6915
      %v6967 = vadd.f32 %v6689, %v6918
      %v6968 = vadd.f32 %v6690, %v6921
      %v6969 = vadd.f32 %v6691, %v6924
      %v6970 = vadd.f32 %v6692, %v6927
      %v6971 = vadd.f32 %v6693, %v6930
      %v6972 = vadd.f32 %v6694, %v6933
      %v6973 = vadd.f32 %v6695, %v6936
      %v6974 = vadd.f32 %v6696, %v6939
      %v6975 = vadd.f32 %v6697, %v6942
      %s6976 = scalar_lea.vmem [#allocation3], 48
      %v6977 = vld [vmem:[%s6976] sm:$0xff]
      %v6978 = vld [vmem:[%s6976 + $0x8] sm:$0xff]
      %v6979 = vld [vmem:[%s6976 + $0x18] sm:$0xff]
      %v6980 = vld [vmem:[%s6976 + $0x20] sm:$0xff]
      %v6981 = vld [vmem:[%s6976 + $0x30] sm:$0xff]
      %v6982 = vld [vmem:[%s6976 + $0x38] sm:$0xff]
      %v6983 = vld [vmem:[%s6976 + $0x48] sm:$0xff]
      %v6984 = vld [vmem:[%s6976 + $0x50] sm:$0xff]
      %v6985 = vld [vmem:[%s6976 + $0x60] sm:$0xff]
      %v6986 = vld [vmem:[%s6976 + $0x68] sm:$0xff]
      %v6987 = vld [vmem:[%s6976 + $0x78] sm:$0xff]
      %v6988 = vld [vmem:[%s6976 + $0x80] sm:$0xff]
      %v6989 = vld [vmem:[%s6976 + $0x90] sm:$0xff]
      %v6990 = vld [vmem:[%s6976 + $0x98] sm:$0xff]
      %v6991 = vld [vmem:[%s6976 + $0xa8] sm:$0xff]
      %v6992 = vld [vmem:[%s6976 + $0xb0] sm:$0xff]
      %v6993 = vld [vmem:[%s6976 + $0xc0] sm:$0xff]
      %v6994 = vld [vmem:[%s6976 + $0xc8] sm:$0xff]
      %v6995 = vld [vmem:[%s6976 + $0xd8] sm:$0xff]
      %v6996 = vld [vmem:[%s6976 + $0xe0] sm:$0xff]
      %v6997 = vld [vmem:[%s6976 + $0xf0] sm:$0xff]
      %v6998 = vld [vmem:[%s6976 + $0xf8] sm:$0xff]
      %v6999 = vld [vmem:[%s6976 + $0x108] sm:$0xff]
      %v7000 = vld [vmem:[%s6976 + $0x110] sm:$0xff]
      %v7001 = vld [vmem:[%s6976 + $0x120] sm:$0xff]
      %v7002 = vld [vmem:[%s6976 + $0x128] sm:$0xff]
      %v7003 = vld [vmem:[%s6976 + $0x138] sm:$0xff]
      %v7004 = vld [vmem:[%s6976 + $0x140] sm:$0xff]
      %v7005 = vld [vmem:[%s6976 + $0x150] sm:$0xff]
      %v7006 = vld [vmem:[%s6976 + $0x158] sm:$0xff]
      %v7007 = vld [vmem:[%s6976 + $0x168] sm:$0xff]
      %v7008 = vld [vmem:[%s6976 + $0x170] sm:$0xff]
      %s7009 = scalar_lea.vmem %s12, 192
      %v7010 = vld [vmem:[%s7009] sm:$0xff]
      %v7011 = vld [vmem:[%s7009 + $0x8] sm:$0xff]
      %v7012 = vld [vmem:[%s7009 + $0x10] sm:$0xff]
      %v7013 = vld [vmem:[%s7009 + $0x18] sm:$0xff]
      %v7015 = vsel %vm4184, %v6977, 0
      %v7018 = vsel %vm4184, %v6978, 0
      %v7021 = vsel %vm4184, %v6979, 0
      %v7024 = vsel %vm4184, %v6980, 0
      %v7027 = vsel %vm4184, %v6981, 0
      %v7030 = vsel %vm4184, %v6982, 0
      %v7033 = vsel %vm4184, %v6983, 0
      %v7036 = vsel %vm4184, %v6984, 0
      %v7039 = vsel %vm4184, %v6985, 0
      %v7042 = vsel %vm4184, %v6986, 0
      %v7045 = vsel %vm4184, %v6987, 0
      %v7048 = vsel %vm4184, %v6988, 0
      %v7051 = vsel %vm4184, %v6989, 0
      %v7054 = vsel %vm4184, %v6990, 0
      %v7057 = vsel %vm4184, %v6991, 0
      %v7060 = vsel %vm4184, %v6992, 0
      %v7063 = vsel %vm4184, %v6993, 0
      %v7066 = vsel %vm4184, %v6994, 0
      %v7069 = vsel %vm4184, %v6995, 0
      %v7072 = vsel %vm4184, %v6996, 0
      %v7075 = vsel %vm4184, %v6997, 0
      %v7078 = vsel %vm4184, %v6998, 0
      %v7081 = vsel %vm4184, %v6999, 0
      %v7084 = vsel %vm4184, %v7000, 0
      %v7087 = vsel %vm4184, %v7001, 0
      %v7090 = vsel %vm4184, %v7002, 0
      %v7093 = vsel %vm4184, %v7003, 0
      %v7096 = vsel %vm4184, %v7004, 0
      %v7099 = vsel %vm4184, %v7005, 0
      %v7102 = vsel %vm4184, %v7006, 0
      %v7105 = vsel %vm4184, %v7007, 0
      %v7108 = vsel %vm4184, %v7008, 0
      %7110 = vmatpush.msra.mxu0 0.0
      %7111 = vmatpush.msra.mxu0 0.0
      %7112 = vmatpush.msra.mxu0 0.0
      %7113 = vmatpush.msra.mxu0 0.0
      %7114 = vmatpush.msra.mxu0 0.0
      %7115 = vmatpush.msra.mxu0 0.0
      %7116 = vmatpush.msra.mxu0 0.0
      %7117 = vmatpush.msra.mxu0 0.0
      %7118 = vmatpush.msra.mxu0 0.0
      %7119 = vmatpush.msra.mxu0 0.0
      %7120 = vmatpush.msra.mxu0 0.0
      %7121 = vmatpush.msra.mxu0 0.0
      %7122 = vmatpush.msra.mxu0 %v7013
      %7123 = vmatpush.msra.mxu0 %v7012
      %7124 = vmatpush.msra.mxu0 %v7011
      %7125 = vmatpush.msra.mxu0 %v7010
      %7126 = vmatmul.f32.gmra.mxu0 %v7015
      %v7127 = vpop.f32.mrf.mxu0
      %v7128 = vadd.f32 0.0, %v7127
      %7129 = vmatmul.f32.gmra.mxu0 %v7018
      %v7130 = vpop.f32.mrf.mxu0
      %v7131 = vadd.f32 0.0, %v7130
      %7132 = vmatmul.f32.gmra.mxu0 %v7021
      %v7133 = vpop.f32.mrf.mxu0
      %v7134 = vadd.f32 0.0, %v7133
      %7135 = vmatmul.f32.gmra.mxu0 %v7024
      %v7136 = vpop.f32.mrf.mxu0
      %v7137 = vadd.f32 0.0, %v7136
      %7138 = vmatmul.f32.gmra.mxu0 %v7027
      %v7139 = vpop.f32.mrf.mxu0
      %v7140 = vadd.f32 0.0, %v7139
      %7141 = vmatmul.f32.gmra.mxu0 %v7030
      %v7142 = vpop.f32.mrf.mxu0
      %v7143 = vadd.f32 0.0, %v7142
      %7144 = vmatmul.f32.gmra.mxu0 %v7033
      %v7145 = vpop.f32.mrf.mxu0
      %v7146 = vadd.f32 0.0, %v7145
      %7147 = vmatmul.f32.gmra.mxu0 %v7036
      %v7148 = vpop.f32.mrf.mxu0
      %v7149 = vadd.f32 0.0, %v7148
      %7150 = vmatmul.f32.gmra.mxu0 %v7039
      %v7151 = vpop.f32.mrf.mxu0
      %v7152 = vadd.f32 0.0, %v7151
      %7153 = vmatmul.f32.gmra.mxu0 %v7042
      %v7154 = vpop.f32.mrf.mxu0
      %v7155 = vadd.f32 0.0, %v7154
      %7156 = vmatmul.f32.gmra.mxu0 %v7045
      %v7157 = vpop.f32.mrf.mxu0
      %v7158 = vadd.f32 0.0, %v7157
      %7159 = vmatmul.f32.gmra.mxu0 %v7048
      %v7160 = vpop.f32.mrf.mxu0
      %v7161 = vadd.f32 0.0, %v7160
      %7162 = vmatmul.f32.gmra.mxu0 %v7051
      %v7163 = vpop.f32.mrf.mxu0
      %v7164 = vadd.f32 0.0, %v7163
      %7165 = vmatmul.f32.gmra.mxu0 %v7054
      %v7166 = vpop.f32.mrf.mxu0
      %v7167 = vadd.f32 0.0, %v7166
      %7168 = vmatmul.f32.gmra.mxu0 %v7057
      %v7169 = vpop.f32.mrf.mxu0
      %v7170 = vadd.f32 0.0, %v7169
      %7171 = vmatmul.f32.gmra.mxu0 %v7060
      %v7172 = vpop.f32.mrf.mxu0
      %v7173 = vadd.f32 0.0, %v7172
      %7174 = vmatmul.f32.gmra.mxu0 %v7063
      %v7175 = vpop.f32.mrf.mxu0
      %v7176 = vadd.f32 0.0, %v7175
      %7177 = vmatmul.f32.gmra.mxu0 %v7066
      %v7178 = vpop.f32.mrf.mxu0
      %v7179 = vadd.f32 0.0, %v7178
      %7180 = vmatmul.f32.gmra.mxu0 %v7069
      %v7181 = vpop.f32.mrf.mxu0
      %v7182 = vadd.f32 0.0, %v7181
      %7183 = vmatmul.f32.gmra.mxu0 %v7072
      %v7184 = vpop.f32.mrf.mxu0
      %v7185 = vadd.f32 0.0, %v7184
      %7186 = vmatmul.f32.gmra.mxu0 %v7075
      %v7187 = vpop.f32.mrf.mxu0
      %v7188 = vadd.f32 0.0, %v7187
      %7189 = vmatmul.f32.gmra.mxu0 %v7078
      %v7190 = vpop.f32.mrf.mxu0
      %v7191 = vadd.f32 0.0, %v7190
      %7192 = vmatmul.f32.gmra.mxu0 %v7081
      %v7193 = vpop.f32.mrf.mxu0
      %v7194 = vadd.f32 0.0, %v7193
      %7195 = vmatmul.f32.gmra.mxu0 %v7084
      %v7196 = vpop.f32.mrf.mxu0
      %v7197 = vadd.f32 0.0, %v7196
      %7198 = vmatmul.f32.gmra.mxu0 %v7087
      %v7199 = vpop.f32.mrf.mxu0
      %v7200 = vadd.f32 0.0, %v7199
      %7201 = vmatmul.f32.gmra.mxu0 %v7090
      %v7202 = vpop.f32.mrf.mxu0
      %v7203 = vadd.f32 0.0, %v7202
      %7204 = vmatmul.f32.gmra.mxu0 %v7093
      %v7205 = vpop.f32.mrf.mxu0
      %v7206 = vadd.f32 0.0, %v7205
      %7207 = vmatmul.f32.gmra.mxu0 %v7096
      %v7208 = vpop.f32.mrf.mxu0
      %v7209 = vadd.f32 0.0, %v7208
      %7210 = vmatmul.f32.gmra.mxu0 %v7099
      %v7211 = vpop.f32.mrf.mxu0
      %v7212 = vadd.f32 0.0, %v7211
      %7213 = vmatmul.f32.gmra.mxu0 %v7102
      %v7214 = vpop.f32.mrf.mxu0
      %v7215 = vadd.f32 0.0, %v7214
      %7216 = vmatmul.f32.gmra.mxu0 %v7105
      %v7217 = vpop.f32.mrf.mxu0
      %v7218 = vadd.f32 0.0, %v7217
      %7219 = vmatmul.f32.gmra.mxu0 %v7108
      %v7220 = vpop.f32.mrf.mxu0
      %v7221 = vadd.f32 0.0, %v7220
      %7222 = vdwg.mxu0
      %v7223 = vadd.f32 %v6944, %v7128
      %v7224 = vadd.f32 %v6945, %v7131
      %v7225 = vadd.f32 %v6946, %v7134
      %v7226 = vadd.f32 %v6947, %v7137
      %v7227 = vadd.f32 %v6948, %v7140
      %v7228 = vadd.f32 %v6949, %v7143
      %v7229 = vadd.f32 %v6950, %v7146
      %v7230 = vadd.f32 %v6951, %v7149
      %v7231 = vadd.f32 %v6952, %v7152
      %v7232 = vadd.f32 %v6953, %v7155
      %v7233 = vadd.f32 %v6954, %v7158
      %v7234 = vadd.f32 %v6955, %v7161
      %v7235 = vadd.f32 %v6956, %v7164
      %v7236 = vadd.f32 %v6957, %v7167
      %v7237 = vadd.f32 %v6958, %v7170
      %v7238 = vadd.f32 %v6959, %v7173
      %v7239 = vadd.f32 %v6960, %v7176
      %v7240 = vadd.f32 %v6961, %v7179
      %v7241 = vadd.f32 %v6962, %v7182
      %v7242 = vadd.f32 %v6963, %v7185
      %v7243 = vadd.f32 %v6964, %v7188
      %v7244 = vadd.f32 %v6965, %v7191
      %v7245 = vadd.f32 %v6966, %v7194
      %v7246 = vadd.f32 %v6967, %v7197
      %v7247 = vadd.f32 %v6968, %v7200
      %v7248 = vadd.f32 %v6969, %v7203
      %v7249 = vadd.f32 %v6970, %v7206
      %v7250 = vadd.f32 %v6971, %v7209
      %v7251 = vadd.f32 %v6972, %v7212
      %v7252 = vadd.f32 %v6973, %v7215
      %v7253 = vadd.f32 %v6974, %v7218
      %v7254 = vadd.f32 %v6975, %v7221
      %v7255 = vld [vmem:[%s6976 + $0x1] sm:$0xff]
      %v7256 = vld [vmem:[%s6976 + $0x9] sm:$0xff]
      %v7257 = vld [vmem:[%s6976 + $0x19] sm:$0xff]
      %v7258 = vld [vmem:[%s6976 + $0x21] sm:$0xff]
      %v7259 = vld [vmem:[%s6976 + $0x31] sm:$0xff]
      %v7260 = vld [vmem:[%s6976 + $0x39] sm:$0xff]
      %v7261 = vld [vmem:[%s6976 + $0x49] sm:$0xff]
      %v7262 = vld [vmem:[%s6976 + $0x51] sm:$0xff]
      %v7263 = vld [vmem:[%s6976 + $0x61] sm:$0xff]
      %v7264 = vld [vmem:[%s6976 + $0x69] sm:$0xff]
      %v7265 = vld [vmem:[%s6976 + $0x79] sm:$0xff]
      %v7266 = vld [vmem:[%s6976 + $0x81] sm:$0xff]
      %v7267 = vld [vmem:[%s6976 + $0x91] sm:$0xff]
      %v7268 = vld [vmem:[%s6976 + $0x99] sm:$0xff]
      %v7269 = vld [vmem:[%s6976 + $0xa9] sm:$0xff]
      %v7270 = vld [vmem:[%s6976 + $0xb1] sm:$0xff]
      %v7271 = vld [vmem:[%s6976 + $0xc1] sm:$0xff]
      %v7272 = vld [vmem:[%s6976 + $0xc9] sm:$0xff]
      %v7273 = vld [vmem:[%s6976 + $0xd9] sm:$0xff]
      %v7274 = vld [vmem:[%s6976 + $0xe1] sm:$0xff]
      %v7275 = vld [vmem:[%s6976 + $0xf1] sm:$0xff]
      %v7276 = vld [vmem:[%s6976 + $0xf9] sm:$0xff]
      %v7277 = vld [vmem:[%s6976 + $0x109] sm:$0xff]
      %v7278 = vld [vmem:[%s6976 + $0x111] sm:$0xff]
      %v7279 = vld [vmem:[%s6976 + $0x121] sm:$0xff]
      %v7280 = vld [vmem:[%s6976 + $0x129] sm:$0xff]
      %v7281 = vld [vmem:[%s6976 + $0x139] sm:$0xff]
      %v7282 = vld [vmem:[%s6976 + $0x141] sm:$0xff]
      %v7283 = vld [vmem:[%s6976 + $0x151] sm:$0xff]
      %v7284 = vld [vmem:[%s6976 + $0x159] sm:$0xff]
      %v7285 = vld [vmem:[%s6976 + $0x169] sm:$0xff]
      %v7286 = vld [vmem:[%s6976 + $0x171] sm:$0xff]
      %s7287 = scalar_lea.vmem %s12, 224
      %v7288 = vld [vmem:[%s7287] sm:$0xff]
      %v7289 = vld [vmem:[%s7287 + $0x8] sm:$0xff]
      %v7290 = vld [vmem:[%s7287 + $0x10] sm:$0xff]
      %v7291 = vld [vmem:[%s7287 + $0x18] sm:$0xff]
      %v7293 = vsel %vm4184, %v7255, 0
      %v7296 = vsel %vm4184, %v7256, 0
      %v7299 = vsel %vm4184, %v7257, 0
      %v7302 = vsel %vm4184, %v7258, 0
      %v7305 = vsel %vm4184, %v7259, 0
      %v7308 = vsel %vm4184, %v7260, 0
      %v7311 = vsel %vm4184, %v7261, 0
      %v7314 = vsel %vm4184, %v7262, 0
      %v7317 = vsel %vm4184, %v7263, 0
      %v7320 = vsel %vm4184, %v7264, 0
      %v7323 = vsel %vm4184, %v7265, 0
      %v7326 = vsel %vm4184, %v7266, 0
      %v7329 = vsel %vm4184, %v7267, 0
      %v7332 = vsel %vm4184, %v7268, 0
      %v7335 = vsel %vm4184, %v7269, 0
      %v7338 = vsel %vm4184, %v7270, 0
      %v7341 = vsel %vm4184, %v7271, 0
      %v7344 = vsel %vm4184, %v7272, 0
      %v7347 = vsel %vm4184, %v7273, 0
      %v7350 = vsel %vm4184, %v7274, 0
      %v7353 = vsel %vm4184, %v7275, 0
      %v7356 = vsel %vm4184, %v7276, 0
      %v7359 = vsel %vm4184, %v7277, 0
      %v7362 = vsel %vm4184, %v7278, 0
      %v7365 = vsel %vm4184, %v7279, 0
      %v7368 = vsel %vm4184, %v7280, 0
      %v7371 = vsel %vm4184, %v7281, 0
      %v7374 = vsel %vm4184, %v7282, 0
      %v7377 = vsel %vm4184, %v7283, 0
      %v7380 = vsel %vm4184, %v7284, 0
      %v7383 = vsel %vm4184, %v7285, 0
      %v7386 = vsel %vm4184, %v7286, 0
      %7388 = vmatpush.msra.mxu0 0.0
      %7389 = vmatpush.msra.mxu0 0.0
      %7390 = vmatpush.msra.mxu0 0.0
      %7391 = vmatpush.msra.mxu0 0.0
      %7392 = vmatpush.msra.mxu0 0.0
      %7393 = vmatpush.msra.mxu0 0.0
      %7394 = vmatpush.msra.mxu0 0.0
      %7395 = vmatpush.msra.mxu0 0.0
      %7396 = vmatpush.msra.mxu0 0.0
      %7397 = vmatpush.msra.mxu0 0.0
      %7398 = vmatpush.msra.mxu0 0.0
      %7399 = vmatpush.msra.mxu0 0.0
      %7400 = vmatpush.msra.mxu0 %v7291
      %7401 = vmatpush.msra.mxu0 %v7290
      %7402 = vmatpush.msra.mxu0 %v7289
      %7403 = vmatpush.msra.mxu0 %v7288
      %7404 = vmatmul.f32.gmra.mxu0 %v7293
      %v7405 = vpop.f32.mrf.mxu0
      %v7406 = vadd.f32 0.0, %v7405
      %7407 = vmatmul.f32.gmra.mxu0 %v7296
      %v7408 = vpop.f32.mrf.mxu0
      %v7409 = vadd.f32 0.0, %v7408
      %7410 = vmatmul.f32.gmra.mxu0 %v7299
      %v7411 = vpop.f32.mrf.mxu0
      %v7412 = vadd.f32 0.0, %v7411
      %7413 = vmatmul.f32.gmra.mxu0 %v7302
      %v7414 = vpop.f32.mrf.mxu0
      %v7415 = vadd.f32 0.0, %v7414
      %7416 = vmatmul.f32.gmra.mxu0 %v7305
      %v7417 = vpop.f32.mrf.mxu0
      %v7418 = vadd.f32 0.0, %v7417
      %7419 = vmatmul.f32.gmra.mxu0 %v7308
      %v7420 = vpop.f32.mrf.mxu0
      %v7421 = vadd.f32 0.0, %v7420
      %7422 = vmatmul.f32.gmra.mxu0 %v7311
      %v7423 = vpop.f32.mrf.mxu0
      %v7424 = vadd.f32 0.0, %v7423
      %7425 = vmatmul.f32.gmra.mxu0 %v7314
      %v7426 = vpop.f32.mrf.mxu0
      %v7427 = vadd.f32 0.0, %v7426
      %7428 = vmatmul.f32.gmra.mxu0 %v7317
      %v7429 = vpop.f32.mrf.mxu0
      %v7430 = vadd.f32 0.0, %v7429
      %7431 = vmatmul.f32.gmra.mxu0 %v7320
      %v7432 = vpop.f32.mrf.mxu0
      %v7433 = vadd.f32 0.0, %v7432
      %7434 = vmatmul.f32.gmra.mxu0 %v7323
      %v7435 = vpop.f32.mrf.mxu0
      %v7436 = vadd.f32 0.0, %v7435
      %7437 = vmatmul.f32.gmra.mxu0 %v7326
      %v7438 = vpop.f32.mrf.mxu0
      %v7439 = vadd.f32 0.0, %v7438
      %7440 = vmatmul.f32.gmra.mxu0 %v7329
      %v7441 = vpop.f32.mrf.mxu0
      %v7442 = vadd.f32 0.0, %v7441
      %7443 = vmatmul.f32.gmra.mxu0 %v7332
      %v7444 = vpop.f32.mrf.mxu0
      %v7445 = vadd.f32 0.0, %v7444
      %7446 = vmatmul.f32.gmra.mxu0 %v7335
      %v7447 = vpop.f32.mrf.mxu0
      %v7448 = vadd.f32 0.0, %v7447
      %7449 = vmatmul.f32.gmra.mxu0 %v7338
      %v7450 = vpop.f32.mrf.mxu0
      %v7451 = vadd.f32 0.0, %v7450
      %7452 = vmatmul.f32.gmra.mxu0 %v7341
      %v7453 = vpop.f32.mrf.mxu0
      %v7454 = vadd.f32 0.0, %v7453
      %7455 = vmatmul.f32.gmra.mxu0 %v7344
      %v7456 = vpop.f32.mrf.mxu0
      %v7457 = vadd.f32 0.0, %v7456
      %7458 = vmatmul.f32.gmra.mxu0 %v7347
      %v7459 = vpop.f32.mrf.mxu0
      %v7460 = vadd.f32 0.0, %v7459
      %7461 = vmatmul.f32.gmra.mxu0 %v7350
      %v7462 = vpop.f32.mrf.mxu0
      %v7463 = vadd.f32 0.0, %v7462
      %7464 = vmatmul.f32.gmra.mxu0 %v7353
      %v7465 = vpop.f32.mrf.mxu0
      %v7466 = vadd.f32 0.0, %v7465
      %7467 = vmatmul.f32.gmra.mxu0 %v7356
      %v7468 = vpop.f32.mrf.mxu0
      %v7469 = vadd.f32 0.0, %v7468
      %7470 = vmatmul.f32.gmra.mxu0 %v7359
      %v7471 = vpop.f32.mrf.mxu0
      %v7472 = vadd.f32 0.0, %v7471
      %7473 = vmatmul.f32.gmra.mxu0 %v7362
      %v7474 = vpop.f32.mrf.mxu0
      %v7475 = vadd.f32 0.0, %v7474
      %7476 = vmatmul.f32.gmra.mxu0 %v7365
      %v7477 = vpop.f32.mrf.mxu0
      %v7478 = vadd.f32 0.0, %v7477
      %7479 = vmatmul.f32.gmra.mxu0 %v7368
      %v7480 = vpop.f32.mrf.mxu0
      %v7481 = vadd.f32 0.0, %v7480
      %7482 = vmatmul.f32.gmra.mxu0 %v7371
      %v7483 = vpop.f32.mrf.mxu0
      %v7484 = vadd.f32 0.0, %v7483
      %7485 = vmatmul.f32.gmra.mxu0 %v7374
      %v7486 = vpop.f32.mrf.mxu0
      %v7487 = vadd.f32 0.0, %v7486
      %7488 = vmatmul.f32.gmra.mxu0 %v7377
      %v7489 = vpop.f32.mrf.mxu0
      %v7490 = vadd.f32 0.0, %v7489
      %7491 = vmatmul.f32.gmra.mxu0 %v7380
      %v7492 = vpop.f32.mrf.mxu0
      %v7493 = vadd.f32 0.0, %v7492
      %7494 = vmatmul.f32.gmra.mxu0 %v7383
      %v7495 = vpop.f32.mrf.mxu0
      %v7496 = vadd.f32 0.0, %v7495
      %7497 = vmatmul.f32.gmra.mxu0 %v7386
      %v7498 = vpop.f32.mrf.mxu0
      %v7499 = vadd.f32 0.0, %v7498
      %7500 = vdwg.mxu0
      %v7501 = vadd.f32 %v7223, %v7406
      %v7502 = vadd.f32 %v7224, %v7409
      %v7503 = vadd.f32 %v7225, %v7412
      %v7504 = vadd.f32 %v7226, %v7415
      %v7505 = vadd.f32 %v7227, %v7418
      %v7506 = vadd.f32 %v7228, %v7421
      %v7507 = vadd.f32 %v7229, %v7424
      %v7508 = vadd.f32 %v7230, %v7427
      %v7509 = vadd.f32 %v7231, %v7430
      %v7510 = vadd.f32 %v7232, %v7433
      %v7511 = vadd.f32 %v7233, %v7436
      %v7512 = vadd.f32 %v7234, %v7439
      %v7513 = vadd.f32 %v7235, %v7442
      %v7514 = vadd.f32 %v7236, %v7445
      %v7515 = vadd.f32 %v7237, %v7448
      %v7516 = vadd.f32 %v7238, %v7451
      %v7517 = vadd.f32 %v7239, %v7454
      %v7518 = vadd.f32 %v7240, %v7457
      %v7519 = vadd.f32 %v7241, %v7460
      %v7520 = vadd.f32 %v7242, %v7463
      %v7521 = vadd.f32 %v7243, %v7466
      %v7522 = vadd.f32 %v7244, %v7469
      %v7523 = vadd.f32 %v7245, %v7472
      %v7524 = vadd.f32 %v7246, %v7475
      %v7525 = vadd.f32 %v7247, %v7478
      %v7526 = vadd.f32 %v7248, %v7481
      %v7527 = vadd.f32 %v7249, %v7484
      %v7528 = vadd.f32 %v7250, %v7487
      %v7529 = vadd.f32 %v7251, %v7490
      %v7530 = vadd.f32 %v7252, %v7493
      %v7531 = vadd.f32 %v7253, %v7496
      %v7532 = vadd.f32 %v7254, %v7499
      %v7533 = vld [vmem:[%s6976 + $0x2] sm:$0xff]
      %v7534 = vld [vmem:[%s6976 + $0xa] sm:$0xff]
      %v7535 = vld [vmem:[%s6976 + $0x1a] sm:$0xff]
      %v7536 = vld [vmem:[%s6976 + $0x22] sm:$0xff]
      %v7537 = vld [vmem:[%s6976 + $0x32] sm:$0xff]
      %v7538 = vld [vmem:[%s6976 + $0x3a] sm:$0xff]
      %v7539 = vld [vmem:[%s6976 + $0x4a] sm:$0xff]
      %v7540 = vld [vmem:[%s6976 + $0x52] sm:$0xff]
      %v7541 = vld [vmem:[%s6976 + $0x62] sm:$0xff]
      %v7542 = vld [vmem:[%s6976 + $0x6a] sm:$0xff]
      %v7543 = vld [vmem:[%s6976 + $0x7a] sm:$0xff]
      %v7544 = vld [vmem:[%s6976 + $0x82] sm:$0xff]
      %v7545 = vld [vmem:[%s6976 + $0x92] sm:$0xff]
      %v7546 = vld [vmem:[%s6976 + $0x9a] sm:$0xff]
      %v7547 = vld [vmem:[%s6976 + $0xaa] sm:$0xff]
      %v7548 = vld [vmem:[%s6976 + $0xb2] sm:$0xff]
      %v7549 = vld [vmem:[%s6976 + $0xc2] sm:$0xff]
      %v7550 = vld [vmem:[%s6976 + $0xca] sm:$0xff]
      %v7551 = vld [vmem:[%s6976 + $0xda] sm:$0xff]
      %v7552 = vld [vmem:[%s6976 + $0xe2] sm:$0xff]
      %v7553 = vld [vmem:[%s6976 + $0xf2] sm:$0xff]
      %v7554 = vld [vmem:[%s6976 + $0xfa] sm:$0xff]
      %v7555 = vld [vmem:[%s6976 + $0x10a] sm:$0xff]
      %v7556 = vld [vmem:[%s6976 + $0x112] sm:$0xff]
      %v7557 = vld [vmem:[%s6976 + $0x122] sm:$0xff]
      %v7558 = vld [vmem:[%s6976 + $0x12a] sm:$0xff]
      %v7559 = vld [vmem:[%s6976 + $0x13a] sm:$0xff]
      %v7560 = vld [vmem:[%s6976 + $0x142] sm:$0xff]
      %v7561 = vld [vmem:[%s6976 + $0x152] sm:$0xff]
      %v7562 = vld [vmem:[%s6976 + $0x15a] sm:$0xff]
      %v7563 = vld [vmem:[%s6976 + $0x16a] sm:$0xff]
      %v7564 = vld [vmem:[%s6976 + $0x172] sm:$0xff]
      %s7565 = scalar_lea.vmem %s12, 256
      %v7566 = vld [vmem:[%s7565] sm:$0xff]
      %v7567 = vld [vmem:[%s7565 + $0x8] sm:$0xff]
      %v7568 = vld [vmem:[%s7565 + $0x10] sm:$0xff]
      %v7569 = vld [vmem:[%s7565 + $0x18] sm:$0xff]
      %v7571 = vsel %vm4184, %v7533, 0
      %v7574 = vsel %vm4184, %v7534, 0
      %v7577 = vsel %vm4184, %v7535, 0
      %v7580 = vsel %vm4184, %v7536, 0
      %v7583 = vsel %vm4184, %v7537, 0
      %v7586 = vsel %vm4184, %v7538, 0
      %v7589 = vsel %vm4184, %v7539, 0
      %v7592 = vsel %vm4184, %v7540, 0
      %v7595 = vsel %vm4184, %v7541, 0
      %v7598 = vsel %vm4184, %v7542, 0
      %v7601 = vsel %vm4184, %v7543, 0
      %v7604 = vsel %vm4184, %v7544, 0
      %v7607 = vsel %vm4184, %v7545, 0
      %v7610 = vsel %vm4184, %v7546, 0
      %v7613 = vsel %vm4184, %v7547, 0
      %v7616 = vsel %vm4184, %v7548, 0
      %v7619 = vsel %vm4184, %v7549, 0
      %v7622 = vsel %vm4184, %v7550, 0
      %v7625 = vsel %vm4184, %v7551, 0
      %v7628 = vsel %vm4184, %v7552, 0
      %v7631 = vsel %vm4184, %v7553, 0
      %v7634 = vsel %vm4184, %v7554, 0
      %v7637 = vsel %vm4184, %v7555, 0
      %v7640 = vsel %vm4184, %v7556, 0
      %v7643 = vsel %vm4184, %v7557, 0
      %v7646 = vsel %vm4184, %v7558, 0
      %v7649 = vsel %vm4184, %v7559, 0
      %v7652 = vsel %vm4184, %v7560, 0
      %v7655 = vsel %vm4184, %v7561, 0
      %v7658 = vsel %vm4184, %v7562, 0
      %v7661 = vsel %vm4184, %v7563, 0
      %v7664 = vsel %vm4184, %v7564, 0
      %7666 = vmatpush.msra.mxu0 0.0
      %7667 = vmatpush.msra.mxu0 0.0
      %7668 = vmatpush.msra.mxu0 0.0
      %7669 = vmatpush.msra.mxu0 0.0
      %7670 = vmatpush.msra.mxu0 0.0
      %7671 = vmatpush.msra.mxu0 0.0
      %7672 = vmatpush.msra.mxu0 0.0
      %7673 = vmatpush.msra.mxu0 0.0
      %7674 = vmatpush.msra.mxu0 0.0
      %7675 = vmatpush.msra.mxu0 0.0
      %7676 = vmatpush.msra.mxu0 0.0
      %7677 = vmatpush.msra.mxu0 0.0
      %7678 = vmatpush.msra.mxu0 %v7569
      %7679 = vmatpush.msra.mxu0 %v7568
      %7680 = vmatpush.msra.mxu0 %v7567
      %7681 = vmatpush.msra.mxu0 %v7566
      %7682 = vmatmul.f32.gmra.mxu0 %v7571
      %v7683 = vpop.f32.mrf.mxu0
      %v7684 = vadd.f32 0.0, %v7683
      %7685 = vmatmul.f32.gmra.mxu0 %v7574
      %v7686 = vpop.f32.mrf.mxu0
      %v7687 = vadd.f32 0.0, %v7686
      %7688 = vmatmul.f32.gmra.mxu0 %v7577
      %v7689 = vpop.f32.mrf.mxu0
      %v7690 = vadd.f32 0.0, %v7689
      %7691 = vmatmul.f32.gmra.mxu0 %v7580
      %v7692 = vpop.f32.mrf.mxu0
      %v7693 = vadd.f32 0.0, %v7692
      %7694 = vmatmul.f32.gmra.mxu0 %v7583
      %v7695 = vpop.f32.mrf.mxu0
      %v7696 = vadd.f32 0.0, %v7695
      %7697 = vmatmul.f32.gmra.mxu0 %v7586
      %v7698 = vpop.f32.mrf.mxu0
      %v7699 = vadd.f32 0.0, %v7698
      %7700 = vmatmul.f32.gmra.mxu0 %v7589
      %v7701 = vpop.f32.mrf.mxu0
      %v7702 = vadd.f32 0.0, %v7701
      %7703 = vmatmul.f32.gmra.mxu0 %v7592
      %v7704 = vpop.f32.mrf.mxu0
      %v7705 = vadd.f32 0.0, %v7704
      %7706 = vmatmul.f32.gmra.mxu0 %v7595
      %v7707 = vpop.f32.mrf.mxu0
      %v7708 = vadd.f32 0.0, %v7707
      %7709 = vmatmul.f32.gmra.mxu0 %v7598
      %v7710 = vpop.f32.mrf.mxu0
      %v7711 = vadd.f32 0.0, %v7710
      %7712 = vmatmul.f32.gmra.mxu0 %v7601
      %v7713 = vpop.f32.mrf.mxu0
      %v7714 = vadd.f32 0.0, %v7713
      %7715 = vmatmul.f32.gmra.mxu0 %v7604
      %v7716 = vpop.f32.mrf.mxu0
      %v7717 = vadd.f32 0.0, %v7716
      %7718 = vmatmul.f32.gmra.mxu0 %v7607
      %v7719 = vpop.f32.mrf.mxu0
      %v7720 = vadd.f32 0.0, %v7719
      %7721 = vmatmul.f32.gmra.mxu0 %v7610
      %v7722 = vpop.f32.mrf.mxu0
      %v7723 = vadd.f32 0.0, %v7722
      %7724 = vmatmul.f32.gmra.mxu0 %v7613
      %v7725 = vpop.f32.mrf.mxu0
      %v7726 = vadd.f32 0.0, %v7725
      %7727 = vmatmul.f32.gmra.mxu0 %v7616
      %v7728 = vpop.f32.mrf.mxu0
      %v7729 = vadd.f32 0.0, %v7728
      %7730 = vmatmul.f32.gmra.mxu0 %v7619
      %v7731 = vpop.f32.mrf.mxu0
      %v7732 = vadd.f32 0.0, %v7731
      %7733 = vmatmul.f32.gmra.mxu0 %v7622
      %v7734 = vpop.f32.mrf.mxu0
      %v7735 = vadd.f32 0.0, %v7734
      %7736 = vmatmul.f32.gmra.mxu0 %v7625
      %v7737 = vpop.f32.mrf.mxu0
      %v7738 = vadd.f32 0.0, %v7737
      %7739 = vmatmul.f32.gmra.mxu0 %v7628
      %v7740 = vpop.f32.mrf.mxu0
      %v7741 = vadd.f32 0.0, %v7740
      %7742 = vmatmul.f32.gmra.mxu0 %v7631
      %v7743 = vpop.f32.mrf.mxu0
      %v7744 = vadd.f32 0.0, %v7743
      %7745 = vmatmul.f32.gmra.mxu0 %v7634
      %v7746 = vpop.f32.mrf.mxu0
      %v7747 = vadd.f32 0.0, %v7746
      %7748 = vmatmul.f32.gmra.mxu0 %v7637
      %v7749 = vpop.f32.mrf.mxu0
      %v7750 = vadd.f32 0.0, %v7749
      %7751 = vmatmul.f32.gmra.mxu0 %v7640
      %v7752 = vpop.f32.mrf.mxu0
      %v7753 = vadd.f32 0.0, %v7752
      %7754 = vmatmul.f32.gmra.mxu0 %v7643
      %v7755 = vpop.f32.mrf.mxu0
      %v7756 = vadd.f32 0.0, %v7755
      %7757 = vmatmul.f32.gmra.mxu0 %v7646
      %v7758 = vpop.f32.mrf.mxu0
      %v7759 = vadd.f32 0.0, %v7758
      %7760 = vmatmul.f32.gmra.mxu0 %v7649
      %v7761 = vpop.f32.mrf.mxu0
      %v7762 = vadd.f32 0.0, %v7761
      %7763 = vmatmul.f32.gmra.mxu0 %v7652
      %v7764 = vpop.f32.mrf.mxu0
      %v7765 = vadd.f32 0.0, %v7764
      %7766 = vmatmul.f32.gmra.mxu0 %v7655
      %v7767 = vpop.f32.mrf.mxu0
      %v7768 = vadd.f32 0.0, %v7767
      %7769 = vmatmul.f32.gmra.mxu0 %v7658
      %v7770 = vpop.f32.mrf.mxu0
      %v7771 = vadd.f32 0.0, %v7770
      %7772 = vmatmul.f32.gmra.mxu0 %v7661
      %v7773 = vpop.f32.mrf.mxu0
      %v7774 = vadd.f32 0.0, %v7773
      %7775 = vmatmul.f32.gmra.mxu0 %v7664
      %v7776 = vpop.f32.mrf.mxu0
      %v7777 = vadd.f32 0.0, %v7776
      %7778 = vdwg.mxu0
      %v7779 = vadd.f32 %v7501, %v7684
      %v7780 = vadd.f32 %v7502, %v7687
      %v7781 = vadd.f32 %v7503, %v7690
      %v7782 = vadd.f32 %v7504, %v7693
      %v7783 = vadd.f32 %v7505, %v7696
      %v7784 = vadd.f32 %v7506, %v7699
      %v7785 = vadd.f32 %v7507, %v7702
      %v7786 = vadd.f32 %v7508, %v7705
      %v7787 = vadd.f32 %v7509, %v7708
      %v7788 = vadd.f32 %v7510, %v7711
      %v7789 = vadd.f32 %v7511, %v7714
      %v7790 = vadd.f32 %v7512, %v7717
      %v7791 = vadd.f32 %v7513, %v7720
      %v7792 = vadd.f32 %v7514, %v7723
      %v7793 = vadd.f32 %v7515, %v7726
      %v7794 = vadd.f32 %v7516, %v7729
      %v7795 = vadd.f32 %v7517, %v7732
      %v7796 = vadd.f32 %v7518, %v7735
      %v7797 = vadd.f32 %v7519, %v7738
      %v7798 = vadd.f32 %v7520, %v7741
      %v7799 = vadd.f32 %v7521, %v7744
      %v7800 = vadd.f32 %v7522, %v7747
      %v7801 = vadd.f32 %v7523, %v7750
      %v7802 = vadd.f32 %v7524, %v7753
      %v7803 = vadd.f32 %v7525, %v7756
      %v7804 = vadd.f32 %v7526, %v7759
      %v7805 = vadd.f32 %v7527, %v7762
      %v7806 = vadd.f32 %v7528, %v7765
      %v7807 = vadd.f32 %v7529, %v7768
      %v7808 = vadd.f32 %v7530, %v7771
      %v7809 = vadd.f32 %v7531, %v7774
      %v7810 = vadd.f32 %v7532, %v7777
      %v7811 = vld [vmem:[%s13] sm:$0x1]
      %v7813 = vperm.slane %v7811, 0
      %v7815 = vadd.f32 %v7779, %v7813
      %v7816 = vadd.f32 %v7780, %v7813
      %v7817 = vadd.f32 %v7781, %v7813
      %v7818 = vadd.f32 %v7782, %v7813
      %v7819 = vadd.f32 %v7783, %v7813
      %v7820 = vadd.f32 %v7784, %v7813
      %v7821 = vadd.f32 %v7785, %v7813
      %v7822 = vadd.f32 %v7786, %v7813
      %v7823 = vadd.f32 %v7787, %v7813
      %v7824 = vadd.f32 %v7788, %v7813
      %v7825 = vadd.f32 %v7789, %v7813
      %v7826 = vadd.f32 %v7790, %v7813
      %v7827 = vadd.f32 %v7791, %v7813
      %v7828 = vadd.f32 %v7792, %v7813
      %v7829 = vadd.f32 %v7793, %v7813
      %v7830 = vadd.f32 %v7794, %v7813
      %v7831 = vadd.f32 %v7795, %v7813
      %v7832 = vadd.f32 %v7796, %v7813
      %v7833 = vadd.f32 %v7797, %v7813
      %v7834 = vadd.f32 %v7798, %v7813
      %v7835 = vadd.f32 %v7799, %v7813
      %v7836 = vadd.f32 %v7800, %v7813
      %v7837 = vadd.f32 %v7801, %v7813
      %v7838 = vadd.f32 %v7802, %v7813
      %v7839 = vadd.f32 %v7803, %v7813
      %v7840 = vadd.f32 %v7804, %v7813
      %v7841 = vadd.f32 %v7805, %v7813
      %v7842 = vadd.f32 %v7806, %v7813
      %v7843 = vadd.f32 %v7807, %v7813
      %v7844 = vadd.f32 %v7808, %v7813
      %v7845 = vadd.f32 %v7809, %v7813
      %v7846 = vadd.f32 %v7810, %v7813
      %v7847 = vld [vmem:[%s14] sm:$0xff]
      %v7848 = vld [vmem:[%s14 + $0x8] sm:$0xff]
      %v7849 = vld [vmem:[%s14 + $0x10] sm:$0xff]
      %v7850 = vld [vmem:[%s14 + $0x18] sm:$0xff]
      %v7851 = vld [vmem:[%s14 + $0x20] sm:$0xff]
      %v7852 = vld [vmem:[%s14 + $0x28] sm:$0xff]
      %v7853 = vld [vmem:[%s15] sm:$0x1]
      %v7855 = vperm.slane %v7853, 0
      %v7858 = vsel %vm576, %v536, 0
      %v7861 = vsel %vm576, %v537, 0
      %v7864 = vsel %vm576, %v538, 0
      %v7867 = vsel %vm576, %v539, 0
      %v7870 = vsel %vm576, %v540, 0
      %v7873 = vsel %vm576, %v541, 0
      %v7876 = vsel %vm576, %v542, 0
      %v7879 = vsel %vm576, %v543, 0
      %v7882 = vsel %vm576, %v544, 0
      %v7885 = vsel %vm576, %v545, 0
      %v7888 = vsel %vm576, %v546, 0
      %v7891 = vsel %vm576, %v547, 0
      %v7894 = vsel %vm576, %v548, 0
      %v7897 = vsel %vm576, %v549, 0
      %v7900 = vsel %vm576, %v550, 0
      %v7903 = vsel %vm576, %v551, 0
      %v7906 = vsel %vm576, %v552, 0
      %v7909 = vsel %vm576, %v553, 0
      %v7912 = vsel %vm576, %v554, 0
      %v7915 = vsel %vm576, %v555, 0
      %v7918 = vsel %vm576, %v556, 0
      %v7921 = vsel %vm576, %v557, 0
      %v7924 = vsel %vm576, %v558, 0
      %v7927 = vsel %vm576, %v559, 0
      %v7930 = vsel %vm576, %v560, 0
      %v7933 = vsel %vm576, %v561, 0
      %v7936 = vsel %vm576, %v562, 0
      %v7939 = vsel %vm576, %v563, 0
      %v7942 = vsel %vm576, %v564, 0
      %v7945 = vsel %vm576, %v565, 0
      %v7948 = vsel %vm576, %v566, 0
      %v7951 = vsel %vm576, %v567, 0
      %7953 = vmatpush.msra.mxu0 0.0
      %7954 = vmatpush.msra.mxu0 0.0
      %7955 = vmatpush.msra.mxu0 0.0
      %7956 = vmatpush.msra.mxu0 0.0
      %7957 = vmatpush.msra.mxu0 0.0
      %7958 = vmatpush.msra.mxu0 0.0
      %7959 = vmatpush.msra.mxu0 0.0
      %7960 = vmatpush.msra.mxu0 0.0
      %7961 = vmatpush.msra.mxu0 0.0
      %7962 = vmatpush.msra.mxu0 0.0
      %7963 = vmatpush.msra.mxu0 %v7852
      %7964 = vmatpush.msra.mxu0 %v7851
      %7965 = vmatpush.msra.mxu0 %v7850
      %7966 = vmatpush.msra.mxu0 %v7849
      %7967 = vmatpush.msra.mxu0 %v7848
      %7968 = vmatpush.msra.mxu0 %v7847
      %7969 = vmatmul.f32.gmra.mxu0 %v7858
      %v7970 = vpop.f32.mrf.mxu0
      %v7971 = vadd.f32 %v7855, %v7970
      %7972 = vmatmul.f32.gmra.mxu0 %v7861
      %v7973 = vpop.f32.mrf.mxu0
      %v7974 = vadd.f32 %v7855, %v7973
      %7975 = vmatmul.f32.gmra.mxu0 %v7864
      %v7976 = vpop.f32.mrf.mxu0
      %v7977 = vadd.f32 %v7855, %v7976
      %7978 = vmatmul.f32.gmra.mxu0 %v7867
      %v7979 = vpop.f32.mrf.mxu0
      %v7980 = vadd.f32 %v7855, %v7979
      %7981 = vmatmul.f32.gmra.mxu0 %v7870
      %v7982 = vpop.f32.mrf.mxu0
      %v7983 = vadd.f32 %v7855, %v7982
      %7984 = vmatmul.f32.gmra.mxu0 %v7873
      %v7985 = vpop.f32.mrf.mxu0
      %v7986 = vadd.f32 %v7855, %v7985
      %7987 = vmatmul.f32.gmra.mxu0 %v7876
      %v7988 = vpop.f32.mrf.mxu0
      %v7989 = vadd.f32 %v7855, %v7988
      %7990 = vmatmul.f32.gmra.mxu0 %v7879
      %v7991 = vpop.f32.mrf.mxu0
      %v7992 = vadd.f32 %v7855, %v7991
      %7993 = vmatmul.f32.gmra.mxu0 %v7882
      %v7994 = vpop.f32.mrf.mxu0
      %v7995 = vadd.f32 %v7855, %v7994
      %7996 = vmatmul.f32.gmra.mxu0 %v7885
      %v7997 = vpop.f32.mrf.mxu0
      %v7998 = vadd.f32 %v7855, %v7997
      %7999 = vmatmul.f32.gmra.mxu0 %v7888
      %v8000 = vpop.f32.mrf.mxu0
      %v8001 = vadd.f32 %v7855, %v8000
      %8002 = vmatmul.f32.gmra.mxu0 %v7891
      %v8003 = vpop.f32.mrf.mxu0
      %v8004 = vadd.f32 %v7855, %v8003
      %8005 = vmatmul.f32.gmra.mxu0 %v7894
      %v8006 = vpop.f32.mrf.mxu0
      %v8007 = vadd.f32 %v7855, %v8006
      %8008 = vmatmul.f32.gmra.mxu0 %v7897
      %v8009 = vpop.f32.mrf.mxu0
      %v8010 = vadd.f32 %v7855, %v8009
      %8011 = vmatmul.f32.gmra.mxu0 %v7900
      %v8012 = vpop.f32.mrf.mxu0
      %v8013 = vadd.f32 %v7855, %v8012
      %8014 = vmatmul.f32.gmra.mxu0 %v7903
      %v8015 = vpop.f32.mrf.mxu0
      %v8016 = vadd.f32 %v7855, %v8015
      %8017 = vmatmul.f32.gmra.mxu0 %v7906
      %v8018 = vpop.f32.mrf.mxu0
      %v8019 = vadd.f32 %v7855, %v8018
      %8020 = vmatmul.f32.gmra.mxu0 %v7909
      %v8021 = vpop.f32.mrf.mxu0
      %v8022 = vadd.f32 %v7855, %v8021
      %8023 = vmatmul.f32.gmra.mxu0 %v7912
      %v8024 = vpop.f32.mrf.mxu0
      %v8025 = vadd.f32 %v7855, %v8024
      %8026 = vmatmul.f32.gmra.mxu0 %v7915
      %v8027 = vpop.f32.mrf.mxu0
      %v8028 = vadd.f32 %v7855, %v8027
      %8029 = vmatmul.f32.gmra.mxu0 %v7918
      %v8030 = vpop.f32.mrf.mxu0
      %v8031 = vadd.f32 %v7855, %v8030
      %8032 = vmatmul.f32.gmra.mxu0 %v7921
      %v8033 = vpop.f32.mrf.mxu0
      %v8034 = vadd.f32 %v7855, %v8033
      %8035 = vmatmul.f32.gmra.mxu0 %v7924
      %v8036 = vpop.f32.mrf.mxu0
      %v8037 = vadd.f32 %v7855, %v8036
      %8038 = vmatmul.f32.gmra.mxu0 %v7927
      %v8039 = vpop.f32.mrf.mxu0
      %v8040 = vadd.f32 %v7855, %v8039
      %8041 = vmatmul.f32.gmra.mxu0 %v7930
      %v8042 = vpop.f32.mrf.mxu0
      %v8043 = vadd.f32 %v7855, %v8042
      %8044 = vmatmul.f32.gmra.mxu0 %v7933
      %v8045 = vpop.f32.mrf.mxu0
      %v8046 = vadd.f32 %v7855, %v8045
      %8047 = vmatmul.f32.gmra.mxu0 %v7936
      %v8048 = vpop.f32.mrf.mxu0
      %v8049 = vadd.f32 %v7855, %v8048
      %8050 = vmatmul.f32.gmra.mxu0 %v7939
      %v8051 = vpop.f32.mrf.mxu0
      %v8052 = vadd.f32 %v7855, %v8051
      %8053 = vmatmul.f32.gmra.mxu0 %v7942
      %v8054 = vpop.f32.mrf.mxu0
      %v8055 = vadd.f32 %v7855, %v8054
      %8056 = vmatmul.f32.gmra.mxu0 %v7945
      %v8057 = vpop.f32.mrf.mxu0
      %v8058 = vadd.f32 %v7855, %v8057
      %8059 = vmatmul.f32.gmra.mxu0 %v7948
      %v8060 = vpop.f32.mrf.mxu0
      %v8061 = vadd.f32 %v7855, %v8060
      %8062 = vmatmul.f32.gmra.mxu0 %v7951
      %v8063 = vpop.f32.mrf.mxu0
      %v8064 = vadd.f32 %v7855, %v8063
      %8065 = vdwg.mxu0
      %v8066 = vadd.f32 %v7971, %v7815
      %v8067 = vadd.f32 %v7974, %v7816
      %v8068 = vadd.f32 %v7977, %v7817
      %v8069 = vadd.f32 %v7980, %v7818
      %v8070 = vadd.f32 %v7983, %v7819
      %v8071 = vadd.f32 %v7986, %v7820
      %v8072 = vadd.f32 %v7989, %v7821
      %v8073 = vadd.f32 %v7992, %v7822
      %v8074 = vadd.f32 %v7995, %v7823
      %v8075 = vadd.f32 %v7998, %v7824
      %v8076 = vadd.f32 %v8001, %v7825
      %v8077 = vadd.f32 %v8004, %v7826
      %v8078 = vadd.f32 %v8007, %v7827
      %v8079 = vadd.f32 %v8010, %v7828
      %v8080 = vadd.f32 %v8013, %v7829
      %v8081 = vadd.f32 %v8016, %v7830
      %v8082 = vadd.f32 %v8019, %v7831
      %v8083 = vadd.f32 %v8022, %v7832
      %v8084 = vadd.f32 %v8025, %v7833
      %v8085 = vadd.f32 %v8028, %v7834
      %v8086 = vadd.f32 %v8031, %v7835
      %v8087 = vadd.f32 %v8034, %v7836
      %v8088 = vadd.f32 %v8037, %v7837
      %v8089 = vadd.f32 %v8040, %v7838
      %v8090 = vadd.f32 %v8043, %v7839
      %v8091 = vadd.f32 %v8046, %v7840
      %v8092 = vadd.f32 %v8049, %v7841
      %v8093 = vadd.f32 %v8052, %v7842
      %v8094 = vadd.f32 %v8055, %v7843
      %v8095 = vadd.f32 %v8058, %v7844
      %v8096 = vadd.f32 %v8061, %v7845
      %v8097 = vadd.f32 %v8064, %v7846
      %8098 = vst.msk [vmem:[%s535] sm:$0xff] %vm4184, %v8066
      %8099 = vst.msk [vmem:[%s535 + $0x8] sm:$0xff] %vm4184, %v8067
      %8100 = vst.msk [vmem:[%s535 + $0x10] sm:$0xff] %vm4184, %v8068
      %8101 = vst.msk [vmem:[%s535 + $0x18] sm:$0xff] %vm4184, %v8069
      %8102 = vst.msk [vmem:[%s535 + $0x20] sm:$0xff] %vm4184, %v8070
      %8103 = vst.msk [vmem:[%s535 + $0x28] sm:$0xff] %vm4184, %v8071
      %8104 = vst.msk [vmem:[%s535 + $0x30] sm:$0xff] %vm4184, %v8072
      %8105 = vst.msk [vmem:[%s535 + $0x38] sm:$0xff] %vm4184, %v8073
      %8106 = vst.msk [vmem:[%s535 + $0x40] sm:$0xff] %vm4184, %v8074
      %8107 = vst.msk [vmem:[%s535 + $0x48] sm:$0xff] %vm4184, %v8075
      %8108 = vst.msk [vmem:[%s535 + $0x50] sm:$0xff] %vm4184, %v8076
      %8109 = vst.msk [vmem:[%s535 + $0x58] sm:$0xff] %vm4184, %v8077
      %8110 = vst.msk [vmem:[%s535 + $0x60] sm:$0xff] %vm4184, %v8078
      %8111 = vst.msk [vmem:[%s535 + $0x68] sm:$0xff] %vm4184, %v8079
      %8112 = vst.msk [vmem:[%s535 + $0x70] sm:$0xff] %vm4184, %v8080
      %8113 = vst.msk [vmem:[%s535 + $0x78] sm:$0xff] %vm4184, %v8081
      %8114 = vst.msk [vmem:[%s535 + $0x80] sm:$0xff] %vm4184, %v8082
      %8115 = vst.msk [vmem:[%s535 + $0x88] sm:$0xff] %vm4184, %v8083
      %8116 = vst.msk [vmem:[%s535 + $0x90] sm:$0xff] %vm4184, %v8084
      %8117 = vst.msk [vmem:[%s535 + $0x98] sm:$0xff] %vm4184, %v8085
      %8118 = vst.msk [vmem:[%s535 + $0xa0] sm:$0xff] %vm4184, %v8086
      %8119 = vst.msk [vmem:[%s535 + $0xa8] sm:$0xff] %vm4184, %v8087
      %8120 = vst.msk [vmem:[%s535 + $0xb0] sm:$0xff] %vm4184, %v8088
      %8121 = vst.msk [vmem:[%s535 + $0xb8] sm:$0xff] %vm4184, %v8089
      %8122 = vst.msk [vmem:[%s535 + $0xc0] sm:$0xff] %vm4184, %v8090
      %8123 = vst.msk [vmem:[%s535 + $0xc8] sm:$0xff] %vm4184, %v8091
      %8124 = vst.msk [vmem:[%s535 + $0xd0] sm:$0xff] %vm4184, %v8092
      %8125 = vst.msk [vmem:[%s535 + $0xd8] sm:$0xff] %vm4184, %v8093
      %8126 = vst.msk [vmem:[%s535 + $0xe0] sm:$0xff] %vm4184, %v8094
      %8127 = vst.msk [vmem:[%s535 + $0xe8] sm:$0xff] %vm4184, %v8095
      %8128 = vst.msk [vmem:[%s535 + $0xf0] sm:$0xff] %vm4184, %v8096
      %8129 = vst.msk [vmem:[%s535 + $0xf8] sm:$0xff] %vm4184, %v8097
      %p8130 = scmp.lt.s32.totalorder %s27, 1
      %s8131 = scalar_select %p8130, %s27, 1
      %s8132 = smul.addr %s8131, 32
      %s8133 = smul.addr %s8132, 8
      %s8134 = scalar_lea.vmem %s16, %s8133
      // Predicated region
      $region85: #{tpu_custom_call.1} parent=83 // pred_check
        %p8135 = pneg %p391
      $region86: #{tpu_custom_call.1} parent=83 // pred_check_branch
        %8137 = sbr.rel (%p8135) target = $region88
      $region87: #{tpu_custom_call.1} parent=83 // pred_region
        _
      $region88: #{tpu_custom_call.1} parent=83 // pred_fallthru
        _
    $region84: #{tpu_custom_call.1} parent=5 // pred_fallthru
      _
    %p8138 = scmp.le.s32.totalorder 2, %s22
    // Predicated region
    $region89: #{tpu_custom_call.1} parent=5 // pred_check
      %p8139 = pneg %p8138
    $region90: #{tpu_custom_call.1} parent=5 // pred_check_branch
      %8141 = sbr.rel (%p8139) target = $region92
    $region91: #{tpu_custom_call.1} parent=5 // pred_region
      %s8142 = ssub.s32 %s22, 2
      // Predicated region
      $region93: #{tpu_custom_call.1} parent=91 // pred_check
        %p8143 = pneg %p397
      $region94: #{tpu_custom_call.1} parent=91 // pred_check_branch
        %8145 = sbr.rel (%p8143) target = $region96
      $region95: #{tpu_custom_call.1} parent=91 // pred_region
        %p8146 = scmp.lt.s32.totalorder %s28, 1
        %s8147 = scalar_select %p8146, %s28, 1
        %s8148 = smul.addr %s8147, 32
        %s8149 = smul.addr %s8148, 8
        %s8150 = scalar_lea.vmem %s16, %s8149
      $region96: #{tpu_custom_call.1} parent=91 // pred_fallthru
        _
    $region92: #{tpu_custom_call.1} parent=5 // pred_fallthru
      _
  $region6: #{tpu_custom_call.1} parent=0 // loop_footer
    %s26 = sadd.s32 1, %s22
  $region7: #{tpu_custom_call.1} parent=0 // loop_footer_branch
    %21 = sbr.rel target = $region3
  $region8: #{tpu_custom_call.1} parent=0 // loop_exit
    _

</llo_original>
